<compile_context>
chip_gen: v7x
topology: tpu7x:2x2x1
jax: 0.10.0
libtpu: 0.0.40
codegen_flags: <defaults>
</compile_context>

<pallas_src>
import jax
import jax.numpy as jnp
from jax.experimental import pallas as pl
from jax.experimental.pallas import tpu as pltpu

HIDDEN = 768          # hardcoded in the PyTorch module (nn.Linear(768+feat_sz, 768))
VOCAB = 1024          # synthetic vocab for the embedding stand-in (multiple of 128)
ROW_TILE = 256        # rows (B*S chunks) per grid step

_COMPILER_PARAMS = pltpu.CompilerParams(
    dimension_semantics=("parallel",),        # megacore sharding on v7x; no-op v5e/v6e
    vmem_limit_bytes=48 * 1024 * 1024,        # well under v7x's 64 MiB, >> actual usage
)


def _round_up(x, m):
    return (x + m - 1) // m * m


def _pick_tile(m):
    return min(ROW_TILE, _round_up(m, 8))


# ---------------------------------------------------------------------------
# Kernel bodies
# ---------------------------------------------------------------------------
def _pooled_rows(ids_ref, mask_ref, table_ref, wp_ref, bp_ref):
    """In-kernel gather + masked mean + tanh pooler (stand-in for BERT pooled_output).

    Gather/mask/sum is one MXU matmul: counts[m, v] = sum_c mask[m, c] * (ids[m, c]==v),
    masked_sum = counts @ table.
    """
    ids = ids_ref[...]                                   # [TM, C] int32
    mask = mask_ref[...]                                 # [TM, C] f32
    tm, c_dim = ids.shape
    vocab = table_ref.shape[0]

    vocab_iota = jax.lax.broadcasted_iota(jnp.int32, (tm, vocab), 1)
    counts = jnp.zeros((tm, vocab), jnp.float32)
    for c in range(c_dim):                               # static, small (max_chunk_len)
        counts = counts + jnp.where(ids[:, c:c + 1] == vocab_iota,
                                    mask[:, c:c + 1], 0.0)

    masked_sum = jnp.dot(counts.astype(jnp.bfloat16), table_ref[...],
                         preferred_element_type=jnp.float32)          # [TM, H]

    # all-zero attention mask -> clamp count to 1 (pooled = tanh(b_pool)); the PyTorch
    # reference would hit 0/0 there, so callers are expected to keep >=1 valid token.
    cnt = jnp.maximum(jnp.sum(mask, axis=1, keepdims=True), 1.0)      # [TM, 1]
    mean = masked_sum * (1.0 / cnt)                                   # exact divide
    pooled = jnp.tanh(
        jnp.dot(mean.astype(jnp.bfloat16), wp_ref[...],
                preferred_element_type=jnp.float32) + bp_ref[...])
    return pooled                                                     # [TM, H] f32


def _fused_kernel(ids_ref, mask_ref, valid_ref, table_ref, wp_ref, bp_ref,
                  wj_ref, bj_ref, out_ref):
    """Pooler + fused seq-length mask + projection Linear(768, 768)."""
    pooled = _pooled_rows(ids_ref, mask_ref, table_ref, wp_ref, bp_ref)
    pooled = pooled * valid_ref[...]           # rows past x_len -> projection(0)==b_proj
    out = jnp.dot(pooled.astype(jnp.bfloat16), wj_ref[...],
                  preferred_element_type=jnp.float32) + bj_ref[...]
    out_ref[...] = out.astype(out_ref.dtype)


def _fused_feats_kernel(ids_ref, mask_ref, valid_ref, feats_ref, table_ref,
                        wp_ref, bp_ref, wj_ref, wjf_ref, bj_ref, out_ref):
    """use_features=True path: concat is replaced by a row-split of w_proj."""
    pooled = _pooled_rows(ids_ref, mask_ref, table_ref, wp_ref, bp_ref)
    pooled = pooled * valid_ref[...]
    out = (jnp.dot(pooled.astype(jnp.bfloat16), wj_ref[...],
                   preferred_element_type=jnp.float32)
           + jnp.dot(feats_ref[...].astype(jnp.bfloat16), wjf_ref[...],
                     preferred_element_type=jnp.float32)
           + bj_ref[...])
    out_ref[...] = out.astype(out_ref.dtype)


# ---------------------------------------------------------------------------
# pallas_call wrapper (row-tiled grid, VMEM-resident table/weights)
# ---------------------------------------------------------------------------
def fused_bert_features(ids, mask, valid, table, w_pool, b_pool, w_proj, b_proj,
                        feats=None, w_proj_feat=None):
    """ids/mask: [M, C], valid: [M, 1] -> [M, 768] f32 (pool + seqmask + proj fused)."""
    M, C = ids.shape
    V, H = table.shape
    TM = _pick_tile(M)
    M_pad = _round_up(M, TM)
    if M_pad != M:
        pad = ((0, M_pad - M), (0, 0))      # only the tiny int/f32 row arrays get padded
        ids = jnp.pad(ids, pad)
        mask = jnp.pad(mask, pad)
        valid = jnp.pad(valid, pad)
        if feats is not None:
            feats = jnp.pad(feats, pad)

    def row_tile(shape):
        return pl.BlockSpec(shape, lambda i: (i, 0))

    def resident(shape):
        return pl.BlockSpec(shape, lambda i: (0, 0))

    common_in = [row_tile((TM, C)),     # ids
                 row_tile((TM, C)),     # attention mask
                 row_tile((TM, 1))]     # seq-length validity
    weights_in = [resident((V, H)),     # embedding table (VMEM-resident)
                  resident((H, H)),     # w_pool
                  resident((1, H)),     # b_pool
                  resident((H, H))]     # w_proj (pooled-input rows)

    if feats is None:
        kernel = _fused_kernel
        in_specs = common_in + weights_in + [resident((1, H))]          # b_proj
        args = (ids, mask, valid, table, w_pool, b_pool, w_proj, b_proj)
    else:
        F = feats.shape[1]
        kernel = _fused_feats_kernel
        in_specs = (common_in + [row_tile((TM, F))] + weights_in
                    + [resident((F, H)), resident((1, H))])             # w_proj_feat, b_proj
        args = (ids, mask, valid, feats, table, w_pool, b_pool, w_proj,
                w_proj_feat, b_proj)

    out = pl.pallas_call(
        kernel,
        out_shape=jax.ShapeDtypeStruct((M_pad, H), jnp.float32),
        grid=(M_pad // TM,),
        in_specs=in_specs,
        out_specs=pl.BlockSpec((TM, H), lambda i: (i, 0)),
        compiler_params=_COMPILER_PARAMS,
    )(*args)
    return out[:M]


# ---------------------------------------------------------------------------
# Parameter init (deterministic, synthetic) + forward wrapper.
# ---------------------------------------------------------------------------
def init_params(key, feat_sz=0):
    k_emb, k_wp, k_bp, k_wj, k_bj = jax.random.split(key, 5)
    scale = 0.02
    return {
        "embedding": (scale * jax.random.normal(k_emb, (VOCAB, HIDDEN), jnp.float32)
                      ).astype(jnp.bfloat16),
        "w_pool": (scale * jax.random.normal(k_wp, (HIDDEN, HIDDEN), jnp.float32)
                   ).astype(jnp.bfloat16),
        "b_pool": scale * jax.random.normal(k_bp, (1, HIDDEN), jnp.float32),
        "w_proj": (scale * jax.random.normal(k_wj, (HIDDEN + feat_sz, HIDDEN), jnp.float32)
                   ).astype(jnp.bfloat16),
        "b_proj": scale * jax.random.normal(k_bj, (1, HIDDEN), jnp.float32),
    }


def bert_bert_mlp_forward(params, x, x_feats, x_len, x_chunk_len, use_features=False):
    """Equivalent of BERT_BERT_MLP.forward == _get_bert_features (eval mode)."""
    del x_chunk_len  # per-chunk truncation is already encoded in the attention mask
    input_ids = x[:, 0, :, :]                        # [B, S, C] int32
    # token_type_ids = x[:, 1, :, :]                 # unused by the encoder stand-in
    attn_mask = x[:, 2, :, :].astype(jnp.float32)    # [B, S, C]
    B, S, C = input_ids.shape
    M = B * S

    x_len_arr = jnp.asarray(x_len, jnp.int32)
    # rows past x_len correspond to projection(zeros) == b_proj in the PyTorch code
    # (tensor_seq is zero-initialized); the kernel applies this via the valid column.
    seq_valid = (jnp.arange(S)[None, :] < x_len_arr[:, None]).astype(jnp.float32)

    ids = input_ids.reshape(M, C)
    mask = attn_mask.reshape(M, C)
    valid = seq_valid.reshape(M, 1)
    w_proj = params["w_proj"]

    if use_features and x_feats.shape[-1] > 0:
        out = fused_bert_features(
            ids, mask, valid, params["embedding"],
            params["w_pool"], params["b_pool"],
            w_proj[:HIDDEN], params["b_proj"],
            feats=x_feats.reshape(M, -1).astype(jnp.float32),
            w_proj_feat=w_proj[HIDDEN:],
        )
    else:
        out = fused_bert_features(
            ids, mask, valid, params["embedding"],
            params["w_pool"], params["b_pool"],
            w_proj[:HIDDEN], params["b_proj"],
        )

    out = out.reshape(B, S, HIDDEN)
    # All kernel work above is static in S; only this cheap view depends on max(x_len)
    # (x_len is a Python list, same as the torch interface).
    max_seq_len = int(max(x_len))
    return out[:, :max_seq_len, :]


if __name__ == "__main__":
    key = jax.random.PRNGKey(0)
    k_ids, k_len, k_par = jax.random.split(key, 3)

    B, S, C = 2, 8, 16      # batch, max_seq_len (chunks/seq), max_chunk_len (tokens/chunk)
    feat_sz = 0
    use_features = False

    input_ids = jax.random.randint(k_ids, (B, S, C), 0, VOCAB, dtype=jnp.int32)
    x_chunk_len = jax.random.randint(k_len, (B, S), 1, C + 1, dtype=jnp.int32)
    attn_mask = (jnp.arange(C)[None, None, :] < x_chunk_len[:, :, None]).astype(jnp.int32)
    token_type_ids = jnp.zeros((B, S, C), jnp.int32)

    x = jnp.stack([input_ids, token_type_ids, attn_mask], axis=1)   # [B, 3, S, C]
    x_feats = jnp.zeros((B, S, feat_sz), jnp.float32)
    x_len = [8, 6]

    params = init_params(k_par, feat_sz=feat_sz)

    out = bert_bert_mlp_forward(params, x, x_feats, x_len, x_chunk_len,
                                use_features=use_features)
    jax.block_until_ready(out)
    assert out.shape == (B, max(x_len), HIDDEN), out.shape
    assert bool(jnp.all(jnp.isfinite(out)))
    print("KERNEL_OK")
</pallas_src>

<mosaic_0001>
module attributes {stable_mosaic.version = 11 : i64} {
  func.func @_fused_kernel(%arg0: i32, %arg1: memref<16x16xi32, #tpu.memory_space<vmem>>, %arg2: memref<16x16xf32, #tpu.memory_space<vmem>>, %arg3: memref<16x1xf32, #tpu.memory_space<vmem>>, %arg4: memref<1024x768xbf16, #tpu.memory_space<vmem>>, %arg5: memref<768x768xbf16, #tpu.memory_space<vmem>>, %arg6: memref<1x768xf32, #tpu.memory_space<vmem>>, %arg7: memref<768x768xbf16, #tpu.memory_space<vmem>>, %arg8: memref<1x768xf32, #tpu.memory_space<vmem>>, %arg9: memref<16x768xf32, #tpu.memory_space<vmem>>) attributes {dimension_semantics = [#tpu.dimension_semantics<parallel>], iteration_bounds = array<i64: 1>, scalar_prefetch = 0 : i64, scratch_operands = 0 : i64, tpu.core_type = #tpu.core_type<tc>, window_params = [{transform_indices = @transform_0, window_bounds = array<i64: 16, 16>}, {transform_indices = @transform_1, window_bounds = array<i64: 16, 16>}, {transform_indices = @transform_2, window_bounds = array<i64: 16, 1>}, {pipeline_mode = #tpu.pipeline_mode<synchronous>, transform_indices = @transform_3, window_bounds = array<i64: 1024, 768>}, {pipeline_mode = #tpu.pipeline_mode<synchronous>, transform_indices = @transform_4, window_bounds = array<i64: 768, 768>}, {pipeline_mode = #tpu.pipeline_mode<synchronous>, transform_indices = @transform_5, window_bounds = array<i64: 1, 768>}, {pipeline_mode = #tpu.pipeline_mode<synchronous>, transform_indices = @transform_6, window_bounds = array<i64: 768, 768>}, {pipeline_mode = #tpu.pipeline_mode<synchronous>, transform_indices = @transform_7, window_bounds = array<i64: 1, 768>}, {transform_indices = @transform_8, window_bounds = array<i64: 16, 768>}]} {
    %c0 = arith.constant 0 : index
    %c0_0 = arith.constant 0 : index
    %0 = vector.load %arg1[%c0, %c0_0] : memref<16x16xi32, #tpu.memory_space<vmem>>, vector<16x16xi32>
    %c0_1 = arith.constant 0 : index
    %c0_2 = arith.constant 0 : index
    %1 = vector.load %arg2[%c0_1, %c0_2] : memref<16x16xf32, #tpu.memory_space<vmem>>, vector<16x16xf32>
    %2 = tpu.iota {dimensions = array<i32: 1>} : vector<16x1024xi32>
    %cst = arith.constant 0.000000e+00 : f32
    %3 = vector.broadcast %cst : f32 to vector<16x1024xf32>
    %4 = vector.extract_strided_slice %0 {offsets = [0, 0], sizes = [16, 1], strides = [1, 1]} : vector<16x16xi32> to vector<16x1xi32>
    %5 = vector.broadcast %4 : vector<16x1xi32> to vector<16x1024xi32>
    %6 = arith.cmpi eq, %5, %2 : vector<16x1024xi32>
    %7 = vector.extract_strided_slice %1 {offsets = [0, 0], sizes = [16, 1], strides = [1, 1]} : vector<16x16xf32> to vector<16x1xf32>
    %cst_3 = arith.constant 0.000000e+00 : f32
    %8 = vector.shape_cast %7 : vector<16x1xf32> to vector<16x1xf32>
    %9 = vector.broadcast %8 : vector<16x1xf32> to vector<16x1024xf32>
    %10 = vector.broadcast %cst_3 : f32 to vector<16x1024xf32>
    %11 = arith.select %6, %9, %10 : vector<16x1024xi1>, vector<16x1024xf32>
    %12 = arith.addf %3, %11 : vector<16x1024xf32>
    %13 = vector.extract_strided_slice %0 {offsets = [0, 1], sizes = [16, 1], strides = [1, 1]} : vector<16x16xi32> to vector<16x1xi32>
    %14 = vector.broadcast %13 : vector<16x1xi32> to vector<16x1024xi32>
    %15 = arith.cmpi eq, %14, %2 : vector<16x1024xi32>
    %16 = vector.extract_strided_slice %1 {offsets = [0, 1], sizes = [16, 1], strides = [1, 1]} : vector<16x16xf32> to vector<16x1xf32>
    %cst_4 = arith.constant 0.000000e+00 : f32
    %17 = vector.shape_cast %16 : vector<16x1xf32> to vector<16x1xf32>
    %18 = vector.broadcast %17 : vector<16x1xf32> to vector<16x1024xf32>
    %19 = vector.broadcast %cst_4 : f32 to vector<16x1024xf32>
    %20 = arith.select %15, %18, %19 : vector<16x1024xi1>, vector<16x1024xf32>
    %21 = arith.addf %12, %20 : vector<16x1024xf32>
    %22 = vector.extract_strided_slice %0 {offsets = [0, 2], sizes = [16, 1], strides = [1, 1]} : vector<16x16xi32> to vector<16x1xi32>
    %23 = vector.broadcast %22 : vector<16x1xi32> to vector<16x1024xi32>
    %24 = arith.cmpi eq, %23, %2 : vector<16x1024xi32>
    %25 = vector.extract_strided_slice %1 {offsets = [0, 2], sizes = [16, 1], strides = [1, 1]} : vector<16x16xf32> to vector<16x1xf32>
    %cst_5 = arith.constant 0.000000e+00 : f32
    %26 = vector.shape_cast %25 : vector<16x1xf32> to vector<16x1xf32>
    %27 = vector.broadcast %26 : vector<16x1xf32> to vector<16x1024xf32>
    %28 = vector.broadcast %cst_5 : f32 to vector<16x1024xf32>
    %29 = arith.select %24, %27, %28 : vector<16x1024xi1>, vector<16x1024xf32>
    %30 = arith.addf %21, %29 : vector<16x1024xf32>
    %31 = vector.extract_strided_slice %0 {offsets = [0, 3], sizes = [16, 1], strides = [1, 1]} : vector<16x16xi32> to vector<16x1xi32>
    %32 = vector.broadcast %31 : vector<16x1xi32> to vector<16x1024xi32>
    %33 = arith.cmpi eq, %32, %2 : vector<16x1024xi32>
    %34 = vector.extract_strided_slice %1 {offsets = [0, 3], sizes = [16, 1], strides = [1, 1]} : vector<16x16xf32> to vector<16x1xf32>
    %cst_6 = arith.constant 0.000000e+00 : f32
    %35 = vector.shape_cast %34 : vector<16x1xf32> to vector<16x1xf32>
    %36 = vector.broadcast %35 : vector<16x1xf32> to vector<16x1024xf32>
    %37 = vector.broadcast %cst_6 : f32 to vector<16x1024xf32>
    %38 = arith.select %33, %36, %37 : vector<16x1024xi1>, vector<16x1024xf32>
    %39 = arith.addf %30, %38 : vector<16x1024xf32>
    %40 = vector.extract_strided_slice %0 {offsets = [0, 4], sizes = [16, 1], strides = [1, 1]} : vector<16x16xi32> to vector<16x1xi32>
    %41 = vector.broadcast %40 : vector<16x1xi32> to vector<16x1024xi32>
    %42 = arith.cmpi eq, %41, %2 : vector<16x1024xi32>
    %43 = vector.extract_strided_slice %1 {offsets = [0, 4], sizes = [16, 1], strides = [1, 1]} : vector<16x16xf32> to vector<16x1xf32>
    %cst_7 = arith.constant 0.000000e+00 : f32
    %44 = vector.shape_cast %43 : vector<16x1xf32> to vector<16x1xf32>
    %45 = vector.broadcast %44 : vector<16x1xf32> to vector<16x1024xf32>
    %46 = vector.broadcast %cst_7 : f32 to vector<16x1024xf32>
    %47 = arith.select %42, %45, %46 : vector<16x1024xi1>, vector<16x1024xf32>
    %48 = arith.addf %39, %47 : vector<16x1024xf32>
    %49 = vector.extract_strided_slice %0 {offsets = [0, 5], sizes = [16, 1], strides = [1, 1]} : vector<16x16xi32> to vector<16x1xi32>
    %50 = vector.broadcast %49 : vector<16x1xi32> to vector<16x1024xi32>
    %51 = arith.cmpi eq, %50, %2 : vector<16x1024xi32>
    %52 = vector.extract_strided_slice %1 {offsets = [0, 5], sizes = [16, 1], strides = [1, 1]} : vector<16x16xf32> to vector<16x1xf32>
    %cst_8 = arith.constant 0.000000e+00 : f32
    %53 = vector.shape_cast %52 : vector<16x1xf32> to vector<16x1xf32>
    %54 = vector.broadcast %53 : vector<16x1xf32> to vector<16x1024xf32>
    %55 = vector.broadcast %cst_8 : f32 to vector<16x1024xf32>
    %56 = arith.select %51, %54, %55 : vector<16x1024xi1>, vector<16x1024xf32>
    %57 = arith.addf %48, %56 : vector<16x1024xf32>
    %58 = vector.extract_strided_slice %0 {offsets = [0, 6], sizes = [16, 1], strides = [1, 1]} : vector<16x16xi32> to vector<16x1xi32>
    %59 = vector.broadcast %58 : vector<16x1xi32> to vector<16x1024xi32>
    %60 = arith.cmpi eq, %59, %2 : vector<16x1024xi32>
    %61 = vector.extract_strided_slice %1 {offsets = [0, 6], sizes = [16, 1], strides = [1, 1]} : vector<16x16xf32> to vector<16x1xf32>
    %cst_9 = arith.constant 0.000000e+00 : f32
    %62 = vector.shape_cast %61 : vector<16x1xf32> to vector<16x1xf32>
    %63 = vector.broadcast %62 : vector<16x1xf32> to vector<16x1024xf32>
    %64 = vector.broadcast %cst_9 : f32 to vector<16x1024xf32>
    %65 = arith.select %60, %63, %64 : vector<16x1024xi1>, vector<16x1024xf32>
    %66 = arith.addf %57, %65 : vector<16x1024xf32>
    %67 = vector.extract_strided_slice %0 {offsets = [0, 7], sizes = [16, 1], strides = [1, 1]} : vector<16x16xi32> to vector<16x1xi32>
    %68 = vector.broadcast %67 : vector<16x1xi32> to vector<16x1024xi32>
    %69 = arith.cmpi eq, %68, %2 : vector<16x1024xi32>
    %70 = vector.extract_strided_slice %1 {offsets = [0, 7], sizes = [16, 1], strides = [1, 1]} : vector<16x16xf32> to vector<16x1xf32>
    %cst_10 = arith.constant 0.000000e+00 : f32
    %71 = vector.shape_cast %70 : vector<16x1xf32> to vector<16x1xf32>
    %72 = vector.broadcast %71 : vector<16x1xf32> to vector<16x1024xf32>
    %73 = vector.broadcast %cst_10 : f32 to vector<16x1024xf32>
    %74 = arith.select %69, %72, %73 : vector<16x1024xi1>, vector<16x1024xf32>
    %75 = arith.addf %66, %74 : vector<16x1024xf32>
    %76 = vector.extract_strided_slice %0 {offsets = [0, 8], sizes = [16, 1], strides = [1, 1]} : vector<16x16xi32> to vector<16x1xi32>
    %77 = vector.broadcast %76 : vector<16x1xi32> to vector<16x1024xi32>
    %78 = arith.cmpi eq, %77, %2 : vector<16x1024xi32>
    %79 = vector.extract_strided_slice %1 {offsets = [0, 8], sizes = [16, 1], strides = [1, 1]} : vector<16x16xf32> to vector<16x1xf32>
    %cst_11 = arith.constant 0.000000e+00 : f32
    %80 = vector.shape_cast %79 : vector<16x1xf32> to vector<16x1xf32>
    %81 = vector.broadcast %80 : vector<16x1xf32> to vector<16x1024xf32>
    %82 = vector.broadcast %cst_11 : f32 to vector<16x1024xf32>
    %83 = arith.select %78, %81, %82 : vector<16x1024xi1>, vector<16x1024xf32>
    %84 = arith.addf %75, %83 : vector<16x1024xf32>
    %85 = vector.extract_strided_slice %0 {offsets = [0, 9], sizes = [16, 1], strides = [1, 1]} : vector<16x16xi32> to vector<16x1xi32>
    %86 = vector.broadcast %85 : vector<16x1xi32> to vector<16x1024xi32>
    %87 = arith.cmpi eq, %86, %2 : vector<16x1024xi32>
    %88 = vector.extract_strided_slice %1 {offsets = [0, 9], sizes = [16, 1], strides = [1, 1]} : vector<16x16xf32> to vector<16x1xf32>
    %cst_12 = arith.constant 0.000000e+00 : f32
    %89 = vector.shape_cast %88 : vector<16x1xf32> to vector<16x1xf32>
    %90 = vector.broadcast %89 : vector<16x1xf32> to vector<16x1024xf32>
    %91 = vector.broadcast %cst_12 : f32 to vector<16x1024xf32>
    %92 = arith.select %87, %90, %91 : vector<16x1024xi1>, vector<16x1024xf32>
    %93 = arith.addf %84, %92 : vector<16x1024xf32>
    %94 = vector.extract_strided_slice %0 {offsets = [0, 10], sizes = [16, 1], strides = [1, 1]} : vector<16x16xi32> to vector<16x1xi32>
    %95 = vector.broadcast %94 : vector<16x1xi32> to vector<16x1024xi32>
    %96 = arith.cmpi eq, %95, %2 : vector<16x1024xi32>
    %97 = vector.extract_strided_slice %1 {offsets = [0, 10], sizes = [16, 1], strides = [1, 1]} : vector<16x16xf32> to vector<16x1xf32>
    %cst_13 = arith.constant 0.000000e+00 : f32
    %98 = vector.shape_cast %97 : vector<16x1xf32> to vector<16x1xf32>
    %99 = vector.broadcast %98 : vector<16x1xf32> to vector<16x1024xf32>
    %100 = vector.broadcast %cst_13 : f32 to vector<16x1024xf32>
    %101 = arith.select %96, %99, %100 : vector<16x1024xi1>, vector<16x1024xf32>
    %102 = arith.addf %93, %101 : vector<16x1024xf32>
    %103 = vector.extract_strided_slice %0 {offsets = [0, 11], sizes = [16, 1], strides = [1, 1]} : vector<16x16xi32> to vector<16x1xi32>
    %104 = vector.broadcast %103 : vector<16x1xi32> to vector<16x1024xi32>
    %105 = arith.cmpi eq, %104, %2 : vector<16x1024xi32>
    %106 = vector.extract_strided_slice %1 {offsets = [0, 11], sizes = [16, 1], strides = [1, 1]} : vector<16x16xf32> to vector<16x1xf32>
    %cst_14 = arith.constant 0.000000e+00 : f32
    %107 = vector.shape_cast %106 : vector<16x1xf32> to vector<16x1xf32>
    %108 = vector.broadcast %107 : vector<16x1xf32> to vector<16x1024xf32>
    %109 = vector.broadcast %cst_14 : f32 to vector<16x1024xf32>
    %110 = arith.select %105, %108, %109 : vector<16x1024xi1>, vector<16x1024xf32>
    %111 = arith.addf %102, %110 : vector<16x1024xf32>
    %112 = vector.extract_strided_slice %0 {offsets = [0, 12], sizes = [16, 1], strides = [1, 1]} : vector<16x16xi32> to vector<16x1xi32>
    %113 = vector.broadcast %112 : vector<16x1xi32> to vector<16x1024xi32>
    %114 = arith.cmpi eq, %113, %2 : vector<16x1024xi32>
    %115 = vector.extract_strided_slice %1 {offsets = [0, 12], sizes = [16, 1], strides = [1, 1]} : vector<16x16xf32> to vector<16x1xf32>
    %cst_15 = arith.constant 0.000000e+00 : f32
    %116 = vector.shape_cast %115 : vector<16x1xf32> to vector<16x1xf32>
    %117 = vector.broadcast %116 : vector<16x1xf32> to vector<16x1024xf32>
    %118 = vector.broadcast %cst_15 : f32 to vector<16x1024xf32>
    %119 = arith.select %114, %117, %118 : vector<16x1024xi1>, vector<16x1024xf32>
    %120 = arith.addf %111, %119 : vector<16x1024xf32>
    %121 = vector.extract_strided_slice %0 {offsets = [0, 13], sizes = [16, 1], strides = [1, 1]} : vector<16x16xi32> to vector<16x1xi32>
    %122 = vector.broadcast %121 : vector<16x1xi32> to vector<16x1024xi32>
    %123 = arith.cmpi eq, %122, %2 : vector<16x1024xi32>
    %124 = vector.extract_strided_slice %1 {offsets = [0, 13], sizes = [16, 1], strides = [1, 1]} : vector<16x16xf32> to vector<16x1xf32>
    %cst_16 = arith.constant 0.000000e+00 : f32
    %125 = vector.shape_cast %124 : vector<16x1xf32> to vector<16x1xf32>
    %126 = vector.broadcast %125 : vector<16x1xf32> to vector<16x1024xf32>
    %127 = vector.broadcast %cst_16 : f32 to vector<16x1024xf32>
    %128 = arith.select %123, %126, %127 : vector<16x1024xi1>, vector<16x1024xf32>
    %129 = arith.addf %120, %128 : vector<16x1024xf32>
    %130 = vector.extract_strided_slice %0 {offsets = [0, 14], sizes = [16, 1], strides = [1, 1]} : vector<16x16xi32> to vector<16x1xi32>
    %131 = vector.broadcast %130 : vector<16x1xi32> to vector<16x1024xi32>
    %132 = arith.cmpi eq, %131, %2 : vector<16x1024xi32>
    %133 = vector.extract_strided_slice %1 {offsets = [0, 14], sizes = [16, 1], strides = [1, 1]} : vector<16x16xf32> to vector<16x1xf32>
    %cst_17 = arith.constant 0.000000e+00 : f32
    %134 = vector.shape_cast %133 : vector<16x1xf32> to vector<16x1xf32>
    %135 = vector.broadcast %134 : vector<16x1xf32> to vector<16x1024xf32>
    %136 = vector.broadcast %cst_17 : f32 to vector<16x1024xf32>
    %137 = arith.select %132, %135, %136 : vector<16x1024xi1>, vector<16x1024xf32>
    %138 = arith.addf %129, %137 : vector<16x1024xf32>
    %139 = vector.extract_strided_slice %0 {offsets = [0, 15], sizes = [16, 1], strides = [1, 1]} : vector<16x16xi32> to vector<16x1xi32>
    %140 = vector.broadcast %139 : vector<16x1xi32> to vector<16x1024xi32>
    %141 = arith.cmpi eq, %140, %2 : vector<16x1024xi32>
    %142 = vector.extract_strided_slice %1 {offsets = [0, 15], sizes = [16, 1], strides = [1, 1]} : vector<16x16xf32> to vector<16x1xf32>
    %cst_18 = arith.constant 0.000000e+00 : f32
    %143 = vector.shape_cast %142 : vector<16x1xf32> to vector<16x1xf32>
    %144 = vector.broadcast %143 : vector<16x1xf32> to vector<16x1024xf32>
    %145 = vector.broadcast %cst_18 : f32 to vector<16x1024xf32>
    %146 = arith.select %141, %144, %145 : vector<16x1024xi1>, vector<16x1024xf32>
    %147 = arith.addf %138, %146 : vector<16x1024xf32>
    %148 = arith.truncf %147 : vector<16x1024xf32> to vector<16x1024xbf16>
    %c0_19 = arith.constant 0 : index
    %c0_20 = arith.constant 0 : index
    %149 = vector.load %arg4[%c0_19, %c0_20] : memref<1024x768xbf16, #tpu.memory_space<vmem>>, vector<1024x768xbf16>
    %cst_21 = arith.constant dense<0.000000e+00> : vector<16x768xf32>
    %150 = tpu.matmul %148, %149, %cst_21 {dimension_numbers = #tpu.dot_dimension_numbers<[1], [0], [0], [1], [0, 0, 1, 1], [], []>} : vector<16x1024xbf16>, vector<1024x768xbf16>, vector<16x768xf32> -> vector<16x768xf32>
    %cst_22 = arith.constant dense<0.000000e+00> : vector<16xf32>
    %151 = vector.multi_reduction <add>, %1, %cst_22 [1] : vector<16x16xf32> to vector<16xf32>
    %152 = vector.shape_cast %151 : vector<16xf32> to vector<16x1xf32>
    %cst_23 = arith.constant 1.000000e+00 : f32
    %153 = vector.broadcast %cst_23 : f32 to vector<16x1xf32>
    %154 = arith.maximumf %152, %153 : vector<16x1xf32>
    %cst_24 = arith.constant 1.000000e+00 : f32
    %155 = vector.broadcast %cst_24 : f32 to vector<16x1xf32>
    %156 = arith.divf %155, %154 : vector<16x1xf32>
    %157 = vector.broadcast %156 : vector<16x1xf32> to vector<16x768xf32>
    %158 = arith.mulf %150, %157 : vector<16x768xf32>
    %159 = arith.truncf %158 : vector<16x768xf32> to vector<16x768xbf16>
    %c0_25 = arith.constant 0 : index
    %c0_26 = arith.constant 0 : index
    %160 = vector.load %arg5[%c0_25, %c0_26] : memref<768x768xbf16, #tpu.memory_space<vmem>>, vector<768x768xbf16>
    %cst_27 = arith.constant dense<0.000000e+00> : vector<16x768xf32>
    %161 = tpu.matmul %159, %160, %cst_27 {dimension_numbers = #tpu.dot_dimension_numbers<[1], [0], [0], [1], [0, 0, 1, 1], [], []>} : vector<16x768xbf16>, vector<768x768xbf16>, vector<16x768xf32> -> vector<16x768xf32>
    %c0_28 = arith.constant 0 : index
    %c0_29 = arith.constant 0 : index
    %162 = vector.load %arg6[%c0_28, %c0_29] : memref<1x768xf32, #tpu.memory_space<vmem>>, vector<1x768xf32>
    %163 = vector.broadcast %162 : vector<1x768xf32> to vector<16x768xf32>
    %164 = arith.addf %161, %163 : vector<16x768xf32>
    %165 = math.tanh %164 : vector<16x768xf32>
    %c0_30 = arith.constant 0 : index
    %c0_31 = arith.constant 0 : index
    %166 = vector.load %arg3[%c0_30, %c0_31] : memref<16x1xf32, #tpu.memory_space<vmem>>, vector<16x1xf32>
    %167 = vector.broadcast %166 : vector<16x1xf32> to vector<16x768xf32>
    %168 = arith.mulf %165, %167 : vector<16x768xf32>
    %169 = arith.truncf %168 : vector<16x768xf32> to vector<16x768xbf16>
    %c0_32 = arith.constant 0 : index
    %c0_33 = arith.constant 0 : index
    %170 = vector.load %arg7[%c0_32, %c0_33] : memref<768x768xbf16, #tpu.memory_space<vmem>>, vector<768x768xbf16>
    %cst_34 = arith.constant dense<0.000000e+00> : vector<16x768xf32>
    %171 = tpu.matmul %169, %170, %cst_34 {dimension_numbers = #tpu.dot_dimension_numbers<[1], [0], [0], [1], [0, 0, 1, 1], [], []>} : vector<16x768xbf16>, vector<768x768xbf16>, vector<16x768xf32> -> vector<16x768xf32>
    %c0_35 = arith.constant 0 : index
    %c0_36 = arith.constant 0 : index
    %172 = vector.load %arg8[%c0_35, %c0_36] : memref<1x768xf32, #tpu.memory_space<vmem>>, vector<1x768xf32>
    %173 = vector.broadcast %172 : vector<1x768xf32> to vector<16x768xf32>
    %174 = arith.addf %171, %173 : vector<16x768xf32>
    %c0_37 = arith.constant 0 : index
    %c0_38 = arith.constant 0 : index
    %175 = vector.load %arg9[%c0_37, %c0_38] : memref<16x768xf32, #tpu.memory_space<vmem>>, vector<16x768xf32>
    tpu.vector_store %arg9[%c0_37, %c0_38], %174 {strides = array<i32>} : memref<16x768xf32, #tpu.memory_space<vmem>>, vector<16x768xf32>,
    return
  }
  func.func @transform_0(%arg0: i32) -> (i32, i32) {
    %c0_i32 = arith.constant 0 : i32
    %c0_i32_0 = arith.constant 0 : i32
    return %arg0, %c0_i32 : i32, i32
  }
  func.func @transform_1(%arg0: i32) -> (i32, i32) {
    %c0_i32 = arith.constant 0 : i32
    %c0_i32_0 = arith.constant 0 : i32
    return %arg0, %c0_i32 : i32, i32
  }
  func.func @transform_2(%arg0: i32) -> (i32, i32) {
    %c0_i32 = arith.constant 0 : i32
    %c0_i32_0 = arith.constant 0 : i32
    return %arg0, %c0_i32 : i32, i32
  }
  func.func @transform_3(%arg0: i32) -> (i32, i32) {
    %c0_i32 = arith.constant 0 : i32
    %c0_i32_0 = arith.constant 0 : i32
    %c0_i32_1 = arith.constant 0 : i32
    return %c0_i32, %c0_i32_0 : i32, i32
  }
  func.func @transform_4(%arg0: i32) -> (i32, i32) {
    %c0_i32 = arith.constant 0 : i32
    %c0_i32_0 = arith.constant 0 : i32
    %c0_i32_1 = arith.constant 0 : i32
    return %c0_i32, %c0_i32_0 : i32, i32
  }
  func.func @transform_5(%arg0: i32) -> (i32, i32) {
    %c0_i32 = arith.constant 0 : i32
    %c0_i32_0 = arith.constant 0 : i32
    %c0_i32_1 = arith.constant 0 : i32
    return %c0_i32, %c0_i32_0 : i32, i32
  }
  func.func @transform_6(%arg0: i32) -> (i32, i32) {
    %c0_i32 = arith.constant 0 : i32
    %c0_i32_0 = arith.constant 0 : i32
    %c0_i32_1 = arith.constant 0 : i32
    return %c0_i32, %c0_i32_0 : i32, i32
  }
  func.func @transform_7(%arg0: i32) -> (i32, i32) {
    %c0_i32 = arith.constant 0 : i32
    %c0_i32_0 = arith.constant 0 : i32
    %c0_i32_1 = arith.constant 0 : i32
    return %c0_i32, %c0_i32_0 : i32, i32
  }
  func.func @transform_8(%arg0: i32) -> (i32, i32) {
    %c0_i32 = arith.constant 0 : i32
    %c0_i32_0 = arith.constant 0 : i32
    return %arg0, %c0_i32 : i32, i32
  }
}

</mosaic_0001>

<llo_original>
// kernel: tpu_custom_call.1
$region0: #{tpu_custom_call.1}
  #allocation0 [shape = 'u32[]', space=smem, size = 0x4, offset = 0x4, fixed_abs, tag = 'smem constant byte address 0x4 - core index']
  #allocation1 [shape = 'u32[144,128]{1,0:T(1,128)}', space=vmem, size = 0x12000, scoped, tag = 'internal scratch']
  %s0 = inlined_call_operand.hbm [shape: s32[16,16], index: 0, kind: input, shape index: {}]
  %s1 = inlined_call_operand.hbm [shape: f32[16,16], index: 1, kind: input, shape index: {}]
  %s2 = inlined_call_operand.vmem [shape: f32[16,1], index: 2, kind: input, shape index: {}]
  %s3 = inlined_call_operand.hbm [shape: bf16[1024,768], index: 3, kind: input, shape index: {}]
  %s4 = inlined_call_operand.hbm [shape: bf16[768,768], index: 4, kind: input, shape index: {}]
  %s5 = inlined_call_operand.hbm [shape: f32[1,768], index: 5, kind: input, shape index: {}]
  %s6 = inlined_call_operand.hbm [shape: bf16[768,768], index: 6, kind: input, shape index: {}]
  %s7 = inlined_call_operand.hbm [shape: f32[1,768], index: 7, kind: input, shape index: {}]
  %s8 = inlined_call_operand.hbm [shape: f32[16,768], index: 8, kind: output, shape index: {}]
  %s9 = sld [smem:[#allocation0]]
  $region70: #{tpu_custom_call.1} parent=0
    _
  %s11 = ssub.s32 1, %s9
  %s12 = scalar_select 0, %s11, %s9
  $region1: #{tpu_custom_call.1} parent=0
    #allocation2 [shape = 'u8[8192]{0}', space=vmem, size = 0x2000, scoped, tag = 'input window, operand 0, single buffered']
    #allocation3 [shape = 's32[1]{0}', space=sflag, size = 0x4, scoped, tag = 'scoped memory for tpu_custom_call.1']
    #allocation4 [shape = 's32[1]{0}', space=sflag, size = 0x4, scoped, tag = 'scoped memory for tpu_custom_call.1']
    #allocation5 [shape = 'u8[8192]{0}', space=vmem, size = 0x2000, scoped, tag = 'input window, operand 1, single buffered']
    #allocation6 [shape = 's32[1]{0}', space=sflag, size = 0x4, scoped, tag = 'scoped memory for tpu_custom_call.1']
    #allocation7 [shape = 'u8[1572864]{0}', space=vmem, size = 0x180000, scoped, tag = 'input window, operand 3, single buffered']
    #allocation8 [shape = 'u8[1179648]{0}', space=vmem, size = 0x120000, scoped, tag = 'input window, operand 4, single buffered']
    #allocation9 [shape = 's32[1]{0}', space=sflag, size = 0x4, scoped, tag = 'scoped memory for tpu_custom_call.1']
    #allocation10 [shape = 'u8[3072]{0}', space=vmem, size = 0xc00, scoped, tag = 'input window, operand 5, single buffered']
    #allocation11 [shape = 'u8[1179648]{0}', space=vmem, size = 0x120000, scoped, tag = 'input window, operand 6, single buffered']
    #allocation12 [shape = 's32[1]{0}', space=sflag, size = 0x4, scoped, tag = 'scoped memory for tpu_custom_call.1']
    #allocation13 [shape = 'u8[3072]{0}', space=vmem, size = 0xc00, scoped, tag = 'input window, operand 7, single buffered']
    #allocation14 [shape = 'u8[49152]{0}', space=vmem, size = 0xc000, scoped, tag = 'output window, operand 0, single buffered']
    %13 = vsyncpa [#allocation3], 0
    %14 = vsyncpa [#allocation6], 0
    %15 = vsyncpa [#allocation9], 0
    %16 = vsyncpa [#allocation12], 0
    %17 = vsyncpa [#allocation4], 0
    // Predicated region
    $region2: #{tpu_custom_call.1} parent=1 // pred_check
      _
    $region3: #{tpu_custom_call.1} parent=1 // pred_check_branch
      %19 = sbr.rel (0) target = $region5
    $region4: #{tpu_custom_call.1} parent=1 // pred_region
      %s21 = ssub.s32 256, 256
      %22 = vsyncadd [#allocation3], %s21
      %s23 = sshll.u32 [#allocation2], 4
      %s24 = int_to_ptr.vmem [resolvable:$true] %s23
      %29 = dma.hbm_to_vmem [thread:$0]  %s0, 256, %s24, [#allocation3], 128, 128, 8
    $region5: #{tpu_custom_call.1} parent=1 // pred_fallthru
      _
    // Predicated region
    $region6: #{tpu_custom_call.1} parent=1 // pred_check
      _
    $region7: #{tpu_custom_call.1} parent=1 // pred_check_branch
      %31 = sbr.rel (0) target = $region9
    $region8: #{tpu_custom_call.1} parent=1 // pred_region
      %s33 = ssub.s32 256, 256
      %34 = vsyncadd [#allocation6], %s33
      %s35 = sshll.u32 [#allocation5], 4
      %s36 = int_to_ptr.vmem [resolvable:$true] %s35
      %41 = dma.hbm_to_vmem [thread:$0]  %s1, 256, %s36, [#allocation6], 128, 128, 8
    $region9: #{tpu_custom_call.1} parent=1 // pred_fallthru
      _
    // Predicated region
    $region10: #{tpu_custom_call.1} parent=1 // pred_check
      _
    $region11: #{tpu_custom_call.1} parent=1 // pred_check_branch
      %43 = sbr.rel (0) target = $region13
    $region12: #{tpu_custom_call.1} parent=1 // pred_region
      _
    $region13: #{tpu_custom_call.1} parent=1 // pred_fallthru
      _
    // Predicated region
    $region14: #{tpu_custom_call.1} parent=1 // pred_check
      _
    $region15: #{tpu_custom_call.1} parent=1 // pred_check_branch
      %45 = sbr.rel (0) target = $region17
    $region16: #{tpu_custom_call.1} parent=1 // pred_region
      %s47 = ssub.s32 49152, 49152
      %48 = vsyncadd [#allocation6], %s47
      %s49 = sshll.u32 [#allocation7], 4
      %s50 = int_to_ptr.vmem [resolvable:$true] %s49
      %55 = dma.hbm_to_vmem [thread:$0]  %s3, 49152, %s50, [#allocation6], 384, 384, 24
    $region17: #{tpu_custom_call.1} parent=1 // pred_fallthru
      _
    // Predicated region
    $region18: #{tpu_custom_call.1} parent=1 // pred_check
      _
    $region19: #{tpu_custom_call.1} parent=1 // pred_check_branch
      %57 = sbr.rel (0) target = $region21
    $region20: #{tpu_custom_call.1} parent=1 // pred_region
      %s59 = ssub.s32 36864, 36864
      %60 = vsyncadd [#allocation9], %s59
      %s61 = sshll.u32 [#allocation8], 4
      %s62 = int_to_ptr.vmem [resolvable:$true] %s61
      %67 = dma.hbm_to_vmem [thread:$0]  %s4, 36864, %s62, [#allocation9], 384, 384, 24
    $region21: #{tpu_custom_call.1} parent=1 // pred_fallthru
      _
    // Predicated region
    $region22: #{tpu_custom_call.1} parent=1 // pred_check
      _
    $region23: #{tpu_custom_call.1} parent=1 // pred_check_branch
      %69 = sbr.rel (0) target = $region25
    $region24: #{tpu_custom_call.1} parent=1 // pred_region
      %s71 = ssub.s32 96, 96
      %72 = vsyncadd [#allocation9], %s71
      %s74 = sshll.u32 [#allocation10], 4
      %s75 = int_to_ptr.vmem [resolvable:$true] %s74
      %77 = dma.hbm_to_vmem [thread:$0]  %s5, 96, %s75, [#allocation9]
    $region25: #{tpu_custom_call.1} parent=1 // pred_fallthru
      _
    // Predicated region
    $region26: #{tpu_custom_call.1} parent=1 // pred_check
      _
    $region27: #{tpu_custom_call.1} parent=1 // pred_check_branch
      %79 = sbr.rel (0) target = $region29
    $region28: #{tpu_custom_call.1} parent=1 // pred_region
      %s81 = ssub.s32 36864, 36864
      %82 = vsyncadd [#allocation12], %s81
      %s83 = sshll.u32 [#allocation11], 4
      %s84 = int_to_ptr.vmem [resolvable:$true] %s83
      %89 = dma.hbm_to_vmem [thread:$0]  %s6, 36864, %s84, [#allocation12], 384, 384, 24
    $region29: #{tpu_custom_call.1} parent=1 // pred_fallthru
      _
    // Predicated region
    $region30: #{tpu_custom_call.1} parent=1 // pred_check
      _
    $region31: #{tpu_custom_call.1} parent=1 // pred_check_branch
      %91 = sbr.rel (0) target = $region33
    $region32: #{tpu_custom_call.1} parent=1 // pred_region
      %s93 = ssub.s32 96, 96
      %94 = vsyncadd [#allocation12], %s93
      %s96 = sshll.u32 [#allocation13], 4
      %s97 = int_to_ptr.vmem [resolvable:$true] %s96
      %99 = dma.hbm_to_vmem [thread:$0]  %s7, 96, %s97, [#allocation12]
    $region33: #{tpu_custom_call.1} parent=1 // pred_fallthru
      _
    // Predicated region
    $region34: #{tpu_custom_call.1} parent=1 // pred_check
      _
    $region35: #{tpu_custom_call.1} parent=1 // pred_check_branch
      %101 = sbr.rel (0) target = $region37
    $region36: #{tpu_custom_call.1} parent=1 // pred_region
      %102 = dma.done [#allocation3], 256
    $region37: #{tpu_custom_call.1} parent=1 // pred_fallthru
      _
    // Predicated region
    $region38: #{tpu_custom_call.1} parent=1 // pred_check
      _
    $region39: #{tpu_custom_call.1} parent=1 // pred_check_branch
      %104 = sbr.rel (0) target = $region41
    $region40: #{tpu_custom_call.1} parent=1 // pred_region
      %105 = dma.done [#allocation6], 256
    $region41: #{tpu_custom_call.1} parent=1 // pred_fallthru
      _
    // Predicated region
    $region42: #{tpu_custom_call.1} parent=1 // pred_check
      _
    $region43: #{tpu_custom_call.1} parent=1 // pred_check_branch
      %107 = sbr.rel (0) target = $region45
    $region44: #{tpu_custom_call.1} parent=1 // pred_region
      %108 = dma.done [#allocation6], 49152
    $region45: #{tpu_custom_call.1} parent=1 // pred_fallthru
      _
    // Predicated region
    $region46: #{tpu_custom_call.1} parent=1 // pred_check
      _
    $region47: #{tpu_custom_call.1} parent=1 // pred_check_branch
      %110 = sbr.rel (0) target = $region49
    $region48: #{tpu_custom_call.1} parent=1 // pred_region
      %111 = dma.done [#allocation9], 36864
    $region49: #{tpu_custom_call.1} parent=1 // pred_fallthru
      _
    // Predicated region
    $region50: #{tpu_custom_call.1} parent=1 // pred_check
      _
    $region51: #{tpu_custom_call.1} parent=1 // pred_check_branch
      %113 = sbr.rel (0) target = $region53
    $region52: #{tpu_custom_call.1} parent=1 // pred_region
      %114 = dma.done [#allocation9], 96
    $region53: #{tpu_custom_call.1} parent=1 // pred_fallthru
      _
    // Predicated region
    $region54: #{tpu_custom_call.1} parent=1 // pred_check
      _
    $region55: #{tpu_custom_call.1} parent=1 // pred_check_branch
      %116 = sbr.rel (0) target = $region57
    $region56: #{tpu_custom_call.1} parent=1 // pred_region
      %117 = dma.done [#allocation12], 36864
    $region57: #{tpu_custom_call.1} parent=1 // pred_fallthru
      _
    // Predicated region
    $region58: #{tpu_custom_call.1} parent=1 // pred_check
      _
    $region59: #{tpu_custom_call.1} parent=1 // pred_check_branch
      %119 = sbr.rel (0) target = $region61
    $region60: #{tpu_custom_call.1} parent=1 // pred_region
      %120 = dma.done [#allocation12], 96
    $region61: #{tpu_custom_call.1} parent=1 // pred_fallthru
      _
    %v121 = vld [vmem:[#allocation2] sm:$0xff]
    %v122 = vld [vmem:[#allocation2 + $0x8] sm:$0xff]
    %v123 = vld [vmem:[#allocation5] sm:$0xff]
    %v124 = vld [vmem:[#allocation5 + $0x8] sm:$0xff]
    %v125 = vlaneseq
    %v126 = vand.u32 %v125, 127
    %v127 = vadd.s32 %v126, 128
    %v128 = vadd.s32 %v126, 256
    %v129 = vadd.s32 %v126, 384
    %v130 = vadd.s32 %v126, 512
    %v131 = vadd.s32 %v126, 640
    %v132 = vadd.s32 %v126, 768
    %v133 = vadd.s32 %v126, 896
    %134 = vset.pattern.permute.xlu0 0
    %135 = vperm.xlu0 %134, %v121
    %v136 = vpop.permute.xlu0 %135
    %137 = vset.pattern.permute.xlu0 0
    %138 = vperm.xlu0 %137, %v122
    %v139 = vpop.permute.xlu0 %138
    %vm140 = vcmp.eq.s32.totalorder %v136, %v126
    %vm141 = vcmp.eq.s32.totalorder %v136, %v127
    %vm142 = vcmp.eq.s32.totalorder %v136, %v128
    %vm143 = vcmp.eq.s32.totalorder %v136, %v129
    %vm144 = vcmp.eq.s32.totalorder %v136, %v130
    %vm145 = vcmp.eq.s32.totalorder %v136, %v131
    %vm146 = vcmp.eq.s32.totalorder %v136, %v132
    %vm147 = vcmp.eq.s32.totalorder %v136, %v133
    %vm148 = vcmp.eq.s32.totalorder %v139, %v126
    %vm149 = vcmp.eq.s32.totalorder %v139, %v127
    %vm150 = vcmp.eq.s32.totalorder %v139, %v128
    %vm151 = vcmp.eq.s32.totalorder %v139, %v129
    %vm152 = vcmp.eq.s32.totalorder %v139, %v130
    %vm153 = vcmp.eq.s32.totalorder %v139, %v131
    %vm154 = vcmp.eq.s32.totalorder %v139, %v132
    %vm155 = vcmp.eq.s32.totalorder %v139, %v133
    %157 = vset.pattern.permute.xlu0 0
    %158 = vperm.xlu0 %157, %v123
    %v159 = vpop.permute.xlu0 %158
    %162 = vset.pattern.permute.xlu0 0
    %163 = vperm.xlu0 %162, %v124
    %v164 = vpop.permute.xlu0 %163
    %v166 = vsel %vm140, %v159, 0.0
    %v167 = vsel %vm141, %v159, 0.0
    %v168 = vsel %vm142, %v159, 0.0
    %v169 = vsel %vm143, %v159, 0.0
    %v170 = vsel %vm144, %v159, 0.0
    %v171 = vsel %vm145, %v159, 0.0
    %v172 = vsel %vm146, %v159, 0.0
    %v173 = vsel %vm147, %v159, 0.0
    %v174 = vsel %vm148, %v164, 0.0
    %v175 = vsel %vm149, %v164, 0.0
    %v176 = vsel %vm150, %v164, 0.0
    %v177 = vsel %vm151, %v164, 0.0
    %v178 = vsel %vm152, %v164, 0.0
    %v179 = vsel %vm153, %v164, 0.0
    %v180 = vsel %vm154, %v164, 0.0
    %v181 = vsel %vm155, %v164, 0.0
    %v182 = vadd.f32 %v166, 0.0
    %v183 = vadd.f32 %v167, 0.0
    %v184 = vadd.f32 %v168, 0.0
    %v185 = vadd.f32 %v169, 0.0
    %v186 = vadd.f32 %v170, 0.0
    %v187 = vadd.f32 %v171, 0.0
    %v188 = vadd.f32 %v172, 0.0
    %v189 = vadd.f32 %v173, 0.0
    %v190 = vadd.f32 %v174, 0.0
    %v191 = vadd.f32 %v175, 0.0
    %v192 = vadd.f32 %v176, 0.0
    %v193 = vadd.f32 %v177, 0.0
    %v194 = vadd.f32 %v178, 0.0
    %v195 = vadd.f32 %v179, 0.0
    %v196 = vadd.f32 %v180, 0.0
    %v197 = vadd.f32 %v181, 0.0
    %198 = vset.pattern.permute.xlu0 1
    %199 = vperm.xlu0 %198, %v121
    %v200 = vpop.permute.xlu0 %199
    %201 = vset.pattern.permute.xlu0 1
    %202 = vperm.xlu0 %201, %v122
    %v203 = vpop.permute.xlu0 %202
    %vm204 = vcmp.eq.s32.totalorder %v200, %v126
    %vm205 = vcmp.eq.s32.totalorder %v200, %v127
    %vm206 = vcmp.eq.s32.totalorder %v200, %v128
    %vm207 = vcmp.eq.s32.totalorder %v200, %v129
    %vm208 = vcmp.eq.s32.totalorder %v200, %v130
    %vm209 = vcmp.eq.s32.totalorder %v200, %v131
    %vm210 = vcmp.eq.s32.totalorder %v200, %v132
    %vm211 = vcmp.eq.s32.totalorder %v200, %v133
    %vm212 = vcmp.eq.s32.totalorder %v203, %v126
    %vm213 = vcmp.eq.s32.totalorder %v203, %v127
    %vm214 = vcmp.eq.s32.totalorder %v203, %v128
    %vm215 = vcmp.eq.s32.totalorder %v203, %v129
    %vm216 = vcmp.eq.s32.totalorder %v203, %v130
    %vm217 = vcmp.eq.s32.totalorder %v203, %v131
    %vm218 = vcmp.eq.s32.totalorder %v203, %v132
    %vm219 = vcmp.eq.s32.totalorder %v203, %v133
    %220 = vset.pattern.permute.xlu0 1
    %221 = vperm.xlu0 %220, %v123
    %v222 = vpop.permute.xlu0 %221
    %224 = vset.pattern.permute.xlu0 1
    %225 = vperm.xlu0 %224, %v124
    %v226 = vpop.permute.xlu0 %225
    %v228 = vsel %vm204, %v222, 0.0
    %v229 = vsel %vm205, %v222, 0.0
    %v230 = vsel %vm206, %v222, 0.0
    %v231 = vsel %vm207, %v222, 0.0
    %v232 = vsel %vm208, %v222, 0.0
    %v233 = vsel %vm209, %v222, 0.0
    %v234 = vsel %vm210, %v222, 0.0
    %v235 = vsel %vm211, %v222, 0.0
    %v236 = vsel %vm212, %v226, 0.0
    %v237 = vsel %vm213, %v226, 0.0
    %v238 = vsel %vm214, %v226, 0.0
    %v239 = vsel %vm215, %v226, 0.0
    %v240 = vsel %vm216, %v226, 0.0
    %v241 = vsel %vm217, %v226, 0.0
    %v242 = vsel %vm218, %v226, 0.0
    %v243 = vsel %vm219, %v226, 0.0
    %v244 = vadd.f32 %v182, %v228
    %v245 = vadd.f32 %v183, %v229
    %v246 = vadd.f32 %v184, %v230
    %v247 = vadd.f32 %v185, %v231
    %v248 = vadd.f32 %v186, %v232
    %v249 = vadd.f32 %v187, %v233
    %v250 = vadd.f32 %v188, %v234
    %v251 = vadd.f32 %v189, %v235
    %v252 = vadd.f32 %v190, %v236
    %v253 = vadd.f32 %v191, %v237
    %v254 = vadd.f32 %v192, %v238
    %v255 = vadd.f32 %v193, %v239
    %v256 = vadd.f32 %v194, %v240
    %v257 = vadd.f32 %v195, %v241
    %v258 = vadd.f32 %v196, %v242
    %v259 = vadd.f32 %v197, %v243
    %260 = vset.pattern.permute.xlu0 2
    %261 = vperm.xlu0 %260, %v121
    %v262 = vpop.permute.xlu0 %261
    %263 = vset.pattern.permute.xlu0 2
    %264 = vperm.xlu0 %263, %v122
    %v265 = vpop.permute.xlu0 %264
    %vm266 = vcmp.eq.s32.totalorder %v262, %v126
    %vm267 = vcmp.eq.s32.totalorder %v262, %v127
    %vm268 = vcmp.eq.s32.totalorder %v262, %v128
    %vm269 = vcmp.eq.s32.totalorder %v262, %v129
    %vm270 = vcmp.eq.s32.totalorder %v262, %v130
    %vm271 = vcmp.eq.s32.totalorder %v262, %v131
    %vm272 = vcmp.eq.s32.totalorder %v262, %v132
    %vm273 = vcmp.eq.s32.totalorder %v262, %v133
    %vm274 = vcmp.eq.s32.totalorder %v265, %v126
    %vm275 = vcmp.eq.s32.totalorder %v265, %v127
    %vm276 = vcmp.eq.s32.totalorder %v265, %v128
    %vm277 = vcmp.eq.s32.totalorder %v265, %v129
    %vm278 = vcmp.eq.s32.totalorder %v265, %v130
    %vm279 = vcmp.eq.s32.totalorder %v265, %v131
    %vm280 = vcmp.eq.s32.totalorder %v265, %v132
    %vm281 = vcmp.eq.s32.totalorder %v265, %v133
    %282 = vset.pattern.permute.xlu0 2
    %283 = vperm.xlu0 %282, %v123
    %v284 = vpop.permute.xlu0 %283
    %286 = vset.pattern.permute.xlu0 2
    %287 = vperm.xlu0 %286, %v124
    %v288 = vpop.permute.xlu0 %287
    %v290 = vsel %vm266, %v284, 0.0
    %v291 = vsel %vm267, %v284, 0.0
    %v292 = vsel %vm268, %v284, 0.0
    %v293 = vsel %vm269, %v284, 0.0
    %v294 = vsel %vm270, %v284, 0.0
    %v295 = vsel %vm271, %v284, 0.0
    %v296 = vsel %vm272, %v284, 0.0
    %v297 = vsel %vm273, %v284, 0.0
    %v298 = vsel %vm274, %v288, 0.0
    %v299 = vsel %vm275, %v288, 0.0
    %v300 = vsel %vm276, %v288, 0.0
    %v301 = vsel %vm277, %v288, 0.0
    %v302 = vsel %vm278, %v288, 0.0
    %v303 = vsel %vm279, %v288, 0.0
    %v304 = vsel %vm280, %v288, 0.0
    %v305 = vsel %vm281, %v288, 0.0
    %v306 = vadd.f32 %v244, %v290
    %v307 = vadd.f32 %v245, %v291
    %v308 = vadd.f32 %v246, %v292
    %v309 = vadd.f32 %v247, %v293
    %v310 = vadd.f32 %v248, %v294
    %v311 = vadd.f32 %v249, %v295
    %v312 = vadd.f32 %v250, %v296
    %v313 = vadd.f32 %v251, %v297
    %v314 = vadd.f32 %v252, %v298
    %v315 = vadd.f32 %v253, %v299
    %v316 = vadd.f32 %v254, %v300
    %v317 = vadd.f32 %v255, %v301
    %v318 = vadd.f32 %v256, %v302
    %v319 = vadd.f32 %v257, %v303
    %v320 = vadd.f32 %v258, %v304
    %v321 = vadd.f32 %v259, %v305
    %322 = vset.pattern.permute.xlu0 3
    %323 = vperm.xlu0 %322, %v121
    %v324 = vpop.permute.xlu0 %323
    %325 = vset.pattern.permute.xlu0 3
    %326 = vperm.xlu0 %325, %v122
    %v327 = vpop.permute.xlu0 %326
    %vm328 = vcmp.eq.s32.totalorder %v324, %v126
    %vm329 = vcmp.eq.s32.totalorder %v324, %v127
    %vm330 = vcmp.eq.s32.totalorder %v324, %v128
    %vm331 = vcmp.eq.s32.totalorder %v324, %v129
    %vm332 = vcmp.eq.s32.totalorder %v324, %v130
    %vm333 = vcmp.eq.s32.totalorder %v324, %v131
    %vm334 = vcmp.eq.s32.totalorder %v324, %v132
    %vm335 = vcmp.eq.s32.totalorder %v324, %v133
    %vm336 = vcmp.eq.s32.totalorder %v327, %v126
    %vm337 = vcmp.eq.s32.totalorder %v327, %v127
    %vm338 = vcmp.eq.s32.totalorder %v327, %v128
    %vm339 = vcmp.eq.s32.totalorder %v327, %v129
    %vm340 = vcmp.eq.s32.totalorder %v327, %v130
    %vm341 = vcmp.eq.s32.totalorder %v327, %v131
    %vm342 = vcmp.eq.s32.totalorder %v327, %v132
    %vm343 = vcmp.eq.s32.totalorder %v327, %v133
    %344 = vset.pattern.permute.xlu0 3
    %345 = vperm.xlu0 %344, %v123
    %v346 = vpop.permute.xlu0 %345
    %348 = vset.pattern.permute.xlu0 3
    %349 = vperm.xlu0 %348, %v124
    %v350 = vpop.permute.xlu0 %349
    %v352 = vsel %vm328, %v346, 0.0
    %v353 = vsel %vm329, %v346, 0.0
    %v354 = vsel %vm330, %v346, 0.0
    %v355 = vsel %vm331, %v346, 0.0
    %v356 = vsel %vm332, %v346, 0.0
    %v357 = vsel %vm333, %v346, 0.0
    %v358 = vsel %vm334, %v346, 0.0
    %v359 = vsel %vm335, %v346, 0.0
    %v360 = vsel %vm336, %v350, 0.0
    %v361 = vsel %vm337, %v350, 0.0
    %v362 = vsel %vm338, %v350, 0.0
    %v363 = vsel %vm339, %v350, 0.0
    %v364 = vsel %vm340, %v350, 0.0
    %v365 = vsel %vm341, %v350, 0.0
    %v366 = vsel %vm342, %v350, 0.0
    %v367 = vsel %vm343, %v350, 0.0
    %v368 = vadd.f32 %v306, %v352
    %v369 = vadd.f32 %v307, %v353
    %v370 = vadd.f32 %v308, %v354
    %v371 = vadd.f32 %v309, %v355
    %v372 = vadd.f32 %v310, %v356
    %v373 = vadd.f32 %v311, %v357
    %v374 = vadd.f32 %v312, %v358
    %v375 = vadd.f32 %v313, %v359
    %v376 = vadd.f32 %v314, %v360
    %v377 = vadd.f32 %v315, %v361
    %v378 = vadd.f32 %v316, %v362
    %v379 = vadd.f32 %v317, %v363
    %v380 = vadd.f32 %v318, %v364
    %v381 = vadd.f32 %v319, %v365
    %v382 = vadd.f32 %v320, %v366
    %v383 = vadd.f32 %v321, %v367
    %384 = vset.pattern.permute.xlu0 4
    %385 = vperm.xlu0 %384, %v121
    %v386 = vpop.permute.xlu0 %385
    %387 = vset.pattern.permute.xlu0 4
    %388 = vperm.xlu0 %387, %v122
    %v389 = vpop.permute.xlu0 %388
    %vm390 = vcmp.eq.s32.totalorder %v386, %v126
    %vm391 = vcmp.eq.s32.totalorder %v386, %v127
    %vm392 = vcmp.eq.s32.totalorder %v386, %v128
    %vm393 = vcmp.eq.s32.totalorder %v386, %v129
    %vm394 = vcmp.eq.s32.totalorder %v386, %v130
    %vm395 = vcmp.eq.s32.totalorder %v386, %v131
    %vm396 = vcmp.eq.s32.totalorder %v386, %v132
    %vm397 = vcmp.eq.s32.totalorder %v386, %v133
    %vm398 = vcmp.eq.s32.totalorder %v389, %v126
    %vm399 = vcmp.eq.s32.totalorder %v389, %v127
    %vm400 = vcmp.eq.s32.totalorder %v389, %v128
    %vm401 = vcmp.eq.s32.totalorder %v389, %v129
    %vm402 = vcmp.eq.s32.totalorder %v389, %v130
    %vm403 = vcmp.eq.s32.totalorder %v389, %v131
    %vm404 = vcmp.eq.s32.totalorder %v389, %v132
    %vm405 = vcmp.eq.s32.totalorder %v389, %v133
    %406 = vset.pattern.permute.xlu0 4
    %407 = vperm.xlu0 %406, %v123
    %v408 = vpop.permute.xlu0 %407
    %410 = vset.pattern.permute.xlu0 4
    %411 = vperm.xlu0 %410, %v124
    %v412 = vpop.permute.xlu0 %411
    %v414 = vsel %vm390, %v408, 0.0
    %v415 = vsel %vm391, %v408, 0.0
    %v416 = vsel %vm392, %v408, 0.0
    %v417 = vsel %vm393, %v408, 0.0
    %v418 = vsel %vm394, %v408, 0.0
    %v419 = vsel %vm395, %v408, 0.0
    %v420 = vsel %vm396, %v408, 0.0
    %v421 = vsel %vm397, %v408, 0.0
    %v422 = vsel %vm398, %v412, 0.0
    %v423 = vsel %vm399, %v412, 0.0
    %v424 = vsel %vm400, %v412, 0.0
    %v425 = vsel %vm401, %v412, 0.0
    %v426 = vsel %vm402, %v412, 0.0
    %v427 = vsel %vm403, %v412, 0.0
    %v428 = vsel %vm404, %v412, 0.0
    %v429 = vsel %vm405, %v412, 0.0
    %v430 = vadd.f32 %v368, %v414
    %v431 = vadd.f32 %v369, %v415
    %v432 = vadd.f32 %v370, %v416
    %v433 = vadd.f32 %v371, %v417
    %v434 = vadd.f32 %v372, %v418
    %v435 = vadd.f32 %v373, %v419
    %v436 = vadd.f32 %v374, %v420
    %v437 = vadd.f32 %v375, %v421
    %v438 = vadd.f32 %v376, %v422
    %v439 = vadd.f32 %v377, %v423
    %v440 = vadd.f32 %v378, %v424
    %v441 = vadd.f32 %v379, %v425
    %v442 = vadd.f32 %v380, %v426
    %v443 = vadd.f32 %v381, %v427
    %v444 = vadd.f32 %v382, %v428
    %v445 = vadd.f32 %v383, %v429
    %446 = vset.pattern.permute.xlu0 5
    %447 = vperm.xlu0 %446, %v121
    %v448 = vpop.permute.xlu0 %447
    %449 = vset.pattern.permute.xlu0 5
    %450 = vperm.xlu0 %449, %v122
    %v451 = vpop.permute.xlu0 %450
    %vm452 = vcmp.eq.s32.totalorder %v448, %v126
    %vm453 = vcmp.eq.s32.totalorder %v448, %v127
    %vm454 = vcmp.eq.s32.totalorder %v448, %v128
    %vm455 = vcmp.eq.s32.totalorder %v448, %v129
    %vm456 = vcmp.eq.s32.totalorder %v448, %v130
    %vm457 = vcmp.eq.s32.totalorder %v448, %v131
    %vm458 = vcmp.eq.s32.totalorder %v448, %v132
    %vm459 = vcmp.eq.s32.totalorder %v448, %v133
    %vm460 = vcmp.eq.s32.totalorder %v451, %v126
    %vm461 = vcmp.eq.s32.totalorder %v451, %v127
    %vm462 = vcmp.eq.s32.totalorder %v451, %v128
    %vm463 = vcmp.eq.s32.totalorder %v451, %v129
    %vm464 = vcmp.eq.s32.totalorder %v451, %v130
    %vm465 = vcmp.eq.s32.totalorder %v451, %v131
    %vm466 = vcmp.eq.s32.totalorder %v451, %v132
    %vm467 = vcmp.eq.s32.totalorder %v451, %v133
    %468 = vset.pattern.permute.xlu0 5
    %469 = vperm.xlu0 %468, %v123
    %v470 = vpop.permute.xlu0 %469
    %472 = vset.pattern.permute.xlu0 5
    %473 = vperm.xlu0 %472, %v124
    %v474 = vpop.permute.xlu0 %473
    %v476 = vsel %vm452, %v470, 0.0
    %v477 = vsel %vm453, %v470, 0.0
    %v478 = vsel %vm454, %v470, 0.0
    %v479 = vsel %vm455, %v470, 0.0
    %v480 = vsel %vm456, %v470, 0.0
    %v481 = vsel %vm457, %v470, 0.0
    %v482 = vsel %vm458, %v470, 0.0
    %v483 = vsel %vm459, %v470, 0.0
    %v484 = vsel %vm460, %v474, 0.0
    %v485 = vsel %vm461, %v474, 0.0
    %v486 = vsel %vm462, %v474, 0.0
    %v487 = vsel %vm463, %v474, 0.0
    %v488 = vsel %vm464, %v474, 0.0
    %v489 = vsel %vm465, %v474, 0.0
    %v490 = vsel %vm466, %v474, 0.0
    %v491 = vsel %vm467, %v474, 0.0
    %v492 = vadd.f32 %v430, %v476
    %v493 = vadd.f32 %v431, %v477
    %v494 = vadd.f32 %v432, %v478
    %v495 = vadd.f32 %v433, %v479
    %v496 = vadd.f32 %v434, %v480
    %v497 = vadd.f32 %v435, %v481
    %v498 = vadd.f32 %v436, %v482
    %v499 = vadd.f32 %v437, %v483
    %v500 = vadd.f32 %v438, %v484
    %v501 = vadd.f32 %v439, %v485
    %v502 = vadd.f32 %v440, %v486
    %v503 = vadd.f32 %v441, %v487
    %v504 = vadd.f32 %v442, %v488
    %v505 = vadd.f32 %v443, %v489
    %v506 = vadd.f32 %v444, %v490
    %v507 = vadd.f32 %v445, %v491
    %508 = vset.pattern.permute.xlu0 6
    %509 = vperm.xlu0 %508, %v121
    %v510 = vpop.permute.xlu0 %509
    %511 = vset.pattern.permute.xlu0 6
    %512 = vperm.xlu0 %511, %v122
    %v513 = vpop.permute.xlu0 %512
    %vm514 = vcmp.eq.s32.totalorder %v510, %v126
    %vm515 = vcmp.eq.s32.totalorder %v510, %v127
    %vm516 = vcmp.eq.s32.totalorder %v510, %v128
    %vm517 = vcmp.eq.s32.totalorder %v510, %v129
    %vm518 = vcmp.eq.s32.totalorder %v510, %v130
    %vm519 = vcmp.eq.s32.totalorder %v510, %v131
    %vm520 = vcmp.eq.s32.totalorder %v510, %v132
    %vm521 = vcmp.eq.s32.totalorder %v510, %v133
    %vm522 = vcmp.eq.s32.totalorder %v513, %v126
    %vm523 = vcmp.eq.s32.totalorder %v513, %v127
    %vm524 = vcmp.eq.s32.totalorder %v513, %v128
    %vm525 = vcmp.eq.s32.totalorder %v513, %v129
    %vm526 = vcmp.eq.s32.totalorder %v513, %v130
    %vm527 = vcmp.eq.s32.totalorder %v513, %v131
    %vm528 = vcmp.eq.s32.totalorder %v513, %v132
    %vm529 = vcmp.eq.s32.totalorder %v513, %v133
    %530 = vset.pattern.permute.xlu0 6
    %531 = vperm.xlu0 %530, %v123
    %v532 = vpop.permute.xlu0 %531
    %534 = vset.pattern.permute.xlu0 6
    %535 = vperm.xlu0 %534, %v124
    %v536 = vpop.permute.xlu0 %535
    %v538 = vsel %vm514, %v532, 0.0
    %v539 = vsel %vm515, %v532, 0.0
    %v540 = vsel %vm516, %v532, 0.0
    %v541 = vsel %vm517, %v532, 0.0
    %v542 = vsel %vm518, %v532, 0.0
    %v543 = vsel %vm519, %v532, 0.0
    %v544 = vsel %vm520, %v532, 0.0
    %v545 = vsel %vm521, %v532, 0.0
    %v546 = vsel %vm522, %v536, 0.0
    %v547 = vsel %vm523, %v536, 0.0
    %v548 = vsel %vm524, %v536, 0.0
    %v549 = vsel %vm525, %v536, 0.0
    %v550 = vsel %vm526, %v536, 0.0
    %v551 = vsel %vm527, %v536, 0.0
    %v552 = vsel %vm528, %v536, 0.0
    %v553 = vsel %vm529, %v536, 0.0
    %v554 = vadd.f32 %v492, %v538
    %v555 = vadd.f32 %v493, %v539
    %v556 = vadd.f32 %v494, %v540
    %v557 = vadd.f32 %v495, %v541
    %v558 = vadd.f32 %v496, %v542
    %v559 = vadd.f32 %v497, %v543
    %v560 = vadd.f32 %v498, %v544
    %v561 = vadd.f32 %v499, %v545
    %v562 = vadd.f32 %v500, %v546
    %v563 = vadd.f32 %v501, %v547
    %v564 = vadd.f32 %v502, %v548
    %v565 = vadd.f32 %v503, %v549
    %v566 = vadd.f32 %v504, %v550
    %v567 = vadd.f32 %v505, %v551
    %v568 = vadd.f32 %v506, %v552
    %v569 = vadd.f32 %v507, %v553
    %570 = vset.pattern.permute.xlu0 7
    %571 = vperm.xlu0 %570, %v121
    %v572 = vpop.permute.xlu0 %571
    %573 = vset.pattern.permute.xlu0 7
    %574 = vperm.xlu0 %573, %v122
    %v575 = vpop.permute.xlu0 %574
    %vm576 = vcmp.eq.s32.totalorder %v572, %v126
    %vm577 = vcmp.eq.s32.totalorder %v572, %v127
    %vm578 = vcmp.eq.s32.totalorder %v572, %v128
    %vm579 = vcmp.eq.s32.totalorder %v572, %v129
    %vm580 = vcmp.eq.s32.totalorder %v572, %v130
    %vm581 = vcmp.eq.s32.totalorder %v572, %v131
    %vm582 = vcmp.eq.s32.totalorder %v572, %v132
    %vm583 = vcmp.eq.s32.totalorder %v572, %v133
    %vm584 = vcmp.eq.s32.totalorder %v575, %v126
    %vm585 = vcmp.eq.s32.totalorder %v575, %v127
    %vm586 = vcmp.eq.s32.totalorder %v575, %v128
    %vm587 = vcmp.eq.s32.totalorder %v575, %v129
    %vm588 = vcmp.eq.s32.totalorder %v575, %v130
    %vm589 = vcmp.eq.s32.totalorder %v575, %v131
    %vm590 = vcmp.eq.s32.totalorder %v575, %v132
    %vm591 = vcmp.eq.s32.totalorder %v575, %v133
    %592 = vset.pattern.permute.xlu0 7
    %593 = vperm.xlu0 %592, %v123
    %v594 = vpop.permute.xlu0 %593
    %596 = vset.pattern.permute.xlu0 7
    %597 = vperm.xlu0 %596, %v124
    %v598 = vpop.permute.xlu0 %597
    %v600 = vsel %vm576, %v594, 0.0
    %v601 = vsel %vm577, %v594, 0.0
    %v602 = vsel %vm578, %v594, 0.0
    %v603 = vsel %vm579, %v594, 0.0
    %v604 = vsel %vm580, %v594, 0.0
    %v605 = vsel %vm581, %v594, 0.0
    %v606 = vsel %vm582, %v594, 0.0
    %v607 = vsel %vm583, %v594, 0.0
    %v608 = vsel %vm584, %v598, 0.0
    %v609 = vsel %vm585, %v598, 0.0
    %v610 = vsel %vm586, %v598, 0.0
    %v611 = vsel %vm587, %v598, 0.0
    %v612 = vsel %vm588, %v598, 0.0
    %v613 = vsel %vm589, %v598, 0.0
    %v614 = vsel %vm590, %v598, 0.0
    %v615 = vsel %vm591, %v598, 0.0
    %v616 = vadd.f32 %v554, %v600
    %v617 = vadd.f32 %v555, %v601
    %v618 = vadd.f32 %v556, %v602
    %v619 = vadd.f32 %v557, %v603
    %v620 = vadd.f32 %v558, %v604
    %v621 = vadd.f32 %v559, %v605
    %v622 = vadd.f32 %v560, %v606
    %v623 = vadd.f32 %v561, %v607
    %v624 = vadd.f32 %v562, %v608
    %v625 = vadd.f32 %v563, %v609
    %v626 = vadd.f32 %v564, %v610
    %v627 = vadd.f32 %v565, %v611
    %v628 = vadd.f32 %v566, %v612
    %v629 = vadd.f32 %v567, %v613
    %v630 = vadd.f32 %v568, %v614
    %v631 = vadd.f32 %v569, %v615
    %632 = vset.pattern.permute.xlu0 8
    %633 = vperm.xlu0 %632, %v121
    %v634 = vpop.permute.xlu0 %633
    %635 = vset.pattern.permute.xlu0 8
    %636 = vperm.xlu0 %635, %v122
    %v637 = vpop.permute.xlu0 %636
    %vm638 = vcmp.eq.s32.totalorder %v634, %v126
    %vm639 = vcmp.eq.s32.totalorder %v634, %v127
    %vm640 = vcmp.eq.s32.totalorder %v634, %v128
    %vm641 = vcmp.eq.s32.totalorder %v634, %v129
    %vm642 = vcmp.eq.s32.totalorder %v634, %v130
    %vm643 = vcmp.eq.s32.totalorder %v634, %v131
    %vm644 = vcmp.eq.s32.totalorder %v634, %v132
    %vm645 = vcmp.eq.s32.totalorder %v634, %v133
    %vm646 = vcmp.eq.s32.totalorder %v637, %v126
    %vm647 = vcmp.eq.s32.totalorder %v637, %v127
    %vm648 = vcmp.eq.s32.totalorder %v637, %v128
    %vm649 = vcmp.eq.s32.totalorder %v637, %v129
    %vm650 = vcmp.eq.s32.totalorder %v637, %v130
    %vm651 = vcmp.eq.s32.totalorder %v637, %v131
    %vm652 = vcmp.eq.s32.totalorder %v637, %v132
    %vm653 = vcmp.eq.s32.totalorder %v637, %v133
    %654 = vset.pattern.permute.xlu0 8
    %655 = vperm.xlu0 %654, %v123
    %v656 = vpop.permute.xlu0 %655
    %658 = vset.pattern.permute.xlu0 8
    %659 = vperm.xlu0 %658, %v124
    %v660 = vpop.permute.xlu0 %659
    %v662 = vsel %vm638, %v656, 0.0
    %v663 = vsel %vm639, %v656, 0.0
    %v664 = vsel %vm640, %v656, 0.0
    %v665 = vsel %vm641, %v656, 0.0
    %v666 = vsel %vm642, %v656, 0.0
    %v667 = vsel %vm643, %v656, 0.0
    %v668 = vsel %vm644, %v656, 0.0
    %v669 = vsel %vm645, %v656, 0.0
    %v670 = vsel %vm646, %v660, 0.0
    %v671 = vsel %vm647, %v660, 0.0
    %v672 = vsel %vm648, %v660, 0.0
    %v673 = vsel %vm649, %v660, 0.0
    %v674 = vsel %vm650, %v660, 0.0
    %v675 = vsel %vm651, %v660, 0.0
    %v676 = vsel %vm652, %v660, 0.0
    %v677 = vsel %vm653, %v660, 0.0
    %v678 = vadd.f32 %v616, %v662
    %v679 = vadd.f32 %v617, %v663
    %v680 = vadd.f32 %v618, %v664
    %v681 = vadd.f32 %v619, %v665
    %v682 = vadd.f32 %v620, %v666
    %v683 = vadd.f32 %v621, %v667
    %v684 = vadd.f32 %v622, %v668
    %v685 = vadd.f32 %v623, %v669
    %v686 = vadd.f32 %v624, %v670
    %v687 = vadd.f32 %v625, %v671
    %v688 = vadd.f32 %v626, %v672
    %v689 = vadd.f32 %v627, %v673
    %v690 = vadd.f32 %v628, %v674
    %v691 = vadd.f32 %v629, %v675
    %v692 = vadd.f32 %v630, %v676
    %v693 = vadd.f32 %v631, %v677
    %694 = vset.pattern.permute.xlu0 9
    %695 = vperm.xlu0 %694, %v121
    %v696 = vpop.permute.xlu0 %695
    %697 = vset.pattern.permute.xlu0 9
    %698 = vperm.xlu0 %697, %v122
    %v699 = vpop.permute.xlu0 %698
    %vm700 = vcmp.eq.s32.totalorder %v696, %v126
    %vm701 = vcmp.eq.s32.totalorder %v696, %v127
    %vm702 = vcmp.eq.s32.totalorder %v696, %v128
    %vm703 = vcmp.eq.s32.totalorder %v696, %v129
    %vm704 = vcmp.eq.s32.totalorder %v696, %v130
    %vm705 = vcmp.eq.s32.totalorder %v696, %v131
    %vm706 = vcmp.eq.s32.totalorder %v696, %v132
    %vm707 = vcmp.eq.s32.totalorder %v696, %v133
    %vm708 = vcmp.eq.s32.totalorder %v699, %v126
    %vm709 = vcmp.eq.s32.totalorder %v699, %v127
    %vm710 = vcmp.eq.s32.totalorder %v699, %v128
    %vm711 = vcmp.eq.s32.totalorder %v699, %v129
    %vm712 = vcmp.eq.s32.totalorder %v699, %v130
    %vm713 = vcmp.eq.s32.totalorder %v699, %v131
    %vm714 = vcmp.eq.s32.totalorder %v699, %v132
    %vm715 = vcmp.eq.s32.totalorder %v699, %v133
    %716 = vset.pattern.permute.xlu0 9
    %717 = vperm.xlu0 %716, %v123
    %v718 = vpop.permute.xlu0 %717
    %720 = vset.pattern.permute.xlu0 9
    %721 = vperm.xlu0 %720, %v124
    %v722 = vpop.permute.xlu0 %721
    %v724 = vsel %vm700, %v718, 0.0
    %v725 = vsel %vm701, %v718, 0.0
    %v726 = vsel %vm702, %v718, 0.0
    %v727 = vsel %vm703, %v718, 0.0
    %v728 = vsel %vm704, %v718, 0.0
    %v729 = vsel %vm705, %v718, 0.0
    %v730 = vsel %vm706, %v718, 0.0
    %v731 = vsel %vm707, %v718, 0.0
    %v732 = vsel %vm708, %v722, 0.0
    %v733 = vsel %vm709, %v722, 0.0
    %v734 = vsel %vm710, %v722, 0.0
    %v735 = vsel %vm711, %v722, 0.0
    %v736 = vsel %vm712, %v722, 0.0
    %v737 = vsel %vm713, %v722, 0.0
    %v738 = vsel %vm714, %v722, 0.0
    %v739 = vsel %vm715, %v722, 0.0
    %v740 = vadd.f32 %v678, %v724
    %v741 = vadd.f32 %v679, %v725
    %v742 = vadd.f32 %v680, %v726
    %v743 = vadd.f32 %v681, %v727
    %v744 = vadd.f32 %v682, %v728
    %v745 = vadd.f32 %v683, %v729
    %v746 = vadd.f32 %v684, %v730
    %v747 = vadd.f32 %v685, %v731
    %v748 = vadd.f32 %v686, %v732
    %v749 = vadd.f32 %v687, %v733
    %v750 = vadd.f32 %v688, %v734
    %v751 = vadd.f32 %v689, %v735
    %v752 = vadd.f32 %v690, %v736
    %v753 = vadd.f32 %v691, %v737
    %v754 = vadd.f32 %v692, %v738
    %v755 = vadd.f32 %v693, %v739
    %756 = vset.pattern.permute.xlu0 10
    %757 = vperm.xlu0 %756, %v121
    %v758 = vpop.permute.xlu0 %757
    %759 = vset.pattern.permute.xlu0 10
    %760 = vperm.xlu0 %759, %v122
    %v761 = vpop.permute.xlu0 %760
    %vm762 = vcmp.eq.s32.totalorder %v758, %v126
    %vm763 = vcmp.eq.s32.totalorder %v758, %v127
    %vm764 = vcmp.eq.s32.totalorder %v758, %v128
    %vm765 = vcmp.eq.s32.totalorder %v758, %v129
    %vm766 = vcmp.eq.s32.totalorder %v758, %v130
    %vm767 = vcmp.eq.s32.totalorder %v758, %v131
    %vm768 = vcmp.eq.s32.totalorder %v758, %v132
    %vm769 = vcmp.eq.s32.totalorder %v758, %v133
    %vm770 = vcmp.eq.s32.totalorder %v761, %v126
    %vm771 = vcmp.eq.s32.totalorder %v761, %v127
    %vm772 = vcmp.eq.s32.totalorder %v761, %v128
    %vm773 = vcmp.eq.s32.totalorder %v761, %v129
    %vm774 = vcmp.eq.s32.totalorder %v761, %v130
    %vm775 = vcmp.eq.s32.totalorder %v761, %v131
    %vm776 = vcmp.eq.s32.totalorder %v761, %v132
    %vm777 = vcmp.eq.s32.totalorder %v761, %v133
    %778 = vset.pattern.permute.xlu0 10
    %779 = vperm.xlu0 %778, %v123
    %v780 = vpop.permute.xlu0 %779
    %782 = vset.pattern.permute.xlu0 10
    %783 = vperm.xlu0 %782, %v124
    %v784 = vpop.permute.xlu0 %783
    %v786 = vsel %vm762, %v780, 0.0
    %v787 = vsel %vm763, %v780, 0.0
    %v788 = vsel %vm764, %v780, 0.0
    %v789 = vsel %vm765, %v780, 0.0
    %v790 = vsel %vm766, %v780, 0.0
    %v791 = vsel %vm767, %v780, 0.0
    %v792 = vsel %vm768, %v780, 0.0
    %v793 = vsel %vm769, %v780, 0.0
    %v794 = vsel %vm770, %v784, 0.0
    %v795 = vsel %vm771, %v784, 0.0
    %v796 = vsel %vm772, %v784, 0.0
    %v797 = vsel %vm773, %v784, 0.0
    %v798 = vsel %vm774, %v784, 0.0
    %v799 = vsel %vm775, %v784, 0.0
    %v800 = vsel %vm776, %v784, 0.0
    %v801 = vsel %vm777, %v784, 0.0
    %v802 = vadd.f32 %v740, %v786
    %v803 = vadd.f32 %v741, %v787
    %v804 = vadd.f32 %v742, %v788
    %v805 = vadd.f32 %v743, %v789
    %v806 = vadd.f32 %v744, %v790
    %v807 = vadd.f32 %v745, %v791
    %v808 = vadd.f32 %v746, %v792
    %v809 = vadd.f32 %v747, %v793
    %v810 = vadd.f32 %v748, %v794
    %v811 = vadd.f32 %v749, %v795
    %v812 = vadd.f32 %v750, %v796
    %v813 = vadd.f32 %v751, %v797
    %v814 = vadd.f32 %v752, %v798
    %v815 = vadd.f32 %v753, %v799
    %v816 = vadd.f32 %v754, %v800
    %v817 = vadd.f32 %v755, %v801
    %818 = vset.pattern.permute.xlu0 11
    %819 = vperm.xlu0 %818, %v121
    %v820 = vpop.permute.xlu0 %819
    %821 = vset.pattern.permute.xlu0 11
    %822 = vperm.xlu0 %821, %v122
    %v823 = vpop.permute.xlu0 %822
    %vm824 = vcmp.eq.s32.totalorder %v820, %v126
    %vm825 = vcmp.eq.s32.totalorder %v820, %v127
    %vm826 = vcmp.eq.s32.totalorder %v820, %v128
    %vm827 = vcmp.eq.s32.totalorder %v820, %v129
    %vm828 = vcmp.eq.s32.totalorder %v820, %v130
    %vm829 = vcmp.eq.s32.totalorder %v820, %v131
    %vm830 = vcmp.eq.s32.totalorder %v820, %v132
    %vm831 = vcmp.eq.s32.totalorder %v820, %v133
    %vm832 = vcmp.eq.s32.totalorder %v823, %v126
    %vm833 = vcmp.eq.s32.totalorder %v823, %v127
    %vm834 = vcmp.eq.s32.totalorder %v823, %v128
    %vm835 = vcmp.eq.s32.totalorder %v823, %v129
    %vm836 = vcmp.eq.s32.totalorder %v823, %v130
    %vm837 = vcmp.eq.s32.totalorder %v823, %v131
    %vm838 = vcmp.eq.s32.totalorder %v823, %v132
    %vm839 = vcmp.eq.s32.totalorder %v823, %v133
    %840 = vset.pattern.permute.xlu0 11
    %841 = vperm.xlu0 %840, %v123
    %v842 = vpop.permute.xlu0 %841
    %844 = vset.pattern.permute.xlu0 11
    %845 = vperm.xlu0 %844, %v124
    %v846 = vpop.permute.xlu0 %845
    %v848 = vsel %vm824, %v842, 0.0
    %v849 = vsel %vm825, %v842, 0.0
    %v850 = vsel %vm826, %v842, 0.0
    %v851 = vsel %vm827, %v842, 0.0
    %v852 = vsel %vm828, %v842, 0.0
    %v853 = vsel %vm829, %v842, 0.0
    %v854 = vsel %vm830, %v842, 0.0
    %v855 = vsel %vm831, %v842, 0.0
    %v856 = vsel %vm832, %v846, 0.0
    %v857 = vsel %vm833, %v846, 0.0
    %v858 = vsel %vm834, %v846, 0.0
    %v859 = vsel %vm835, %v846, 0.0
    %v860 = vsel %vm836, %v846, 0.0
    %v861 = vsel %vm837, %v846, 0.0
    %v862 = vsel %vm838, %v846, 0.0
    %v863 = vsel %vm839, %v846, 0.0
    %v864 = vadd.f32 %v802, %v848
    %v865 = vadd.f32 %v803, %v849
    %v866 = vadd.f32 %v804, %v850
    %v867 = vadd.f32 %v805, %v851
    %v868 = vadd.f32 %v806, %v852
    %v869 = vadd.f32 %v807, %v853
    %v870 = vadd.f32 %v808, %v854
    %v871 = vadd.f32 %v809, %v855
    %v872 = vadd.f32 %v810, %v856
    %v873 = vadd.f32 %v811, %v857
    %v874 = vadd.f32 %v812, %v858
    %v875 = vadd.f32 %v813, %v859
    %v876 = vadd.f32 %v814, %v860
    %v877 = vadd.f32 %v815, %v861
    %v878 = vadd.f32 %v816, %v862
    %v879 = vadd.f32 %v817, %v863
    %880 = vset.pattern.permute.xlu0 12
    %881 = vperm.xlu0 %880, %v121
    %v882 = vpop.permute.xlu0 %881
    %883 = vset.pattern.permute.xlu0 12
    %884 = vperm.xlu0 %883, %v122
    %v885 = vpop.permute.xlu0 %884
    %vm886 = vcmp.eq.s32.totalorder %v882, %v126
    %vm887 = vcmp.eq.s32.totalorder %v882, %v127
    %vm888 = vcmp.eq.s32.totalorder %v882, %v128
    %vm889 = vcmp.eq.s32.totalorder %v882, %v129
    %vm890 = vcmp.eq.s32.totalorder %v882, %v130
    %vm891 = vcmp.eq.s32.totalorder %v882, %v131
    %vm892 = vcmp.eq.s32.totalorder %v882, %v132
    %vm893 = vcmp.eq.s32.totalorder %v882, %v133
    %vm894 = vcmp.eq.s32.totalorder %v885, %v126
    %vm895 = vcmp.eq.s32.totalorder %v885, %v127
    %vm896 = vcmp.eq.s32.totalorder %v885, %v128
    %vm897 = vcmp.eq.s32.totalorder %v885, %v129
    %vm898 = vcmp.eq.s32.totalorder %v885, %v130
    %vm899 = vcmp.eq.s32.totalorder %v885, %v131
    %vm900 = vcmp.eq.s32.totalorder %v885, %v132
    %vm901 = vcmp.eq.s32.totalorder %v885, %v133
    %902 = vset.pattern.permute.xlu0 12
    %903 = vperm.xlu0 %902, %v123
    %v904 = vpop.permute.xlu0 %903
    %906 = vset.pattern.permute.xlu0 12
    %907 = vperm.xlu0 %906, %v124
    %v908 = vpop.permute.xlu0 %907
    %v910 = vsel %vm886, %v904, 0.0
    %v911 = vsel %vm887, %v904, 0.0
    %v912 = vsel %vm888, %v904, 0.0
    %v913 = vsel %vm889, %v904, 0.0
    %v914 = vsel %vm890, %v904, 0.0
    %v915 = vsel %vm891, %v904, 0.0
    %v916 = vsel %vm892, %v904, 0.0
    %v917 = vsel %vm893, %v904, 0.0
    %v918 = vsel %vm894, %v908, 0.0
    %v919 = vsel %vm895, %v908, 0.0
    %v920 = vsel %vm896, %v908, 0.0
    %v921 = vsel %vm897, %v908, 0.0
    %v922 = vsel %vm898, %v908, 0.0
    %v923 = vsel %vm899, %v908, 0.0
    %v924 = vsel %vm900, %v908, 0.0
    %v925 = vsel %vm901, %v908, 0.0
    %v926 = vadd.f32 %v864, %v910
    %v927 = vadd.f32 %v865, %v911
    %v928 = vadd.f32 %v866, %v912
    %v929 = vadd.f32 %v867, %v913
    %v930 = vadd.f32 %v868, %v914
    %v931 = vadd.f32 %v869, %v915
    %v932 = vadd.f32 %v870, %v916
    %v933 = vadd.f32 %v871, %v917
    %v934 = vadd.f32 %v872, %v918
    %v935 = vadd.f32 %v873, %v919
    %v936 = vadd.f32 %v874, %v920
    %v937 = vadd.f32 %v875, %v921
    %v938 = vadd.f32 %v876, %v922
    %v939 = vadd.f32 %v877, %v923
    %v940 = vadd.f32 %v878, %v924
    %v941 = vadd.f32 %v879, %v925
    %942 = vset.pattern.permute.xlu0 13
    %943 = vperm.xlu0 %942, %v121
    %v944 = vpop.permute.xlu0 %943
    %945 = vset.pattern.permute.xlu0 13
    %946 = vperm.xlu0 %945, %v122
    %v947 = vpop.permute.xlu0 %946
    %vm948 = vcmp.eq.s32.totalorder %v944, %v126
    %vm949 = vcmp.eq.s32.totalorder %v944, %v127
    %vm950 = vcmp.eq.s32.totalorder %v944, %v128
    %vm951 = vcmp.eq.s32.totalorder %v944, %v129
    %vm952 = vcmp.eq.s32.totalorder %v944, %v130
    %vm953 = vcmp.eq.s32.totalorder %v944, %v131
    %vm954 = vcmp.eq.s32.totalorder %v944, %v132
    %vm955 = vcmp.eq.s32.totalorder %v944, %v133
    %vm956 = vcmp.eq.s32.totalorder %v947, %v126
    %vm957 = vcmp.eq.s32.totalorder %v947, %v127
    %vm958 = vcmp.eq.s32.totalorder %v947, %v128
    %vm959 = vcmp.eq.s32.totalorder %v947, %v129
    %vm960 = vcmp.eq.s32.totalorder %v947, %v130
    %vm961 = vcmp.eq.s32.totalorder %v947, %v131
    %vm962 = vcmp.eq.s32.totalorder %v947, %v132
    %vm963 = vcmp.eq.s32.totalorder %v947, %v133
    %964 = vset.pattern.permute.xlu0 13
    %965 = vperm.xlu0 %964, %v123
    %v966 = vpop.permute.xlu0 %965
    %968 = vset.pattern.permute.xlu0 13
    %969 = vperm.xlu0 %968, %v124
    %v970 = vpop.permute.xlu0 %969
    %v972 = vsel %vm948, %v966, 0.0
    %v973 = vsel %vm949, %v966, 0.0
    %v974 = vsel %vm950, %v966, 0.0
    %v975 = vsel %vm951, %v966, 0.0
    %v976 = vsel %vm952, %v966, 0.0
    %v977 = vsel %vm953, %v966, 0.0
    %v978 = vsel %vm954, %v966, 0.0
    %v979 = vsel %vm955, %v966, 0.0
    %v980 = vsel %vm956, %v970, 0.0
    %v981 = vsel %vm957, %v970, 0.0
    %v982 = vsel %vm958, %v970, 0.0
    %v983 = vsel %vm959, %v970, 0.0
    %v984 = vsel %vm960, %v970, 0.0
    %v985 = vsel %vm961, %v970, 0.0
    %v986 = vsel %vm962, %v970, 0.0
    %v987 = vsel %vm963, %v970, 0.0
    %v988 = vadd.f32 %v926, %v972
    %v989 = vadd.f32 %v927, %v973
    %v990 = vadd.f32 %v928, %v974
    %v991 = vadd.f32 %v929, %v975
    %v992 = vadd.f32 %v930, %v976
    %v993 = vadd.f32 %v931, %v977
    %v994 = vadd.f32 %v932, %v978
    %v995 = vadd.f32 %v933, %v979
    %v996 = vadd.f32 %v934, %v980
    %v997 = vadd.f32 %v935, %v981
    %v998 = vadd.f32 %v936, %v982
    %v999 = vadd.f32 %v937, %v983
    %v1000 = vadd.f32 %v938, %v984
    %v1001 = vadd.f32 %v939, %v985
    %v1002 = vadd.f32 %v940, %v986
    %v1003 = vadd.f32 %v941, %v987
    %1004 = vset.pattern.permute.xlu0 14
    %1005 = vperm.xlu0 %1004, %v121
    %v1006 = vpop.permute.xlu0 %1005
    %1007 = vset.pattern.permute.xlu0 14
    %1008 = vperm.xlu0 %1007, %v122
    %v1009 = vpop.permute.xlu0 %1008
    %vm1010 = vcmp.eq.s32.totalorder %v1006, %v126
    %vm1011 = vcmp.eq.s32.totalorder %v1006, %v127
    %vm1012 = vcmp.eq.s32.totalorder %v1006, %v128
    %vm1013 = vcmp.eq.s32.totalorder %v1006, %v129
    %vm1014 = vcmp.eq.s32.totalorder %v1006, %v130
    %vm1015 = vcmp.eq.s32.totalorder %v1006, %v131
    %vm1016 = vcmp.eq.s32.totalorder %v1006, %v132
    %vm1017 = vcmp.eq.s32.totalorder %v1006, %v133
    %vm1018 = vcmp.eq.s32.totalorder %v1009, %v126
    %vm1019 = vcmp.eq.s32.totalorder %v1009, %v127
    %vm1020 = vcmp.eq.s32.totalorder %v1009, %v128
    %vm1021 = vcmp.eq.s32.totalorder %v1009, %v129
    %vm1022 = vcmp.eq.s32.totalorder %v1009, %v130
    %vm1023 = vcmp.eq.s32.totalorder %v1009, %v131
    %vm1024 = vcmp.eq.s32.totalorder %v1009, %v132
    %vm1025 = vcmp.eq.s32.totalorder %v1009, %v133
    %1026 = vset.pattern.permute.xlu0 14
    %1027 = vperm.xlu0 %1026, %v123
    %v1028 = vpop.permute.xlu0 %1027
    %1030 = vset.pattern.permute.xlu0 14
    %1031 = vperm.xlu0 %1030, %v124
    %v1032 = vpop.permute.xlu0 %1031
    %v1034 = vsel %vm1010, %v1028, 0.0
    %v1035 = vsel %vm1011, %v1028, 0.0
    %v1036 = vsel %vm1012, %v1028, 0.0
    %v1037 = vsel %vm1013, %v1028, 0.0
    %v1038 = vsel %vm1014, %v1028, 0.0
    %v1039 = vsel %vm1015, %v1028, 0.0
    %v1040 = vsel %vm1016, %v1028, 0.0
    %v1041 = vsel %vm1017, %v1028, 0.0
    %v1042 = vsel %vm1018, %v1032, 0.0
    %v1043 = vsel %vm1019, %v1032, 0.0
    %v1044 = vsel %vm1020, %v1032, 0.0
    %v1045 = vsel %vm1021, %v1032, 0.0
    %v1046 = vsel %vm1022, %v1032, 0.0
    %v1047 = vsel %vm1023, %v1032, 0.0
    %v1048 = vsel %vm1024, %v1032, 0.0
    %v1049 = vsel %vm1025, %v1032, 0.0
    %v1050 = vadd.f32 %v988, %v1034
    %v1051 = vadd.f32 %v989, %v1035
    %v1052 = vadd.f32 %v990, %v1036
    %v1053 = vadd.f32 %v991, %v1037
    %v1054 = vadd.f32 %v992, %v1038
    %v1055 = vadd.f32 %v993, %v1039
    %v1056 = vadd.f32 %v994, %v1040
    %v1057 = vadd.f32 %v995, %v1041
    %v1058 = vadd.f32 %v996, %v1042
    %v1059 = vadd.f32 %v997, %v1043
    %v1060 = vadd.f32 %v998, %v1044
    %v1061 = vadd.f32 %v999, %v1045
    %v1062 = vadd.f32 %v1000, %v1046
    %v1063 = vadd.f32 %v1001, %v1047
    %v1064 = vadd.f32 %v1002, %v1048
    %v1065 = vadd.f32 %v1003, %v1049
    %1066 = vset.pattern.permute.xlu0 15
    %1067 = vperm.xlu0 %1066, %v121
    %v1068 = vpop.permute.xlu0 %1067
    %1069 = vset.pattern.permute.xlu0 15
    %1070 = vperm.xlu0 %1069, %v122
    %v1071 = vpop.permute.xlu0 %1070
    %vm1072 = vcmp.eq.s32.totalorder %v1068, %v126
    %vm1073 = vcmp.eq.s32.totalorder %v1068, %v127
    %vm1074 = vcmp.eq.s32.totalorder %v1068, %v128
    %vm1075 = vcmp.eq.s32.totalorder %v1068, %v129
    %vm1076 = vcmp.eq.s32.totalorder %v1068, %v130
    %vm1077 = vcmp.eq.s32.totalorder %v1068, %v131
    %vm1078 = vcmp.eq.s32.totalorder %v1068, %v132
    %vm1079 = vcmp.eq.s32.totalorder %v1068, %v133
    %vm1080 = vcmp.eq.s32.totalorder %v1071, %v126
    %vm1081 = vcmp.eq.s32.totalorder %v1071, %v127
    %vm1082 = vcmp.eq.s32.totalorder %v1071, %v128
    %vm1083 = vcmp.eq.s32.totalorder %v1071, %v129
    %vm1084 = vcmp.eq.s32.totalorder %v1071, %v130
    %vm1085 = vcmp.eq.s32.totalorder %v1071, %v131
    %vm1086 = vcmp.eq.s32.totalorder %v1071, %v132
    %vm1087 = vcmp.eq.s32.totalorder %v1071, %v133
    %1088 = vset.pattern.permute.xlu0 15
    %1089 = vperm.xlu0 %1088, %v123
    %v1090 = vpop.permute.xlu0 %1089
    %1092 = vset.pattern.permute.xlu0 15
    %1093 = vperm.xlu0 %1092, %v124
    %v1094 = vpop.permute.xlu0 %1093
    %v1096 = vsel %vm1072, %v1090, 0.0
    %v1097 = vsel %vm1073, %v1090, 0.0
    %v1098 = vsel %vm1074, %v1090, 0.0
    %v1099 = vsel %vm1075, %v1090, 0.0
    %v1100 = vsel %vm1076, %v1090, 0.0
    %v1101 = vsel %vm1077, %v1090, 0.0
    %v1102 = vsel %vm1078, %v1090, 0.0
    %v1103 = vsel %vm1079, %v1090, 0.0
    %v1104 = vsel %vm1080, %v1094, 0.0
    %v1105 = vsel %vm1081, %v1094, 0.0
    %v1106 = vsel %vm1082, %v1094, 0.0
    %v1107 = vsel %vm1083, %v1094, 0.0
    %v1108 = vsel %vm1084, %v1094, 0.0
    %v1109 = vsel %vm1085, %v1094, 0.0
    %v1110 = vsel %vm1086, %v1094, 0.0
    %v1111 = vsel %vm1087, %v1094, 0.0
    %v1112 = vadd.f32 %v1050, %v1096
    %v1113 = vadd.f32 %v1051, %v1097
    %v1114 = vadd.f32 %v1052, %v1098
    %v1115 = vadd.f32 %v1053, %v1099
    %v1116 = vadd.f32 %v1054, %v1100
    %v1117 = vadd.f32 %v1055, %v1101
    %v1118 = vadd.f32 %v1056, %v1102
    %v1119 = vadd.f32 %v1057, %v1103
    %v1120 = vadd.f32 %v1058, %v1104
    %v1121 = vadd.f32 %v1059, %v1105
    %v1122 = vadd.f32 %v1060, %v1106
    %v1123 = vadd.f32 %v1061, %v1107
    %v1124 = vadd.f32 %v1062, %v1108
    %v1125 = vadd.f32 %v1063, %v1109
    %v1126 = vadd.f32 %v1064, %v1110
    %v1127 = vadd.f32 %v1065, %v1111
    %v1128 = vpack.c.bf16 %v1120, %v1112
    %v1129 = vpack.c.bf16 %v1121, %v1113
    %v1130 = vpack.c.bf16 %v1122, %v1114
    %v1131 = vpack.c.bf16 %v1123, %v1115
    %v1132 = vpack.c.bf16 %v1124, %v1116
    %v1133 = vpack.c.bf16 %v1125, %v1117
    %v1134 = vpack.c.bf16 %v1126, %v1118
    %v1135 = vpack.c.bf16 %v1127, %v1119
    %v1136 = vld [vmem:[#allocation7] sm:$0xff]
    %v1137 = vld [vmem:[#allocation7 + $0x8] sm:$0xff]
    %v1138 = vld [vmem:[#allocation7 + $0x10] sm:$0xff]
    %v1139 = vld [vmem:[#allocation7 + $0x18] sm:$0xff]
    %v1140 = vld [vmem:[#allocation7 + $0x20] sm:$0xff]
    %v1141 = vld [vmem:[#allocation7 + $0x28] sm:$0xff]
    %v1142 = vld [vmem:[#allocation7 + $0x30] sm:$0xff]
    %v1143 = vld [vmem:[#allocation7 + $0x38] sm:$0xff]
    %v1144 = vld [vmem:[#allocation7 + $0x40] sm:$0xff]
    %v1145 = vld [vmem:[#allocation7 + $0x48] sm:$0xff]
    %v1146 = vld [vmem:[#allocation7 + $0x50] sm:$0xff]
    %v1147 = vld [vmem:[#allocation7 + $0x58] sm:$0xff]
    %v1148 = vld [vmem:[#allocation7 + $0x60] sm:$0xff]
    %v1149 = vld [vmem:[#allocation7 + $0x68] sm:$0xff]
    %v1150 = vld [vmem:[#allocation7 + $0x70] sm:$0xff]
    %v1151 = vld [vmem:[#allocation7 + $0x78] sm:$0xff]
    %v1152 = vld [vmem:[#allocation7 + $0x80] sm:$0xff]
    %v1153 = vld [vmem:[#allocation7 + $0x88] sm:$0xff]
    %v1154 = vld [vmem:[#allocation7 + $0x90] sm:$0xff]
    %v1155 = vld [vmem:[#allocation7 + $0x98] sm:$0xff]
    %v1156 = vld [vmem:[#allocation7 + $0xa0] sm:$0xff]
    %v1157 = vld [vmem:[#allocation7 + $0xa8] sm:$0xff]
    %v1158 = vld [vmem:[#allocation7 + $0xb0] sm:$0xff]
    %v1159 = vld [vmem:[#allocation7 + $0xb8] sm:$0xff]
    %v1160 = vld [vmem:[#allocation7 + $0xc0] sm:$0xff]
    %v1161 = vld [vmem:[#allocation7 + $0xc8] sm:$0xff]
    %v1162 = vld [vmem:[#allocation7 + $0xd0] sm:$0xff]
    %v1163 = vld [vmem:[#allocation7 + $0xd8] sm:$0xff]
    %v1164 = vld [vmem:[#allocation7 + $0xe0] sm:$0xff]
    %v1165 = vld [vmem:[#allocation7 + $0xe8] sm:$0xff]
    %v1166 = vld [vmem:[#allocation7 + $0xf0] sm:$0xff]
    %v1167 = vld [vmem:[#allocation7 + $0xf8] sm:$0xff]
    %v1168 = vld [vmem:[#allocation7 + $0x100] sm:$0xff]
    %v1169 = vld [vmem:[#allocation7 + $0x108] sm:$0xff]
    %v1170 = vld [vmem:[#allocation7 + $0x110] sm:$0xff]
    %v1171 = vld [vmem:[#allocation7 + $0x118] sm:$0xff]
    %v1172 = vld [vmem:[#allocation7 + $0x120] sm:$0xff]
    %v1173 = vld [vmem:[#allocation7 + $0x128] sm:$0xff]
    %v1174 = vld [vmem:[#allocation7 + $0x130] sm:$0xff]
    %v1175 = vld [vmem:[#allocation7 + $0x138] sm:$0xff]
    %v1176 = vld [vmem:[#allocation7 + $0x140] sm:$0xff]
    %v1177 = vld [vmem:[#allocation7 + $0x148] sm:$0xff]
    %v1178 = vld [vmem:[#allocation7 + $0x150] sm:$0xff]
    %v1179 = vld [vmem:[#allocation7 + $0x158] sm:$0xff]
    %v1180 = vld [vmem:[#allocation7 + $0x160] sm:$0xff]
    %v1181 = vld [vmem:[#allocation7 + $0x168] sm:$0xff]
    %v1182 = vld [vmem:[#allocation7 + $0x170] sm:$0xff]
    %v1183 = vld [vmem:[#allocation7 + $0x178] sm:$0xff]
    %v1184 = vld [vmem:[#allocation7 + $0x180] sm:$0xff]
    %v1185 = vld [vmem:[#allocation7 + $0x188] sm:$0xff]
    %v1186 = vld [vmem:[#allocation7 + $0x190] sm:$0xff]
    %v1187 = vld [vmem:[#allocation7 + $0x198] sm:$0xff]
    %v1188 = vld [vmem:[#allocation7 + $0x1a0] sm:$0xff]
    %v1189 = vld [vmem:[#allocation7 + $0x1a8] sm:$0xff]
    %v1190 = vld [vmem:[#allocation7 + $0x1b0] sm:$0xff]
    %v1191 = vld [vmem:[#allocation7 + $0x1b8] sm:$0xff]
    %v1192 = vld [vmem:[#allocation7 + $0x1c0] sm:$0xff]
    %v1193 = vld [vmem:[#allocation7 + $0x1c8] sm:$0xff]
    %v1194 = vld [vmem:[#allocation7 + $0x1d0] sm:$0xff]
    %v1195 = vld [vmem:[#allocation7 + $0x1d8] sm:$0xff]
    %v1196 = vld [vmem:[#allocation7 + $0x1e0] sm:$0xff]
    %v1197 = vld [vmem:[#allocation7 + $0x1e8] sm:$0xff]
    %v1198 = vld [vmem:[#allocation7 + $0x1f0] sm:$0xff]
    %v1199 = vld [vmem:[#allocation7 + $0x1f8] sm:$0xff]
    %v1200 = vld [vmem:[#allocation7 + $0x200] sm:$0xff]
    %v1201 = vld [vmem:[#allocation7 + $0x208] sm:$0xff]
    %v1202 = vld [vmem:[#allocation7 + $0x210] sm:$0xff]
    %v1203 = vld [vmem:[#allocation7 + $0x218] sm:$0xff]
    %v1204 = vld [vmem:[#allocation7 + $0x220] sm:$0xff]
    %v1205 = vld [vmem:[#allocation7 + $0x228] sm:$0xff]
    %v1206 = vld [vmem:[#allocation7 + $0x230] sm:$0xff]
    %v1207 = vld [vmem:[#allocation7 + $0x238] sm:$0xff]
    %v1208 = vld [vmem:[#allocation7 + $0x240] sm:$0xff]
    %v1209 = vld [vmem:[#allocation7 + $0x248] sm:$0xff]
    %v1210 = vld [vmem:[#allocation7 + $0x250] sm:$0xff]
    %v1211 = vld [vmem:[#allocation7 + $0x258] sm:$0xff]
    %v1212 = vld [vmem:[#allocation7 + $0x260] sm:$0xff]
    %v1213 = vld [vmem:[#allocation7 + $0x268] sm:$0xff]
    %v1214 = vld [vmem:[#allocation7 + $0x270] sm:$0xff]
    %v1215 = vld [vmem:[#allocation7 + $0x278] sm:$0xff]
    %v1216 = vld [vmem:[#allocation7 + $0x280] sm:$0xff]
    %v1217 = vld [vmem:[#allocation7 + $0x288] sm:$0xff]
    %v1218 = vld [vmem:[#allocation7 + $0x290] sm:$0xff]
    %v1219 = vld [vmem:[#allocation7 + $0x298] sm:$0xff]
    %v1220 = vld [vmem:[#allocation7 + $0x2a0] sm:$0xff]
    %v1221 = vld [vmem:[#allocation7 + $0x2a8] sm:$0xff]
    %v1222 = vld [vmem:[#allocation7 + $0x2b0] sm:$0xff]
    %v1223 = vld [vmem:[#allocation7 + $0x2b8] sm:$0xff]
    %v1224 = vld [vmem:[#allocation7 + $0x2c0] sm:$0xff]
    %v1225 = vld [vmem:[#allocation7 + $0x2c8] sm:$0xff]
    %v1226 = vld [vmem:[#allocation7 + $0x2d0] sm:$0xff]
    %v1227 = vld [vmem:[#allocation7 + $0x2d8] sm:$0xff]
    %v1228 = vld [vmem:[#allocation7 + $0x2e0] sm:$0xff]
    %v1229 = vld [vmem:[#allocation7 + $0x2e8] sm:$0xff]
    %v1230 = vld [vmem:[#allocation7 + $0x2f0] sm:$0xff]
    %v1231 = vld [vmem:[#allocation7 + $0x2f8] sm:$0xff]
    %v1232 = vld [vmem:[#allocation7 + $0x300] sm:$0xff]
    %v1233 = vld [vmem:[#allocation7 + $0x308] sm:$0xff]
    %v1234 = vld [vmem:[#allocation7 + $0x310] sm:$0xff]
    %v1235 = vld [vmem:[#allocation7 + $0x318] sm:$0xff]
    %v1236 = vld [vmem:[#allocation7 + $0x320] sm:$0xff]
    %v1237 = vld [vmem:[#allocation7 + $0x328] sm:$0xff]
    %v1238 = vld [vmem:[#allocation7 + $0x330] sm:$0xff]
    %v1239 = vld [vmem:[#allocation7 + $0x338] sm:$0xff]
    %v1240 = vld [vmem:[#allocation7 + $0x340] sm:$0xff]
    %v1241 = vld [vmem:[#allocation7 + $0x348] sm:$0xff]
    %v1242 = vld [vmem:[#allocation7 + $0x350] sm:$0xff]
    %v1243 = vld [vmem:[#allocation7 + $0x358] sm:$0xff]
    %v1244 = vld [vmem:[#allocation7 + $0x360] sm:$0xff]
    %v1245 = vld [vmem:[#allocation7 + $0x368] sm:$0xff]
    %v1246 = vld [vmem:[#allocation7 + $0x370] sm:$0xff]
    %v1247 = vld [vmem:[#allocation7 + $0x378] sm:$0xff]
    %v1248 = vld [vmem:[#allocation7 + $0x380] sm:$0xff]
    %v1249 = vld [vmem:[#allocation7 + $0x388] sm:$0xff]
    %v1250 = vld [vmem:[#allocation7 + $0x390] sm:$0xff]
    %v1251 = vld [vmem:[#allocation7 + $0x398] sm:$0xff]
    %v1252 = vld [vmem:[#allocation7 + $0x3a0] sm:$0xff]
    %v1253 = vld [vmem:[#allocation7 + $0x3a8] sm:$0xff]
    %v1254 = vld [vmem:[#allocation7 + $0x3b0] sm:$0xff]
    %v1255 = vld [vmem:[#allocation7 + $0x3b8] sm:$0xff]
    %v1256 = vld [vmem:[#allocation7 + $0x3c0] sm:$0xff]
    %v1257 = vld [vmem:[#allocation7 + $0x3c8] sm:$0xff]
    %v1258 = vld [vmem:[#allocation7 + $0x3d0] sm:$0xff]
    %v1259 = vld [vmem:[#allocation7 + $0x3d8] sm:$0xff]
    %v1260 = vld [vmem:[#allocation7 + $0x3e0] sm:$0xff]
    %v1261 = vld [vmem:[#allocation7 + $0x3e8] sm:$0xff]
    %v1262 = vld [vmem:[#allocation7 + $0x3f0] sm:$0xff]
    %v1263 = vld [vmem:[#allocation7 + $0x3f8] sm:$0xff]
    %v1264 = vld [vmem:[#allocation7 + $0x400] sm:$0xff]
    %v1265 = vld [vmem:[#allocation7 + $0x408] sm:$0xff]
    %v1266 = vld [vmem:[#allocation7 + $0x410] sm:$0xff]
    %v1267 = vld [vmem:[#allocation7 + $0x418] sm:$0xff]
    %v1268 = vld [vmem:[#allocation7 + $0x420] sm:$0xff]
    %v1269 = vld [vmem:[#allocation7 + $0x428] sm:$0xff]
    %v1270 = vld [vmem:[#allocation7 + $0x430] sm:$0xff]
    %v1271 = vld [vmem:[#allocation7 + $0x438] sm:$0xff]
    %v1272 = vld [vmem:[#allocation7 + $0x440] sm:$0xff]
    %v1273 = vld [vmem:[#allocation7 + $0x448] sm:$0xff]
    %v1274 = vld [vmem:[#allocation7 + $0x450] sm:$0xff]
    %v1275 = vld [vmem:[#allocation7 + $0x458] sm:$0xff]
    %v1276 = vld [vmem:[#allocation7 + $0x460] sm:$0xff]
    %v1277 = vld [vmem:[#allocation7 + $0x468] sm:$0xff]
    %v1278 = vld [vmem:[#allocation7 + $0x470] sm:$0xff]
    %v1279 = vld [vmem:[#allocation7 + $0x478] sm:$0xff]
    %v1280 = vld [vmem:[#allocation7 + $0x480] sm:$0xff]
    %v1281 = vld [vmem:[#allocation7 + $0x488] sm:$0xff]
    %v1282 = vld [vmem:[#allocation7 + $0x490] sm:$0xff]
    %v1283 = vld [vmem:[#allocation7 + $0x498] sm:$0xff]
    %v1284 = vld [vmem:[#allocation7 + $0x4a0] sm:$0xff]
    %v1285 = vld [vmem:[#allocation7 + $0x4a8] sm:$0xff]
    %v1286 = vld [vmem:[#allocation7 + $0x4b0] sm:$0xff]
    %v1287 = vld [vmem:[#allocation7 + $0x4b8] sm:$0xff]
    %v1288 = vld [vmem:[#allocation7 + $0x4c0] sm:$0xff]
    %v1289 = vld [vmem:[#allocation7 + $0x4c8] sm:$0xff]
    %v1290 = vld [vmem:[#allocation7 + $0x4d0] sm:$0xff]
    %v1291 = vld [vmem:[#allocation7 + $0x4d8] sm:$0xff]
    %v1292 = vld [vmem:[#allocation7 + $0x4e0] sm:$0xff]
    %v1293 = vld [vmem:[#allocation7 + $0x4e8] sm:$0xff]
    %v1294 = vld [vmem:[#allocation7 + $0x4f0] sm:$0xff]
    %v1295 = vld [vmem:[#allocation7 + $0x4f8] sm:$0xff]
    %v1296 = vld [vmem:[#allocation7 + $0x500] sm:$0xff]
    %v1297 = vld [vmem:[#allocation7 + $0x508] sm:$0xff]
    %v1298 = vld [vmem:[#allocation7 + $0x510] sm:$0xff]
    %v1299 = vld [vmem:[#allocation7 + $0x518] sm:$0xff]
    %v1300 = vld [vmem:[#allocation7 + $0x520] sm:$0xff]
    %v1301 = vld [vmem:[#allocation7 + $0x528] sm:$0xff]
    %v1302 = vld [vmem:[#allocation7 + $0x530] sm:$0xff]
    %v1303 = vld [vmem:[#allocation7 + $0x538] sm:$0xff]
    %v1304 = vld [vmem:[#allocation7 + $0x540] sm:$0xff]
    %v1305 = vld [vmem:[#allocation7 + $0x548] sm:$0xff]
    %v1306 = vld [vmem:[#allocation7 + $0x550] sm:$0xff]
    %v1307 = vld [vmem:[#allocation7 + $0x558] sm:$0xff]
    %v1308 = vld [vmem:[#allocation7 + $0x560] sm:$0xff]
    %v1309 = vld [vmem:[#allocation7 + $0x568] sm:$0xff]
    %v1310 = vld [vmem:[#allocation7 + $0x570] sm:$0xff]
    %v1311 = vld [vmem:[#allocation7 + $0x578] sm:$0xff]
    %v1312 = vld [vmem:[#allocation7 + $0x580] sm:$0xff]
    %v1313 = vld [vmem:[#allocation7 + $0x588] sm:$0xff]
    %v1314 = vld [vmem:[#allocation7 + $0x590] sm:$0xff]
    %v1315 = vld [vmem:[#allocation7 + $0x598] sm:$0xff]
    %v1316 = vld [vmem:[#allocation7 + $0x5a0] sm:$0xff]
    %v1317 = vld [vmem:[#allocation7 + $0x5a8] sm:$0xff]
    %v1318 = vld [vmem:[#allocation7 + $0x5b0] sm:$0xff]
    %v1319 = vld [vmem:[#allocation7 + $0x5b8] sm:$0xff]
    %v1320 = vld [vmem:[#allocation7 + $0x5c0] sm:$0xff]
    %v1321 = vld [vmem:[#allocation7 + $0x5c8] sm:$0xff]
    %v1322 = vld [vmem:[#allocation7 + $0x5d0] sm:$0xff]
    %v1323 = vld [vmem:[#allocation7 + $0x5d8] sm:$0xff]
    %v1324 = vld [vmem:[#allocation7 + $0x5e0] sm:$0xff]
    %v1325 = vld [vmem:[#allocation7 + $0x5e8] sm:$0xff]
    %v1326 = vld [vmem:[#allocation7 + $0x5f0] sm:$0xff]
    %v1327 = vld [vmem:[#allocation7 + $0x5f8] sm:$0xff]
    %v1328 = vld [vmem:[#allocation7 + $0x600] sm:$0xff]
    %v1329 = vld [vmem:[#allocation7 + $0x608] sm:$0xff]
    %v1330 = vld [vmem:[#allocation7 + $0x610] sm:$0xff]
    %v1331 = vld [vmem:[#allocation7 + $0x618] sm:$0xff]
    %v1332 = vld [vmem:[#allocation7 + $0x620] sm:$0xff]
    %v1333 = vld [vmem:[#allocation7 + $0x628] sm:$0xff]
    %v1334 = vld [vmem:[#allocation7 + $0x630] sm:$0xff]
    %v1335 = vld [vmem:[#allocation7 + $0x638] sm:$0xff]
    %v1336 = vld [vmem:[#allocation7 + $0x640] sm:$0xff]
    %v1337 = vld [vmem:[#allocation7 + $0x648] sm:$0xff]
    %v1338 = vld [vmem:[#allocation7 + $0x650] sm:$0xff]
    %v1339 = vld [vmem:[#allocation7 + $0x658] sm:$0xff]
    %v1340 = vld [vmem:[#allocation7 + $0x660] sm:$0xff]
    %v1341 = vld [vmem:[#allocation7 + $0x668] sm:$0xff]
    %v1342 = vld [vmem:[#allocation7 + $0x670] sm:$0xff]
    %v1343 = vld [vmem:[#allocation7 + $0x678] sm:$0xff]
    %v1344 = vld [vmem:[#allocation7 + $0x680] sm:$0xff]
    %v1345 = vld [vmem:[#allocation7 + $0x688] sm:$0xff]
    %v1346 = vld [vmem:[#allocation7 + $0x690] sm:$0xff]
    %v1347 = vld [vmem:[#allocation7 + $0x698] sm:$0xff]
    %v1348 = vld [vmem:[#allocation7 + $0x6a0] sm:$0xff]
    %v1349 = vld [vmem:[#allocation7 + $0x6a8] sm:$0xff]
    %v1350 = vld [vmem:[#allocation7 + $0x6b0] sm:$0xff]
    %v1351 = vld [vmem:[#allocation7 + $0x6b8] sm:$0xff]
    %v1352 = vld [vmem:[#allocation7 + $0x6c0] sm:$0xff]
    %v1353 = vld [vmem:[#allocation7 + $0x6c8] sm:$0xff]
    %v1354 = vld [vmem:[#allocation7 + $0x6d0] sm:$0xff]
    %v1355 = vld [vmem:[#allocation7 + $0x6d8] sm:$0xff]
    %v1356 = vld [vmem:[#allocation7 + $0x6e0] sm:$0xff]
    %v1357 = vld [vmem:[#allocation7 + $0x6e8] sm:$0xff]
    %v1358 = vld [vmem:[#allocation7 + $0x6f0] sm:$0xff]
    %v1359 = vld [vmem:[#allocation7 + $0x6f8] sm:$0xff]
    %v1360 = vld [vmem:[#allocation7 + $0x700] sm:$0xff]
    %v1361 = vld [vmem:[#allocation7 + $0x708] sm:$0xff]
    %v1362 = vld [vmem:[#allocation7 + $0x710] sm:$0xff]
    %v1363 = vld [vmem:[#allocation7 + $0x718] sm:$0xff]
    %v1364 = vld [vmem:[#allocation7 + $0x720] sm:$0xff]
    %v1365 = vld [vmem:[#allocation7 + $0x728] sm:$0xff]
    %v1366 = vld [vmem:[#allocation7 + $0x730] sm:$0xff]
    %v1367 = vld [vmem:[#allocation7 + $0x738] sm:$0xff]
    %v1368 = vld [vmem:[#allocation7 + $0x740] sm:$0xff]
    %v1369 = vld [vmem:[#allocation7 + $0x748] sm:$0xff]
    %v1370 = vld [vmem:[#allocation7 + $0x750] sm:$0xff]
    %v1371 = vld [vmem:[#allocation7 + $0x758] sm:$0xff]
    %v1372 = vld [vmem:[#allocation7 + $0x760] sm:$0xff]
    %v1373 = vld [vmem:[#allocation7 + $0x768] sm:$0xff]
    %v1374 = vld [vmem:[#allocation7 + $0x770] sm:$0xff]
    %v1375 = vld [vmem:[#allocation7 + $0x778] sm:$0xff]
    %v1376 = vld [vmem:[#allocation7 + $0x780] sm:$0xff]
    %v1377 = vld [vmem:[#allocation7 + $0x788] sm:$0xff]
    %v1378 = vld [vmem:[#allocation7 + $0x790] sm:$0xff]
    %v1379 = vld [vmem:[#allocation7 + $0x798] sm:$0xff]
    %v1380 = vld [vmem:[#allocation7 + $0x7a0] sm:$0xff]
    %v1381 = vld [vmem:[#allocation7 + $0x7a8] sm:$0xff]
    %v1382 = vld [vmem:[#allocation7 + $0x7b0] sm:$0xff]
    %v1383 = vld [vmem:[#allocation7 + $0x7b8] sm:$0xff]
    %v1384 = vld [vmem:[#allocation7 + $0x7c0] sm:$0xff]
    %v1385 = vld [vmem:[#allocation7 + $0x7c8] sm:$0xff]
    %v1386 = vld [vmem:[#allocation7 + $0x7d0] sm:$0xff]
    %v1387 = vld [vmem:[#allocation7 + $0x7d8] sm:$0xff]
    %v1388 = vld [vmem:[#allocation7 + $0x7e0] sm:$0xff]
    %v1389 = vld [vmem:[#allocation7 + $0x7e8] sm:$0xff]
    %v1390 = vld [vmem:[#allocation7 + $0x7f0] sm:$0xff]
    %v1391 = vld [vmem:[#allocation7 + $0x7f8] sm:$0xff]
    %v1392 = vld [vmem:[#allocation7 + $0x800] sm:$0xff]
    %v1393 = vld [vmem:[#allocation7 + $0x808] sm:$0xff]
    %v1394 = vld [vmem:[#allocation7 + $0x810] sm:$0xff]
    %v1395 = vld [vmem:[#allocation7 + $0x818] sm:$0xff]
    %v1396 = vld [vmem:[#allocation7 + $0x820] sm:$0xff]
    %v1397 = vld [vmem:[#allocation7 + $0x828] sm:$0xff]
    %v1398 = vld [vmem:[#allocation7 + $0x830] sm:$0xff]
    %v1399 = vld [vmem:[#allocation7 + $0x838] sm:$0xff]
    %v1400 = vld [vmem:[#allocation7 + $0x840] sm:$0xff]
    %v1401 = vld [vmem:[#allocation7 + $0x848] sm:$0xff]
    %v1402 = vld [vmem:[#allocation7 + $0x850] sm:$0xff]
    %v1403 = vld [vmem:[#allocation7 + $0x858] sm:$0xff]
    %v1404 = vld [vmem:[#allocation7 + $0x860] sm:$0xff]
    %v1405 = vld [vmem:[#allocation7 + $0x868] sm:$0xff]
    %v1406 = vld [vmem:[#allocation7 + $0x870] sm:$0xff]
    %v1407 = vld [vmem:[#allocation7 + $0x878] sm:$0xff]
    %v1408 = vld [vmem:[#allocation7 + $0x880] sm:$0xff]
    %v1409 = vld [vmem:[#allocation7 + $0x888] sm:$0xff]
    %v1410 = vld [vmem:[#allocation7 + $0x890] sm:$0xff]
    %v1411 = vld [vmem:[#allocation7 + $0x898] sm:$0xff]
    %v1412 = vld [vmem:[#allocation7 + $0x8a0] sm:$0xff]
    %v1413 = vld [vmem:[#allocation7 + $0x8a8] sm:$0xff]
    %v1414 = vld [vmem:[#allocation7 + $0x8b0] sm:$0xff]
    %v1415 = vld [vmem:[#allocation7 + $0x8b8] sm:$0xff]
    %v1416 = vld [vmem:[#allocation7 + $0x8c0] sm:$0xff]
    %v1417 = vld [vmem:[#allocation7 + $0x8c8] sm:$0xff]
    %v1418 = vld [vmem:[#allocation7 + $0x8d0] sm:$0xff]
    %v1419 = vld [vmem:[#allocation7 + $0x8d8] sm:$0xff]
    %v1420 = vld [vmem:[#allocation7 + $0x8e0] sm:$0xff]
    %v1421 = vld [vmem:[#allocation7 + $0x8e8] sm:$0xff]
    %v1422 = vld [vmem:[#allocation7 + $0x8f0] sm:$0xff]
    %v1423 = vld [vmem:[#allocation7 + $0x8f8] sm:$0xff]
    %v1424 = vld [vmem:[#allocation7 + $0x900] sm:$0xff]
    %v1425 = vld [vmem:[#allocation7 + $0x908] sm:$0xff]
    %v1426 = vld [vmem:[#allocation7 + $0x910] sm:$0xff]
    %v1427 = vld [vmem:[#allocation7 + $0x918] sm:$0xff]
    %v1428 = vld [vmem:[#allocation7 + $0x920] sm:$0xff]
    %v1429 = vld [vmem:[#allocation7 + $0x928] sm:$0xff]
    %v1430 = vld [vmem:[#allocation7 + $0x930] sm:$0xff]
    %v1431 = vld [vmem:[#allocation7 + $0x938] sm:$0xff]
    %v1432 = vld [vmem:[#allocation7 + $0x940] sm:$0xff]
    %v1433 = vld [vmem:[#allocation7 + $0x948] sm:$0xff]
    %v1434 = vld [vmem:[#allocation7 + $0x950] sm:$0xff]
    %v1435 = vld [vmem:[#allocation7 + $0x958] sm:$0xff]
    %v1436 = vld [vmem:[#allocation7 + $0x960] sm:$0xff]
    %v1437 = vld [vmem:[#allocation7 + $0x968] sm:$0xff]
    %v1438 = vld [vmem:[#allocation7 + $0x970] sm:$0xff]
    %v1439 = vld [vmem:[#allocation7 + $0x978] sm:$0xff]
    %v1440 = vld [vmem:[#allocation7 + $0x980] sm:$0xff]
    %v1441 = vld [vmem:[#allocation7 + $0x988] sm:$0xff]
    %v1442 = vld [vmem:[#allocation7 + $0x990] sm:$0xff]
    %v1443 = vld [vmem:[#allocation7 + $0x998] sm:$0xff]
    %v1444 = vld [vmem:[#allocation7 + $0x9a0] sm:$0xff]
    %v1445 = vld [vmem:[#allocation7 + $0x9a8] sm:$0xff]
    %v1446 = vld [vmem:[#allocation7 + $0x9b0] sm:$0xff]
    %v1447 = vld [vmem:[#allocation7 + $0x9b8] sm:$0xff]
    %v1448 = vld [vmem:[#allocation7 + $0x9c0] sm:$0xff]
    %v1449 = vld [vmem:[#allocation7 + $0x9c8] sm:$0xff]
    %v1450 = vld [vmem:[#allocation7 + $0x9d0] sm:$0xff]
    %v1451 = vld [vmem:[#allocation7 + $0x9d8] sm:$0xff]
    %v1452 = vld [vmem:[#allocation7 + $0x9e0] sm:$0xff]
    %v1453 = vld [vmem:[#allocation7 + $0x9e8] sm:$0xff]
    %v1454 = vld [vmem:[#allocation7 + $0x9f0] sm:$0xff]
    %v1455 = vld [vmem:[#allocation7 + $0x9f8] sm:$0xff]
    %v1456 = vld [vmem:[#allocation7 + $0xa00] sm:$0xff]
    %v1457 = vld [vmem:[#allocation7 + $0xa08] sm:$0xff]
    %v1458 = vld [vmem:[#allocation7 + $0xa10] sm:$0xff]
    %v1459 = vld [vmem:[#allocation7 + $0xa18] sm:$0xff]
    %v1460 = vld [vmem:[#allocation7 + $0xa20] sm:$0xff]
    %v1461 = vld [vmem:[#allocation7 + $0xa28] sm:$0xff]
    %v1462 = vld [vmem:[#allocation7 + $0xa30] sm:$0xff]
    %v1463 = vld [vmem:[#allocation7 + $0xa38] sm:$0xff]
    %v1464 = vld [vmem:[#allocation7 + $0xa40] sm:$0xff]
    %v1465 = vld [vmem:[#allocation7 + $0xa48] sm:$0xff]
    %v1466 = vld [vmem:[#allocation7 + $0xa50] sm:$0xff]
    %v1467 = vld [vmem:[#allocation7 + $0xa58] sm:$0xff]
    %v1468 = vld [vmem:[#allocation7 + $0xa60] sm:$0xff]
    %v1469 = vld [vmem:[#allocation7 + $0xa68] sm:$0xff]
    %v1470 = vld [vmem:[#allocation7 + $0xa70] sm:$0xff]
    %v1471 = vld [vmem:[#allocation7 + $0xa78] sm:$0xff]
    %v1472 = vld [vmem:[#allocation7 + $0xa80] sm:$0xff]
    %v1473 = vld [vmem:[#allocation7 + $0xa88] sm:$0xff]
    %v1474 = vld [vmem:[#allocation7 + $0xa90] sm:$0xff]
    %v1475 = vld [vmem:[#allocation7 + $0xa98] sm:$0xff]
    %v1476 = vld [vmem:[#allocation7 + $0xaa0] sm:$0xff]
    %v1477 = vld [vmem:[#allocation7 + $0xaa8] sm:$0xff]
    %v1478 = vld [vmem:[#allocation7 + $0xab0] sm:$0xff]
    %v1479 = vld [vmem:[#allocation7 + $0xab8] sm:$0xff]
    %v1480 = vld [vmem:[#allocation7 + $0xac0] sm:$0xff]
    %v1481 = vld [vmem:[#allocation7 + $0xac8] sm:$0xff]
    %v1482 = vld [vmem:[#allocation7 + $0xad0] sm:$0xff]
    %v1483 = vld [vmem:[#allocation7 + $0xad8] sm:$0xff]
    %v1484 = vld [vmem:[#allocation7 + $0xae0] sm:$0xff]
    %v1485 = vld [vmem:[#allocation7 + $0xae8] sm:$0xff]
    %v1486 = vld [vmem:[#allocation7 + $0xaf0] sm:$0xff]
    %v1487 = vld [vmem:[#allocation7 + $0xaf8] sm:$0xff]
    %v1488 = vld [vmem:[#allocation7 + $0xb00] sm:$0xff]
    %v1489 = vld [vmem:[#allocation7 + $0xb08] sm:$0xff]
    %v1490 = vld [vmem:[#allocation7 + $0xb10] sm:$0xff]
    %v1491 = vld [vmem:[#allocation7 + $0xb18] sm:$0xff]
    %v1492 = vld [vmem:[#allocation7 + $0xb20] sm:$0xff]
    %v1493 = vld [vmem:[#allocation7 + $0xb28] sm:$0xff]
    %v1494 = vld [vmem:[#allocation7 + $0xb30] sm:$0xff]
    %v1495 = vld [vmem:[#allocation7 + $0xb38] sm:$0xff]
    %v1496 = vld [vmem:[#allocation7 + $0xb40] sm:$0xff]
    %v1497 = vld [vmem:[#allocation7 + $0xb48] sm:$0xff]
    %v1498 = vld [vmem:[#allocation7 + $0xb50] sm:$0xff]
    %v1499 = vld [vmem:[#allocation7 + $0xb58] sm:$0xff]
    %v1500 = vld [vmem:[#allocation7 + $0xb60] sm:$0xff]
    %v1501 = vld [vmem:[#allocation7 + $0xb68] sm:$0xff]
    %v1502 = vld [vmem:[#allocation7 + $0xb70] sm:$0xff]
    %v1503 = vld [vmem:[#allocation7 + $0xb78] sm:$0xff]
    %v1504 = vld [vmem:[#allocation7 + $0xb80] sm:$0xff]
    %v1505 = vld [vmem:[#allocation7 + $0xb88] sm:$0xff]
    %v1506 = vld [vmem:[#allocation7 + $0xb90] sm:$0xff]
    %v1507 = vld [vmem:[#allocation7 + $0xb98] sm:$0xff]
    %v1508 = vld [vmem:[#allocation7 + $0xba0] sm:$0xff]
    %v1509 = vld [vmem:[#allocation7 + $0xba8] sm:$0xff]
    %v1510 = vld [vmem:[#allocation7 + $0xbb0] sm:$0xff]
    %v1511 = vld [vmem:[#allocation7 + $0xbb8] sm:$0xff]
    %v1512 = vld [vmem:[#allocation7 + $0xbc0] sm:$0xff]
    %v1513 = vld [vmem:[#allocation7 + $0xbc8] sm:$0xff]
    %v1514 = vld [vmem:[#allocation7 + $0xbd0] sm:$0xff]
    %v1515 = vld [vmem:[#allocation7 + $0xbd8] sm:$0xff]
    %v1516 = vld [vmem:[#allocation7 + $0xbe0] sm:$0xff]
    %v1517 = vld [vmem:[#allocation7 + $0xbe8] sm:$0xff]
    %v1518 = vld [vmem:[#allocation7 + $0xbf0] sm:$0xff]
    %v1519 = vld [vmem:[#allocation7 + $0xbf8] sm:$0xff]
    %v1904 = vunpack.c.l.b16 %v1136
    %v1905 = vunpack.c.h.b16 %v1136
    %v1906 = vunpack.c.l.b16 %v1137
    %v1907 = vunpack.c.h.b16 %v1137
    %v1908 = vunpack.c.l.b16 %v1138
    %v1909 = vunpack.c.h.b16 %v1138
    %v1910 = vunpack.c.l.b16 %v1139
    %v1911 = vunpack.c.h.b16 %v1139
    %v1912 = vunpack.c.l.b16 %v1140
    %v1913 = vunpack.c.h.b16 %v1140
    %v1914 = vunpack.c.l.b16 %v1141
    %v1915 = vunpack.c.h.b16 %v1141
    %v1916 = vunpack.c.l.b16 %v1142
    %v1917 = vunpack.c.h.b16 %v1142
    %v1918 = vunpack.c.l.b16 %v1143
    %v1919 = vunpack.c.h.b16 %v1143
    %v1920 = vunpack.c.l.b16 %v1144
    %v1921 = vunpack.c.h.b16 %v1144
    %v1922 = vunpack.c.l.b16 %v1145
    %v1923 = vunpack.c.h.b16 %v1145
    %v1924 = vunpack.c.l.b16 %v1146
    %v1925 = vunpack.c.h.b16 %v1146
    %v1926 = vunpack.c.l.b16 %v1147
    %v1927 = vunpack.c.h.b16 %v1147
    %v1928 = vunpack.c.l.b16 %v1148
    %v1929 = vunpack.c.h.b16 %v1148
    %v1930 = vunpack.c.l.b16 %v1149
    %v1931 = vunpack.c.h.b16 %v1149
    %v1932 = vunpack.c.l.b16 %v1150
    %v1933 = vunpack.c.h.b16 %v1150
    %v1934 = vunpack.c.l.b16 %v1151
    %v1935 = vunpack.c.h.b16 %v1151
    %v1936 = vunpack.c.l.b16 %v1152
    %v1937 = vunpack.c.h.b16 %v1152
    %v1938 = vunpack.c.l.b16 %v1153
    %v1939 = vunpack.c.h.b16 %v1153
    %v1940 = vunpack.c.l.b16 %v1154
    %v1941 = vunpack.c.h.b16 %v1154
    %v1942 = vunpack.c.l.b16 %v1155
    %v1943 = vunpack.c.h.b16 %v1155
    %v1944 = vunpack.c.l.b16 %v1156
    %v1945 = vunpack.c.h.b16 %v1156
    %v1946 = vunpack.c.l.b16 %v1157
    %v1947 = vunpack.c.h.b16 %v1157
    %v1948 = vunpack.c.l.b16 %v1158
    %v1949 = vunpack.c.h.b16 %v1158
    %v1950 = vunpack.c.l.b16 %v1159
    %v1951 = vunpack.c.h.b16 %v1159
    %v1952 = vunpack.c.l.b16 %v1160
    %v1953 = vunpack.c.h.b16 %v1160
    %v1954 = vunpack.c.l.b16 %v1161
    %v1955 = vunpack.c.h.b16 %v1161
    %v1956 = vunpack.c.l.b16 %v1162
    %v1957 = vunpack.c.h.b16 %v1162
    %v1958 = vunpack.c.l.b16 %v1163
    %v1959 = vunpack.c.h.b16 %v1163
    %v1960 = vunpack.c.l.b16 %v1164
    %v1961 = vunpack.c.h.b16 %v1164
    %v1962 = vunpack.c.l.b16 %v1165
    %v1963 = vunpack.c.h.b16 %v1165
    %v1964 = vunpack.c.l.b16 %v1166
    %v1965 = vunpack.c.h.b16 %v1166
    %v1966 = vunpack.c.l.b16 %v1167
    %v1967 = vunpack.c.h.b16 %v1167
    %v1968 = vunpack.c.l.b16 %v1168
    %v1969 = vunpack.c.h.b16 %v1168
    %v1970 = vunpack.c.l.b16 %v1169
    %v1971 = vunpack.c.h.b16 %v1169
    %v1972 = vunpack.c.l.b16 %v1170
    %v1973 = vunpack.c.h.b16 %v1170
    %v1974 = vunpack.c.l.b16 %v1171
    %v1975 = vunpack.c.h.b16 %v1171
    %v1976 = vunpack.c.l.b16 %v1172
    %v1977 = vunpack.c.h.b16 %v1172
    %v1978 = vunpack.c.l.b16 %v1173
    %v1979 = vunpack.c.h.b16 %v1173
    %v1980 = vunpack.c.l.b16 %v1174
    %v1981 = vunpack.c.h.b16 %v1174
    %v1982 = vunpack.c.l.b16 %v1175
    %v1983 = vunpack.c.h.b16 %v1175
    %v1984 = vunpack.c.l.b16 %v1176
    %v1985 = vunpack.c.h.b16 %v1176
    %v1986 = vunpack.c.l.b16 %v1177
    %v1987 = vunpack.c.h.b16 %v1177
    %v1988 = vunpack.c.l.b16 %v1178
    %v1989 = vunpack.c.h.b16 %v1178
    %v1990 = vunpack.c.l.b16 %v1179
    %v1991 = vunpack.c.h.b16 %v1179
    %v1992 = vunpack.c.l.b16 %v1180
    %v1993 = vunpack.c.h.b16 %v1180
    %v1994 = vunpack.c.l.b16 %v1181
    %v1995 = vunpack.c.h.b16 %v1181
    %v1996 = vunpack.c.l.b16 %v1182
    %v1997 = vunpack.c.h.b16 %v1182
    %v1998 = vunpack.c.l.b16 %v1183
    %v1999 = vunpack.c.h.b16 %v1183
    %v2000 = vunpack.c.l.b16 %v1184
    %v2001 = vunpack.c.h.b16 %v1184
    %v2002 = vunpack.c.l.b16 %v1185
    %v2003 = vunpack.c.h.b16 %v1185
    %v2004 = vunpack.c.l.b16 %v1186
    %v2005 = vunpack.c.h.b16 %v1186
    %v2006 = vunpack.c.l.b16 %v1187
    %v2007 = vunpack.c.h.b16 %v1187
    %v2008 = vunpack.c.l.b16 %v1188
    %v2009 = vunpack.c.h.b16 %v1188
    %v2010 = vunpack.c.l.b16 %v1189
    %v2011 = vunpack.c.h.b16 %v1189
    %v2012 = vunpack.c.l.b16 %v1190
    %v2013 = vunpack.c.h.b16 %v1190
    %v2014 = vunpack.c.l.b16 %v1191
    %v2015 = vunpack.c.h.b16 %v1191
    %v2016 = vunpack.c.l.b16 %v1192
    %v2017 = vunpack.c.h.b16 %v1192
    %v2018 = vunpack.c.l.b16 %v1193
    %v2019 = vunpack.c.h.b16 %v1193
    %v2020 = vunpack.c.l.b16 %v1194
    %v2021 = vunpack.c.h.b16 %v1194
    %v2022 = vunpack.c.l.b16 %v1195
    %v2023 = vunpack.c.h.b16 %v1195
    %v2024 = vunpack.c.l.b16 %v1196
    %v2025 = vunpack.c.h.b16 %v1196
    %v2026 = vunpack.c.l.b16 %v1197
    %v2027 = vunpack.c.h.b16 %v1197
    %v2028 = vunpack.c.l.b16 %v1198
    %v2029 = vunpack.c.h.b16 %v1198
    %v2030 = vunpack.c.l.b16 %v1199
    %v2031 = vunpack.c.h.b16 %v1199
    %v2032 = vunpack.c.l.b16 %v1200
    %v2033 = vunpack.c.h.b16 %v1200
    %v2034 = vunpack.c.l.b16 %v1201
    %v2035 = vunpack.c.h.b16 %v1201
    %v2036 = vunpack.c.l.b16 %v1202
    %v2037 = vunpack.c.h.b16 %v1202
    %v2038 = vunpack.c.l.b16 %v1203
    %v2039 = vunpack.c.h.b16 %v1203
    %v2040 = vunpack.c.l.b16 %v1204
    %v2041 = vunpack.c.h.b16 %v1204
    %v2042 = vunpack.c.l.b16 %v1205
    %v2043 = vunpack.c.h.b16 %v1205
    %v2044 = vunpack.c.l.b16 %v1206
    %v2045 = vunpack.c.h.b16 %v1206
    %v2046 = vunpack.c.l.b16 %v1207
    %v2047 = vunpack.c.h.b16 %v1207
    %v2048 = vunpack.c.l.b16 %v1208
    %v2049 = vunpack.c.h.b16 %v1208
    %v2050 = vunpack.c.l.b16 %v1209
    %v2051 = vunpack.c.h.b16 %v1209
    %v2052 = vunpack.c.l.b16 %v1210
    %v2053 = vunpack.c.h.b16 %v1210
    %v2054 = vunpack.c.l.b16 %v1211
    %v2055 = vunpack.c.h.b16 %v1211
    %v2056 = vunpack.c.l.b16 %v1212
    %v2057 = vunpack.c.h.b16 %v1212
    %v2058 = vunpack.c.l.b16 %v1213
    %v2059 = vunpack.c.h.b16 %v1213
    %v2060 = vunpack.c.l.b16 %v1214
    %v2061 = vunpack.c.h.b16 %v1214
    %v2062 = vunpack.c.l.b16 %v1215
    %v2063 = vunpack.c.h.b16 %v1215
    %v2064 = vunpack.c.l.b16 %v1216
    %v2065 = vunpack.c.h.b16 %v1216
    %v2066 = vunpack.c.l.b16 %v1217
    %v2067 = vunpack.c.h.b16 %v1217
    %v2068 = vunpack.c.l.b16 %v1218
    %v2069 = vunpack.c.h.b16 %v1218
    %v2070 = vunpack.c.l.b16 %v1219
    %v2071 = vunpack.c.h.b16 %v1219
    %v2072 = vunpack.c.l.b16 %v1220
    %v2073 = vunpack.c.h.b16 %v1220
    %v2074 = vunpack.c.l.b16 %v1221
    %v2075 = vunpack.c.h.b16 %v1221
    %v2076 = vunpack.c.l.b16 %v1222
    %v2077 = vunpack.c.h.b16 %v1222
    %v2078 = vunpack.c.l.b16 %v1223
    %v2079 = vunpack.c.h.b16 %v1223
    %v2080 = vunpack.c.l.b16 %v1224
    %v2081 = vunpack.c.h.b16 %v1224
    %v2082 = vunpack.c.l.b16 %v1225
    %v2083 = vunpack.c.h.b16 %v1225
    %v2084 = vunpack.c.l.b16 %v1226
    %v2085 = vunpack.c.h.b16 %v1226
    %v2086 = vunpack.c.l.b16 %v1227
    %v2087 = vunpack.c.h.b16 %v1227
    %v2088 = vunpack.c.l.b16 %v1228
    %v2089 = vunpack.c.h.b16 %v1228
    %v2090 = vunpack.c.l.b16 %v1229
    %v2091 = vunpack.c.h.b16 %v1229
    %v2092 = vunpack.c.l.b16 %v1230
    %v2093 = vunpack.c.h.b16 %v1230
    %v2094 = vunpack.c.l.b16 %v1231
    %v2095 = vunpack.c.h.b16 %v1231
    %v2096 = vunpack.c.l.b16 %v1232
    %v2097 = vunpack.c.h.b16 %v1232
    %v2098 = vunpack.c.l.b16 %v1233
    %v2099 = vunpack.c.h.b16 %v1233
    %v2100 = vunpack.c.l.b16 %v1234
    %v2101 = vunpack.c.h.b16 %v1234
    %v2102 = vunpack.c.l.b16 %v1235
    %v2103 = vunpack.c.h.b16 %v1235
    %v2104 = vunpack.c.l.b16 %v1236
    %v2105 = vunpack.c.h.b16 %v1236
    %v2106 = vunpack.c.l.b16 %v1237
    %v2107 = vunpack.c.h.b16 %v1237
    %v2108 = vunpack.c.l.b16 %v1238
    %v2109 = vunpack.c.h.b16 %v1238
    %v2110 = vunpack.c.l.b16 %v1239
    %v2111 = vunpack.c.h.b16 %v1239
    %v2112 = vunpack.c.l.b16 %v1240
    %v2113 = vunpack.c.h.b16 %v1240
    %v2114 = vunpack.c.l.b16 %v1241
    %v2115 = vunpack.c.h.b16 %v1241
    %v2116 = vunpack.c.l.b16 %v1242
    %v2117 = vunpack.c.h.b16 %v1242
    %v2118 = vunpack.c.l.b16 %v1243
    %v2119 = vunpack.c.h.b16 %v1243
    %v2120 = vunpack.c.l.b16 %v1244
    %v2121 = vunpack.c.h.b16 %v1244
    %v2122 = vunpack.c.l.b16 %v1245
    %v2123 = vunpack.c.h.b16 %v1245
    %v2124 = vunpack.c.l.b16 %v1246
    %v2125 = vunpack.c.h.b16 %v1246
    %v2126 = vunpack.c.l.b16 %v1247
    %v2127 = vunpack.c.h.b16 %v1247
    %v2128 = vunpack.c.l.b16 %v1248
    %v2129 = vunpack.c.h.b16 %v1248
    %v2130 = vunpack.c.l.b16 %v1249
    %v2131 = vunpack.c.h.b16 %v1249
    %v2132 = vunpack.c.l.b16 %v1250
    %v2133 = vunpack.c.h.b16 %v1250
    %v2134 = vunpack.c.l.b16 %v1251
    %v2135 = vunpack.c.h.b16 %v1251
    %v2136 = vunpack.c.l.b16 %v1252
    %v2137 = vunpack.c.h.b16 %v1252
    %v2138 = vunpack.c.l.b16 %v1253
    %v2139 = vunpack.c.h.b16 %v1253
    %v2140 = vunpack.c.l.b16 %v1254
    %v2141 = vunpack.c.h.b16 %v1254
    %v2142 = vunpack.c.l.b16 %v1255
    %v2143 = vunpack.c.h.b16 %v1255
    %v2144 = vunpack.c.l.b16 %v1256
    %v2145 = vunpack.c.h.b16 %v1256
    %v2146 = vunpack.c.l.b16 %v1257
    %v2147 = vunpack.c.h.b16 %v1257
    %v2148 = vunpack.c.l.b16 %v1258
    %v2149 = vunpack.c.h.b16 %v1258
    %v2150 = vunpack.c.l.b16 %v1259
    %v2151 = vunpack.c.h.b16 %v1259
    %v2152 = vunpack.c.l.b16 %v1260
    %v2153 = vunpack.c.h.b16 %v1260
    %v2154 = vunpack.c.l.b16 %v1261
    %v2155 = vunpack.c.h.b16 %v1261
    %v2156 = vunpack.c.l.b16 %v1262
    %v2157 = vunpack.c.h.b16 %v1262
    %v2158 = vunpack.c.l.b16 %v1263
    %v2159 = vunpack.c.h.b16 %v1263
    %v2160 = vunpack.c.l.b16 %v1264
    %v2161 = vunpack.c.h.b16 %v1264
    %v2162 = vunpack.c.l.b16 %v1265
    %v2163 = vunpack.c.h.b16 %v1265
    %v2164 = vunpack.c.l.b16 %v1266
    %v2165 = vunpack.c.h.b16 %v1266
    %v2166 = vunpack.c.l.b16 %v1267
    %v2167 = vunpack.c.h.b16 %v1267
    %v2168 = vunpack.c.l.b16 %v1268
    %v2169 = vunpack.c.h.b16 %v1268
    %v2170 = vunpack.c.l.b16 %v1269
    %v2171 = vunpack.c.h.b16 %v1269
    %v2172 = vunpack.c.l.b16 %v1270
    %v2173 = vunpack.c.h.b16 %v1270
    %v2174 = vunpack.c.l.b16 %v1271
    %v2175 = vunpack.c.h.b16 %v1271
    %v2176 = vunpack.c.l.b16 %v1272
    %v2177 = vunpack.c.h.b16 %v1272
    %v2178 = vunpack.c.l.b16 %v1273
    %v2179 = vunpack.c.h.b16 %v1273
    %v2180 = vunpack.c.l.b16 %v1274
    %v2181 = vunpack.c.h.b16 %v1274
    %v2182 = vunpack.c.l.b16 %v1275
    %v2183 = vunpack.c.h.b16 %v1275
    %v2184 = vunpack.c.l.b16 %v1276
    %v2185 = vunpack.c.h.b16 %v1276
    %v2186 = vunpack.c.l.b16 %v1277
    %v2187 = vunpack.c.h.b16 %v1277
    %v2188 = vunpack.c.l.b16 %v1278
    %v2189 = vunpack.c.h.b16 %v1278
    %v2190 = vunpack.c.l.b16 %v1279
    %v2191 = vunpack.c.h.b16 %v1279
    %v2192 = vunpack.c.l.b16 %v1280
    %v2193 = vunpack.c.h.b16 %v1280
    %v2194 = vunpack.c.l.b16 %v1281
    %v2195 = vunpack.c.h.b16 %v1281
    %v2196 = vunpack.c.l.b16 %v1282
    %v2197 = vunpack.c.h.b16 %v1282
    %v2198 = vunpack.c.l.b16 %v1283
    %v2199 = vunpack.c.h.b16 %v1283
    %v2200 = vunpack.c.l.b16 %v1284
    %v2201 = vunpack.c.h.b16 %v1284
    %v2202 = vunpack.c.l.b16 %v1285
    %v2203 = vunpack.c.h.b16 %v1285
    %v2204 = vunpack.c.l.b16 %v1286
    %v2205 = vunpack.c.h.b16 %v1286
    %v2206 = vunpack.c.l.b16 %v1287
    %v2207 = vunpack.c.h.b16 %v1287
    %v2208 = vunpack.c.l.b16 %v1288
    %v2209 = vunpack.c.h.b16 %v1288
    %v2210 = vunpack.c.l.b16 %v1289
    %v2211 = vunpack.c.h.b16 %v1289
    %v2212 = vunpack.c.l.b16 %v1290
    %v2213 = vunpack.c.h.b16 %v1290
    %v2214 = vunpack.c.l.b16 %v1291
    %v2215 = vunpack.c.h.b16 %v1291
    %v2216 = vunpack.c.l.b16 %v1292
    %v2217 = vunpack.c.h.b16 %v1292
    %v2218 = vunpack.c.l.b16 %v1293
    %v2219 = vunpack.c.h.b16 %v1293
    %v2220 = vunpack.c.l.b16 %v1294
    %v2221 = vunpack.c.h.b16 %v1294
    %v2222 = vunpack.c.l.b16 %v1295
    %v2223 = vunpack.c.h.b16 %v1295
    %v2224 = vunpack.c.l.b16 %v1296
    %v2225 = vunpack.c.h.b16 %v1296
    %v2226 = vunpack.c.l.b16 %v1297
    %v2227 = vunpack.c.h.b16 %v1297
    %v2228 = vunpack.c.l.b16 %v1298
    %v2229 = vunpack.c.h.b16 %v1298
    %v2230 = vunpack.c.l.b16 %v1299
    %v2231 = vunpack.c.h.b16 %v1299
    %v2232 = vunpack.c.l.b16 %v1300
    %v2233 = vunpack.c.h.b16 %v1300
    %v2234 = vunpack.c.l.b16 %v1301
    %v2235 = vunpack.c.h.b16 %v1301
    %v2236 = vunpack.c.l.b16 %v1302
    %v2237 = vunpack.c.h.b16 %v1302
    %v2238 = vunpack.c.l.b16 %v1303
    %v2239 = vunpack.c.h.b16 %v1303
    %v2240 = vunpack.c.l.b16 %v1304
    %v2241 = vunpack.c.h.b16 %v1304
    %v2242 = vunpack.c.l.b16 %v1305
    %v2243 = vunpack.c.h.b16 %v1305
    %v2244 = vunpack.c.l.b16 %v1306
    %v2245 = vunpack.c.h.b16 %v1306
    %v2246 = vunpack.c.l.b16 %v1307
    %v2247 = vunpack.c.h.b16 %v1307
    %v2248 = vunpack.c.l.b16 %v1308
    %v2249 = vunpack.c.h.b16 %v1308
    %v2250 = vunpack.c.l.b16 %v1309
    %v2251 = vunpack.c.h.b16 %v1309
    %v2252 = vunpack.c.l.b16 %v1310
    %v2253 = vunpack.c.h.b16 %v1310
    %v2254 = vunpack.c.l.b16 %v1311
    %v2255 = vunpack.c.h.b16 %v1311
    %v2256 = vunpack.c.l.b16 %v1312
    %v2257 = vunpack.c.h.b16 %v1312
    %v2258 = vunpack.c.l.b16 %v1313
    %v2259 = vunpack.c.h.b16 %v1313
    %v2260 = vunpack.c.l.b16 %v1314
    %v2261 = vunpack.c.h.b16 %v1314
    %v2262 = vunpack.c.l.b16 %v1315
    %v2263 = vunpack.c.h.b16 %v1315
    %v2264 = vunpack.c.l.b16 %v1316
    %v2265 = vunpack.c.h.b16 %v1316
    %v2266 = vunpack.c.l.b16 %v1317
    %v2267 = vunpack.c.h.b16 %v1317
    %v2268 = vunpack.c.l.b16 %v1318
    %v2269 = vunpack.c.h.b16 %v1318
    %v2270 = vunpack.c.l.b16 %v1319
    %v2271 = vunpack.c.h.b16 %v1319
    %v2272 = vunpack.c.l.b16 %v1320
    %v2273 = vunpack.c.h.b16 %v1320
    %v2274 = vunpack.c.l.b16 %v1321
    %v2275 = vunpack.c.h.b16 %v1321
    %v2276 = vunpack.c.l.b16 %v1322
    %v2277 = vunpack.c.h.b16 %v1322
    %v2278 = vunpack.c.l.b16 %v1323
    %v2279 = vunpack.c.h.b16 %v1323
    %v2280 = vunpack.c.l.b16 %v1324
    %v2281 = vunpack.c.h.b16 %v1324
    %v2282 = vunpack.c.l.b16 %v1325
    %v2283 = vunpack.c.h.b16 %v1325
    %v2284 = vunpack.c.l.b16 %v1326
    %v2285 = vunpack.c.h.b16 %v1326
    %v2286 = vunpack.c.l.b16 %v1327
    %v2287 = vunpack.c.h.b16 %v1327
    %v2288 = vunpack.c.l.b16 %v1328
    %v2289 = vunpack.c.h.b16 %v1328
    %v2290 = vunpack.c.l.b16 %v1329
    %v2291 = vunpack.c.h.b16 %v1329
    %v2292 = vunpack.c.l.b16 %v1330
    %v2293 = vunpack.c.h.b16 %v1330
    %v2294 = vunpack.c.l.b16 %v1331
    %v2295 = vunpack.c.h.b16 %v1331
    %v2296 = vunpack.c.l.b16 %v1332
    %v2297 = vunpack.c.h.b16 %v1332
    %v2298 = vunpack.c.l.b16 %v1333
    %v2299 = vunpack.c.h.b16 %v1333
    %v2300 = vunpack.c.l.b16 %v1334
    %v2301 = vunpack.c.h.b16 %v1334
    %v2302 = vunpack.c.l.b16 %v1335
    %v2303 = vunpack.c.h.b16 %v1335
    %v2304 = vunpack.c.l.b16 %v1336
    %v2305 = vunpack.c.h.b16 %v1336
    %v2306 = vunpack.c.l.b16 %v1337
    %v2307 = vunpack.c.h.b16 %v1337
    %v2308 = vunpack.c.l.b16 %v1338
    %v2309 = vunpack.c.h.b16 %v1338
    %v2310 = vunpack.c.l.b16 %v1339
    %v2311 = vunpack.c.h.b16 %v1339
    %v2312 = vunpack.c.l.b16 %v1340
    %v2313 = vunpack.c.h.b16 %v1340
    %v2314 = vunpack.c.l.b16 %v1341
    %v2315 = vunpack.c.h.b16 %v1341
    %v2316 = vunpack.c.l.b16 %v1342
    %v2317 = vunpack.c.h.b16 %v1342
    %v2318 = vunpack.c.l.b16 %v1343
    %v2319 = vunpack.c.h.b16 %v1343
    %v2320 = vunpack.c.l.b16 %v1344
    %v2321 = vunpack.c.h.b16 %v1344
    %v2322 = vunpack.c.l.b16 %v1345
    %v2323 = vunpack.c.h.b16 %v1345
    %v2324 = vunpack.c.l.b16 %v1346
    %v2325 = vunpack.c.h.b16 %v1346
    %v2326 = vunpack.c.l.b16 %v1347
    %v2327 = vunpack.c.h.b16 %v1347
    %v2328 = vunpack.c.l.b16 %v1348
    %v2329 = vunpack.c.h.b16 %v1348
    %v2330 = vunpack.c.l.b16 %v1349
    %v2331 = vunpack.c.h.b16 %v1349
    %v2332 = vunpack.c.l.b16 %v1350
    %v2333 = vunpack.c.h.b16 %v1350
    %v2334 = vunpack.c.l.b16 %v1351
    %v2335 = vunpack.c.h.b16 %v1351
    %v2336 = vunpack.c.l.b16 %v1352
    %v2337 = vunpack.c.h.b16 %v1352
    %v2338 = vunpack.c.l.b16 %v1353
    %v2339 = vunpack.c.h.b16 %v1353
    %v2340 = vunpack.c.l.b16 %v1354
    %v2341 = vunpack.c.h.b16 %v1354
    %v2342 = vunpack.c.l.b16 %v1355
    %v2343 = vunpack.c.h.b16 %v1355
    %v2344 = vunpack.c.l.b16 %v1356
    %v2345 = vunpack.c.h.b16 %v1356
    %v2346 = vunpack.c.l.b16 %v1357
    %v2347 = vunpack.c.h.b16 %v1357
    %v2348 = vunpack.c.l.b16 %v1358
    %v2349 = vunpack.c.h.b16 %v1358
    %v2350 = vunpack.c.l.b16 %v1359
    %v2351 = vunpack.c.h.b16 %v1359
    %v2352 = vunpack.c.l.b16 %v1360
    %v2353 = vunpack.c.h.b16 %v1360
    %v2354 = vunpack.c.l.b16 %v1361
    %v2355 = vunpack.c.h.b16 %v1361
    %v2356 = vunpack.c.l.b16 %v1362
    %v2357 = vunpack.c.h.b16 %v1362
    %v2358 = vunpack.c.l.b16 %v1363
    %v2359 = vunpack.c.h.b16 %v1363
    %v2360 = vunpack.c.l.b16 %v1364
    %v2361 = vunpack.c.h.b16 %v1364
    %v2362 = vunpack.c.l.b16 %v1365
    %v2363 = vunpack.c.h.b16 %v1365
    %v2364 = vunpack.c.l.b16 %v1366
    %v2365 = vunpack.c.h.b16 %v1366
    %v2366 = vunpack.c.l.b16 %v1367
    %v2367 = vunpack.c.h.b16 %v1367
    %v2368 = vunpack.c.l.b16 %v1368
    %v2369 = vunpack.c.h.b16 %v1368
    %v2370 = vunpack.c.l.b16 %v1369
    %v2371 = vunpack.c.h.b16 %v1369
    %v2372 = vunpack.c.l.b16 %v1370
    %v2373 = vunpack.c.h.b16 %v1370
    %v2374 = vunpack.c.l.b16 %v1371
    %v2375 = vunpack.c.h.b16 %v1371
    %v2376 = vunpack.c.l.b16 %v1372
    %v2377 = vunpack.c.h.b16 %v1372
    %v2378 = vunpack.c.l.b16 %v1373
    %v2379 = vunpack.c.h.b16 %v1373
    %v2380 = vunpack.c.l.b16 %v1374
    %v2381 = vunpack.c.h.b16 %v1374
    %v2382 = vunpack.c.l.b16 %v1375
    %v2383 = vunpack.c.h.b16 %v1375
    %v2384 = vunpack.c.l.b16 %v1376
    %v2385 = vunpack.c.h.b16 %v1376
    %v2386 = vunpack.c.l.b16 %v1377
    %v2387 = vunpack.c.h.b16 %v1377
    %v2388 = vunpack.c.l.b16 %v1378
    %v2389 = vunpack.c.h.b16 %v1378
    %v2390 = vunpack.c.l.b16 %v1379
    %v2391 = vunpack.c.h.b16 %v1379
    %v2392 = vunpack.c.l.b16 %v1380
    %v2393 = vunpack.c.h.b16 %v1380
    %v2394 = vunpack.c.l.b16 %v1381
    %v2395 = vunpack.c.h.b16 %v1381
    %v2396 = vunpack.c.l.b16 %v1382
    %v2397 = vunpack.c.h.b16 %v1382
    %v2398 = vunpack.c.l.b16 %v1383
    %v2399 = vunpack.c.h.b16 %v1383
    %v2400 = vunpack.c.l.b16 %v1384
    %v2401 = vunpack.c.h.b16 %v1384
    %v2402 = vunpack.c.l.b16 %v1385
    %v2403 = vunpack.c.h.b16 %v1385
    %v2404 = vunpack.c.l.b16 %v1386
    %v2405 = vunpack.c.h.b16 %v1386
    %v2406 = vunpack.c.l.b16 %v1387
    %v2407 = vunpack.c.h.b16 %v1387
    %v2408 = vunpack.c.l.b16 %v1388
    %v2409 = vunpack.c.h.b16 %v1388
    %v2410 = vunpack.c.l.b16 %v1389
    %v2411 = vunpack.c.h.b16 %v1389
    %v2412 = vunpack.c.l.b16 %v1390
    %v2413 = vunpack.c.h.b16 %v1390
    %v2414 = vunpack.c.l.b16 %v1391
    %v2415 = vunpack.c.h.b16 %v1391
    %v2416 = vunpack.c.l.b16 %v1392
    %v2417 = vunpack.c.h.b16 %v1392
    %v2418 = vunpack.c.l.b16 %v1393
    %v2419 = vunpack.c.h.b16 %v1393
    %v2420 = vunpack.c.l.b16 %v1394
    %v2421 = vunpack.c.h.b16 %v1394
    %v2422 = vunpack.c.l.b16 %v1395
    %v2423 = vunpack.c.h.b16 %v1395
    %v2424 = vunpack.c.l.b16 %v1396
    %v2425 = vunpack.c.h.b16 %v1396
    %v2426 = vunpack.c.l.b16 %v1397
    %v2427 = vunpack.c.h.b16 %v1397
    %v2428 = vunpack.c.l.b16 %v1398
    %v2429 = vunpack.c.h.b16 %v1398
    %v2430 = vunpack.c.l.b16 %v1399
    %v2431 = vunpack.c.h.b16 %v1399
    %v2432 = vunpack.c.l.b16 %v1400
    %v2433 = vunpack.c.h.b16 %v1400
    %v2434 = vunpack.c.l.b16 %v1401
    %v2435 = vunpack.c.h.b16 %v1401
    %v2436 = vunpack.c.l.b16 %v1402
    %v2437 = vunpack.c.h.b16 %v1402
    %v2438 = vunpack.c.l.b16 %v1403
    %v2439 = vunpack.c.h.b16 %v1403
    %v2440 = vunpack.c.l.b16 %v1404
    %v2441 = vunpack.c.h.b16 %v1404
    %v2442 = vunpack.c.l.b16 %v1405
    %v2443 = vunpack.c.h.b16 %v1405
    %v2444 = vunpack.c.l.b16 %v1406
    %v2445 = vunpack.c.h.b16 %v1406
    %v2446 = vunpack.c.l.b16 %v1407
    %v2447 = vunpack.c.h.b16 %v1407
    %v2448 = vunpack.c.l.b16 %v1408
    %v2449 = vunpack.c.h.b16 %v1408
    %v2450 = vunpack.c.l.b16 %v1409
    %v2451 = vunpack.c.h.b16 %v1409
    %v2452 = vunpack.c.l.b16 %v1410
    %v2453 = vunpack.c.h.b16 %v1410
    %v2454 = vunpack.c.l.b16 %v1411
    %v2455 = vunpack.c.h.b16 %v1411
    %v2456 = vunpack.c.l.b16 %v1412
    %v2457 = vunpack.c.h.b16 %v1412
    %v2458 = vunpack.c.l.b16 %v1413
    %v2459 = vunpack.c.h.b16 %v1413
    %v2460 = vunpack.c.l.b16 %v1414
    %v2461 = vunpack.c.h.b16 %v1414
    %v2462 = vunpack.c.l.b16 %v1415
    %v2463 = vunpack.c.h.b16 %v1415
    %v2464 = vunpack.c.l.b16 %v1416
    %v2465 = vunpack.c.h.b16 %v1416
    %v2466 = vunpack.c.l.b16 %v1417
    %v2467 = vunpack.c.h.b16 %v1417
    %v2468 = vunpack.c.l.b16 %v1418
    %v2469 = vunpack.c.h.b16 %v1418
    %v2470 = vunpack.c.l.b16 %v1419
    %v2471 = vunpack.c.h.b16 %v1419
    %v2472 = vunpack.c.l.b16 %v1420
    %v2473 = vunpack.c.h.b16 %v1420
    %v2474 = vunpack.c.l.b16 %v1421
    %v2475 = vunpack.c.h.b16 %v1421
    %v2476 = vunpack.c.l.b16 %v1422
    %v2477 = vunpack.c.h.b16 %v1422
    %v2478 = vunpack.c.l.b16 %v1423
    %v2479 = vunpack.c.h.b16 %v1423
    %v2480 = vunpack.c.l.b16 %v1424
    %v2481 = vunpack.c.h.b16 %v1424
    %v2482 = vunpack.c.l.b16 %v1425
    %v2483 = vunpack.c.h.b16 %v1425
    %v2484 = vunpack.c.l.b16 %v1426
    %v2485 = vunpack.c.h.b16 %v1426
    %v2486 = vunpack.c.l.b16 %v1427
    %v2487 = vunpack.c.h.b16 %v1427
    %v2488 = vunpack.c.l.b16 %v1428
    %v2489 = vunpack.c.h.b16 %v1428
    %v2490 = vunpack.c.l.b16 %v1429
    %v2491 = vunpack.c.h.b16 %v1429
    %v2492 = vunpack.c.l.b16 %v1430
    %v2493 = vunpack.c.h.b16 %v1430
    %v2494 = vunpack.c.l.b16 %v1431
    %v2495 = vunpack.c.h.b16 %v1431
    %v2496 = vunpack.c.l.b16 %v1432
    %v2497 = vunpack.c.h.b16 %v1432
    %v2498 = vunpack.c.l.b16 %v1433
    %v2499 = vunpack.c.h.b16 %v1433
    %v2500 = vunpack.c.l.b16 %v1434
    %v2501 = vunpack.c.h.b16 %v1434
    %v2502 = vunpack.c.l.b16 %v1435
    %v2503 = vunpack.c.h.b16 %v1435
    %v2504 = vunpack.c.l.b16 %v1436
    %v2505 = vunpack.c.h.b16 %v1436
    %v2506 = vunpack.c.l.b16 %v1437
    %v2507 = vunpack.c.h.b16 %v1437
    %v2508 = vunpack.c.l.b16 %v1438
    %v2509 = vunpack.c.h.b16 %v1438
    %v2510 = vunpack.c.l.b16 %v1439
    %v2511 = vunpack.c.h.b16 %v1439
    %v2512 = vunpack.c.l.b16 %v1440
    %v2513 = vunpack.c.h.b16 %v1440
    %v2514 = vunpack.c.l.b16 %v1441
    %v2515 = vunpack.c.h.b16 %v1441
    %v2516 = vunpack.c.l.b16 %v1442
    %v2517 = vunpack.c.h.b16 %v1442
    %v2518 = vunpack.c.l.b16 %v1443
    %v2519 = vunpack.c.h.b16 %v1443
    %v2520 = vunpack.c.l.b16 %v1444
    %v2521 = vunpack.c.h.b16 %v1444
    %v2522 = vunpack.c.l.b16 %v1445
    %v2523 = vunpack.c.h.b16 %v1445
    %v2524 = vunpack.c.l.b16 %v1446
    %v2525 = vunpack.c.h.b16 %v1446
    %v2526 = vunpack.c.l.b16 %v1447
    %v2527 = vunpack.c.h.b16 %v1447
    %v2528 = vunpack.c.l.b16 %v1448
    %v2529 = vunpack.c.h.b16 %v1448
    %v2530 = vunpack.c.l.b16 %v1449
    %v2531 = vunpack.c.h.b16 %v1449
    %v2532 = vunpack.c.l.b16 %v1450
    %v2533 = vunpack.c.h.b16 %v1450
    %v2534 = vunpack.c.l.b16 %v1451
    %v2535 = vunpack.c.h.b16 %v1451
    %v2536 = vunpack.c.l.b16 %v1452
    %v2537 = vunpack.c.h.b16 %v1452
    %v2538 = vunpack.c.l.b16 %v1453
    %v2539 = vunpack.c.h.b16 %v1453
    %v2540 = vunpack.c.l.b16 %v1454
    %v2541 = vunpack.c.h.b16 %v1454
    %v2542 = vunpack.c.l.b16 %v1455
    %v2543 = vunpack.c.h.b16 %v1455
    %v2544 = vunpack.c.l.b16 %v1456
    %v2545 = vunpack.c.h.b16 %v1456
    %v2546 = vunpack.c.l.b16 %v1457
    %v2547 = vunpack.c.h.b16 %v1457
    %v2548 = vunpack.c.l.b16 %v1458
    %v2549 = vunpack.c.h.b16 %v1458
    %v2550 = vunpack.c.l.b16 %v1459
    %v2551 = vunpack.c.h.b16 %v1459
    %v2552 = vunpack.c.l.b16 %v1460
    %v2553 = vunpack.c.h.b16 %v1460
    %v2554 = vunpack.c.l.b16 %v1461
    %v2555 = vunpack.c.h.b16 %v1461
    %v2556 = vunpack.c.l.b16 %v1462
    %v2557 = vunpack.c.h.b16 %v1462
    %v2558 = vunpack.c.l.b16 %v1463
    %v2559 = vunpack.c.h.b16 %v1463
    %v2560 = vunpack.c.l.b16 %v1464
    %v2561 = vunpack.c.h.b16 %v1464
    %v2562 = vunpack.c.l.b16 %v1465
    %v2563 = vunpack.c.h.b16 %v1465
    %v2564 = vunpack.c.l.b16 %v1466
    %v2565 = vunpack.c.h.b16 %v1466
    %v2566 = vunpack.c.l.b16 %v1467
    %v2567 = vunpack.c.h.b16 %v1467
    %v2568 = vunpack.c.l.b16 %v1468
    %v2569 = vunpack.c.h.b16 %v1468
    %v2570 = vunpack.c.l.b16 %v1469
    %v2571 = vunpack.c.h.b16 %v1469
    %v2572 = vunpack.c.l.b16 %v1470
    %v2573 = vunpack.c.h.b16 %v1470
    %v2574 = vunpack.c.l.b16 %v1471
    %v2575 = vunpack.c.h.b16 %v1471
    %v2576 = vunpack.c.l.b16 %v1472
    %v2577 = vunpack.c.h.b16 %v1472
    %v2578 = vunpack.c.l.b16 %v1473
    %v2579 = vunpack.c.h.b16 %v1473
    %v2580 = vunpack.c.l.b16 %v1474
    %v2581 = vunpack.c.h.b16 %v1474
    %v2582 = vunpack.c.l.b16 %v1475
    %v2583 = vunpack.c.h.b16 %v1475
    %v2584 = vunpack.c.l.b16 %v1476
    %v2585 = vunpack.c.h.b16 %v1476
    %v2586 = vunpack.c.l.b16 %v1477
    %v2587 = vunpack.c.h.b16 %v1477
    %v2588 = vunpack.c.l.b16 %v1478
    %v2589 = vunpack.c.h.b16 %v1478
    %v2590 = vunpack.c.l.b16 %v1479
    %v2591 = vunpack.c.h.b16 %v1479
    %v2592 = vunpack.c.l.b16 %v1480
    %v2593 = vunpack.c.h.b16 %v1480
    %v2594 = vunpack.c.l.b16 %v1481
    %v2595 = vunpack.c.h.b16 %v1481
    %v2596 = vunpack.c.l.b16 %v1482
    %v2597 = vunpack.c.h.b16 %v1482
    %v2598 = vunpack.c.l.b16 %v1483
    %v2599 = vunpack.c.h.b16 %v1483
    %v2600 = vunpack.c.l.b16 %v1484
    %v2601 = vunpack.c.h.b16 %v1484
    %v2602 = vunpack.c.l.b16 %v1485
    %v2603 = vunpack.c.h.b16 %v1485
    %v2604 = vunpack.c.l.b16 %v1486
    %v2605 = vunpack.c.h.b16 %v1486
    %v2606 = vunpack.c.l.b16 %v1487
    %v2607 = vunpack.c.h.b16 %v1487
    %v2608 = vunpack.c.l.b16 %v1488
    %v2609 = vunpack.c.h.b16 %v1488
    %v2610 = vunpack.c.l.b16 %v1489
    %v2611 = vunpack.c.h.b16 %v1489
    %v2612 = vunpack.c.l.b16 %v1490
    %v2613 = vunpack.c.h.b16 %v1490
    %v2614 = vunpack.c.l.b16 %v1491
    %v2615 = vunpack.c.h.b16 %v1491
    %v2616 = vunpack.c.l.b16 %v1492
    %v2617 = vunpack.c.h.b16 %v1492
    %v2618 = vunpack.c.l.b16 %v1493
    %v2619 = vunpack.c.h.b16 %v1493
    %v2620 = vunpack.c.l.b16 %v1494
    %v2621 = vunpack.c.h.b16 %v1494
    %v2622 = vunpack.c.l.b16 %v1495
    %v2623 = vunpack.c.h.b16 %v1495
    %v2624 = vunpack.c.l.b16 %v1496
    %v2625 = vunpack.c.h.b16 %v1496
    %v2626 = vunpack.c.l.b16 %v1497
    %v2627 = vunpack.c.h.b16 %v1497
    %v2628 = vunpack.c.l.b16 %v1498
    %v2629 = vunpack.c.h.b16 %v1498
    %v2630 = vunpack.c.l.b16 %v1499
    %v2631 = vunpack.c.h.b16 %v1499
    %v2632 = vunpack.c.l.b16 %v1500
    %v2633 = vunpack.c.h.b16 %v1500
    %v2634 = vunpack.c.l.b16 %v1501
    %v2635 = vunpack.c.h.b16 %v1501
    %v2636 = vunpack.c.l.b16 %v1502
    %v2637 = vunpack.c.h.b16 %v1502
    %v2638 = vunpack.c.l.b16 %v1503
    %v2639 = vunpack.c.h.b16 %v1503
    %v2640 = vunpack.c.l.b16 %v1504
    %v2641 = vunpack.c.h.b16 %v1504
    %v2642 = vunpack.c.l.b16 %v1505
    %v2643 = vunpack.c.h.b16 %v1505
    %v2644 = vunpack.c.l.b16 %v1506
    %v2645 = vunpack.c.h.b16 %v1506
    %v2646 = vunpack.c.l.b16 %v1507
    %v2647 = vunpack.c.h.b16 %v1507
    %v2648 = vunpack.c.l.b16 %v1508
    %v2649 = vunpack.c.h.b16 %v1508
    %v2650 = vunpack.c.l.b16 %v1509
    %v2651 = vunpack.c.h.b16 %v1509
    %v2652 = vunpack.c.l.b16 %v1510
    %v2653 = vunpack.c.h.b16 %v1510
    %v2654 = vunpack.c.l.b16 %v1511
    %v2655 = vunpack.c.h.b16 %v1511
    %v2656 = vunpack.c.l.b16 %v1512
    %v2657 = vunpack.c.h.b16 %v1512
    %v2658 = vunpack.c.l.b16 %v1513
    %v2659 = vunpack.c.h.b16 %v1513
    %v2660 = vunpack.c.l.b16 %v1514
    %v2661 = vunpack.c.h.b16 %v1514
    %v2662 = vunpack.c.l.b16 %v1515
    %v2663 = vunpack.c.h.b16 %v1515
    %v2664 = vunpack.c.l.b16 %v1516
    %v2665 = vunpack.c.h.b16 %v1516
    %v2666 = vunpack.c.l.b16 %v1517
    %v2667 = vunpack.c.h.b16 %v1517
    %v2668 = vunpack.c.l.b16 %v1518
    %v2669 = vunpack.c.h.b16 %v1518
    %v2670 = vunpack.c.l.b16 %v1519
    %v2671 = vunpack.c.h.b16 %v1519
    %v2672 = vpack.c.b16 %v1910, %v1904
    %v2673 = vpack.c.b16 %v1911, %v1905
    %v2674 = vpack.c.b16 %v1912, %v1906
    %v2675 = vpack.c.b16 %v1913, %v1907
    %v2676 = vpack.c.b16 %v1914, %v1908
    %v2677 = vpack.c.b16 %v1915, %v1909
    %v2678 = vpack.c.b16 %v1922, %v1916
    %v2679 = vpack.c.b16 %v1923, %v1917
    %v2680 = vpack.c.b16 %v1924, %v1918
    %v2681 = vpack.c.b16 %v1925, %v1919
    %v2682 = vpack.c.b16 %v1926, %v1920
    %v2683 = vpack.c.b16 %v1927, %v1921
    %v2684 = vpack.c.b16 %v1934, %v1928
    %v2685 = vpack.c.b16 %v1935, %v1929
    %v2686 = vpack.c.b16 %v1936, %v1930
    %v2687 = vpack.c.b16 %v1937, %v1931
    %v2688 = vpack.c.b16 %v1938, %v1932
    %v2689 = vpack.c.b16 %v1939, %v1933
    %v2690 = vpack.c.b16 %v1946, %v1940
    %v2691 = vpack.c.b16 %v1947, %v1941
    %v2692 = vpack.c.b16 %v1948, %v1942
    %v2693 = vpack.c.b16 %v1949, %v1943
    %v2694 = vpack.c.b16 %v1950, %v1944
    %v2695 = vpack.c.b16 %v1951, %v1945
    %v2696 = vpack.c.b16 %v1958, %v1952
    %v2697 = vpack.c.b16 %v1959, %v1953
    %v2698 = vpack.c.b16 %v1960, %v1954
    %v2699 = vpack.c.b16 %v1961, %v1955
    %v2700 = vpack.c.b16 %v1962, %v1956
    %v2701 = vpack.c.b16 %v1963, %v1957
    %v2702 = vpack.c.b16 %v1970, %v1964
    %v2703 = vpack.c.b16 %v1971, %v1965
    %v2704 = vpack.c.b16 %v1972, %v1966
    %v2705 = vpack.c.b16 %v1973, %v1967
    %v2706 = vpack.c.b16 %v1974, %v1968
    %v2707 = vpack.c.b16 %v1975, %v1969
    %v2708 = vpack.c.b16 %v1982, %v1976
    %v2709 = vpack.c.b16 %v1983, %v1977
    %v2710 = vpack.c.b16 %v1984, %v1978
    %v2711 = vpack.c.b16 %v1985, %v1979
    %v2712 = vpack.c.b16 %v1986, %v1980
    %v2713 = vpack.c.b16 %v1987, %v1981
    %v2714 = vpack.c.b16 %v1994, %v1988
    %v2715 = vpack.c.b16 %v1995, %v1989
    %v2716 = vpack.c.b16 %v1996, %v1990
    %v2717 = vpack.c.b16 %v1997, %v1991
    %v2718 = vpack.c.b16 %v1998, %v1992
    %v2719 = vpack.c.b16 %v1999, %v1993
    %v2720 = vpack.c.b16 %v2006, %v2000
    %v2721 = vpack.c.b16 %v2007, %v2001
    %v2722 = vpack.c.b16 %v2008, %v2002
    %v2723 = vpack.c.b16 %v2009, %v2003
    %v2724 = vpack.c.b16 %v2010, %v2004
    %v2725 = vpack.c.b16 %v2011, %v2005
    %v2726 = vpack.c.b16 %v2018, %v2012
    %v2727 = vpack.c.b16 %v2019, %v2013
    %v2728 = vpack.c.b16 %v2020, %v2014
    %v2729 = vpack.c.b16 %v2021, %v2015
    %v2730 = vpack.c.b16 %v2022, %v2016
    %v2731 = vpack.c.b16 %v2023, %v2017
    %v2732 = vpack.c.b16 %v2030, %v2024
    %v2733 = vpack.c.b16 %v2031, %v2025
    %v2734 = vpack.c.b16 %v2032, %v2026
    %v2735 = vpack.c.b16 %v2033, %v2027
    %v2736 = vpack.c.b16 %v2034, %v2028
    %v2737 = vpack.c.b16 %v2035, %v2029
    %v2738 = vpack.c.b16 %v2042, %v2036
    %v2739 = vpack.c.b16 %v2043, %v2037
    %v2740 = vpack.c.b16 %v2044, %v2038
    %v2741 = vpack.c.b16 %v2045, %v2039
    %v2742 = vpack.c.b16 %v2046, %v2040
    %v2743 = vpack.c.b16 %v2047, %v2041
    %v2744 = vpack.c.b16 %v2054, %v2048
    %v2745 = vpack.c.b16 %v2055, %v2049
    %v2746 = vpack.c.b16 %v2056, %v2050
    %v2747 = vpack.c.b16 %v2057, %v2051
    %v2748 = vpack.c.b16 %v2058, %v2052
    %v2749 = vpack.c.b16 %v2059, %v2053
    %v2750 = vpack.c.b16 %v2066, %v2060
    %v2751 = vpack.c.b16 %v2067, %v2061
    %v2752 = vpack.c.b16 %v2068, %v2062
    %v2753 = vpack.c.b16 %v2069, %v2063
    %v2754 = vpack.c.b16 %v2070, %v2064
    %v2755 = vpack.c.b16 %v2071, %v2065
    %v2756 = vpack.c.b16 %v2078, %v2072
    %v2757 = vpack.c.b16 %v2079, %v2073
    %v2758 = vpack.c.b16 %v2080, %v2074
    %v2759 = vpack.c.b16 %v2081, %v2075
    %v2760 = vpack.c.b16 %v2082, %v2076
    %v2761 = vpack.c.b16 %v2083, %v2077
    %v2762 = vpack.c.b16 %v2090, %v2084
    %v2763 = vpack.c.b16 %v2091, %v2085
    %v2764 = vpack.c.b16 %v2092, %v2086
    %v2765 = vpack.c.b16 %v2093, %v2087
    %v2766 = vpack.c.b16 %v2094, %v2088
    %v2767 = vpack.c.b16 %v2095, %v2089
    %v2768 = vpack.c.b16 %v2102, %v2096
    %v2769 = vpack.c.b16 %v2103, %v2097
    %v2770 = vpack.c.b16 %v2104, %v2098
    %v2771 = vpack.c.b16 %v2105, %v2099
    %v2772 = vpack.c.b16 %v2106, %v2100
    %v2773 = vpack.c.b16 %v2107, %v2101
    %v2774 = vpack.c.b16 %v2114, %v2108
    %v2775 = vpack.c.b16 %v2115, %v2109
    %v2776 = vpack.c.b16 %v2116, %v2110
    %v2777 = vpack.c.b16 %v2117, %v2111
    %v2778 = vpack.c.b16 %v2118, %v2112
    %v2779 = vpack.c.b16 %v2119, %v2113
    %v2780 = vpack.c.b16 %v2126, %v2120
    %v2781 = vpack.c.b16 %v2127, %v2121
    %v2782 = vpack.c.b16 %v2128, %v2122
    %v2783 = vpack.c.b16 %v2129, %v2123
    %v2784 = vpack.c.b16 %v2130, %v2124
    %v2785 = vpack.c.b16 %v2131, %v2125
    %v2786 = vpack.c.b16 %v2138, %v2132
    %v2787 = vpack.c.b16 %v2139, %v2133
    %v2788 = vpack.c.b16 %v2140, %v2134
    %v2789 = vpack.c.b16 %v2141, %v2135
    %v2790 = vpack.c.b16 %v2142, %v2136
    %v2791 = vpack.c.b16 %v2143, %v2137
    %v2792 = vpack.c.b16 %v2150, %v2144
    %v2793 = vpack.c.b16 %v2151, %v2145
    %v2794 = vpack.c.b16 %v2152, %v2146
    %v2795 = vpack.c.b16 %v2153, %v2147
    %v2796 = vpack.c.b16 %v2154, %v2148
    %v2797 = vpack.c.b16 %v2155, %v2149
    %v2798 = vpack.c.b16 %v2162, %v2156
    %v2799 = vpack.c.b16 %v2163, %v2157
    %v2800 = vpack.c.b16 %v2164, %v2158
    %v2801 = vpack.c.b16 %v2165, %v2159
    %v2802 = vpack.c.b16 %v2166, %v2160
    %v2803 = vpack.c.b16 %v2167, %v2161
    %v2804 = vpack.c.b16 %v2174, %v2168
    %v2805 = vpack.c.b16 %v2175, %v2169
    %v2806 = vpack.c.b16 %v2176, %v2170
    %v2807 = vpack.c.b16 %v2177, %v2171
    %v2808 = vpack.c.b16 %v2178, %v2172
    %v2809 = vpack.c.b16 %v2179, %v2173
    %v2810 = vpack.c.b16 %v2186, %v2180
    %v2811 = vpack.c.b16 %v2187, %v2181
    %v2812 = vpack.c.b16 %v2188, %v2182
    %v2813 = vpack.c.b16 %v2189, %v2183
    %v2814 = vpack.c.b16 %v2190, %v2184
    %v2815 = vpack.c.b16 %v2191, %v2185
    %v2816 = vpack.c.b16 %v2198, %v2192
    %v2817 = vpack.c.b16 %v2199, %v2193
    %v2818 = vpack.c.b16 %v2200, %v2194
    %v2819 = vpack.c.b16 %v2201, %v2195
    %v2820 = vpack.c.b16 %v2202, %v2196
    %v2821 = vpack.c.b16 %v2203, %v2197
    %v2822 = vpack.c.b16 %v2210, %v2204
    %v2823 = vpack.c.b16 %v2211, %v2205
    %v2824 = vpack.c.b16 %v2212, %v2206
    %v2825 = vpack.c.b16 %v2213, %v2207
    %v2826 = vpack.c.b16 %v2214, %v2208
    %v2827 = vpack.c.b16 %v2215, %v2209
    %v2828 = vpack.c.b16 %v2222, %v2216
    %v2829 = vpack.c.b16 %v2223, %v2217
    %v2830 = vpack.c.b16 %v2224, %v2218
    %v2831 = vpack.c.b16 %v2225, %v2219
    %v2832 = vpack.c.b16 %v2226, %v2220
    %v2833 = vpack.c.b16 %v2227, %v2221
    %v2834 = vpack.c.b16 %v2234, %v2228
    %v2835 = vpack.c.b16 %v2235, %v2229
    %v2836 = vpack.c.b16 %v2236, %v2230
    %v2837 = vpack.c.b16 %v2237, %v2231
    %v2838 = vpack.c.b16 %v2238, %v2232
    %v2839 = vpack.c.b16 %v2239, %v2233
    %v2840 = vpack.c.b16 %v2246, %v2240
    %v2841 = vpack.c.b16 %v2247, %v2241
    %v2842 = vpack.c.b16 %v2248, %v2242
    %v2843 = vpack.c.b16 %v2249, %v2243
    %v2844 = vpack.c.b16 %v2250, %v2244
    %v2845 = vpack.c.b16 %v2251, %v2245
    %v2846 = vpack.c.b16 %v2258, %v2252
    %v2847 = vpack.c.b16 %v2259, %v2253
    %v2848 = vpack.c.b16 %v2260, %v2254
    %v2849 = vpack.c.b16 %v2261, %v2255
    %v2850 = vpack.c.b16 %v2262, %v2256
    %v2851 = vpack.c.b16 %v2263, %v2257
    %v2852 = vpack.c.b16 %v2270, %v2264
    %v2853 = vpack.c.b16 %v2271, %v2265
    %v2854 = vpack.c.b16 %v2272, %v2266
    %v2855 = vpack.c.b16 %v2273, %v2267
    %v2856 = vpack.c.b16 %v2274, %v2268
    %v2857 = vpack.c.b16 %v2275, %v2269
    %v2858 = vpack.c.b16 %v2282, %v2276
    %v2859 = vpack.c.b16 %v2283, %v2277
    %v2860 = vpack.c.b16 %v2284, %v2278
    %v2861 = vpack.c.b16 %v2285, %v2279
    %v2862 = vpack.c.b16 %v2286, %v2280
    %v2863 = vpack.c.b16 %v2287, %v2281
    %v2864 = vpack.c.b16 %v2294, %v2288
    %v2865 = vpack.c.b16 %v2295, %v2289
    %v2866 = vpack.c.b16 %v2296, %v2290
    %v2867 = vpack.c.b16 %v2297, %v2291
    %v2868 = vpack.c.b16 %v2298, %v2292
    %v2869 = vpack.c.b16 %v2299, %v2293
    %v2870 = vpack.c.b16 %v2306, %v2300
    %v2871 = vpack.c.b16 %v2307, %v2301
    %v2872 = vpack.c.b16 %v2308, %v2302
    %v2873 = vpack.c.b16 %v2309, %v2303
    %v2874 = vpack.c.b16 %v2310, %v2304
    %v2875 = vpack.c.b16 %v2311, %v2305
    %v2876 = vpack.c.b16 %v2318, %v2312
    %v2877 = vpack.c.b16 %v2319, %v2313
    %v2878 = vpack.c.b16 %v2320, %v2314
    %v2879 = vpack.c.b16 %v2321, %v2315
    %v2880 = vpack.c.b16 %v2322, %v2316
    %v2881 = vpack.c.b16 %v2323, %v2317
    %v2882 = vpack.c.b16 %v2330, %v2324
    %v2883 = vpack.c.b16 %v2331, %v2325
    %v2884 = vpack.c.b16 %v2332, %v2326
    %v2885 = vpack.c.b16 %v2333, %v2327
    %v2886 = vpack.c.b16 %v2334, %v2328
    %v2887 = vpack.c.b16 %v2335, %v2329
    %v2888 = vpack.c.b16 %v2342, %v2336
    %v2889 = vpack.c.b16 %v2343, %v2337
    %v2890 = vpack.c.b16 %v2344, %v2338
    %v2891 = vpack.c.b16 %v2345, %v2339
    %v2892 = vpack.c.b16 %v2346, %v2340
    %v2893 = vpack.c.b16 %v2347, %v2341
    %v2894 = vpack.c.b16 %v2354, %v2348
    %v2895 = vpack.c.b16 %v2355, %v2349
    %v2896 = vpack.c.b16 %v2356, %v2350
    %v2897 = vpack.c.b16 %v2357, %v2351
    %v2898 = vpack.c.b16 %v2358, %v2352
    %v2899 = vpack.c.b16 %v2359, %v2353
    %v2900 = vpack.c.b16 %v2366, %v2360
    %v2901 = vpack.c.b16 %v2367, %v2361
    %v2902 = vpack.c.b16 %v2368, %v2362
    %v2903 = vpack.c.b16 %v2369, %v2363
    %v2904 = vpack.c.b16 %v2370, %v2364
    %v2905 = vpack.c.b16 %v2371, %v2365
    %v2906 = vpack.c.b16 %v2378, %v2372
    %v2907 = vpack.c.b16 %v2379, %v2373
    %v2908 = vpack.c.b16 %v2380, %v2374
    %v2909 = vpack.c.b16 %v2381, %v2375
    %v2910 = vpack.c.b16 %v2382, %v2376
    %v2911 = vpack.c.b16 %v2383, %v2377
    %v2912 = vpack.c.b16 %v2390, %v2384
    %v2913 = vpack.c.b16 %v2391, %v2385
    %v2914 = vpack.c.b16 %v2392, %v2386
    %v2915 = vpack.c.b16 %v2393, %v2387
    %v2916 = vpack.c.b16 %v2394, %v2388
    %v2917 = vpack.c.b16 %v2395, %v2389
    %v2918 = vpack.c.b16 %v2402, %v2396
    %v2919 = vpack.c.b16 %v2403, %v2397
    %v2920 = vpack.c.b16 %v2404, %v2398
    %v2921 = vpack.c.b16 %v2405, %v2399
    %v2922 = vpack.c.b16 %v2406, %v2400
    %v2923 = vpack.c.b16 %v2407, %v2401
    %v2924 = vpack.c.b16 %v2414, %v2408
    %v2925 = vpack.c.b16 %v2415, %v2409
    %v2926 = vpack.c.b16 %v2416, %v2410
    %v2927 = vpack.c.b16 %v2417, %v2411
    %v2928 = vpack.c.b16 %v2418, %v2412
    %v2929 = vpack.c.b16 %v2419, %v2413
    %v2930 = vpack.c.b16 %v2426, %v2420
    %v2931 = vpack.c.b16 %v2427, %v2421
    %v2932 = vpack.c.b16 %v2428, %v2422
    %v2933 = vpack.c.b16 %v2429, %v2423
    %v2934 = vpack.c.b16 %v2430, %v2424
    %v2935 = vpack.c.b16 %v2431, %v2425
    %v2936 = vpack.c.b16 %v2438, %v2432
    %v2937 = vpack.c.b16 %v2439, %v2433
    %v2938 = vpack.c.b16 %v2440, %v2434
    %v2939 = vpack.c.b16 %v2441, %v2435
    %v2940 = vpack.c.b16 %v2442, %v2436
    %v2941 = vpack.c.b16 %v2443, %v2437
    %v2942 = vpack.c.b16 %v2450, %v2444
    %v2943 = vpack.c.b16 %v2451, %v2445
    %v2944 = vpack.c.b16 %v2452, %v2446
    %v2945 = vpack.c.b16 %v2453, %v2447
    %v2946 = vpack.c.b16 %v2454, %v2448
    %v2947 = vpack.c.b16 %v2455, %v2449
    %v2948 = vpack.c.b16 %v2462, %v2456
    %v2949 = vpack.c.b16 %v2463, %v2457
    %v2950 = vpack.c.b16 %v2464, %v2458
    %v2951 = vpack.c.b16 %v2465, %v2459
    %v2952 = vpack.c.b16 %v2466, %v2460
    %v2953 = vpack.c.b16 %v2467, %v2461
    %v2954 = vpack.c.b16 %v2474, %v2468
    %v2955 = vpack.c.b16 %v2475, %v2469
    %v2956 = vpack.c.b16 %v2476, %v2470
    %v2957 = vpack.c.b16 %v2477, %v2471
    %v2958 = vpack.c.b16 %v2478, %v2472
    %v2959 = vpack.c.b16 %v2479, %v2473
    %v2960 = vpack.c.b16 %v2486, %v2480
    %v2961 = vpack.c.b16 %v2487, %v2481
    %v2962 = vpack.c.b16 %v2488, %v2482
    %v2963 = vpack.c.b16 %v2489, %v2483
    %v2964 = vpack.c.b16 %v2490, %v2484
    %v2965 = vpack.c.b16 %v2491, %v2485
    %v2966 = vpack.c.b16 %v2498, %v2492
    %v2967 = vpack.c.b16 %v2499, %v2493
    %v2968 = vpack.c.b16 %v2500, %v2494
    %v2969 = vpack.c.b16 %v2501, %v2495
    %v2970 = vpack.c.b16 %v2502, %v2496
    %v2971 = vpack.c.b16 %v2503, %v2497
    %v2972 = vpack.c.b16 %v2510, %v2504
    %v2973 = vpack.c.b16 %v2511, %v2505
    %v2974 = vpack.c.b16 %v2512, %v2506
    %v2975 = vpack.c.b16 %v2513, %v2507
    %v2976 = vpack.c.b16 %v2514, %v2508
    %v2977 = vpack.c.b16 %v2515, %v2509
    %v2978 = vpack.c.b16 %v2522, %v2516
    %v2979 = vpack.c.b16 %v2523, %v2517
    %v2980 = vpack.c.b16 %v2524, %v2518
    %v2981 = vpack.c.b16 %v2525, %v2519
    %v2982 = vpack.c.b16 %v2526, %v2520
    %v2983 = vpack.c.b16 %v2527, %v2521
    %v2984 = vpack.c.b16 %v2534, %v2528
    %v2985 = vpack.c.b16 %v2535, %v2529
    %v2986 = vpack.c.b16 %v2536, %v2530
    %v2987 = vpack.c.b16 %v2537, %v2531
    %v2988 = vpack.c.b16 %v2538, %v2532
    %v2989 = vpack.c.b16 %v2539, %v2533
    %v2990 = vpack.c.b16 %v2546, %v2540
    %v2991 = vpack.c.b16 %v2547, %v2541
    %v2992 = vpack.c.b16 %v2548, %v2542
    %v2993 = vpack.c.b16 %v2549, %v2543
    %v2994 = vpack.c.b16 %v2550, %v2544
    %v2995 = vpack.c.b16 %v2551, %v2545
    %v2996 = vpack.c.b16 %v2558, %v2552
    %v2997 = vpack.c.b16 %v2559, %v2553
    %v2998 = vpack.c.b16 %v2560, %v2554
    %v2999 = vpack.c.b16 %v2561, %v2555
    %v3000 = vpack.c.b16 %v2562, %v2556
    %v3001 = vpack.c.b16 %v2563, %v2557
    %v3002 = vpack.c.b16 %v2570, %v2564
    %v3003 = vpack.c.b16 %v2571, %v2565
    %v3004 = vpack.c.b16 %v2572, %v2566
    %v3005 = vpack.c.b16 %v2573, %v2567
    %v3006 = vpack.c.b16 %v2574, %v2568
    %v3007 = vpack.c.b16 %v2575, %v2569
    %v3008 = vpack.c.b16 %v2582, %v2576
    %v3009 = vpack.c.b16 %v2583, %v2577
    %v3010 = vpack.c.b16 %v2584, %v2578
    %v3011 = vpack.c.b16 %v2585, %v2579
    %v3012 = vpack.c.b16 %v2586, %v2580
    %v3013 = vpack.c.b16 %v2587, %v2581
    %v3014 = vpack.c.b16 %v2594, %v2588
    %v3015 = vpack.c.b16 %v2595, %v2589
    %v3016 = vpack.c.b16 %v2596, %v2590
    %v3017 = vpack.c.b16 %v2597, %v2591
    %v3018 = vpack.c.b16 %v2598, %v2592
    %v3019 = vpack.c.b16 %v2599, %v2593
    %v3020 = vpack.c.b16 %v2606, %v2600
    %v3021 = vpack.c.b16 %v2607, %v2601
    %v3022 = vpack.c.b16 %v2608, %v2602
    %v3023 = vpack.c.b16 %v2609, %v2603
    %v3024 = vpack.c.b16 %v2610, %v2604
    %v3025 = vpack.c.b16 %v2611, %v2605
    %v3026 = vpack.c.b16 %v2618, %v2612
    %v3027 = vpack.c.b16 %v2619, %v2613
    %v3028 = vpack.c.b16 %v2620, %v2614
    %v3029 = vpack.c.b16 %v2621, %v2615
    %v3030 = vpack.c.b16 %v2622, %v2616
    %v3031 = vpack.c.b16 %v2623, %v2617
    %v3032 = vpack.c.b16 %v2630, %v2624
    %v3033 = vpack.c.b16 %v2631, %v2625
    %v3034 = vpack.c.b16 %v2632, %v2626
    %v3035 = vpack.c.b16 %v2633, %v2627
    %v3036 = vpack.c.b16 %v2634, %v2628
    %v3037 = vpack.c.b16 %v2635, %v2629
    %v3038 = vpack.c.b16 %v2642, %v2636
    %v3039 = vpack.c.b16 %v2643, %v2637
    %v3040 = vpack.c.b16 %v2644, %v2638
    %v3041 = vpack.c.b16 %v2645, %v2639
    %v3042 = vpack.c.b16 %v2646, %v2640
    %v3043 = vpack.c.b16 %v2647, %v2641
    %v3044 = vpack.c.b16 %v2654, %v2648
    %v3045 = vpack.c.b16 %v2655, %v2649
    %v3046 = vpack.c.b16 %v2656, %v2650
    %v3047 = vpack.c.b16 %v2657, %v2651
    %v3048 = vpack.c.b16 %v2658, %v2652
    %v3049 = vpack.c.b16 %v2659, %v2653
    %v3050 = vpack.c.b16 %v2666, %v2660
    %v3051 = vpack.c.b16 %v2667, %v2661
    %v3052 = vpack.c.b16 %v2668, %v2662
    %v3053 = vpack.c.b16 %v2669, %v2663
    %v3054 = vpack.c.b16 %v2670, %v2664
    %v3055 = vpack.c.b16 %v2671, %v2665
    %3440 = vmatprep.subr.bf16.mxu0 %v2673
    %3441 = vmatpush1.bf16.msra.mxu0 %v2672
    %3442 = vmatprep.subr.bf16.mxu0 %v2679
    %3443 = vmatpush1.bf16.msra.mxu0 %v2678
    %3444 = vmatprep.subr.bf16.mxu0 %v2685
    %3445 = vmatpush1.bf16.msra.mxu0 %v2684
    %3446 = vmatprep.subr.bf16.mxu0 %v2691
    %3447 = vmatpush1.bf16.msra.mxu0 %v2690
    %3448 = vmatprep.subr.bf16.mxu0 %v2697
    %3449 = vmatpush1.bf16.msra.mxu0 %v2696
    %3450 = vmatprep.subr.bf16.mxu0 %v2703
    %3451 = vmatpush1.bf16.msra.mxu0 %v2702
    %3452 = vmatprep.subr.bf16.mxu0 %v2709
    %3453 = vmatpush1.bf16.msra.mxu0 %v2708
    %3454 = vmatprep.subr.bf16.mxu0 %v2715
    %3455 = vmatpush1.bf16.msra.mxu0 %v2714
    %3456 = vmatprep.subr.bf16.mxu0 %v2721
    %3457 = vmatpush1.bf16.msra.mxu0 %v2720
    %3458 = vmatprep.subr.bf16.mxu0 %v2727
    %3459 = vmatpush1.bf16.msra.mxu0 %v2726
    %3460 = vmatprep.subr.bf16.mxu0 %v2733
    %3461 = vmatpush1.bf16.msra.mxu0 %v2732
    %3462 = vmatprep.subr.bf16.mxu0 %v2739
    %3463 = vmatpush1.bf16.msra.mxu0 %v2738
    %3464 = vmatprep.subr.bf16.mxu0 %v2745
    %3465 = vmatpush1.bf16.msra.mxu0 %v2744
    %3466 = vmatprep.subr.bf16.mxu0 %v2751
    %3467 = vmatpush1.bf16.msra.mxu0 %v2750
    %3468 = vmatprep.subr.bf16.mxu0 %v2757
    %3469 = vmatpush1.bf16.msra.mxu0 %v2756
    %3470 = vmatprep.subr.bf16.mxu0 %v2763
    %3471 = vmatpush1.bf16.msra.mxu0 %v2762
    %3472 = vmatprep.mubr.bf16.mxu0 %v1129
    %3473 = vmatmul.mubr.bf16.gmra.mrb[0].mxu0 %v1128
    %v3474 = vpop.f32.mrb[0].mxu0
    %v3475 = vadd.f32 0.0, %v3474
    %v3476 = vpop.f32.mrb[0].mxu0
    %v3477 = vadd.f32 0.0, %v3476
    %v3478 = vpop.f32.mrb[0].mxu0
    %v3479 = vadd.f32 0.0, %v3478
    %v3480 = vpop.f32.mrb[0].mxu0
    %v3481 = vadd.f32 0.0, %v3480
    %3482 = vdwg.mxu0
    %3483 = vmatprep.subr.bf16.mxu0 %v2769
    %3484 = vmatpush1.bf16.msra.mxu0 %v2768
    %3485 = vmatprep.subr.bf16.mxu0 %v2775
    %3486 = vmatpush1.bf16.msra.mxu0 %v2774
    %3487 = vmatprep.subr.bf16.mxu0 %v2781
    %3488 = vmatpush1.bf16.msra.mxu0 %v2780
    %3489 = vmatprep.subr.bf16.mxu0 %v2787
    %3490 = vmatpush1.bf16.msra.mxu0 %v2786
    %3491 = vmatprep.subr.bf16.mxu0 %v2793
    %3492 = vmatpush1.bf16.msra.mxu0 %v2792
    %3493 = vmatprep.subr.bf16.mxu0 %v2799
    %3494 = vmatpush1.bf16.msra.mxu0 %v2798
    %3495 = vmatprep.subr.bf16.mxu0 %v2805
    %3496 = vmatpush1.bf16.msra.mxu0 %v2804
    %3497 = vmatprep.subr.bf16.mxu0 %v2811
    %3498 = vmatpush1.bf16.msra.mxu0 %v2810
    %3499 = vmatprep.subr.bf16.mxu0 %v2817
    %3500 = vmatpush1.bf16.msra.mxu0 %v2816
    %3501 = vmatprep.subr.bf16.mxu0 %v2823
    %3502 = vmatpush1.bf16.msra.mxu0 %v2822
    %3503 = vmatprep.subr.bf16.mxu0 %v2829
    %3504 = vmatpush1.bf16.msra.mxu0 %v2828
    %3505 = vmatprep.subr.bf16.mxu0 %v2835
    %3506 = vmatpush1.bf16.msra.mxu0 %v2834
    %3507 = vmatprep.subr.bf16.mxu0 %v2841
    %3508 = vmatpush1.bf16.msra.mxu0 %v2840
    %3509 = vmatprep.subr.bf16.mxu0 %v2847
    %3510 = vmatpush1.bf16.msra.mxu0 %v2846
    %3511 = vmatprep.subr.bf16.mxu0 %v2853
    %3512 = vmatpush1.bf16.msra.mxu0 %v2852
    %3513 = vmatprep.subr.bf16.mxu0 %v2859
    %3514 = vmatpush1.bf16.msra.mxu0 %v2858
    %3515 = vmatprep.mubr.bf16.mxu0 %v1131
    %3516 = vmatmul.mubr.bf16.gmra.mrb[0].mxu0 %v1130
    %v3517 = vpop.f32.mrb[0].mxu0
    %v3518 = vadd.f32 %v3475, %v3517
    %v3519 = vpop.f32.mrb[0].mxu0
    %v3520 = vadd.f32 %v3477, %v3519
    %v3521 = vpop.f32.mrb[0].mxu0
    %v3522 = vadd.f32 %v3479, %v3521
    %v3523 = vpop.f32.mrb[0].mxu0
    %v3524 = vadd.f32 %v3481, %v3523
    %3525 = vdwg.mxu0
    %3526 = vmatprep.subr.bf16.mxu0 %v2865
    %3527 = vmatpush1.bf16.msra.mxu0 %v2864
    %3528 = vmatprep.subr.bf16.mxu0 %v2871
    %3529 = vmatpush1.bf16.msra.mxu0 %v2870
    %3530 = vmatprep.subr.bf16.mxu0 %v2877
    %3531 = vmatpush1.bf16.msra.mxu0 %v2876
    %3532 = vmatprep.subr.bf16.mxu0 %v2883
    %3533 = vmatpush1.bf16.msra.mxu0 %v2882
    %3534 = vmatprep.subr.bf16.mxu0 %v2889
    %3535 = vmatpush1.bf16.msra.mxu0 %v2888
    %3536 = vmatprep.subr.bf16.mxu0 %v2895
    %3537 = vmatpush1.bf16.msra.mxu0 %v2894
    %3538 = vmatprep.subr.bf16.mxu0 %v2901
    %3539 = vmatpush1.bf16.msra.mxu0 %v2900
    %3540 = vmatprep.subr.bf16.mxu0 %v2907
    %3541 = vmatpush1.bf16.msra.mxu0 %v2906
    %3542 = vmatprep.subr.bf16.mxu0 %v2913
    %3543 = vmatpush1.bf16.msra.mxu0 %v2912
    %3544 = vmatprep.subr.bf16.mxu0 %v2919
    %3545 = vmatpush1.bf16.msra.mxu0 %v2918
    %3546 = vmatprep.subr.bf16.mxu0 %v2925
    %3547 = vmatpush1.bf16.msra.mxu0 %v2924
    %3548 = vmatprep.subr.bf16.mxu0 %v2931
    %3549 = vmatpush1.bf16.msra.mxu0 %v2930
    %3550 = vmatprep.subr.bf16.mxu0 %v2937
    %3551 = vmatpush1.bf16.msra.mxu0 %v2936
    %3552 = vmatprep.subr.bf16.mxu0 %v2943
    %3553 = vmatpush1.bf16.msra.mxu0 %v2942
    %3554 = vmatprep.subr.bf16.mxu0 %v2949
    %3555 = vmatpush1.bf16.msra.mxu0 %v2948
    %3556 = vmatprep.subr.bf16.mxu0 %v2955
    %3557 = vmatpush1.bf16.msra.mxu0 %v2954
    %3558 = vmatprep.mubr.bf16.mxu0 %v1133
    %3559 = vmatmul.mubr.bf16.gmra.mrb[0].mxu0 %v1132
    %v3560 = vpop.f32.mrb[0].mxu0
    %v3561 = vadd.f32 %v3518, %v3560
    %v3562 = vpop.f32.mrb[0].mxu0
    %v3563 = vadd.f32 %v3520, %v3562
    %v3564 = vpop.f32.mrb[0].mxu0
    %v3565 = vadd.f32 %v3522, %v3564
    %v3566 = vpop.f32.mrb[0].mxu0
    %v3567 = vadd.f32 %v3524, %v3566
    %3568 = vdwg.mxu0
    %3569 = vmatprep.subr.bf16.mxu0 %v2961
    %3570 = vmatpush1.bf16.msra.mxu0 %v2960
    %3571 = vmatprep.subr.bf16.mxu0 %v2967
    %3572 = vmatpush1.bf16.msra.mxu0 %v2966
    %3573 = vmatprep.subr.bf16.mxu0 %v2973
    %3574 = vmatpush1.bf16.msra.mxu0 %v2972
    %3575 = vmatprep.subr.bf16.mxu0 %v2979
    %3576 = vmatpush1.bf16.msra.mxu0 %v2978
    %3577 = vmatprep.subr.bf16.mxu0 %v2985
    %3578 = vmatpush1.bf16.msra.mxu0 %v2984
    %3579 = vmatprep.subr.bf16.mxu0 %v2991
    %3580 = vmatpush1.bf16.msra.mxu0 %v2990
    %3581 = vmatprep.subr.bf16.mxu0 %v2997
    %3582 = vmatpush1.bf16.msra.mxu0 %v2996
    %3583 = vmatprep.subr.bf16.mxu0 %v3003
    %3584 = vmatpush1.bf16.msra.mxu0 %v3002
    %3585 = vmatprep.subr.bf16.mxu0 %v3009
    %3586 = vmatpush1.bf16.msra.mxu0 %v3008
    %3587 = vmatprep.subr.bf16.mxu0 %v3015
    %3588 = vmatpush1.bf16.msra.mxu0 %v3014
    %3589 = vmatprep.subr.bf16.mxu0 %v3021
    %3590 = vmatpush1.bf16.msra.mxu0 %v3020
    %3591 = vmatprep.subr.bf16.mxu0 %v3027
    %3592 = vmatpush1.bf16.msra.mxu0 %v3026
    %3593 = vmatprep.subr.bf16.mxu0 %v3033
    %3594 = vmatpush1.bf16.msra.mxu0 %v3032
    %3595 = vmatprep.subr.bf16.mxu0 %v3039
    %3596 = vmatpush1.bf16.msra.mxu0 %v3038
    %3597 = vmatprep.subr.bf16.mxu0 %v3045
    %3598 = vmatpush1.bf16.msra.mxu0 %v3044
    %3599 = vmatprep.subr.bf16.mxu0 %v3051
    %3600 = vmatpush1.bf16.msra.mxu0 %v3050
    %3601 = vmatprep.mubr.bf16.mxu0 %v1135
    %3602 = vmatmul.mubr.bf16.gmra.mrb[0].mxu0 %v1134
    %v3603 = vpop.f32.mrb[0].mxu0
    %v3604 = vadd.f32 %v3561, %v3603
    %v3605 = vpop.f32.mrb[0].mxu0
    %v3606 = vadd.f32 %v3563, %v3605
    %v3607 = vpop.f32.mrb[0].mxu0
    %v3608 = vadd.f32 %v3565, %v3607
    %v3609 = vpop.f32.mrb[0].mxu0
    %v3610 = vadd.f32 %v3567, %v3609
    %3611 = vdwg.mxu0
    %3612 = vmatprep.subr.bf16.mxu0 %v2675
    %3613 = vmatpush1.bf16.msra.mxu0 %v2674
    %3614 = vmatprep.subr.bf16.mxu0 %v2681
    %3615 = vmatpush1.bf16.msra.mxu0 %v2680
    %3616 = vmatprep.subr.bf16.mxu0 %v2687
    %3617 = vmatpush1.bf16.msra.mxu0 %v2686
    %3618 = vmatprep.subr.bf16.mxu0 %v2693
    %3619 = vmatpush1.bf16.msra.mxu0 %v2692
    %3620 = vmatprep.subr.bf16.mxu0 %v2699
    %3621 = vmatpush1.bf16.msra.mxu0 %v2698
    %3622 = vmatprep.subr.bf16.mxu0 %v2705
    %3623 = vmatpush1.bf16.msra.mxu0 %v2704
    %3624 = vmatprep.subr.bf16.mxu0 %v2711
    %3625 = vmatpush1.bf16.msra.mxu0 %v2710
    %3626 = vmatprep.subr.bf16.mxu0 %v2717
    %3627 = vmatpush1.bf16.msra.mxu0 %v2716
    %3628 = vmatprep.subr.bf16.mxu0 %v2723
    %3629 = vmatpush1.bf16.msra.mxu0 %v2722
    %3630 = vmatprep.subr.bf16.mxu0 %v2729
    %3631 = vmatpush1.bf16.msra.mxu0 %v2728
    %3632 = vmatprep.subr.bf16.mxu0 %v2735
    %3633 = vmatpush1.bf16.msra.mxu0 %v2734
    %3634 = vmatprep.subr.bf16.mxu0 %v2741
    %3635 = vmatpush1.bf16.msra.mxu0 %v2740
    %3636 = vmatprep.subr.bf16.mxu0 %v2747
    %3637 = vmatpush1.bf16.msra.mxu0 %v2746
    %3638 = vmatprep.subr.bf16.mxu0 %v2753
    %3639 = vmatpush1.bf16.msra.mxu0 %v2752
    %3640 = vmatprep.subr.bf16.mxu0 %v2759
    %3641 = vmatpush1.bf16.msra.mxu0 %v2758
    %3642 = vmatprep.subr.bf16.mxu0 %v2765
    %3643 = vmatpush1.bf16.msra.mxu0 %v2764
    %3644 = vmatprep.mubr.bf16.mxu0 %v1129
    %3645 = vmatmul.mubr.bf16.gmra.mrb[0].mxu0 %v1128
    %v3646 = vpop.f32.mrb[0].mxu0
    %v3647 = vadd.f32 0.0, %v3646
    %v3648 = vpop.f32.mrb[0].mxu0
    %v3649 = vadd.f32 0.0, %v3648
    %v3650 = vpop.f32.mrb[0].mxu0
    %v3651 = vadd.f32 0.0, %v3650
    %v3652 = vpop.f32.mrb[0].mxu0
    %v3653 = vadd.f32 0.0, %v3652
    %3654 = vdwg.mxu0
    %3655 = vmatprep.subr.bf16.mxu0 %v2771
    %3656 = vmatpush1.bf16.msra.mxu0 %v2770
    %3657 = vmatprep.subr.bf16.mxu0 %v2777
    %3658 = vmatpush1.bf16.msra.mxu0 %v2776
    %3659 = vmatprep.subr.bf16.mxu0 %v2783
    %3660 = vmatpush1.bf16.msra.mxu0 %v2782
    %3661 = vmatprep.subr.bf16.mxu0 %v2789
    %3662 = vmatpush1.bf16.msra.mxu0 %v2788
    %3663 = vmatprep.subr.bf16.mxu0 %v2795
    %3664 = vmatpush1.bf16.msra.mxu0 %v2794
    %3665 = vmatprep.subr.bf16.mxu0 %v2801
    %3666 = vmatpush1.bf16.msra.mxu0 %v2800
    %3667 = vmatprep.subr.bf16.mxu0 %v2807
    %3668 = vmatpush1.bf16.msra.mxu0 %v2806
    %3669 = vmatprep.subr.bf16.mxu0 %v2813
    %3670 = vmatpush1.bf16.msra.mxu0 %v2812
    %3671 = vmatprep.subr.bf16.mxu0 %v2819
    %3672 = vmatpush1.bf16.msra.mxu0 %v2818
    %3673 = vmatprep.subr.bf16.mxu0 %v2825
    %3674 = vmatpush1.bf16.msra.mxu0 %v2824
    %3675 = vmatprep.subr.bf16.mxu0 %v2831
    %3676 = vmatpush1.bf16.msra.mxu0 %v2830
    %3677 = vmatprep.subr.bf16.mxu0 %v2837
    %3678 = vmatpush1.bf16.msra.mxu0 %v2836
    %3679 = vmatprep.subr.bf16.mxu0 %v2843
    %3680 = vmatpush1.bf16.msra.mxu0 %v2842
    %3681 = vmatprep.subr.bf16.mxu0 %v2849
    %3682 = vmatpush1.bf16.msra.mxu0 %v2848
    %3683 = vmatprep.subr.bf16.mxu0 %v2855
    %3684 = vmatpush1.bf16.msra.mxu0 %v2854
    %3685 = vmatprep.subr.bf16.mxu0 %v2861
    %3686 = vmatpush1.bf16.msra.mxu0 %v2860
    %3687 = vmatprep.mubr.bf16.mxu0 %v1131
    %3688 = vmatmul.mubr.bf16.gmra.mrb[0].mxu0 %v1130
    %v3689 = vpop.f32.mrb[0].mxu0
    %v3690 = vadd.f32 %v3647, %v3689
    %v3691 = vpop.f32.mrb[0].mxu0
    %v3692 = vadd.f32 %v3649, %v3691
    %v3693 = vpop.f32.mrb[0].mxu0
    %v3694 = vadd.f32 %v3651, %v3693
    %v3695 = vpop.f32.mrb[0].mxu0
    %v3696 = vadd.f32 %v3653, %v3695
    %3697 = vdwg.mxu0
    %3698 = vmatprep.subr.bf16.mxu0 %v2867
    %3699 = vmatpush1.bf16.msra.mxu0 %v2866
    %3700 = vmatprep.subr.bf16.mxu0 %v2873
    %3701 = vmatpush1.bf16.msra.mxu0 %v2872
    %3702 = vmatprep.subr.bf16.mxu0 %v2879
    %3703 = vmatpush1.bf16.msra.mxu0 %v2878
    %3704 = vmatprep.subr.bf16.mxu0 %v2885
    %3705 = vmatpush1.bf16.msra.mxu0 %v2884
    %3706 = vmatprep.subr.bf16.mxu0 %v2891
    %3707 = vmatpush1.bf16.msra.mxu0 %v2890
    %3708 = vmatprep.subr.bf16.mxu0 %v2897
    %3709 = vmatpush1.bf16.msra.mxu0 %v2896
    %3710 = vmatprep.subr.bf16.mxu0 %v2903
    %3711 = vmatpush1.bf16.msra.mxu0 %v2902
    %3712 = vmatprep.subr.bf16.mxu0 %v2909
    %3713 = vmatpush1.bf16.msra.mxu0 %v2908
    %3714 = vmatprep.subr.bf16.mxu0 %v2915
    %3715 = vmatpush1.bf16.msra.mxu0 %v2914
    %3716 = vmatprep.subr.bf16.mxu0 %v2921
    %3717 = vmatpush1.bf16.msra.mxu0 %v2920
    %3718 = vmatprep.subr.bf16.mxu0 %v2927
    %3719 = vmatpush1.bf16.msra.mxu0 %v2926
    %3720 = vmatprep.subr.bf16.mxu0 %v2933
    %3721 = vmatpush1.bf16.msra.mxu0 %v2932
    %3722 = vmatprep.subr.bf16.mxu0 %v2939
    %3723 = vmatpush1.bf16.msra.mxu0 %v2938
    %3724 = vmatprep.subr.bf16.mxu0 %v2945
    %3725 = vmatpush1.bf16.msra.mxu0 %v2944
    %3726 = vmatprep.subr.bf16.mxu0 %v2951
    %3727 = vmatpush1.bf16.msra.mxu0 %v2950
    %3728 = vmatprep.subr.bf16.mxu0 %v2957
    %3729 = vmatpush1.bf16.msra.mxu0 %v2956
    %3730 = vmatprep.mubr.bf16.mxu0 %v1133
    %3731 = vmatmul.mubr.bf16.gmra.mrb[0].mxu0 %v1132
    %v3732 = vpop.f32.mrb[0].mxu0
    %v3733 = vadd.f32 %v3690, %v3732
    %v3734 = vpop.f32.mrb[0].mxu0
    %v3735 = vadd.f32 %v3692, %v3734
    %v3736 = vpop.f32.mrb[0].mxu0
    %v3737 = vadd.f32 %v3694, %v3736
    %v3738 = vpop.f32.mrb[0].mxu0
    %v3739 = vadd.f32 %v3696, %v3738
    %3740 = vdwg.mxu0
    %3741 = vmatprep.subr.bf16.mxu0 %v2963
    %3742 = vmatpush1.bf16.msra.mxu0 %v2962
    %3743 = vmatprep.subr.bf16.mxu0 %v2969
    %3744 = vmatpush1.bf16.msra.mxu0 %v2968
    %3745 = vmatprep.subr.bf16.mxu0 %v2975
    %3746 = vmatpush1.bf16.msra.mxu0 %v2974
    %3747 = vmatprep.subr.bf16.mxu0 %v2981
    %3748 = vmatpush1.bf16.msra.mxu0 %v2980
    %3749 = vmatprep.subr.bf16.mxu0 %v2987
    %3750 = vmatpush1.bf16.msra.mxu0 %v2986
    %3751 = vmatprep.subr.bf16.mxu0 %v2993
    %3752 = vmatpush1.bf16.msra.mxu0 %v2992
    %3753 = vmatprep.subr.bf16.mxu0 %v2999
    %3754 = vmatpush1.bf16.msra.mxu0 %v2998
    %3755 = vmatprep.subr.bf16.mxu0 %v3005
    %3756 = vmatpush1.bf16.msra.mxu0 %v3004
    %3757 = vmatprep.subr.bf16.mxu0 %v3011
    %3758 = vmatpush1.bf16.msra.mxu0 %v3010
    %3759 = vmatprep.subr.bf16.mxu0 %v3017
    %3760 = vmatpush1.bf16.msra.mxu0 %v3016
    %3761 = vmatprep.subr.bf16.mxu0 %v3023
    %3762 = vmatpush1.bf16.msra.mxu0 %v3022
    %3763 = vmatprep.subr.bf16.mxu0 %v3029
    %3764 = vmatpush1.bf16.msra.mxu0 %v3028
    %3765 = vmatprep.subr.bf16.mxu0 %v3035
    %3766 = vmatpush1.bf16.msra.mxu0 %v3034
    %3767 = vmatprep.subr.bf16.mxu0 %v3041
    %3768 = vmatpush1.bf16.msra.mxu0 %v3040
    %3769 = vmatprep.subr.bf16.mxu0 %v3047
    %3770 = vmatpush1.bf16.msra.mxu0 %v3046
    %3771 = vmatprep.subr.bf16.mxu0 %v3053
    %3772 = vmatpush1.bf16.msra.mxu0 %v3052
    %3773 = vmatprep.mubr.bf16.mxu0 %v1135
    %3774 = vmatmul.mubr.bf16.gmra.mrb[0].mxu0 %v1134
    %v3775 = vpop.f32.mrb[0].mxu0
    %v3776 = vadd.f32 %v3733, %v3775
    %v3777 = vpop.f32.mrb[0].mxu0
    %v3778 = vadd.f32 %v3735, %v3777
    %v3779 = vpop.f32.mrb[0].mxu0
    %v3780 = vadd.f32 %v3737, %v3779
    %v3781 = vpop.f32.mrb[0].mxu0
    %v3782 = vadd.f32 %v3739, %v3781
    %3783 = vdwg.mxu0
    %3784 = vmatprep.subr.bf16.mxu0 %v2677
    %3785 = vmatpush1.bf16.msra.mxu0 %v2676
    %3786 = vmatprep.subr.bf16.mxu0 %v2683
    %3787 = vmatpush1.bf16.msra.mxu0 %v2682
    %3788 = vmatprep.subr.bf16.mxu0 %v2689
    %3789 = vmatpush1.bf16.msra.mxu0 %v2688
    %3790 = vmatprep.subr.bf16.mxu0 %v2695
    %3791 = vmatpush1.bf16.msra.mxu0 %v2694
    %3792 = vmatprep.subr.bf16.mxu0 %v2701
    %3793 = vmatpush1.bf16.msra.mxu0 %v2700
    %3794 = vmatprep.subr.bf16.mxu0 %v2707
    %3795 = vmatpush1.bf16.msra.mxu0 %v2706
    %3796 = vmatprep.subr.bf16.mxu0 %v2713
    %3797 = vmatpush1.bf16.msra.mxu0 %v2712
    %3798 = vmatprep.subr.bf16.mxu0 %v2719
    %3799 = vmatpush1.bf16.msra.mxu0 %v2718
    %3800 = vmatprep.subr.bf16.mxu0 %v2725
    %3801 = vmatpush1.bf16.msra.mxu0 %v2724
    %3802 = vmatprep.subr.bf16.mxu0 %v2731
    %3803 = vmatpush1.bf16.msra.mxu0 %v2730
    %3804 = vmatprep.subr.bf16.mxu0 %v2737
    %3805 = vmatpush1.bf16.msra.mxu0 %v2736
    %3806 = vmatprep.subr.bf16.mxu0 %v2743
    %3807 = vmatpush1.bf16.msra.mxu0 %v2742
    %3808 = vmatprep.subr.bf16.mxu0 %v2749
    %3809 = vmatpush1.bf16.msra.mxu0 %v2748
    %3810 = vmatprep.subr.bf16.mxu0 %v2755
    %3811 = vmatpush1.bf16.msra.mxu0 %v2754
    %3812 = vmatprep.subr.bf16.mxu0 %v2761
    %3813 = vmatpush1.bf16.msra.mxu0 %v2760
    %3814 = vmatprep.subr.bf16.mxu0 %v2767
    %3815 = vmatpush1.bf16.msra.mxu0 %v2766
    %3816 = vmatprep.mubr.bf16.mxu0 %v1129
    %3817 = vmatmul.mubr.bf16.gmra.mrb[0].mxu0 %v1128
    %v3818 = vpop.f32.mrb[0].mxu0
    %v3819 = vadd.f32 0.0, %v3818
    %v3820 = vpop.f32.mrb[0].mxu0
    %v3821 = vadd.f32 0.0, %v3820
    %v3822 = vpop.f32.mrb[0].mxu0
    %v3823 = vadd.f32 0.0, %v3822
    %v3824 = vpop.f32.mrb[0].mxu0
    %v3825 = vadd.f32 0.0, %v3824
    %3826 = vdwg.mxu0
    %3827 = vmatprep.subr.bf16.mxu0 %v2773
    %3828 = vmatpush1.bf16.msra.mxu0 %v2772
    %3829 = vmatprep.subr.bf16.mxu0 %v2779
    %3830 = vmatpush1.bf16.msra.mxu0 %v2778
    %3831 = vmatprep.subr.bf16.mxu0 %v2785
    %3832 = vmatpush1.bf16.msra.mxu0 %v2784
    %3833 = vmatprep.subr.bf16.mxu0 %v2791
    %3834 = vmatpush1.bf16.msra.mxu0 %v2790
    %3835 = vmatprep.subr.bf16.mxu0 %v2797
    %3836 = vmatpush1.bf16.msra.mxu0 %v2796
    %3837 = vmatprep.subr.bf16.mxu0 %v2803
    %3838 = vmatpush1.bf16.msra.mxu0 %v2802
    %3839 = vmatprep.subr.bf16.mxu0 %v2809
    %3840 = vmatpush1.bf16.msra.mxu0 %v2808
    %3841 = vmatprep.subr.bf16.mxu0 %v2815
    %3842 = vmatpush1.bf16.msra.mxu0 %v2814
    %3843 = vmatprep.subr.bf16.mxu0 %v2821
    %3844 = vmatpush1.bf16.msra.mxu0 %v2820
    %3845 = vmatprep.subr.bf16.mxu0 %v2827
    %3846 = vmatpush1.bf16.msra.mxu0 %v2826
    %3847 = vmatprep.subr.bf16.mxu0 %v2833
    %3848 = vmatpush1.bf16.msra.mxu0 %v2832
    %3849 = vmatprep.subr.bf16.mxu0 %v2839
    %3850 = vmatpush1.bf16.msra.mxu0 %v2838
    %3851 = vmatprep.subr.bf16.mxu0 %v2845
    %3852 = vmatpush1.bf16.msra.mxu0 %v2844
    %3853 = vmatprep.subr.bf16.mxu0 %v2851
    %3854 = vmatpush1.bf16.msra.mxu0 %v2850
    %3855 = vmatprep.subr.bf16.mxu0 %v2857
    %3856 = vmatpush1.bf16.msra.mxu0 %v2856
    %3857 = vmatprep.subr.bf16.mxu0 %v2863
    %3858 = vmatpush1.bf16.msra.mxu0 %v2862
    %3859 = vmatprep.mubr.bf16.mxu0 %v1131
    %3860 = vmatmul.mubr.bf16.gmra.mrb[0].mxu0 %v1130
    %v3861 = vpop.f32.mrb[0].mxu0
    %v3862 = vadd.f32 %v3819, %v3861
    %v3863 = vpop.f32.mrb[0].mxu0
    %v3864 = vadd.f32 %v3821, %v3863
    %v3865 = vpop.f32.mrb[0].mxu0
    %v3866 = vadd.f32 %v3823, %v3865
    %v3867 = vpop.f32.mrb[0].mxu0
    %v3868 = vadd.f32 %v3825, %v3867
    %3869 = vdwg.mxu0
    %3870 = vmatprep.subr.bf16.mxu0 %v2869
    %3871 = vmatpush1.bf16.msra.mxu0 %v2868
    %3872 = vmatprep.subr.bf16.mxu0 %v2875
    %3873 = vmatpush1.bf16.msra.mxu0 %v2874
    %3874 = vmatprep.subr.bf16.mxu0 %v2881
    %3875 = vmatpush1.bf16.msra.mxu0 %v2880
    %3876 = vmatprep.subr.bf16.mxu0 %v2887
    %3877 = vmatpush1.bf16.msra.mxu0 %v2886
    %3878 = vmatprep.subr.bf16.mxu0 %v2893
    %3879 = vmatpush1.bf16.msra.mxu0 %v2892
    %3880 = vmatprep.subr.bf16.mxu0 %v2899
    %3881 = vmatpush1.bf16.msra.mxu0 %v2898
    %3882 = vmatprep.subr.bf16.mxu0 %v2905
    %3883 = vmatpush1.bf16.msra.mxu0 %v2904
    %3884 = vmatprep.subr.bf16.mxu0 %v2911
    %3885 = vmatpush1.bf16.msra.mxu0 %v2910
    %3886 = vmatprep.subr.bf16.mxu0 %v2917
    %3887 = vmatpush1.bf16.msra.mxu0 %v2916
    %3888 = vmatprep.subr.bf16.mxu0 %v2923
    %3889 = vmatpush1.bf16.msra.mxu0 %v2922
    %3890 = vmatprep.subr.bf16.mxu0 %v2929
    %3891 = vmatpush1.bf16.msra.mxu0 %v2928
    %3892 = vmatprep.subr.bf16.mxu0 %v2935
    %3893 = vmatpush1.bf16.msra.mxu0 %v2934
    %3894 = vmatprep.subr.bf16.mxu0 %v2941
    %3895 = vmatpush1.bf16.msra.mxu0 %v2940
    %3896 = vmatprep.subr.bf16.mxu0 %v2947
    %3897 = vmatpush1.bf16.msra.mxu0 %v2946
    %3898 = vmatprep.subr.bf16.mxu0 %v2953
    %3899 = vmatpush1.bf16.msra.mxu0 %v2952
    %3900 = vmatprep.subr.bf16.mxu0 %v2959
    %3901 = vmatpush1.bf16.msra.mxu0 %v2958
    %3902 = vmatprep.mubr.bf16.mxu0 %v1133
    %3903 = vmatmul.mubr.bf16.gmra.mrb[0].mxu0 %v1132
    %v3904 = vpop.f32.mrb[0].mxu0
    %v3905 = vadd.f32 %v3862, %v3904
    %v3906 = vpop.f32.mrb[0].mxu0
    %v3907 = vadd.f32 %v3864, %v3906
    %v3908 = vpop.f32.mrb[0].mxu0
    %v3909 = vadd.f32 %v3866, %v3908
    %v3910 = vpop.f32.mrb[0].mxu0
    %v3911 = vadd.f32 %v3868, %v3910
    %3912 = vdwg.mxu0
    %3913 = vmatprep.subr.bf16.mxu0 %v2965
    %3914 = vmatpush1.bf16.msra.mxu0 %v2964
    %3915 = vmatprep.subr.bf16.mxu0 %v2971
    %3916 = vmatpush1.bf16.msra.mxu0 %v2970
    %3917 = vmatprep.subr.bf16.mxu0 %v2977
    %3918 = vmatpush1.bf16.msra.mxu0 %v2976
    %3919 = vmatprep.subr.bf16.mxu0 %v2983
    %3920 = vmatpush1.bf16.msra.mxu0 %v2982
    %3921 = vmatprep.subr.bf16.mxu0 %v2989
    %3922 = vmatpush1.bf16.msra.mxu0 %v2988
    %3923 = vmatprep.subr.bf16.mxu0 %v2995
    %3924 = vmatpush1.bf16.msra.mxu0 %v2994
    %3925 = vmatprep.subr.bf16.mxu0 %v3001
    %3926 = vmatpush1.bf16.msra.mxu0 %v3000
    %3927 = vmatprep.subr.bf16.mxu0 %v3007
    %3928 = vmatpush1.bf16.msra.mxu0 %v3006
    %3929 = vmatprep.subr.bf16.mxu0 %v3013
    %3930 = vmatpush1.bf16.msra.mxu0 %v3012
    %3931 = vmatprep.subr.bf16.mxu0 %v3019
    %3932 = vmatpush1.bf16.msra.mxu0 %v3018
    %3933 = vmatprep.subr.bf16.mxu0 %v3025
    %3934 = vmatpush1.bf16.msra.mxu0 %v3024
    %3935 = vmatprep.subr.bf16.mxu0 %v3031
    %3936 = vmatpush1.bf16.msra.mxu0 %v3030
    %3937 = vmatprep.subr.bf16.mxu0 %v3037
    %3938 = vmatpush1.bf16.msra.mxu0 %v3036
    %3939 = vmatprep.subr.bf16.mxu0 %v3043
    %3940 = vmatpush1.bf16.msra.mxu0 %v3042
    %3941 = vmatprep.subr.bf16.mxu0 %v3049
    %3942 = vmatpush1.bf16.msra.mxu0 %v3048
    %3943 = vmatprep.subr.bf16.mxu0 %v3055
    %3944 = vmatpush1.bf16.msra.mxu0 %v3054
    %3945 = vmatprep.mubr.bf16.mxu0 %v1135
    %3946 = vmatmul.mubr.bf16.gmra.mrb[0].mxu0 %v1134
    %v3947 = vpop.f32.mrb[0].mxu0
    %v3948 = vadd.f32 %v3905, %v3947
    %v3949 = vpop.f32.mrb[0].mxu0
    %v3950 = vadd.f32 %v3907, %v3949
    %v3951 = vpop.f32.mrb[0].mxu0
    %v3952 = vadd.f32 %v3909, %v3951
    %v3953 = vpop.f32.mrb[0].mxu0
    %v3954 = vadd.f32 %v3911, %v3953
    %3955 = vdwg.mxu0
    %vm3956 = vcmask 130048
    %v3957 = vsel %vm3956, %v123, 0.0
    %3958 = vadd.xlane.f32.xlu0 %v3957
    %v3959 = vpop.xlane.xlu0 %3958
    %v3960 = vsel %vm3956, %v124, 0.0
    %3961 = vadd.xlane.f32.xlu0 %v3960
    %v3962 = vpop.xlane.xlu0 %3961
    %v3963 = vmax.f32 %v3959, 1.0
    %v3964 = vmax.f32 %v3962, 1.0
    %v3965 = vrcp.pop %v3963
    %v3966 = vmul.f32 1.0, %v3965
    %v3967 = vrcp.pop %v3964
    %v3968 = vmul.f32 1.0, %v3967
    %v3969 = vmul.f32 %v3604, %v3966
    %v3970 = vmul.f32 %v3606, %v3966
    %v3971 = vmul.f32 %v3776, %v3966
    %v3972 = vmul.f32 %v3778, %v3966
    %v3973 = vmul.f32 %v3948, %v3966
    %v3974 = vmul.f32 %v3950, %v3966
    %v3975 = vmul.f32 %v3608, %v3968
    %v3976 = vmul.f32 %v3610, %v3968
    %v3977 = vmul.f32 %v3780, %v3968
    %v3978 = vmul.f32 %v3782, %v3968
    %v3979 = vmul.f32 %v3952, %v3968
    %v3980 = vmul.f32 %v3954, %v3968
    %v3981 = vpack.c.bf16 %v3975, %v3969
    %v3982 = vpack.c.bf16 %v3976, %v3970
    %v3983 = vpack.c.bf16 %v3977, %v3971
    %v3984 = vpack.c.bf16 %v3978, %v3972
    %v3985 = vpack.c.bf16 %v3979, %v3973
    %v3986 = vpack.c.bf16 %v3980, %v3974
    %v3987 = vld [vmem:[#allocation8] sm:$0xff]
    %v3988 = vld [vmem:[#allocation8 + $0x8] sm:$0xff]
    %v3989 = vld [vmem:[#allocation8 + $0x10] sm:$0xff]
    %v3990 = vld [vmem:[#allocation8 + $0x18] sm:$0xff]
    %v3991 = vld [vmem:[#allocation8 + $0x20] sm:$0xff]
    %v3992 = vld [vmem:[#allocation8 + $0x28] sm:$0xff]
    %v3993 = vld [vmem:[#allocation8 + $0x30] sm:$0xff]
    %v3994 = vld [vmem:[#allocation8 + $0x38] sm:$0xff]
    %v3995 = vld [vmem:[#allocation8 + $0x40] sm:$0xff]
    %v3996 = vld [vmem:[#allocation8 + $0x48] sm:$0xff]
    %v3997 = vld [vmem:[#allocation8 + $0x50] sm:$0xff]
    %v3998 = vld [vmem:[#allocation8 + $0x58] sm:$0xff]
    %v3999 = vld [vmem:[#allocation8 + $0x60] sm:$0xff]
    %v4000 = vld [vmem:[#allocation8 + $0x68] sm:$0xff]
    %v4001 = vld [vmem:[#allocation8 + $0x70] sm:$0xff]
    %v4002 = vld [vmem:[#allocation8 + $0x78] sm:$0xff]
    %v4003 = vld [vmem:[#allocation8 + $0x80] sm:$0xff]
    %v4004 = vld [vmem:[#allocation8 + $0x88] sm:$0xff]
    %v4005 = vld [vmem:[#allocation8 + $0x90] sm:$0xff]
    %v4006 = vld [vmem:[#allocation8 + $0x98] sm:$0xff]
    %v4007 = vld [vmem:[#allocation8 + $0xa0] sm:$0xff]
    %v4008 = vld [vmem:[#allocation8 + $0xa8] sm:$0xff]
    %v4009 = vld [vmem:[#allocation8 + $0xb0] sm:$0xff]
    %v4010 = vld [vmem:[#allocation8 + $0xb8] sm:$0xff]
    %v4011 = vld [vmem:[#allocation8 + $0xc0] sm:$0xff]
    %v4012 = vld [vmem:[#allocation8 + $0xc8] sm:$0xff]
    %v4013 = vld [vmem:[#allocation8 + $0xd0] sm:$0xff]
    %v4014 = vld [vmem:[#allocation8 + $0xd8] sm:$0xff]
    %v4015 = vld [vmem:[#allocation8 + $0xe0] sm:$0xff]
    %v4016 = vld [vmem:[#allocation8 + $0xe8] sm:$0xff]
    %v4017 = vld [vmem:[#allocation8 + $0xf0] sm:$0xff]
    %v4018 = vld [vmem:[#allocation8 + $0xf8] sm:$0xff]
    %v4019 = vld [vmem:[#allocation8 + $0x100] sm:$0xff]
    %v4020 = vld [vmem:[#allocation8 + $0x108] sm:$0xff]
    %v4021 = vld [vmem:[#allocation8 + $0x110] sm:$0xff]
    %v4022 = vld [vmem:[#allocation8 + $0x118] sm:$0xff]
    %v4023 = vld [vmem:[#allocation8 + $0x120] sm:$0xff]
    %v4024 = vld [vmem:[#allocation8 + $0x128] sm:$0xff]
    %v4025 = vld [vmem:[#allocation8 + $0x130] sm:$0xff]
    %v4026 = vld [vmem:[#allocation8 + $0x138] sm:$0xff]
    %v4027 = vld [vmem:[#allocation8 + $0x140] sm:$0xff]
    %v4028 = vld [vmem:[#allocation8 + $0x148] sm:$0xff]
    %v4029 = vld [vmem:[#allocation8 + $0x150] sm:$0xff]
    %v4030 = vld [vmem:[#allocation8 + $0x158] sm:$0xff]
    %v4031 = vld [vmem:[#allocation8 + $0x160] sm:$0xff]
    %v4032 = vld [vmem:[#allocation8 + $0x168] sm:$0xff]
    %v4033 = vld [vmem:[#allocation8 + $0x170] sm:$0xff]
    %v4034 = vld [vmem:[#allocation8 + $0x178] sm:$0xff]
    %v4035 = vld [vmem:[#allocation8 + $0x180] sm:$0xff]
    %v4036 = vld [vmem:[#allocation8 + $0x188] sm:$0xff]
    %v4037 = vld [vmem:[#allocation8 + $0x190] sm:$0xff]
    %v4038 = vld [vmem:[#allocation8 + $0x198] sm:$0xff]
    %v4039 = vld [vmem:[#allocation8 + $0x1a0] sm:$0xff]
    %v4040 = vld [vmem:[#allocation8 + $0x1a8] sm:$0xff]
    %v4041 = vld [vmem:[#allocation8 + $0x1b0] sm:$0xff]
    %v4042 = vld [vmem:[#allocation8 + $0x1b8] sm:$0xff]
    %v4043 = vld [vmem:[#allocation8 + $0x1c0] sm:$0xff]
    %v4044 = vld [vmem:[#allocation8 + $0x1c8] sm:$0xff]
    %v4045 = vld [vmem:[#allocation8 + $0x1d0] sm:$0xff]
    %v4046 = vld [vmem:[#allocation8 + $0x1d8] sm:$0xff]
    %v4047 = vld [vmem:[#allocation8 + $0x1e0] sm:$0xff]
    %v4048 = vld [vmem:[#allocation8 + $0x1e8] sm:$0xff]
    %v4049 = vld [vmem:[#allocation8 + $0x1f0] sm:$0xff]
    %v4050 = vld [vmem:[#allocation8 + $0x1f8] sm:$0xff]
    %v4051 = vld [vmem:[#allocation8 + $0x200] sm:$0xff]
    %v4052 = vld [vmem:[#allocation8 + $0x208] sm:$0xff]
    %v4053 = vld [vmem:[#allocation8 + $0x210] sm:$0xff]
    %v4054 = vld [vmem:[#allocation8 + $0x218] sm:$0xff]
    %v4055 = vld [vmem:[#allocation8 + $0x220] sm:$0xff]
    %v4056 = vld [vmem:[#allocation8 + $0x228] sm:$0xff]
    %v4057 = vld [vmem:[#allocation8 + $0x230] sm:$0xff]
    %v4058 = vld [vmem:[#allocation8 + $0x238] sm:$0xff]
    %v4059 = vld [vmem:[#allocation8 + $0x240] sm:$0xff]
    %v4060 = vld [vmem:[#allocation8 + $0x248] sm:$0xff]
    %v4061 = vld [vmem:[#allocation8 + $0x250] sm:$0xff]
    %v4062 = vld [vmem:[#allocation8 + $0x258] sm:$0xff]
    %v4063 = vld [vmem:[#allocation8 + $0x260] sm:$0xff]
    %v4064 = vld [vmem:[#allocation8 + $0x268] sm:$0xff]
    %v4065 = vld [vmem:[#allocation8 + $0x270] sm:$0xff]
    %v4066 = vld [vmem:[#allocation8 + $0x278] sm:$0xff]
    %v4067 = vld [vmem:[#allocation8 + $0x280] sm:$0xff]
    %v4068 = vld [vmem:[#allocation8 + $0x288] sm:$0xff]
    %v4069 = vld [vmem:[#allocation8 + $0x290] sm:$0xff]
    %v4070 = vld [vmem:[#allocation8 + $0x298] sm:$0xff]
    %v4071 = vld [vmem:[#allocation8 + $0x2a0] sm:$0xff]
    %v4072 = vld [vmem:[#allocation8 + $0x2a8] sm:$0xff]
    %v4073 = vld [vmem:[#allocation8 + $0x2b0] sm:$0xff]
    %v4074 = vld [vmem:[#allocation8 + $0x2b8] sm:$0xff]
    %v4075 = vld [vmem:[#allocation8 + $0x2c0] sm:$0xff]
    %v4076 = vld [vmem:[#allocation8 + $0x2c8] sm:$0xff]
    %v4077 = vld [vmem:[#allocation8 + $0x2d0] sm:$0xff]
    %v4078 = vld [vmem:[#allocation8 + $0x2d8] sm:$0xff]
    %v4079 = vld [vmem:[#allocation8 + $0x2e0] sm:$0xff]
    %v4080 = vld [vmem:[#allocation8 + $0x2e8] sm:$0xff]
    %v4081 = vld [vmem:[#allocation8 + $0x2f0] sm:$0xff]
    %v4082 = vld [vmem:[#allocation8 + $0x2f8] sm:$0xff]
    %v4083 = vld [vmem:[#allocation8 + $0x300] sm:$0xff]
    %v4084 = vld [vmem:[#allocation8 + $0x308] sm:$0xff]
    %v4085 = vld [vmem:[#allocation8 + $0x310] sm:$0xff]
    %v4086 = vld [vmem:[#allocation8 + $0x318] sm:$0xff]
    %v4087 = vld [vmem:[#allocation8 + $0x320] sm:$0xff]
    %v4088 = vld [vmem:[#allocation8 + $0x328] sm:$0xff]
    %v4089 = vld [vmem:[#allocation8 + $0x330] sm:$0xff]
    %v4090 = vld [vmem:[#allocation8 + $0x338] sm:$0xff]
    %v4091 = vld [vmem:[#allocation8 + $0x340] sm:$0xff]
    %v4092 = vld [vmem:[#allocation8 + $0x348] sm:$0xff]
    %v4093 = vld [vmem:[#allocation8 + $0x350] sm:$0xff]
    %v4094 = vld [vmem:[#allocation8 + $0x358] sm:$0xff]
    %v4095 = vld [vmem:[#allocation8 + $0x360] sm:$0xff]
    %v4096 = vld [vmem:[#allocation8 + $0x368] sm:$0xff]
    %v4097 = vld [vmem:[#allocation8 + $0x370] sm:$0xff]
    %v4098 = vld [vmem:[#allocation8 + $0x378] sm:$0xff]
    %v4099 = vld [vmem:[#allocation8 + $0x380] sm:$0xff]
    %v4100 = vld [vmem:[#allocation8 + $0x388] sm:$0xff]
    %v4101 = vld [vmem:[#allocation8 + $0x390] sm:$0xff]
    %v4102 = vld [vmem:[#allocation8 + $0x398] sm:$0xff]
    %v4103 = vld [vmem:[#allocation8 + $0x3a0] sm:$0xff]
    %v4104 = vld [vmem:[#allocation8 + $0x3a8] sm:$0xff]
    %v4105 = vld [vmem:[#allocation8 + $0x3b0] sm:$0xff]
    %v4106 = vld [vmem:[#allocation8 + $0x3b8] sm:$0xff]
    %v4107 = vld [vmem:[#allocation8 + $0x3c0] sm:$0xff]
    %v4108 = vld [vmem:[#allocation8 + $0x3c8] sm:$0xff]
    %v4109 = vld [vmem:[#allocation8 + $0x3d0] sm:$0xff]
    %v4110 = vld [vmem:[#allocation8 + $0x3d8] sm:$0xff]
    %v4111 = vld [vmem:[#allocation8 + $0x3e0] sm:$0xff]
    %v4112 = vld [vmem:[#allocation8 + $0x3e8] sm:$0xff]
    %v4113 = vld [vmem:[#allocation8 + $0x3f0] sm:$0xff]
    %v4114 = vld [vmem:[#allocation8 + $0x3f8] sm:$0xff]
    %v4115 = vld [vmem:[#allocation8 + $0x400] sm:$0xff]
    %v4116 = vld [vmem:[#allocation8 + $0x408] sm:$0xff]
    %v4117 = vld [vmem:[#allocation8 + $0x410] sm:$0xff]
    %v4118 = vld [vmem:[#allocation8 + $0x418] sm:$0xff]
    %v4119 = vld [vmem:[#allocation8 + $0x420] sm:$0xff]
    %v4120 = vld [vmem:[#allocation8 + $0x428] sm:$0xff]
    %v4121 = vld [vmem:[#allocation8 + $0x430] sm:$0xff]
    %v4122 = vld [vmem:[#allocation8 + $0x438] sm:$0xff]
    %v4123 = vld [vmem:[#allocation8 + $0x440] sm:$0xff]
    %v4124 = vld [vmem:[#allocation8 + $0x448] sm:$0xff]
    %v4125 = vld [vmem:[#allocation8 + $0x450] sm:$0xff]
    %v4126 = vld [vmem:[#allocation8 + $0x458] sm:$0xff]
    %v4127 = vld [vmem:[#allocation8 + $0x460] sm:$0xff]
    %v4128 = vld [vmem:[#allocation8 + $0x468] sm:$0xff]
    %v4129 = vld [vmem:[#allocation8 + $0x470] sm:$0xff]
    %v4130 = vld [vmem:[#allocation8 + $0x478] sm:$0xff]
    %v4131 = vld [vmem:[#allocation8 + $0x480] sm:$0xff]
    %v4132 = vld [vmem:[#allocation8 + $0x488] sm:$0xff]
    %v4133 = vld [vmem:[#allocation8 + $0x490] sm:$0xff]
    %v4134 = vld [vmem:[#allocation8 + $0x498] sm:$0xff]
    %v4135 = vld [vmem:[#allocation8 + $0x4a0] sm:$0xff]
    %v4136 = vld [vmem:[#allocation8 + $0x4a8] sm:$0xff]
    %v4137 = vld [vmem:[#allocation8 + $0x4b0] sm:$0xff]
    %v4138 = vld [vmem:[#allocation8 + $0x4b8] sm:$0xff]
    %v4139 = vld [vmem:[#allocation8 + $0x4c0] sm:$0xff]
    %v4140 = vld [vmem:[#allocation8 + $0x4c8] sm:$0xff]
    %v4141 = vld [vmem:[#allocation8 + $0x4d0] sm:$0xff]
    %v4142 = vld [vmem:[#allocation8 + $0x4d8] sm:$0xff]
    %v4143 = vld [vmem:[#allocation8 + $0x4e0] sm:$0xff]
    %v4144 = vld [vmem:[#allocation8 + $0x4e8] sm:$0xff]
    %v4145 = vld [vmem:[#allocation8 + $0x4f0] sm:$0xff]
    %v4146 = vld [vmem:[#allocation8 + $0x4f8] sm:$0xff]
    %v4147 = vld [vmem:[#allocation8 + $0x500] sm:$0xff]
    %v4148 = vld [vmem:[#allocation8 + $0x508] sm:$0xff]
    %v4149 = vld [vmem:[#allocation8 + $0x510] sm:$0xff]
    %v4150 = vld [vmem:[#allocation8 + $0x518] sm:$0xff]
    %v4151 = vld [vmem:[#allocation8 + $0x520] sm:$0xff]
    %v4152 = vld [vmem:[#allocation8 + $0x528] sm:$0xff]
    %v4153 = vld [vmem:[#allocation8 + $0x530] sm:$0xff]
    %v4154 = vld [vmem:[#allocation8 + $0x538] sm:$0xff]
    %v4155 = vld [vmem:[#allocation8 + $0x540] sm:$0xff]
    %v4156 = vld [vmem:[#allocation8 + $0x548] sm:$0xff]
    %v4157 = vld [vmem:[#allocation8 + $0x550] sm:$0xff]
    %v4158 = vld [vmem:[#allocation8 + $0x558] sm:$0xff]
    %v4159 = vld [vmem:[#allocation8 + $0x560] sm:$0xff]
    %v4160 = vld [vmem:[#allocation8 + $0x568] sm:$0xff]
    %v4161 = vld [vmem:[#allocation8 + $0x570] sm:$0xff]
    %v4162 = vld [vmem:[#allocation8 + $0x578] sm:$0xff]
    %v4163 = vld [vmem:[#allocation8 + $0x580] sm:$0xff]
    %v4164 = vld [vmem:[#allocation8 + $0x588] sm:$0xff]
    %v4165 = vld [vmem:[#allocation8 + $0x590] sm:$0xff]
    %v4166 = vld [vmem:[#allocation8 + $0x598] sm:$0xff]
    %v4167 = vld [vmem:[#allocation8 + $0x5a0] sm:$0xff]
    %v4168 = vld [vmem:[#allocation8 + $0x5a8] sm:$0xff]
    %v4169 = vld [vmem:[#allocation8 + $0x5b0] sm:$0xff]
    %v4170 = vld [vmem:[#allocation8 + $0x5b8] sm:$0xff]
    %v4171 = vld [vmem:[#allocation8 + $0x5c0] sm:$0xff]
    %v4172 = vld [vmem:[#allocation8 + $0x5c8] sm:$0xff]
    %v4173 = vld [vmem:[#allocation8 + $0x5d0] sm:$0xff]
    %v4174 = vld [vmem:[#allocation8 + $0x5d8] sm:$0xff]
    %v4175 = vld [vmem:[#allocation8 + $0x5e0] sm:$0xff]
    %v4176 = vld [vmem:[#allocation8 + $0x5e8] sm:$0xff]
    %v4177 = vld [vmem:[#allocation8 + $0x5f0] sm:$0xff]
    %v4178 = vld [vmem:[#allocation8 + $0x5f8] sm:$0xff]
    %v4179 = vld [vmem:[#allocation8 + $0x600] sm:$0xff]
    %v4180 = vld [vmem:[#allocation8 + $0x608] sm:$0xff]
    %v4181 = vld [vmem:[#allocation8 + $0x610] sm:$0xff]
    %v4182 = vld [vmem:[#allocation8 + $0x618] sm:$0xff]
    %v4183 = vld [vmem:[#allocation8 + $0x620] sm:$0xff]
    %v4184 = vld [vmem:[#allocation8 + $0x628] sm:$0xff]
    %v4185 = vld [vmem:[#allocation8 + $0x630] sm:$0xff]
    %v4186 = vld [vmem:[#allocation8 + $0x638] sm:$0xff]
    %v4187 = vld [vmem:[#allocation8 + $0x640] sm:$0xff]
    %v4188 = vld [vmem:[#allocation8 + $0x648] sm:$0xff]
    %v4189 = vld [vmem:[#allocation8 + $0x650] sm:$0xff]
    %v4190 = vld [vmem:[#allocation8 + $0x658] sm:$0xff]
    %v4191 = vld [vmem:[#allocation8 + $0x660] sm:$0xff]
    %v4192 = vld [vmem:[#allocation8 + $0x668] sm:$0xff]
    %v4193 = vld [vmem:[#allocation8 + $0x670] sm:$0xff]
    %v4194 = vld [vmem:[#allocation8 + $0x678] sm:$0xff]
    %v4195 = vld [vmem:[#allocation8 + $0x680] sm:$0xff]
    %v4196 = vld [vmem:[#allocation8 + $0x688] sm:$0xff]
    %v4197 = vld [vmem:[#allocation8 + $0x690] sm:$0xff]
    %v4198 = vld [vmem:[#allocation8 + $0x698] sm:$0xff]
    %v4199 = vld [vmem:[#allocation8 + $0x6a0] sm:$0xff]
    %v4200 = vld [vmem:[#allocation8 + $0x6a8] sm:$0xff]
    %v4201 = vld [vmem:[#allocation8 + $0x6b0] sm:$0xff]
    %v4202 = vld [vmem:[#allocation8 + $0x6b8] sm:$0xff]
    %v4203 = vld [vmem:[#allocation8 + $0x6c0] sm:$0xff]
    %v4204 = vld [vmem:[#allocation8 + $0x6c8] sm:$0xff]
    %v4205 = vld [vmem:[#allocation8 + $0x6d0] sm:$0xff]
    %v4206 = vld [vmem:[#allocation8 + $0x6d8] sm:$0xff]
    %v4207 = vld [vmem:[#allocation8 + $0x6e0] sm:$0xff]
    %v4208 = vld [vmem:[#allocation8 + $0x6e8] sm:$0xff]
    %v4209 = vld [vmem:[#allocation8 + $0x6f0] sm:$0xff]
    %v4210 = vld [vmem:[#allocation8 + $0x6f8] sm:$0xff]
    %v4211 = vld [vmem:[#allocation8 + $0x700] sm:$0xff]
    %v4212 = vld [vmem:[#allocation8 + $0x708] sm:$0xff]
    %v4213 = vld [vmem:[#allocation8 + $0x710] sm:$0xff]
    %v4214 = vld [vmem:[#allocation8 + $0x718] sm:$0xff]
    %v4215 = vld [vmem:[#allocation8 + $0x720] sm:$0xff]
    %v4216 = vld [vmem:[#allocation8 + $0x728] sm:$0xff]
    %v4217 = vld [vmem:[#allocation8 + $0x730] sm:$0xff]
    %v4218 = vld [vmem:[#allocation8 + $0x738] sm:$0xff]
    %v4219 = vld [vmem:[#allocation8 + $0x740] sm:$0xff]
    %v4220 = vld [vmem:[#allocation8 + $0x748] sm:$0xff]
    %v4221 = vld [vmem:[#allocation8 + $0x750] sm:$0xff]
    %v4222 = vld [vmem:[#allocation8 + $0x758] sm:$0xff]
    %v4223 = vld [vmem:[#allocation8 + $0x760] sm:$0xff]
    %v4224 = vld [vmem:[#allocation8 + $0x768] sm:$0xff]
    %v4225 = vld [vmem:[#allocation8 + $0x770] sm:$0xff]
    %v4226 = vld [vmem:[#allocation8 + $0x778] sm:$0xff]
    %v4227 = vld [vmem:[#allocation8 + $0x780] sm:$0xff]
    %v4228 = vld [vmem:[#allocation8 + $0x788] sm:$0xff]
    %v4229 = vld [vmem:[#allocation8 + $0x790] sm:$0xff]
    %v4230 = vld [vmem:[#allocation8 + $0x798] sm:$0xff]
    %v4231 = vld [vmem:[#allocation8 + $0x7a0] sm:$0xff]
    %v4232 = vld [vmem:[#allocation8 + $0x7a8] sm:$0xff]
    %v4233 = vld [vmem:[#allocation8 + $0x7b0] sm:$0xff]
    %v4234 = vld [vmem:[#allocation8 + $0x7b8] sm:$0xff]
    %v4235 = vld [vmem:[#allocation8 + $0x7c0] sm:$0xff]
    %v4236 = vld [vmem:[#allocation8 + $0x7c8] sm:$0xff]
    %v4237 = vld [vmem:[#allocation8 + $0x7d0] sm:$0xff]
    %v4238 = vld [vmem:[#allocation8 + $0x7d8] sm:$0xff]
    %v4239 = vld [vmem:[#allocation8 + $0x7e0] sm:$0xff]
    %v4240 = vld [vmem:[#allocation8 + $0x7e8] sm:$0xff]
    %v4241 = vld [vmem:[#allocation8 + $0x7f0] sm:$0xff]
    %v4242 = vld [vmem:[#allocation8 + $0x7f8] sm:$0xff]
    %v4243 = vld [vmem:[#allocation8 + $0x800] sm:$0xff]
    %v4244 = vld [vmem:[#allocation8 + $0x808] sm:$0xff]
    %v4245 = vld [vmem:[#allocation8 + $0x810] sm:$0xff]
    %v4246 = vld [vmem:[#allocation8 + $0x818] sm:$0xff]
    %v4247 = vld [vmem:[#allocation8 + $0x820] sm:$0xff]
    %v4248 = vld [vmem:[#allocation8 + $0x828] sm:$0xff]
    %v4249 = vld [vmem:[#allocation8 + $0x830] sm:$0xff]
    %v4250 = vld [vmem:[#allocation8 + $0x838] sm:$0xff]
    %v4251 = vld [vmem:[#allocation8 + $0x840] sm:$0xff]
    %v4252 = vld [vmem:[#allocation8 + $0x848] sm:$0xff]
    %v4253 = vld [vmem:[#allocation8 + $0x850] sm:$0xff]
    %v4254 = vld [vmem:[#allocation8 + $0x858] sm:$0xff]
    %v4255 = vld [vmem:[#allocation8 + $0x860] sm:$0xff]
    %v4256 = vld [vmem:[#allocation8 + $0x868] sm:$0xff]
    %v4257 = vld [vmem:[#allocation8 + $0x870] sm:$0xff]
    %v4258 = vld [vmem:[#allocation8 + $0x878] sm:$0xff]
    %v4259 = vld [vmem:[#allocation8 + $0x880] sm:$0xff]
    %v4260 = vld [vmem:[#allocation8 + $0x888] sm:$0xff]
    %v4261 = vld [vmem:[#allocation8 + $0x890] sm:$0xff]
    %v4262 = vld [vmem:[#allocation8 + $0x898] sm:$0xff]
    %v4263 = vld [vmem:[#allocation8 + $0x8a0] sm:$0xff]
    %v4264 = vld [vmem:[#allocation8 + $0x8a8] sm:$0xff]
    %v4265 = vld [vmem:[#allocation8 + $0x8b0] sm:$0xff]
    %v4266 = vld [vmem:[#allocation8 + $0x8b8] sm:$0xff]
    %v4267 = vld [vmem:[#allocation8 + $0x8c0] sm:$0xff]
    %v4268 = vld [vmem:[#allocation8 + $0x8c8] sm:$0xff]
    %v4269 = vld [vmem:[#allocation8 + $0x8d0] sm:$0xff]
    %v4270 = vld [vmem:[#allocation8 + $0x8d8] sm:$0xff]
    %v4271 = vld [vmem:[#allocation8 + $0x8e0] sm:$0xff]
    %v4272 = vld [vmem:[#allocation8 + $0x8e8] sm:$0xff]
    %v4273 = vld [vmem:[#allocation8 + $0x8f0] sm:$0xff]
    %v4274 = vld [vmem:[#allocation8 + $0x8f8] sm:$0xff]
    %v4275 = vld [vmem:[#allocation10] sm:$0x3f]
    %v4277 = vlaneseq
    %v4278 = vshrl.u32 %v4277, 7
    %v4279 = vsub.s32 0, %v4278
    %v4280 = vrot.slane %v4275, %v4279
    %v4281 = vlaneseq
    %v4282 = vshrl.u32 %v4281, 7
    %v4283 = vsub.s32 1, %v4282
    %v4284 = vrot.slane %v4275, %v4283
    %v4285 = vlaneseq
    %v4286 = vshrl.u32 %v4285, 7
    %v4287 = vsub.s32 2, %v4286
    %v4288 = vrot.slane %v4275, %v4287
    %v4289 = vlaneseq
    %v4290 = vshrl.u32 %v4289, 7
    %v4291 = vsub.s32 3, %v4290
    %v4292 = vrot.slane %v4275, %v4291
    %v4293 = vlaneseq
    %v4294 = vshrl.u32 %v4293, 7
    %v4295 = vsub.s32 4, %v4294
    %v4296 = vrot.slane %v4275, %v4295
    %v4297 = vlaneseq
    %v4298 = vshrl.u32 %v4297, 7
    %v4299 = vsub.s32 5, %v4298
    %v4300 = vrot.slane %v4275, %v4299
    %v4595 = vunpack.c.l.b16 %v3987
    %v4596 = vunpack.c.h.b16 %v3987
    %v4597 = vunpack.c.l.b16 %v3988
    %v4598 = vunpack.c.h.b16 %v3988
    %v4599 = vunpack.c.l.b16 %v3989
    %v4600 = vunpack.c.h.b16 %v3989
    %v4601 = vunpack.c.l.b16 %v3990
    %v4602 = vunpack.c.h.b16 %v3990
    %v4603 = vunpack.c.l.b16 %v3991
    %v4604 = vunpack.c.h.b16 %v3991
    %v4605 = vunpack.c.l.b16 %v3992
    %v4606 = vunpack.c.h.b16 %v3992
    %v4607 = vunpack.c.l.b16 %v3993
    %v4608 = vunpack.c.h.b16 %v3993
    %v4609 = vunpack.c.l.b16 %v3994
    %v4610 = vunpack.c.h.b16 %v3994
    %v4611 = vunpack.c.l.b16 %v3995
    %v4612 = vunpack.c.h.b16 %v3995
    %v4613 = vunpack.c.l.b16 %v3996
    %v4614 = vunpack.c.h.b16 %v3996
    %v4615 = vunpack.c.l.b16 %v3997
    %v4616 = vunpack.c.h.b16 %v3997
    %v4617 = vunpack.c.l.b16 %v3998
    %v4618 = vunpack.c.h.b16 %v3998
    %v4619 = vunpack.c.l.b16 %v3999
    %v4620 = vunpack.c.h.b16 %v3999
    %v4621 = vunpack.c.l.b16 %v4000
    %v4622 = vunpack.c.h.b16 %v4000
    %v4623 = vunpack.c.l.b16 %v4001
    %v4624 = vunpack.c.h.b16 %v4001
    %v4625 = vunpack.c.l.b16 %v4002
    %v4626 = vunpack.c.h.b16 %v4002
    %v4627 = vunpack.c.l.b16 %v4003
    %v4628 = vunpack.c.h.b16 %v4003
    %v4629 = vunpack.c.l.b16 %v4004
    %v4630 = vunpack.c.h.b16 %v4004
    %v4631 = vunpack.c.l.b16 %v4005
    %v4632 = vunpack.c.h.b16 %v4005
    %v4633 = vunpack.c.l.b16 %v4006
    %v4634 = vunpack.c.h.b16 %v4006
    %v4635 = vunpack.c.l.b16 %v4007
    %v4636 = vunpack.c.h.b16 %v4007
    %v4637 = vunpack.c.l.b16 %v4008
    %v4638 = vunpack.c.h.b16 %v4008
    %v4639 = vunpack.c.l.b16 %v4009
    %v4640 = vunpack.c.h.b16 %v4009
    %v4641 = vunpack.c.l.b16 %v4010
    %v4642 = vunpack.c.h.b16 %v4010
    %v4643 = vunpack.c.l.b16 %v4011
    %v4644 = vunpack.c.h.b16 %v4011
    %v4645 = vunpack.c.l.b16 %v4012
    %v4646 = vunpack.c.h.b16 %v4012
    %v4647 = vunpack.c.l.b16 %v4013
    %v4648 = vunpack.c.h.b16 %v4013
    %v4649 = vunpack.c.l.b16 %v4014
    %v4650 = vunpack.c.h.b16 %v4014
    %v4651 = vunpack.c.l.b16 %v4015
    %v4652 = vunpack.c.h.b16 %v4015
    %v4653 = vunpack.c.l.b16 %v4016
    %v4654 = vunpack.c.h.b16 %v4016
    %v4655 = vunpack.c.l.b16 %v4017
    %v4656 = vunpack.c.h.b16 %v4017
    %v4657 = vunpack.c.l.b16 %v4018
    %v4658 = vunpack.c.h.b16 %v4018
    %v4659 = vunpack.c.l.b16 %v4019
    %v4660 = vunpack.c.h.b16 %v4019
    %v4661 = vunpack.c.l.b16 %v4020
    %v4662 = vunpack.c.h.b16 %v4020
    %v4663 = vunpack.c.l.b16 %v4021
    %v4664 = vunpack.c.h.b16 %v4021
    %v4665 = vunpack.c.l.b16 %v4022
    %v4666 = vunpack.c.h.b16 %v4022
    %v4667 = vunpack.c.l.b16 %v4023
    %v4668 = vunpack.c.h.b16 %v4023
    %v4669 = vunpack.c.l.b16 %v4024
    %v4670 = vunpack.c.h.b16 %v4024
    %v4671 = vunpack.c.l.b16 %v4025
    %v4672 = vunpack.c.h.b16 %v4025
    %v4673 = vunpack.c.l.b16 %v4026
    %v4674 = vunpack.c.h.b16 %v4026
    %v4675 = vunpack.c.l.b16 %v4027
    %v4676 = vunpack.c.h.b16 %v4027
    %v4677 = vunpack.c.l.b16 %v4028
    %v4678 = vunpack.c.h.b16 %v4028
    %v4679 = vunpack.c.l.b16 %v4029
    %v4680 = vunpack.c.h.b16 %v4029
    %v4681 = vunpack.c.l.b16 %v4030
    %v4682 = vunpack.c.h.b16 %v4030
    %v4683 = vunpack.c.l.b16 %v4031
    %v4684 = vunpack.c.h.b16 %v4031
    %v4685 = vunpack.c.l.b16 %v4032
    %v4686 = vunpack.c.h.b16 %v4032
    %v4687 = vunpack.c.l.b16 %v4033
    %v4688 = vunpack.c.h.b16 %v4033
    %v4689 = vunpack.c.l.b16 %v4034
    %v4690 = vunpack.c.h.b16 %v4034
    %v4691 = vunpack.c.l.b16 %v4035
    %v4692 = vunpack.c.h.b16 %v4035
    %v4693 = vunpack.c.l.b16 %v4036
    %v4694 = vunpack.c.h.b16 %v4036
    %v4695 = vunpack.c.l.b16 %v4037
    %v4696 = vunpack.c.h.b16 %v4037
    %v4697 = vunpack.c.l.b16 %v4038
    %v4698 = vunpack.c.h.b16 %v4038
    %v4699 = vunpack.c.l.b16 %v4039
    %v4700 = vunpack.c.h.b16 %v4039
    %v4701 = vunpack.c.l.b16 %v4040
    %v4702 = vunpack.c.h.b16 %v4040
    %v4703 = vunpack.c.l.b16 %v4041
    %v4704 = vunpack.c.h.b16 %v4041
    %v4705 = vunpack.c.l.b16 %v4042
    %v4706 = vunpack.c.h.b16 %v4042
    %v4707 = vunpack.c.l.b16 %v4043
    %v4708 = vunpack.c.h.b16 %v4043
    %v4709 = vunpack.c.l.b16 %v4044
    %v4710 = vunpack.c.h.b16 %v4044
    %v4711 = vunpack.c.l.b16 %v4045
    %v4712 = vunpack.c.h.b16 %v4045
    %v4713 = vunpack.c.l.b16 %v4046
    %v4714 = vunpack.c.h.b16 %v4046
    %v4715 = vunpack.c.l.b16 %v4047
    %v4716 = vunpack.c.h.b16 %v4047
    %v4717 = vunpack.c.l.b16 %v4048
    %v4718 = vunpack.c.h.b16 %v4048
    %v4719 = vunpack.c.l.b16 %v4049
    %v4720 = vunpack.c.h.b16 %v4049
    %v4721 = vunpack.c.l.b16 %v4050
    %v4722 = vunpack.c.h.b16 %v4050
    %v4723 = vunpack.c.l.b16 %v4051
    %v4724 = vunpack.c.h.b16 %v4051
    %v4725 = vunpack.c.l.b16 %v4052
    %v4726 = vunpack.c.h.b16 %v4052
    %v4727 = vunpack.c.l.b16 %v4053
    %v4728 = vunpack.c.h.b16 %v4053
    %v4729 = vunpack.c.l.b16 %v4054
    %v4730 = vunpack.c.h.b16 %v4054
    %v4731 = vunpack.c.l.b16 %v4055
    %v4732 = vunpack.c.h.b16 %v4055
    %v4733 = vunpack.c.l.b16 %v4056
    %v4734 = vunpack.c.h.b16 %v4056
    %v4735 = vunpack.c.l.b16 %v4057
    %v4736 = vunpack.c.h.b16 %v4057
    %v4737 = vunpack.c.l.b16 %v4058
    %v4738 = vunpack.c.h.b16 %v4058
    %v4739 = vunpack.c.l.b16 %v4059
    %v4740 = vunpack.c.h.b16 %v4059
    %v4741 = vunpack.c.l.b16 %v4060
    %v4742 = vunpack.c.h.b16 %v4060
    %v4743 = vunpack.c.l.b16 %v4061
    %v4744 = vunpack.c.h.b16 %v4061
    %v4745 = vunpack.c.l.b16 %v4062
    %v4746 = vunpack.c.h.b16 %v4062
    %v4747 = vunpack.c.l.b16 %v4063
    %v4748 = vunpack.c.h.b16 %v4063
    %v4749 = vunpack.c.l.b16 %v4064
    %v4750 = vunpack.c.h.b16 %v4064
    %v4751 = vunpack.c.l.b16 %v4065
    %v4752 = vunpack.c.h.b16 %v4065
    %v4753 = vunpack.c.l.b16 %v4066
    %v4754 = vunpack.c.h.b16 %v4066
    %v4755 = vunpack.c.l.b16 %v4067
    %v4756 = vunpack.c.h.b16 %v4067
    %v4757 = vunpack.c.l.b16 %v4068
    %v4758 = vunpack.c.h.b16 %v4068
    %v4759 = vunpack.c.l.b16 %v4069
    %v4760 = vunpack.c.h.b16 %v4069
    %v4761 = vunpack.c.l.b16 %v4070
    %v4762 = vunpack.c.h.b16 %v4070
    %v4763 = vunpack.c.l.b16 %v4071
    %v4764 = vunpack.c.h.b16 %v4071
    %v4765 = vunpack.c.l.b16 %v4072
    %v4766 = vunpack.c.h.b16 %v4072
    %v4767 = vunpack.c.l.b16 %v4073
    %v4768 = vunpack.c.h.b16 %v4073
    %v4769 = vunpack.c.l.b16 %v4074
    %v4770 = vunpack.c.h.b16 %v4074
    %v4771 = vunpack.c.l.b16 %v4075
    %v4772 = vunpack.c.h.b16 %v4075
    %v4773 = vunpack.c.l.b16 %v4076
    %v4774 = vunpack.c.h.b16 %v4076
    %v4775 = vunpack.c.l.b16 %v4077
    %v4776 = vunpack.c.h.b16 %v4077
    %v4777 = vunpack.c.l.b16 %v4078
    %v4778 = vunpack.c.h.b16 %v4078
    %v4779 = vunpack.c.l.b16 %v4079
    %v4780 = vunpack.c.h.b16 %v4079
    %v4781 = vunpack.c.l.b16 %v4080
    %v4782 = vunpack.c.h.b16 %v4080
    %v4783 = vunpack.c.l.b16 %v4081
    %v4784 = vunpack.c.h.b16 %v4081
    %v4785 = vunpack.c.l.b16 %v4082
    %v4786 = vunpack.c.h.b16 %v4082
    %v4787 = vunpack.c.l.b16 %v4083
    %v4788 = vunpack.c.h.b16 %v4083
    %v4789 = vunpack.c.l.b16 %v4084
    %v4790 = vunpack.c.h.b16 %v4084
    %v4791 = vunpack.c.l.b16 %v4085
    %v4792 = vunpack.c.h.b16 %v4085
    %v4793 = vunpack.c.l.b16 %v4086
    %v4794 = vunpack.c.h.b16 %v4086
    %v4795 = vunpack.c.l.b16 %v4087
    %v4796 = vunpack.c.h.b16 %v4087
    %v4797 = vunpack.c.l.b16 %v4088
    %v4798 = vunpack.c.h.b16 %v4088
    %v4799 = vunpack.c.l.b16 %v4089
    %v4800 = vunpack.c.h.b16 %v4089
    %v4801 = vunpack.c.l.b16 %v4090
    %v4802 = vunpack.c.h.b16 %v4090
    %v4803 = vunpack.c.l.b16 %v4091
    %v4804 = vunpack.c.h.b16 %v4091
    %v4805 = vunpack.c.l.b16 %v4092
    %v4806 = vunpack.c.h.b16 %v4092
    %v4807 = vunpack.c.l.b16 %v4093
    %v4808 = vunpack.c.h.b16 %v4093
    %v4809 = vunpack.c.l.b16 %v4094
    %v4810 = vunpack.c.h.b16 %v4094
    %v4811 = vunpack.c.l.b16 %v4095
    %v4812 = vunpack.c.h.b16 %v4095
    %v4813 = vunpack.c.l.b16 %v4096
    %v4814 = vunpack.c.h.b16 %v4096
    %v4815 = vunpack.c.l.b16 %v4097
    %v4816 = vunpack.c.h.b16 %v4097
    %v4817 = vunpack.c.l.b16 %v4098
    %v4818 = vunpack.c.h.b16 %v4098
    %v4819 = vunpack.c.l.b16 %v4099
    %v4820 = vunpack.c.h.b16 %v4099
    %v4821 = vunpack.c.l.b16 %v4100
    %v4822 = vunpack.c.h.b16 %v4100
    %v4823 = vunpack.c.l.b16 %v4101
    %v4824 = vunpack.c.h.b16 %v4101
    %v4825 = vunpack.c.l.b16 %v4102
    %v4826 = vunpack.c.h.b16 %v4102
    %v4827 = vunpack.c.l.b16 %v4103
    %v4828 = vunpack.c.h.b16 %v4103
    %v4829 = vunpack.c.l.b16 %v4104
    %v4830 = vunpack.c.h.b16 %v4104
    %v4831 = vunpack.c.l.b16 %v4105
    %v4832 = vunpack.c.h.b16 %v4105
    %v4833 = vunpack.c.l.b16 %v4106
    %v4834 = vunpack.c.h.b16 %v4106
    %v4835 = vunpack.c.l.b16 %v4107
    %v4836 = vunpack.c.h.b16 %v4107
    %v4837 = vunpack.c.l.b16 %v4108
    %v4838 = vunpack.c.h.b16 %v4108
    %v4839 = vunpack.c.l.b16 %v4109
    %v4840 = vunpack.c.h.b16 %v4109
    %v4841 = vunpack.c.l.b16 %v4110
    %v4842 = vunpack.c.h.b16 %v4110
    %v4843 = vunpack.c.l.b16 %v4111
    %v4844 = vunpack.c.h.b16 %v4111
    %v4845 = vunpack.c.l.b16 %v4112
    %v4846 = vunpack.c.h.b16 %v4112
    %v4847 = vunpack.c.l.b16 %v4113
    %v4848 = vunpack.c.h.b16 %v4113
    %v4849 = vunpack.c.l.b16 %v4114
    %v4850 = vunpack.c.h.b16 %v4114
    %v4851 = vunpack.c.l.b16 %v4115
    %v4852 = vunpack.c.h.b16 %v4115
    %v4853 = vunpack.c.l.b16 %v4116
    %v4854 = vunpack.c.h.b16 %v4116
    %v4855 = vunpack.c.l.b16 %v4117
    %v4856 = vunpack.c.h.b16 %v4117
    %v4857 = vunpack.c.l.b16 %v4118
    %v4858 = vunpack.c.h.b16 %v4118
    %v4859 = vunpack.c.l.b16 %v4119
    %v4860 = vunpack.c.h.b16 %v4119
    %v4861 = vunpack.c.l.b16 %v4120
    %v4862 = vunpack.c.h.b16 %v4120
    %v4863 = vunpack.c.l.b16 %v4121
    %v4864 = vunpack.c.h.b16 %v4121
    %v4865 = vunpack.c.l.b16 %v4122
    %v4866 = vunpack.c.h.b16 %v4122
    %v4867 = vunpack.c.l.b16 %v4123
    %v4868 = vunpack.c.h.b16 %v4123
    %v4869 = vunpack.c.l.b16 %v4124
    %v4870 = vunpack.c.h.b16 %v4124
    %v4871 = vunpack.c.l.b16 %v4125
    %v4872 = vunpack.c.h.b16 %v4125
    %v4873 = vunpack.c.l.b16 %v4126
    %v4874 = vunpack.c.h.b16 %v4126
    %v4875 = vunpack.c.l.b16 %v4127
    %v4876 = vunpack.c.h.b16 %v4127
    %v4877 = vunpack.c.l.b16 %v4128
    %v4878 = vunpack.c.h.b16 %v4128
    %v4879 = vunpack.c.l.b16 %v4129
    %v4880 = vunpack.c.h.b16 %v4129
    %v4881 = vunpack.c.l.b16 %v4130
    %v4882 = vunpack.c.h.b16 %v4130
    %v4883 = vunpack.c.l.b16 %v4131
    %v4884 = vunpack.c.h.b16 %v4131
    %v4885 = vunpack.c.l.b16 %v4132
    %v4886 = vunpack.c.h.b16 %v4132
    %v4887 = vunpack.c.l.b16 %v4133
    %v4888 = vunpack.c.h.b16 %v4133
    %v4889 = vunpack.c.l.b16 %v4134
    %v4890 = vunpack.c.h.b16 %v4134
    %v4891 = vunpack.c.l.b16 %v4135
    %v4892 = vunpack.c.h.b16 %v4135
    %v4893 = vunpack.c.l.b16 %v4136
    %v4894 = vunpack.c.h.b16 %v4136
    %v4895 = vunpack.c.l.b16 %v4137
    %v4896 = vunpack.c.h.b16 %v4137
    %v4897 = vunpack.c.l.b16 %v4138
    %v4898 = vunpack.c.h.b16 %v4138
    %v4899 = vunpack.c.l.b16 %v4139
    %v4900 = vunpack.c.h.b16 %v4139
    %v4901 = vunpack.c.l.b16 %v4140
    %v4902 = vunpack.c.h.b16 %v4140
    %v4903 = vunpack.c.l.b16 %v4141
    %v4904 = vunpack.c.h.b16 %v4141
    %v4905 = vunpack.c.l.b16 %v4142
    %v4906 = vunpack.c.h.b16 %v4142
    %v4907 = vunpack.c.l.b16 %v4143
    %v4908 = vunpack.c.h.b16 %v4143
    %v4909 = vunpack.c.l.b16 %v4144
    %v4910 = vunpack.c.h.b16 %v4144
    %v4911 = vunpack.c.l.b16 %v4145
    %v4912 = vunpack.c.h.b16 %v4145
    %v4913 = vunpack.c.l.b16 %v4146
    %v4914 = vunpack.c.h.b16 %v4146
    %v4915 = vunpack.c.l.b16 %v4147
    %v4916 = vunpack.c.h.b16 %v4147
    %v4917 = vunpack.c.l.b16 %v4148
    %v4918 = vunpack.c.h.b16 %v4148
    %v4919 = vunpack.c.l.b16 %v4149
    %v4920 = vunpack.c.h.b16 %v4149
    %v4921 = vunpack.c.l.b16 %v4150
    %v4922 = vunpack.c.h.b16 %v4150
    %v4923 = vunpack.c.l.b16 %v4151
    %v4924 = vunpack.c.h.b16 %v4151
    %v4925 = vunpack.c.l.b16 %v4152
    %v4926 = vunpack.c.h.b16 %v4152
    %v4927 = vunpack.c.l.b16 %v4153
    %v4928 = vunpack.c.h.b16 %v4153
    %v4929 = vunpack.c.l.b16 %v4154
    %v4930 = vunpack.c.h.b16 %v4154
    %v4931 = vunpack.c.l.b16 %v4155
    %v4932 = vunpack.c.h.b16 %v4155
    %v4933 = vunpack.c.l.b16 %v4156
    %v4934 = vunpack.c.h.b16 %v4156
    %v4935 = vunpack.c.l.b16 %v4157
    %v4936 = vunpack.c.h.b16 %v4157
    %v4937 = vunpack.c.l.b16 %v4158
    %v4938 = vunpack.c.h.b16 %v4158
    %v4939 = vunpack.c.l.b16 %v4159
    %v4940 = vunpack.c.h.b16 %v4159
    %v4941 = vunpack.c.l.b16 %v4160
    %v4942 = vunpack.c.h.b16 %v4160
    %v4943 = vunpack.c.l.b16 %v4161
    %v4944 = vunpack.c.h.b16 %v4161
    %v4945 = vunpack.c.l.b16 %v4162
    %v4946 = vunpack.c.h.b16 %v4162
    %v4947 = vunpack.c.l.b16 %v4163
    %v4948 = vunpack.c.h.b16 %v4163
    %v4949 = vunpack.c.l.b16 %v4164
    %v4950 = vunpack.c.h.b16 %v4164
    %v4951 = vunpack.c.l.b16 %v4165
    %v4952 = vunpack.c.h.b16 %v4165
    %v4953 = vunpack.c.l.b16 %v4166
    %v4954 = vunpack.c.h.b16 %v4166
    %v4955 = vunpack.c.l.b16 %v4167
    %v4956 = vunpack.c.h.b16 %v4167
    %v4957 = vunpack.c.l.b16 %v4168
    %v4958 = vunpack.c.h.b16 %v4168
    %v4959 = vunpack.c.l.b16 %v4169
    %v4960 = vunpack.c.h.b16 %v4169
    %v4961 = vunpack.c.l.b16 %v4170
    %v4962 = vunpack.c.h.b16 %v4170
    %v4963 = vunpack.c.l.b16 %v4171
    %v4964 = vunpack.c.h.b16 %v4171
    %v4965 = vunpack.c.l.b16 %v4172
    %v4966 = vunpack.c.h.b16 %v4172
    %v4967 = vunpack.c.l.b16 %v4173
    %v4968 = vunpack.c.h.b16 %v4173
    %v4969 = vunpack.c.l.b16 %v4174
    %v4970 = vunpack.c.h.b16 %v4174
    %v4971 = vunpack.c.l.b16 %v4175
    %v4972 = vunpack.c.h.b16 %v4175
    %v4973 = vunpack.c.l.b16 %v4176
    %v4974 = vunpack.c.h.b16 %v4176
    %v4975 = vunpack.c.l.b16 %v4177
    %v4976 = vunpack.c.h.b16 %v4177
    %v4977 = vunpack.c.l.b16 %v4178
    %v4978 = vunpack.c.h.b16 %v4178
    %v4979 = vunpack.c.l.b16 %v4179
    %v4980 = vunpack.c.h.b16 %v4179
    %v4981 = vunpack.c.l.b16 %v4180
    %v4982 = vunpack.c.h.b16 %v4180
    %v4983 = vunpack.c.l.b16 %v4181
    %v4984 = vunpack.c.h.b16 %v4181
    %v4985 = vunpack.c.l.b16 %v4182
    %v4986 = vunpack.c.h.b16 %v4182
    %v4987 = vunpack.c.l.b16 %v4183
    %v4988 = vunpack.c.h.b16 %v4183
    %v4989 = vunpack.c.l.b16 %v4184
    %v4990 = vunpack.c.h.b16 %v4184
    %v4991 = vunpack.c.l.b16 %v4185
    %v4992 = vunpack.c.h.b16 %v4185
    %v4993 = vunpack.c.l.b16 %v4186
    %v4994 = vunpack.c.h.b16 %v4186
    %v4995 = vunpack.c.l.b16 %v4187
    %v4996 = vunpack.c.h.b16 %v4187
    %v4997 = vunpack.c.l.b16 %v4188
    %v4998 = vunpack.c.h.b16 %v4188
    %v4999 = vunpack.c.l.b16 %v4189
    %v5000 = vunpack.c.h.b16 %v4189
    %v5001 = vunpack.c.l.b16 %v4190
    %v5002 = vunpack.c.h.b16 %v4190
    %v5003 = vunpack.c.l.b16 %v4191
    %v5004 = vunpack.c.h.b16 %v4191
    %v5005 = vunpack.c.l.b16 %v4192
    %v5006 = vunpack.c.h.b16 %v4192
    %v5007 = vunpack.c.l.b16 %v4193
    %v5008 = vunpack.c.h.b16 %v4193
    %v5009 = vunpack.c.l.b16 %v4194
    %v5010 = vunpack.c.h.b16 %v4194
    %v5011 = vunpack.c.l.b16 %v4195
    %v5012 = vunpack.c.h.b16 %v4195
    %v5013 = vunpack.c.l.b16 %v4196
    %v5014 = vunpack.c.h.b16 %v4196
    %v5015 = vunpack.c.l.b16 %v4197
    %v5016 = vunpack.c.h.b16 %v4197
    %v5017 = vunpack.c.l.b16 %v4198
    %v5018 = vunpack.c.h.b16 %v4198
    %v5019 = vunpack.c.l.b16 %v4199
    %v5020 = vunpack.c.h.b16 %v4199
    %v5021 = vunpack.c.l.b16 %v4200
    %v5022 = vunpack.c.h.b16 %v4200
    %v5023 = vunpack.c.l.b16 %v4201
    %v5024 = vunpack.c.h.b16 %v4201
    %v5025 = vunpack.c.l.b16 %v4202
    %v5026 = vunpack.c.h.b16 %v4202
    %v5027 = vunpack.c.l.b16 %v4203
    %v5028 = vunpack.c.h.b16 %v4203
    %v5029 = vunpack.c.l.b16 %v4204
    %v5030 = vunpack.c.h.b16 %v4204
    %v5031 = vunpack.c.l.b16 %v4205
    %v5032 = vunpack.c.h.b16 %v4205
    %v5033 = vunpack.c.l.b16 %v4206
    %v5034 = vunpack.c.h.b16 %v4206
    %v5035 = vunpack.c.l.b16 %v4207
    %v5036 = vunpack.c.h.b16 %v4207
    %v5037 = vunpack.c.l.b16 %v4208
    %v5038 = vunpack.c.h.b16 %v4208
    %v5039 = vunpack.c.l.b16 %v4209
    %v5040 = vunpack.c.h.b16 %v4209
    %v5041 = vunpack.c.l.b16 %v4210
    %v5042 = vunpack.c.h.b16 %v4210
    %v5043 = vunpack.c.l.b16 %v4211
    %v5044 = vunpack.c.h.b16 %v4211
    %v5045 = vunpack.c.l.b16 %v4212
    %v5046 = vunpack.c.h.b16 %v4212
    %v5047 = vunpack.c.l.b16 %v4213
    %v5048 = vunpack.c.h.b16 %v4213
    %v5049 = vunpack.c.l.b16 %v4214
    %v5050 = vunpack.c.h.b16 %v4214
    %v5051 = vunpack.c.l.b16 %v4215
    %v5052 = vunpack.c.h.b16 %v4215
    %v5053 = vunpack.c.l.b16 %v4216
    %v5054 = vunpack.c.h.b16 %v4216
    %v5055 = vunpack.c.l.b16 %v4217
    %v5056 = vunpack.c.h.b16 %v4217
    %v5057 = vunpack.c.l.b16 %v4218
    %v5058 = vunpack.c.h.b16 %v4218
    %v5059 = vunpack.c.l.b16 %v4219
    %v5060 = vunpack.c.h.b16 %v4219
    %v5061 = vunpack.c.l.b16 %v4220
    %v5062 = vunpack.c.h.b16 %v4220
    %v5063 = vunpack.c.l.b16 %v4221
    %v5064 = vunpack.c.h.b16 %v4221
    %v5065 = vunpack.c.l.b16 %v4222
    %v5066 = vunpack.c.h.b16 %v4222
    %v5067 = vunpack.c.l.b16 %v4223
    %v5068 = vunpack.c.h.b16 %v4223
    %v5069 = vunpack.c.l.b16 %v4224
    %v5070 = vunpack.c.h.b16 %v4224
    %v5071 = vunpack.c.l.b16 %v4225
    %v5072 = vunpack.c.h.b16 %v4225
    %v5073 = vunpack.c.l.b16 %v4226
    %v5074 = vunpack.c.h.b16 %v4226
    %v5075 = vunpack.c.l.b16 %v4227
    %v5076 = vunpack.c.h.b16 %v4227
    %v5077 = vunpack.c.l.b16 %v4228
    %v5078 = vunpack.c.h.b16 %v4228
    %v5079 = vunpack.c.l.b16 %v4229
    %v5080 = vunpack.c.h.b16 %v4229
    %v5081 = vunpack.c.l.b16 %v4230
    %v5082 = vunpack.c.h.b16 %v4230
    %v5083 = vunpack.c.l.b16 %v4231
    %v5084 = vunpack.c.h.b16 %v4231
    %v5085 = vunpack.c.l.b16 %v4232
    %v5086 = vunpack.c.h.b16 %v4232
    %v5087 = vunpack.c.l.b16 %v4233
    %v5088 = vunpack.c.h.b16 %v4233
    %v5089 = vunpack.c.l.b16 %v4234
    %v5090 = vunpack.c.h.b16 %v4234
    %v5091 = vunpack.c.l.b16 %v4235
    %v5092 = vunpack.c.h.b16 %v4235
    %v5093 = vunpack.c.l.b16 %v4236
    %v5094 = vunpack.c.h.b16 %v4236
    %v5095 = vunpack.c.l.b16 %v4237
    %v5096 = vunpack.c.h.b16 %v4237
    %v5097 = vunpack.c.l.b16 %v4238
    %v5098 = vunpack.c.h.b16 %v4238
    %v5099 = vunpack.c.l.b16 %v4239
    %v5100 = vunpack.c.h.b16 %v4239
    %v5101 = vunpack.c.l.b16 %v4240
    %v5102 = vunpack.c.h.b16 %v4240
    %v5103 = vunpack.c.l.b16 %v4241
    %v5104 = vunpack.c.h.b16 %v4241
    %v5105 = vunpack.c.l.b16 %v4242
    %v5106 = vunpack.c.h.b16 %v4242
    %v5107 = vunpack.c.l.b16 %v4243
    %v5108 = vunpack.c.h.b16 %v4243
    %v5109 = vunpack.c.l.b16 %v4244
    %v5110 = vunpack.c.h.b16 %v4244
    %v5111 = vunpack.c.l.b16 %v4245
    %v5112 = vunpack.c.h.b16 %v4245
    %v5113 = vunpack.c.l.b16 %v4246
    %v5114 = vunpack.c.h.b16 %v4246
    %v5115 = vunpack.c.l.b16 %v4247
    %v5116 = vunpack.c.h.b16 %v4247
    %v5117 = vunpack.c.l.b16 %v4248
    %v5118 = vunpack.c.h.b16 %v4248
    %v5119 = vunpack.c.l.b16 %v4249
    %v5120 = vunpack.c.h.b16 %v4249
    %v5121 = vunpack.c.l.b16 %v4250
    %v5122 = vunpack.c.h.b16 %v4250
    %v5123 = vunpack.c.l.b16 %v4251
    %v5124 = vunpack.c.h.b16 %v4251
    %v5125 = vunpack.c.l.b16 %v4252
    %v5126 = vunpack.c.h.b16 %v4252
    %v5127 = vunpack.c.l.b16 %v4253
    %v5128 = vunpack.c.h.b16 %v4253
    %v5129 = vunpack.c.l.b16 %v4254
    %v5130 = vunpack.c.h.b16 %v4254
    %v5131 = vunpack.c.l.b16 %v4255
    %v5132 = vunpack.c.h.b16 %v4255
    %v5133 = vunpack.c.l.b16 %v4256
    %v5134 = vunpack.c.h.b16 %v4256
    %v5135 = vunpack.c.l.b16 %v4257
    %v5136 = vunpack.c.h.b16 %v4257
    %v5137 = vunpack.c.l.b16 %v4258
    %v5138 = vunpack.c.h.b16 %v4258
    %v5139 = vunpack.c.l.b16 %v4259
    %v5140 = vunpack.c.h.b16 %v4259
    %v5141 = vunpack.c.l.b16 %v4260
    %v5142 = vunpack.c.h.b16 %v4260
    %v5143 = vunpack.c.l.b16 %v4261
    %v5144 = vunpack.c.h.b16 %v4261
    %v5145 = vunpack.c.l.b16 %v4262
    %v5146 = vunpack.c.h.b16 %v4262
    %v5147 = vunpack.c.l.b16 %v4263
    %v5148 = vunpack.c.h.b16 %v4263
    %v5149 = vunpack.c.l.b16 %v4264
    %v5150 = vunpack.c.h.b16 %v4264
    %v5151 = vunpack.c.l.b16 %v4265
    %v5152 = vunpack.c.h.b16 %v4265
    %v5153 = vunpack.c.l.b16 %v4266
    %v5154 = vunpack.c.h.b16 %v4266
    %v5155 = vunpack.c.l.b16 %v4267
    %v5156 = vunpack.c.h.b16 %v4267
    %v5157 = vunpack.c.l.b16 %v4268
    %v5158 = vunpack.c.h.b16 %v4268
    %v5159 = vunpack.c.l.b16 %v4269
    %v5160 = vunpack.c.h.b16 %v4269
    %v5161 = vunpack.c.l.b16 %v4270
    %v5162 = vunpack.c.h.b16 %v4270
    %v5163 = vunpack.c.l.b16 %v4271
    %v5164 = vunpack.c.h.b16 %v4271
    %v5165 = vunpack.c.l.b16 %v4272
    %v5166 = vunpack.c.h.b16 %v4272
    %v5167 = vunpack.c.l.b16 %v4273
    %v5168 = vunpack.c.h.b16 %v4273
    %v5169 = vunpack.c.l.b16 %v4274
    %v5170 = vunpack.c.h.b16 %v4274
    %v5171 = vpack.c.b16 %v4601, %v4595
    %v5172 = vpack.c.b16 %v4602, %v4596
    %v5173 = vpack.c.b16 %v4603, %v4597
    %v5174 = vpack.c.b16 %v4604, %v4598
    %v5175 = vpack.c.b16 %v4605, %v4599
    %v5176 = vpack.c.b16 %v4606, %v4600
    %v5177 = vpack.c.b16 %v4613, %v4607
    %v5178 = vpack.c.b16 %v4614, %v4608
    %v5179 = vpack.c.b16 %v4615, %v4609
    %v5180 = vpack.c.b16 %v4616, %v4610
    %v5181 = vpack.c.b16 %v4617, %v4611
    %v5182 = vpack.c.b16 %v4618, %v4612
    %v5183 = vpack.c.b16 %v4625, %v4619
    %v5184 = vpack.c.b16 %v4626, %v4620
    %v5185 = vpack.c.b16 %v4627, %v4621
    %v5186 = vpack.c.b16 %v4628, %v4622
    %v5187 = vpack.c.b16 %v4629, %v4623
    %v5188 = vpack.c.b16 %v4630, %v4624
    %v5189 = vpack.c.b16 %v4637, %v4631
    %v5190 = vpack.c.b16 %v4638, %v4632
    %v5191 = vpack.c.b16 %v4639, %v4633
    %v5192 = vpack.c.b16 %v4640, %v4634
    %v5193 = vpack.c.b16 %v4641, %v4635
    %v5194 = vpack.c.b16 %v4642, %v4636
    %v5195 = vpack.c.b16 %v4649, %v4643
    %v5196 = vpack.c.b16 %v4650, %v4644
    %v5197 = vpack.c.b16 %v4651, %v4645
    %v5198 = vpack.c.b16 %v4652, %v4646
    %v5199 = vpack.c.b16 %v4653, %v4647
    %v5200 = vpack.c.b16 %v4654, %v4648
    %v5201 = vpack.c.b16 %v4661, %v4655
    %v5202 = vpack.c.b16 %v4662, %v4656
    %v5203 = vpack.c.b16 %v4663, %v4657
    %v5204 = vpack.c.b16 %v4664, %v4658
    %v5205 = vpack.c.b16 %v4665, %v4659
    %v5206 = vpack.c.b16 %v4666, %v4660
    %v5207 = vpack.c.b16 %v4673, %v4667
    %v5208 = vpack.c.b16 %v4674, %v4668
    %v5209 = vpack.c.b16 %v4675, %v4669
    %v5210 = vpack.c.b16 %v4676, %v4670
    %v5211 = vpack.c.b16 %v4677, %v4671
    %v5212 = vpack.c.b16 %v4678, %v4672
    %v5213 = vpack.c.b16 %v4685, %v4679
    %v5214 = vpack.c.b16 %v4686, %v4680
    %v5215 = vpack.c.b16 %v4687, %v4681
    %v5216 = vpack.c.b16 %v4688, %v4682
    %v5217 = vpack.c.b16 %v4689, %v4683
    %v5218 = vpack.c.b16 %v4690, %v4684
    %v5219 = vpack.c.b16 %v4697, %v4691
    %v5220 = vpack.c.b16 %v4698, %v4692
    %v5221 = vpack.c.b16 %v4699, %v4693
    %v5222 = vpack.c.b16 %v4700, %v4694
    %v5223 = vpack.c.b16 %v4701, %v4695
    %v5224 = vpack.c.b16 %v4702, %v4696
    %v5225 = vpack.c.b16 %v4709, %v4703
    %v5226 = vpack.c.b16 %v4710, %v4704
    %v5227 = vpack.c.b16 %v4711, %v4705
    %v5228 = vpack.c.b16 %v4712, %v4706
    %v5229 = vpack.c.b16 %v4713, %v4707
    %v5230 = vpack.c.b16 %v4714, %v4708
    %v5231 = vpack.c.b16 %v4721, %v4715
    %v5232 = vpack.c.b16 %v4722, %v4716
    %v5233 = vpack.c.b16 %v4723, %v4717
    %v5234 = vpack.c.b16 %v4724, %v4718
    %v5235 = vpack.c.b16 %v4725, %v4719
    %v5236 = vpack.c.b16 %v4726, %v4720
    %v5237 = vpack.c.b16 %v4733, %v4727
    %v5238 = vpack.c.b16 %v4734, %v4728
    %v5239 = vpack.c.b16 %v4735, %v4729
    %v5240 = vpack.c.b16 %v4736, %v4730
    %v5241 = vpack.c.b16 %v4737, %v4731
    %v5242 = vpack.c.b16 %v4738, %v4732
    %v5243 = vpack.c.b16 %v4745, %v4739
    %v5244 = vpack.c.b16 %v4746, %v4740
    %v5245 = vpack.c.b16 %v4747, %v4741
    %v5246 = vpack.c.b16 %v4748, %v4742
    %v5247 = vpack.c.b16 %v4749, %v4743
    %v5248 = vpack.c.b16 %v4750, %v4744
    %v5249 = vpack.c.b16 %v4757, %v4751
    %v5250 = vpack.c.b16 %v4758, %v4752
    %v5251 = vpack.c.b16 %v4759, %v4753
    %v5252 = vpack.c.b16 %v4760, %v4754
    %v5253 = vpack.c.b16 %v4761, %v4755
    %v5254 = vpack.c.b16 %v4762, %v4756
    %v5255 = vpack.c.b16 %v4769, %v4763
    %v5256 = vpack.c.b16 %v4770, %v4764
    %v5257 = vpack.c.b16 %v4771, %v4765
    %v5258 = vpack.c.b16 %v4772, %v4766
    %v5259 = vpack.c.b16 %v4773, %v4767
    %v5260 = vpack.c.b16 %v4774, %v4768
    %v5261 = vpack.c.b16 %v4781, %v4775
    %v5262 = vpack.c.b16 %v4782, %v4776
    %v5263 = vpack.c.b16 %v4783, %v4777
    %v5264 = vpack.c.b16 %v4784, %v4778
    %v5265 = vpack.c.b16 %v4785, %v4779
    %v5266 = vpack.c.b16 %v4786, %v4780
    %v5267 = vpack.c.b16 %v4793, %v4787
    %v5268 = vpack.c.b16 %v4794, %v4788
    %v5269 = vpack.c.b16 %v4795, %v4789
    %v5270 = vpack.c.b16 %v4796, %v4790
    %v5271 = vpack.c.b16 %v4797, %v4791
    %v5272 = vpack.c.b16 %v4798, %v4792
    %v5273 = vpack.c.b16 %v4805, %v4799
    %v5274 = vpack.c.b16 %v4806, %v4800
    %v5275 = vpack.c.b16 %v4807, %v4801
    %v5276 = vpack.c.b16 %v4808, %v4802
    %v5277 = vpack.c.b16 %v4809, %v4803
    %v5278 = vpack.c.b16 %v4810, %v4804
    %v5279 = vpack.c.b16 %v4817, %v4811
    %v5280 = vpack.c.b16 %v4818, %v4812
    %v5281 = vpack.c.b16 %v4819, %v4813
    %v5282 = vpack.c.b16 %v4820, %v4814
    %v5283 = vpack.c.b16 %v4821, %v4815
    %v5284 = vpack.c.b16 %v4822, %v4816
    %v5285 = vpack.c.b16 %v4829, %v4823
    %v5286 = vpack.c.b16 %v4830, %v4824
    %v5287 = vpack.c.b16 %v4831, %v4825
    %v5288 = vpack.c.b16 %v4832, %v4826
    %v5289 = vpack.c.b16 %v4833, %v4827
    %v5290 = vpack.c.b16 %v4834, %v4828
    %v5291 = vpack.c.b16 %v4841, %v4835
    %v5292 = vpack.c.b16 %v4842, %v4836
    %v5293 = vpack.c.b16 %v4843, %v4837
    %v5294 = vpack.c.b16 %v4844, %v4838
    %v5295 = vpack.c.b16 %v4845, %v4839
    %v5296 = vpack.c.b16 %v4846, %v4840
    %v5297 = vpack.c.b16 %v4853, %v4847
    %v5298 = vpack.c.b16 %v4854, %v4848
    %v5299 = vpack.c.b16 %v4855, %v4849
    %v5300 = vpack.c.b16 %v4856, %v4850
    %v5301 = vpack.c.b16 %v4857, %v4851
    %v5302 = vpack.c.b16 %v4858, %v4852
    %v5303 = vpack.c.b16 %v4865, %v4859
    %v5304 = vpack.c.b16 %v4866, %v4860
    %v5305 = vpack.c.b16 %v4867, %v4861
    %v5306 = vpack.c.b16 %v4868, %v4862
    %v5307 = vpack.c.b16 %v4869, %v4863
    %v5308 = vpack.c.b16 %v4870, %v4864
    %v5309 = vpack.c.b16 %v4877, %v4871
    %v5310 = vpack.c.b16 %v4878, %v4872
    %v5311 = vpack.c.b16 %v4879, %v4873
    %v5312 = vpack.c.b16 %v4880, %v4874
    %v5313 = vpack.c.b16 %v4881, %v4875
    %v5314 = vpack.c.b16 %v4882, %v4876
    %v5315 = vpack.c.b16 %v4889, %v4883
    %v5316 = vpack.c.b16 %v4890, %v4884
    %v5317 = vpack.c.b16 %v4891, %v4885
    %v5318 = vpack.c.b16 %v4892, %v4886
    %v5319 = vpack.c.b16 %v4893, %v4887
    %v5320 = vpack.c.b16 %v4894, %v4888
    %v5321 = vpack.c.b16 %v4901, %v4895
    %v5322 = vpack.c.b16 %v4902, %v4896
    %v5323 = vpack.c.b16 %v4903, %v4897
    %v5324 = vpack.c.b16 %v4904, %v4898
    %v5325 = vpack.c.b16 %v4905, %v4899
    %v5326 = vpack.c.b16 %v4906, %v4900
    %v5327 = vpack.c.b16 %v4913, %v4907
    %v5328 = vpack.c.b16 %v4914, %v4908
    %v5329 = vpack.c.b16 %v4915, %v4909
    %v5330 = vpack.c.b16 %v4916, %v4910
    %v5331 = vpack.c.b16 %v4917, %v4911
    %v5332 = vpack.c.b16 %v4918, %v4912
    %v5333 = vpack.c.b16 %v4925, %v4919
    %v5334 = vpack.c.b16 %v4926, %v4920
    %v5335 = vpack.c.b16 %v4927, %v4921
    %v5336 = vpack.c.b16 %v4928, %v4922
    %v5337 = vpack.c.b16 %v4929, %v4923
    %v5338 = vpack.c.b16 %v4930, %v4924
    %v5339 = vpack.c.b16 %v4937, %v4931
    %v5340 = vpack.c.b16 %v4938, %v4932
    %v5341 = vpack.c.b16 %v4939, %v4933
    %v5342 = vpack.c.b16 %v4940, %v4934
    %v5343 = vpack.c.b16 %v4941, %v4935
    %v5344 = vpack.c.b16 %v4942, %v4936
    %v5345 = vpack.c.b16 %v4949, %v4943
    %v5346 = vpack.c.b16 %v4950, %v4944
    %v5347 = vpack.c.b16 %v4951, %v4945
    %v5348 = vpack.c.b16 %v4952, %v4946
    %v5349 = vpack.c.b16 %v4953, %v4947
    %v5350 = vpack.c.b16 %v4954, %v4948
    %v5351 = vpack.c.b16 %v4961, %v4955
    %v5352 = vpack.c.b16 %v4962, %v4956
    %v5353 = vpack.c.b16 %v4963, %v4957
    %v5354 = vpack.c.b16 %v4964, %v4958
    %v5355 = vpack.c.b16 %v4965, %v4959
    %v5356 = vpack.c.b16 %v4966, %v4960
    %v5357 = vpack.c.b16 %v4973, %v4967
    %v5358 = vpack.c.b16 %v4974, %v4968
    %v5359 = vpack.c.b16 %v4975, %v4969
    %v5360 = vpack.c.b16 %v4976, %v4970
    %v5361 = vpack.c.b16 %v4977, %v4971
    %v5362 = vpack.c.b16 %v4978, %v4972
    %v5363 = vpack.c.b16 %v4985, %v4979
    %v5364 = vpack.c.b16 %v4986, %v4980
    %v5365 = vpack.c.b16 %v4987, %v4981
    %v5366 = vpack.c.b16 %v4988, %v4982
    %v5367 = vpack.c.b16 %v4989, %v4983
    %v5368 = vpack.c.b16 %v4990, %v4984
    %v5369 = vpack.c.b16 %v4997, %v4991
    %v5370 = vpack.c.b16 %v4998, %v4992
    %v5371 = vpack.c.b16 %v4999, %v4993
    %v5372 = vpack.c.b16 %v5000, %v4994
    %v5373 = vpack.c.b16 %v5001, %v4995
    %v5374 = vpack.c.b16 %v5002, %v4996
    %v5375 = vpack.c.b16 %v5009, %v5003
    %v5376 = vpack.c.b16 %v5010, %v5004
    %v5377 = vpack.c.b16 %v5011, %v5005
    %v5378 = vpack.c.b16 %v5012, %v5006
    %v5379 = vpack.c.b16 %v5013, %v5007
    %v5380 = vpack.c.b16 %v5014, %v5008
    %v5381 = vpack.c.b16 %v5021, %v5015
    %v5382 = vpack.c.b16 %v5022, %v5016
    %v5383 = vpack.c.b16 %v5023, %v5017
    %v5384 = vpack.c.b16 %v5024, %v5018
    %v5385 = vpack.c.b16 %v5025, %v5019
    %v5386 = vpack.c.b16 %v5026, %v5020
    %v5387 = vpack.c.b16 %v5033, %v5027
    %v5388 = vpack.c.b16 %v5034, %v5028
    %v5389 = vpack.c.b16 %v5035, %v5029
    %v5390 = vpack.c.b16 %v5036, %v5030
    %v5391 = vpack.c.b16 %v5037, %v5031
    %v5392 = vpack.c.b16 %v5038, %v5032
    %v5393 = vpack.c.b16 %v5045, %v5039
    %v5394 = vpack.c.b16 %v5046, %v5040
    %v5395 = vpack.c.b16 %v5047, %v5041
    %v5396 = vpack.c.b16 %v5048, %v5042
    %v5397 = vpack.c.b16 %v5049, %v5043
    %v5398 = vpack.c.b16 %v5050, %v5044
    %v5399 = vpack.c.b16 %v5057, %v5051
    %v5400 = vpack.c.b16 %v5058, %v5052
    %v5401 = vpack.c.b16 %v5059, %v5053
    %v5402 = vpack.c.b16 %v5060, %v5054
    %v5403 = vpack.c.b16 %v5061, %v5055
    %v5404 = vpack.c.b16 %v5062, %v5056
    %v5405 = vpack.c.b16 %v5069, %v5063
    %v5406 = vpack.c.b16 %v5070, %v5064
    %v5407 = vpack.c.b16 %v5071, %v5065
    %v5408 = vpack.c.b16 %v5072, %v5066
    %v5409 = vpack.c.b16 %v5073, %v5067
    %v5410 = vpack.c.b16 %v5074, %v5068
    %v5411 = vpack.c.b16 %v5081, %v5075
    %v5412 = vpack.c.b16 %v5082, %v5076
    %v5413 = vpack.c.b16 %v5083, %v5077
    %v5414 = vpack.c.b16 %v5084, %v5078
    %v5415 = vpack.c.b16 %v5085, %v5079
    %v5416 = vpack.c.b16 %v5086, %v5080
    %v5417 = vpack.c.b16 %v5093, %v5087
    %v5418 = vpack.c.b16 %v5094, %v5088
    %v5419 = vpack.c.b16 %v5095, %v5089
    %v5420 = vpack.c.b16 %v5096, %v5090
    %v5421 = vpack.c.b16 %v5097, %v5091
    %v5422 = vpack.c.b16 %v5098, %v5092
    %v5423 = vpack.c.b16 %v5105, %v5099
    %v5424 = vpack.c.b16 %v5106, %v5100
    %v5425 = vpack.c.b16 %v5107, %v5101
    %v5426 = vpack.c.b16 %v5108, %v5102
    %v5427 = vpack.c.b16 %v5109, %v5103
    %v5428 = vpack.c.b16 %v5110, %v5104
    %v5429 = vpack.c.b16 %v5117, %v5111
    %v5430 = vpack.c.b16 %v5118, %v5112
    %v5431 = vpack.c.b16 %v5119, %v5113
    %v5432 = vpack.c.b16 %v5120, %v5114
    %v5433 = vpack.c.b16 %v5121, %v5115
    %v5434 = vpack.c.b16 %v5122, %v5116
    %v5435 = vpack.c.b16 %v5129, %v5123
    %v5436 = vpack.c.b16 %v5130, %v5124
    %v5437 = vpack.c.b16 %v5131, %v5125
    %v5438 = vpack.c.b16 %v5132, %v5126
    %v5439 = vpack.c.b16 %v5133, %v5127
    %v5440 = vpack.c.b16 %v5134, %v5128
    %v5441 = vpack.c.b16 %v5141, %v5135
    %v5442 = vpack.c.b16 %v5142, %v5136
    %v5443 = vpack.c.b16 %v5143, %v5137
    %v5444 = vpack.c.b16 %v5144, %v5138
    %v5445 = vpack.c.b16 %v5145, %v5139
    %v5446 = vpack.c.b16 %v5146, %v5140
    %v5447 = vpack.c.b16 %v5153, %v5147
    %v5448 = vpack.c.b16 %v5154, %v5148
    %v5449 = vpack.c.b16 %v5155, %v5149
    %v5450 = vpack.c.b16 %v5156, %v5150
    %v5451 = vpack.c.b16 %v5157, %v5151
    %v5452 = vpack.c.b16 %v5158, %v5152
    %v5453 = vpack.c.b16 %v5165, %v5159
    %v5454 = vpack.c.b16 %v5166, %v5160
    %v5455 = vpack.c.b16 %v5167, %v5161
    %v5456 = vpack.c.b16 %v5168, %v5162
    %v5457 = vpack.c.b16 %v5169, %v5163
    %v5458 = vpack.c.b16 %v5170, %v5164
    %5747 = vmatprep.subr.bf16.mxu0 %v5172
    %5748 = vmatpush1.bf16.msra.mxu0 %v5171
    %5749 = vmatprep.subr.bf16.mxu0 %v5178
    %5750 = vmatpush1.bf16.msra.mxu0 %v5177
    %5751 = vmatprep.subr.bf16.mxu0 %v5184
    %5752 = vmatpush1.bf16.msra.mxu0 %v5183
    %5753 = vmatprep.subr.bf16.mxu0 %v5190
    %5754 = vmatpush1.bf16.msra.mxu0 %v5189
    %5755 = vmatprep.subr.bf16.mxu0 %v5196
    %5756 = vmatpush1.bf16.msra.mxu0 %v5195
    %5757 = vmatprep.subr.bf16.mxu0 %v5202
    %5758 = vmatpush1.bf16.msra.mxu0 %v5201
    %5759 = vmatprep.subr.bf16.mxu0 %v5208
    %5760 = vmatpush1.bf16.msra.mxu0 %v5207
    %5761 = vmatprep.subr.bf16.mxu0 %v5214
    %5762 = vmatpush1.bf16.msra.mxu0 %v5213
    %5763 = vmatprep.subr.bf16.mxu0 %v5220
    %5764 = vmatpush1.bf16.msra.mxu0 %v5219
    %5765 = vmatprep.subr.bf16.mxu0 %v5226
    %5766 = vmatpush1.bf16.msra.mxu0 %v5225
    %5767 = vmatprep.subr.bf16.mxu0 %v5232
    %5768 = vmatpush1.bf16.msra.mxu0 %v5231
    %5769 = vmatprep.subr.bf16.mxu0 %v5238
    %5770 = vmatpush1.bf16.msra.mxu0 %v5237
    %5771 = vmatprep.subr.bf16.mxu0 %v5244
    %5772 = vmatpush1.bf16.msra.mxu0 %v5243
    %5773 = vmatprep.subr.bf16.mxu0 %v5250
    %5774 = vmatpush1.bf16.msra.mxu0 %v5249
    %5775 = vmatprep.subr.bf16.mxu0 %v5256
    %5776 = vmatpush1.bf16.msra.mxu0 %v5255
    %5777 = vmatprep.subr.bf16.mxu0 %v5262
    %5778 = vmatpush1.bf16.msra.mxu0 %v5261
    %5779 = vmatprep.mubr.bf16.mxu0 %v3982
    %5780 = vmatmul.mubr.bf16.gmra.mrb[0].mxu0 %v3981
    %v5781 = vpop.f32.mrb[0].mxu0
    %v5782 = vadd.f32 %v4280, %v5781
    %v5783 = vpop.f32.mrb[0].mxu0
    %v5784 = vadd.f32 %v4284, %v5783
    %v5785 = vpop.f32.mrb[0].mxu0
    %v5786 = vadd.f32 %v4280, %v5785
    %v5787 = vpop.f32.mrb[0].mxu0
    %v5788 = vadd.f32 %v4284, %v5787
    %5789 = vdwg.mxu0
    %5790 = vmatprep.subr.bf16.mxu0 %v5268
    %5791 = vmatpush1.bf16.msra.mxu0 %v5267
    %5792 = vmatprep.subr.bf16.mxu0 %v5274
    %5793 = vmatpush1.bf16.msra.mxu0 %v5273
    %5794 = vmatprep.subr.bf16.mxu0 %v5280
    %5795 = vmatpush1.bf16.msra.mxu0 %v5279
    %5796 = vmatprep.subr.bf16.mxu0 %v5286
    %5797 = vmatpush1.bf16.msra.mxu0 %v5285
    %5798 = vmatprep.subr.bf16.mxu0 %v5292
    %5799 = vmatpush1.bf16.msra.mxu0 %v5291
    %5800 = vmatprep.subr.bf16.mxu0 %v5298
    %5801 = vmatpush1.bf16.msra.mxu0 %v5297
    %5802 = vmatprep.subr.bf16.mxu0 %v5304
    %5803 = vmatpush1.bf16.msra.mxu0 %v5303
    %5804 = vmatprep.subr.bf16.mxu0 %v5310
    %5805 = vmatpush1.bf16.msra.mxu0 %v5309
    %5806 = vmatprep.subr.bf16.mxu0 %v5316
    %5807 = vmatpush1.bf16.msra.mxu0 %v5315
    %5808 = vmatprep.subr.bf16.mxu0 %v5322
    %5809 = vmatpush1.bf16.msra.mxu0 %v5321
    %5810 = vmatprep.subr.bf16.mxu0 %v5328
    %5811 = vmatpush1.bf16.msra.mxu0 %v5327
    %5812 = vmatprep.subr.bf16.mxu0 %v5334
    %5813 = vmatpush1.bf16.msra.mxu0 %v5333
    %5814 = vmatprep.subr.bf16.mxu0 %v5340
    %5815 = vmatpush1.bf16.msra.mxu0 %v5339
    %5816 = vmatprep.subr.bf16.mxu0 %v5346
    %5817 = vmatpush1.bf16.msra.mxu0 %v5345
    %5818 = vmatprep.subr.bf16.mxu0 %v5352
    %5819 = vmatpush1.bf16.msra.mxu0 %v5351
    %5820 = vmatprep.subr.bf16.mxu0 %v5358
    %5821 = vmatpush1.bf16.msra.mxu0 %v5357
    %5822 = vmatprep.mubr.bf16.mxu0 %v3984
    %5823 = vmatmul.mubr.bf16.gmra.mrb[0].mxu0 %v3983
    %v5824 = vpop.f32.mrb[0].mxu0
    %v5825 = vadd.f32 %v5782, %v5824
    %v5826 = vpop.f32.mrb[0].mxu0
    %v5827 = vadd.f32 %v5784, %v5826
    %v5828 = vpop.f32.mrb[0].mxu0
    %v5829 = vadd.f32 %v5786, %v5828
    %v5830 = vpop.f32.mrb[0].mxu0
    %v5831 = vadd.f32 %v5788, %v5830
    %5832 = vdwg.mxu0
    %5833 = vmatprep.subr.bf16.mxu0 %v5364
    %5834 = vmatpush1.bf16.msra.mxu0 %v5363
    %5835 = vmatprep.subr.bf16.mxu0 %v5370
    %5836 = vmatpush1.bf16.msra.mxu0 %v5369
    %5837 = vmatprep.subr.bf16.mxu0 %v5376
    %5838 = vmatpush1.bf16.msra.mxu0 %v5375
    %5839 = vmatprep.subr.bf16.mxu0 %v5382
    %5840 = vmatpush1.bf16.msra.mxu0 %v5381
    %5841 = vmatprep.subr.bf16.mxu0 %v5388
    %5842 = vmatpush1.bf16.msra.mxu0 %v5387
    %5843 = vmatprep.subr.bf16.mxu0 %v5394
    %5844 = vmatpush1.bf16.msra.mxu0 %v5393
    %5845 = vmatprep.subr.bf16.mxu0 %v5400
    %5846 = vmatpush1.bf16.msra.mxu0 %v5399
    %5847 = vmatprep.subr.bf16.mxu0 %v5406
    %5848 = vmatpush1.bf16.msra.mxu0 %v5405
    %5849 = vmatprep.subr.bf16.mxu0 %v5412
    %5850 = vmatpush1.bf16.msra.mxu0 %v5411
    %5851 = vmatprep.subr.bf16.mxu0 %v5418
    %5852 = vmatpush1.bf16.msra.mxu0 %v5417
    %5853 = vmatprep.subr.bf16.mxu0 %v5424
    %5854 = vmatpush1.bf16.msra.mxu0 %v5423
    %5855 = vmatprep.subr.bf16.mxu0 %v5430
    %5856 = vmatpush1.bf16.msra.mxu0 %v5429
    %5857 = vmatprep.subr.bf16.mxu0 %v5436
    %5858 = vmatpush1.bf16.msra.mxu0 %v5435
    %5859 = vmatprep.subr.bf16.mxu0 %v5442
    %5860 = vmatpush1.bf16.msra.mxu0 %v5441
    %5861 = vmatprep.subr.bf16.mxu0 %v5448
    %5862 = vmatpush1.bf16.msra.mxu0 %v5447
    %5863 = vmatprep.subr.bf16.mxu0 %v5454
    %5864 = vmatpush1.bf16.msra.mxu0 %v5453
    %5865 = vmatprep.mubr.bf16.mxu0 %v3986
    %5866 = vmatmul.mubr.bf16.gmra.mrb[0].mxu0 %v3985
    %v5867 = vpop.f32.mrb[0].mxu0
    %v5868 = vadd.f32 %v5825, %v5867
    %v5869 = vpop.f32.mrb[0].mxu0
    %v5870 = vadd.f32 %v5827, %v5869
    %v5871 = vpop.f32.mrb[0].mxu0
    %v5872 = vadd.f32 %v5829, %v5871
    %v5873 = vpop.f32.mrb[0].mxu0
    %v5874 = vadd.f32 %v5831, %v5873
    %5875 = vdwg.mxu0
    %5876 = vmatprep.subr.bf16.mxu0 %v5174
    %5877 = vmatpush1.bf16.msra.mxu0 %v5173
    %5878 = vmatprep.subr.bf16.mxu0 %v5180
    %5879 = vmatpush1.bf16.msra.mxu0 %v5179
    %5880 = vmatprep.subr.bf16.mxu0 %v5186
    %5881 = vmatpush1.bf16.msra.mxu0 %v5185
    %5882 = vmatprep.subr.bf16.mxu0 %v5192
    %5883 = vmatpush1.bf16.msra.mxu0 %v5191
    %5884 = vmatprep.subr.bf16.mxu0 %v5198
    %5885 = vmatpush1.bf16.msra.mxu0 %v5197
    %5886 = vmatprep.subr.bf16.mxu0 %v5204
    %5887 = vmatpush1.bf16.msra.mxu0 %v5203
    %5888 = vmatprep.subr.bf16.mxu0 %v5210
    %5889 = vmatpush1.bf16.msra.mxu0 %v5209
    %5890 = vmatprep.subr.bf16.mxu0 %v5216
    %5891 = vmatpush1.bf16.msra.mxu0 %v5215
    %5892 = vmatprep.subr.bf16.mxu0 %v5222
    %5893 = vmatpush1.bf16.msra.mxu0 %v5221
    %5894 = vmatprep.subr.bf16.mxu0 %v5228
    %5895 = vmatpush1.bf16.msra.mxu0 %v5227
    %5896 = vmatprep.subr.bf16.mxu0 %v5234
    %5897 = vmatpush1.bf16.msra.mxu0 %v5233
    %5898 = vmatprep.subr.bf16.mxu0 %v5240
    %5899 = vmatpush1.bf16.msra.mxu0 %v5239
    %5900 = vmatprep.subr.bf16.mxu0 %v5246
    %5901 = vmatpush1.bf16.msra.mxu0 %v5245
    %5902 = vmatprep.subr.bf16.mxu0 %v5252
    %5903 = vmatpush1.bf16.msra.mxu0 %v5251
    %5904 = vmatprep.subr.bf16.mxu0 %v5258
    %5905 = vmatpush1.bf16.msra.mxu0 %v5257
    %5906 = vmatprep.subr.bf16.mxu0 %v5264
    %5907 = vmatpush1.bf16.msra.mxu0 %v5263
    %5908 = vmatprep.mubr.bf16.mxu0 %v3982
    %5909 = vmatmul.mubr.bf16.gmra.mrb[0].mxu0 %v3981
    %v5910 = vpop.f32.mrb[0].mxu0
    %v5911 = vadd.f32 %v4288, %v5910
    %v5912 = vpop.f32.mrb[0].mxu0
    %v5913 = vadd.f32 %v4292, %v5912
    %v5914 = vpop.f32.mrb[0].mxu0
    %v5915 = vadd.f32 %v4288, %v5914
    %v5916 = vpop.f32.mrb[0].mxu0
    %v5917 = vadd.f32 %v4292, %v5916
    %5918 = vdwg.mxu0
    %5919 = vmatprep.subr.bf16.mxu0 %v5270
    %5920 = vmatpush1.bf16.msra.mxu0 %v5269
    %5921 = vmatprep.subr.bf16.mxu0 %v5276
    %5922 = vmatpush1.bf16.msra.mxu0 %v5275
    %5923 = vmatprep.subr.bf16.mxu0 %v5282
    %5924 = vmatpush1.bf16.msra.mxu0 %v5281
    %5925 = vmatprep.subr.bf16.mxu0 %v5288
    %5926 = vmatpush1.bf16.msra.mxu0 %v5287
    %5927 = vmatprep.subr.bf16.mxu0 %v5294
    %5928 = vmatpush1.bf16.msra.mxu0 %v5293
    %5929 = vmatprep.subr.bf16.mxu0 %v5300
    %5930 = vmatpush1.bf16.msra.mxu0 %v5299
    %5931 = vmatprep.subr.bf16.mxu0 %v5306
    %5932 = vmatpush1.bf16.msra.mxu0 %v5305
    %5933 = vmatprep.subr.bf16.mxu0 %v5312
    %5934 = vmatpush1.bf16.msra.mxu0 %v5311
    %5935 = vmatprep.subr.bf16.mxu0 %v5318
    %5936 = vmatpush1.bf16.msra.mxu0 %v5317
    %5937 = vmatprep.subr.bf16.mxu0 %v5324
    %5938 = vmatpush1.bf16.msra.mxu0 %v5323
    %5939 = vmatprep.subr.bf16.mxu0 %v5330
    %5940 = vmatpush1.bf16.msra.mxu0 %v5329
    %5941 = vmatprep.subr.bf16.mxu0 %v5336
    %5942 = vmatpush1.bf16.msra.mxu0 %v5335
    %5943 = vmatprep.subr.bf16.mxu0 %v5342
    %5944 = vmatpush1.bf16.msra.mxu0 %v5341
    %5945 = vmatprep.subr.bf16.mxu0 %v5348
    %5946 = vmatpush1.bf16.msra.mxu0 %v5347
    %5947 = vmatprep.subr.bf16.mxu0 %v5354
    %5948 = vmatpush1.bf16.msra.mxu0 %v5353
    %5949 = vmatprep.subr.bf16.mxu0 %v5360
    %5950 = vmatpush1.bf16.msra.mxu0 %v5359
    %5951 = vmatprep.mubr.bf16.mxu0 %v3984
    %5952 = vmatmul.mubr.bf16.gmra.mrb[0].mxu0 %v3983
    %v5953 = vpop.f32.mrb[0].mxu0
    %v5954 = vadd.f32 %v5911, %v5953
    %v5955 = vpop.f32.mrb[0].mxu0
    %v5956 = vadd.f32 %v5913, %v5955
    %v5957 = vpop.f32.mrb[0].mxu0
    %v5958 = vadd.f32 %v5915, %v5957
    %v5959 = vpop.f32.mrb[0].mxu0
    %v5960 = vadd.f32 %v5917, %v5959
    %5961 = vdwg.mxu0
    %5962 = vmatprep.subr.bf16.mxu0 %v5366
    %5963 = vmatpush1.bf16.msra.mxu0 %v5365
    %5964 = vmatprep.subr.bf16.mxu0 %v5372
    %5965 = vmatpush1.bf16.msra.mxu0 %v5371
    %5966 = vmatprep.subr.bf16.mxu0 %v5378
    %5967 = vmatpush1.bf16.msra.mxu0 %v5377
    %5968 = vmatprep.subr.bf16.mxu0 %v5384
    %5969 = vmatpush1.bf16.msra.mxu0 %v5383
    %5970 = vmatprep.subr.bf16.mxu0 %v5390
    %5971 = vmatpush1.bf16.msra.mxu0 %v5389
    %5972 = vmatprep.subr.bf16.mxu0 %v5396
    %5973 = vmatpush1.bf16.msra.mxu0 %v5395
    %5974 = vmatprep.subr.bf16.mxu0 %v5402
    %5975 = vmatpush1.bf16.msra.mxu0 %v5401
    %5976 = vmatprep.subr.bf16.mxu0 %v5408
    %5977 = vmatpush1.bf16.msra.mxu0 %v5407
    %5978 = vmatprep.subr.bf16.mxu0 %v5414
    %5979 = vmatpush1.bf16.msra.mxu0 %v5413
    %5980 = vmatprep.subr.bf16.mxu0 %v5420
    %5981 = vmatpush1.bf16.msra.mxu0 %v5419
    %5982 = vmatprep.subr.bf16.mxu0 %v5426
    %5983 = vmatpush1.bf16.msra.mxu0 %v5425
    %5984 = vmatprep.subr.bf16.mxu0 %v5432
    %5985 = vmatpush1.bf16.msra.mxu0 %v5431
    %5986 = vmatprep.subr.bf16.mxu0 %v5438
    %5987 = vmatpush1.bf16.msra.mxu0 %v5437
    %5988 = vmatprep.subr.bf16.mxu0 %v5444
    %5989 = vmatpush1.bf16.msra.mxu0 %v5443
    %5990 = vmatprep.subr.bf16.mxu0 %v5450
    %5991 = vmatpush1.bf16.msra.mxu0 %v5449
    %5992 = vmatprep.subr.bf16.mxu0 %v5456
    %5993 = vmatpush1.bf16.msra.mxu0 %v5455
    %5994 = vmatprep.mubr.bf16.mxu0 %v3986
    %5995 = vmatmul.mubr.bf16.gmra.mrb[0].mxu0 %v3985
    %v5996 = vpop.f32.mrb[0].mxu0
    %v5997 = vadd.f32 %v5954, %v5996
    %v5998 = vpop.f32.mrb[0].mxu0
    %v5999 = vadd.f32 %v5956, %v5998
    %v6000 = vpop.f32.mrb[0].mxu0
    %v6001 = vadd.f32 %v5958, %v6000
    %v6002 = vpop.f32.mrb[0].mxu0
    %v6003 = vadd.f32 %v5960, %v6002
    %6004 = vdwg.mxu0
    %6005 = vmatprep.subr.bf16.mxu0 %v5176
    %6006 = vmatpush1.bf16.msra.mxu0 %v5175
    %6007 = vmatprep.subr.bf16.mxu0 %v5182
    %6008 = vmatpush1.bf16.msra.mxu0 %v5181
    %6009 = vmatprep.subr.bf16.mxu0 %v5188
    %6010 = vmatpush1.bf16.msra.mxu0 %v5187
    %6011 = vmatprep.subr.bf16.mxu0 %v5194
    %6012 = vmatpush1.bf16.msra.mxu0 %v5193
    %6013 = vmatprep.subr.bf16.mxu0 %v5200
    %6014 = vmatpush1.bf16.msra.mxu0 %v5199
    %6015 = vmatprep.subr.bf16.mxu0 %v5206
    %6016 = vmatpush1.bf16.msra.mxu0 %v5205
    %6017 = vmatprep.subr.bf16.mxu0 %v5212
    %6018 = vmatpush1.bf16.msra.mxu0 %v5211
    %6019 = vmatprep.subr.bf16.mxu0 %v5218
    %6020 = vmatpush1.bf16.msra.mxu0 %v5217
    %6021 = vmatprep.subr.bf16.mxu0 %v5224
    %6022 = vmatpush1.bf16.msra.mxu0 %v5223
    %6023 = vmatprep.subr.bf16.mxu0 %v5230
    %6024 = vmatpush1.bf16.msra.mxu0 %v5229
    %6025 = vmatprep.subr.bf16.mxu0 %v5236
    %6026 = vmatpush1.bf16.msra.mxu0 %v5235
    %6027 = vmatprep.subr.bf16.mxu0 %v5242
    %6028 = vmatpush1.bf16.msra.mxu0 %v5241
    %6029 = vmatprep.subr.bf16.mxu0 %v5248
    %6030 = vmatpush1.bf16.msra.mxu0 %v5247
    %6031 = vmatprep.subr.bf16.mxu0 %v5254
    %6032 = vmatpush1.bf16.msra.mxu0 %v5253
    %6033 = vmatprep.subr.bf16.mxu0 %v5260
    %6034 = vmatpush1.bf16.msra.mxu0 %v5259
    %6035 = vmatprep.subr.bf16.mxu0 %v5266
    %6036 = vmatpush1.bf16.msra.mxu0 %v5265
    %6037 = vmatprep.mubr.bf16.mxu0 %v3982
    %6038 = vmatmul.mubr.bf16.gmra.mrb[0].mxu0 %v3981
    %v6039 = vpop.f32.mrb[0].mxu0
    %v6040 = vadd.f32 %v4296, %v6039
    %v6041 = vpop.f32.mrb[0].mxu0
    %v6042 = vadd.f32 %v4300, %v6041
    %v6043 = vpop.f32.mrb[0].mxu0
    %v6044 = vadd.f32 %v4296, %v6043
    %v6045 = vpop.f32.mrb[0].mxu0
    %v6046 = vadd.f32 %v4300, %v6045
    %6047 = vdwg.mxu0
    %6048 = vmatprep.subr.bf16.mxu0 %v5272
    %6049 = vmatpush1.bf16.msra.mxu0 %v5271
    %6050 = vmatprep.subr.bf16.mxu0 %v5278
    %6051 = vmatpush1.bf16.msra.mxu0 %v5277
    %6052 = vmatprep.subr.bf16.mxu0 %v5284
    %6053 = vmatpush1.bf16.msra.mxu0 %v5283
    %6054 = vmatprep.subr.bf16.mxu0 %v5290
    %6055 = vmatpush1.bf16.msra.mxu0 %v5289
    %6056 = vmatprep.subr.bf16.mxu0 %v5296
    %6057 = vmatpush1.bf16.msra.mxu0 %v5295
    %6058 = vmatprep.subr.bf16.mxu0 %v5302
    %6059 = vmatpush1.bf16.msra.mxu0 %v5301
    %6060 = vmatprep.subr.bf16.mxu0 %v5308
    %6061 = vmatpush1.bf16.msra.mxu0 %v5307
    %6062 = vmatprep.subr.bf16.mxu0 %v5314
    %6063 = vmatpush1.bf16.msra.mxu0 %v5313
    %6064 = vmatprep.subr.bf16.mxu0 %v5320
    %6065 = vmatpush1.bf16.msra.mxu0 %v5319
    %6066 = vmatprep.subr.bf16.mxu0 %v5326
    %6067 = vmatpush1.bf16.msra.mxu0 %v5325
    %6068 = vmatprep.subr.bf16.mxu0 %v5332
    %6069 = vmatpush1.bf16.msra.mxu0 %v5331
    %6070 = vmatprep.subr.bf16.mxu0 %v5338
    %6071 = vmatpush1.bf16.msra.mxu0 %v5337
    %6072 = vmatprep.subr.bf16.mxu0 %v5344
    %6073 = vmatpush1.bf16.msra.mxu0 %v5343
    %6074 = vmatprep.subr.bf16.mxu0 %v5350
    %6075 = vmatpush1.bf16.msra.mxu0 %v5349
    %6076 = vmatprep.subr.bf16.mxu0 %v5356
    %6077 = vmatpush1.bf16.msra.mxu0 %v5355
    %6078 = vmatprep.subr.bf16.mxu0 %v5362
    %6079 = vmatpush1.bf16.msra.mxu0 %v5361
    %6080 = vmatprep.mubr.bf16.mxu0 %v3984
    %6081 = vmatmul.mubr.bf16.gmra.mrb[0].mxu0 %v3983
    %v6082 = vpop.f32.mrb[0].mxu0
    %v6083 = vadd.f32 %v6040, %v6082
    %v6084 = vpop.f32.mrb[0].mxu0
    %v6085 = vadd.f32 %v6042, %v6084
    %v6086 = vpop.f32.mrb[0].mxu0
    %v6087 = vadd.f32 %v6044, %v6086
    %v6088 = vpop.f32.mrb[0].mxu0
    %v6089 = vadd.f32 %v6046, %v6088
    %6090 = vdwg.mxu0
    %6091 = vmatprep.subr.bf16.mxu0 %v5368
    %6092 = vmatpush1.bf16.msra.mxu0 %v5367
    %6093 = vmatprep.subr.bf16.mxu0 %v5374
    %6094 = vmatpush1.bf16.msra.mxu0 %v5373
    %6095 = vmatprep.subr.bf16.mxu0 %v5380
    %6096 = vmatpush1.bf16.msra.mxu0 %v5379
    %6097 = vmatprep.subr.bf16.mxu0 %v5386
    %6098 = vmatpush1.bf16.msra.mxu0 %v5385
    %6099 = vmatprep.subr.bf16.mxu0 %v5392
    %6100 = vmatpush1.bf16.msra.mxu0 %v5391
    %6101 = vmatprep.subr.bf16.mxu0 %v5398
    %6102 = vmatpush1.bf16.msra.mxu0 %v5397
    %6103 = vmatprep.subr.bf16.mxu0 %v5404
    %6104 = vmatpush1.bf16.msra.mxu0 %v5403
    %6105 = vmatprep.subr.bf16.mxu0 %v5410
    %6106 = vmatpush1.bf16.msra.mxu0 %v5409
    %6107 = vmatprep.subr.bf16.mxu0 %v5416
    %6108 = vmatpush1.bf16.msra.mxu0 %v5415
    %6109 = vmatprep.subr.bf16.mxu0 %v5422
    %6110 = vmatpush1.bf16.msra.mxu0 %v5421
    %6111 = vmatprep.subr.bf16.mxu0 %v5428
    %6112 = vmatpush1.bf16.msra.mxu0 %v5427
    %6113 = vmatprep.subr.bf16.mxu0 %v5434
    %6114 = vmatpush1.bf16.msra.mxu0 %v5433
    %6115 = vmatprep.subr.bf16.mxu0 %v5440
    %6116 = vmatpush1.bf16.msra.mxu0 %v5439
    %6117 = vmatprep.subr.bf16.mxu0 %v5446
    %6118 = vmatpush1.bf16.msra.mxu0 %v5445
    %6119 = vmatprep.subr.bf16.mxu0 %v5452
    %6120 = vmatpush1.bf16.msra.mxu0 %v5451
    %6121 = vmatprep.subr.bf16.mxu0 %v5458
    %6122 = vmatpush1.bf16.msra.mxu0 %v5457
    %6123 = vmatprep.mubr.bf16.mxu0 %v3986
    %6124 = vmatmul.mubr.bf16.gmra.mrb[0].mxu0 %v3985
    %v6125 = vpop.f32.mrb[0].mxu0
    %v6126 = vadd.f32 %v6083, %v6125
    %v6127 = vpop.f32.mrb[0].mxu0
    %v6128 = vadd.f32 %v6085, %v6127
    %v6129 = vpop.f32.mrb[0].mxu0
    %v6130 = vadd.f32 %v6087, %v6129
    %v6131 = vpop.f32.mrb[0].mxu0
    %v6132 = vadd.f32 %v6089, %v6131
    %6133 = vdwg.mxu0
    %v6134 = vtanh.pop %v5868
    %v6135 = vtanh.pop %v5870
    %v6136 = vtanh.pop %v5997
    %v6137 = vtanh.pop %v5999
    %v6138 = vtanh.pop %v6126
    %v6139 = vtanh.pop %v6128
    %v6140 = vtanh.pop %v5872
    %v6141 = vtanh.pop %v5874
    %v6142 = vtanh.pop %v6001
    %v6143 = vtanh.pop %v6003
    %v6144 = vtanh.pop %v6130
    %v6145 = vtanh.pop %v6132
    %v6146 = vld [vmem:[%s2] sm:$0xff]
    %v6147 = vld [vmem:[%s2 + $0x8] sm:$0xff]
    %6149 = vset.pattern.permute.xlu0 0
    %6150 = vperm.xlu0 %6149, %v6146
    %v6151 = vpop.permute.xlu0 %6150
    %6154 = vset.pattern.permute.xlu0 0
    %6155 = vperm.xlu0 %6154, %v6147
    %v6156 = vpop.permute.xlu0 %6155
    %v6158 = vmul.f32 %v6134, %v6151
    %v6159 = vmul.f32 %v6135, %v6151
    %v6160 = vmul.f32 %v6136, %v6151
    %v6161 = vmul.f32 %v6137, %v6151
    %v6162 = vmul.f32 %v6138, %v6151
    %v6163 = vmul.f32 %v6139, %v6151
    %v6164 = vmul.f32 %v6140, %v6156
    %v6165 = vmul.f32 %v6141, %v6156
    %v6166 = vmul.f32 %v6142, %v6156
    %v6167 = vmul.f32 %v6143, %v6156
    %v6168 = vmul.f32 %v6144, %v6156
    %v6169 = vmul.f32 %v6145, %v6156
    %v6170 = vpack.c.bf16 %v6164, %v6158
    %v6171 = vpack.c.bf16 %v6165, %v6159
    %v6172 = vpack.c.bf16 %v6166, %v6160
    %v6173 = vpack.c.bf16 %v6167, %v6161
    %v6174 = vpack.c.bf16 %v6168, %v6162
    %v6175 = vpack.c.bf16 %v6169, %v6163
    %v6176 = vld [vmem:[#allocation11] sm:$0xff]
    %v6177 = vld [vmem:[#allocation11 + $0x8] sm:$0xff]
    %v6178 = vld [vmem:[#allocation11 + $0x10] sm:$0xff]
    %v6179 = vld [vmem:[#allocation11 + $0x18] sm:$0xff]
    %v6180 = vld [vmem:[#allocation11 + $0x20] sm:$0xff]
    %v6181 = vld [vmem:[#allocation11 + $0x28] sm:$0xff]
    %v6182 = vld [vmem:[#allocation11 + $0x30] sm:$0xff]
    %v6183 = vld [vmem:[#allocation11 + $0x38] sm:$0xff]
    %v6184 = vld [vmem:[#allocation11 + $0x40] sm:$0xff]
    %v6185 = vld [vmem:[#allocation11 + $0x48] sm:$0xff]
    %v6186 = vld [vmem:[#allocation11 + $0x50] sm:$0xff]
    %v6187 = vld [vmem:[#allocation11 + $0x58] sm:$0xff]
    %v6188 = vld [vmem:[#allocation11 + $0x60] sm:$0xff]
    %v6189 = vld [vmem:[#allocation11 + $0x68] sm:$0xff]
    %v6190 = vld [vmem:[#allocation11 + $0x70] sm:$0xff]
    %v6191 = vld [vmem:[#allocation11 + $0x78] sm:$0xff]
    %v6192 = vld [vmem:[#allocation11 + $0x80] sm:$0xff]
    %v6193 = vld [vmem:[#allocation11 + $0x88] sm:$0xff]
    %v6194 = vld [vmem:[#allocation11 + $0x90] sm:$0xff]
    %v6195 = vld [vmem:[#allocation11 + $0x98] sm:$0xff]
    %v6196 = vld [vmem:[#allocation11 + $0xa0] sm:$0xff]
    %v6197 = vld [vmem:[#allocation11 + $0xa8] sm:$0xff]
    %v6198 = vld [vmem:[#allocation11 + $0xb0] sm:$0xff]
    %v6199 = vld [vmem:[#allocation11 + $0xb8] sm:$0xff]
    %v6200 = vld [vmem:[#allocation11 + $0xc0] sm:$0xff]
    %v6201 = vld [vmem:[#allocation11 + $0xc8] sm:$0xff]
    %v6202 = vld [vmem:[#allocation11 + $0xd0] sm:$0xff]
    %v6203 = vld [vmem:[#allocation11 + $0xd8] sm:$0xff]
    %v6204 = vld [vmem:[#allocation11 + $0xe0] sm:$0xff]
    %v6205 = vld [vmem:[#allocation11 + $0xe8] sm:$0xff]
    %v6206 = vld [vmem:[#allocation11 + $0xf0] sm:$0xff]
    %v6207 = vld [vmem:[#allocation11 + $0xf8] sm:$0xff]
    %v6208 = vld [vmem:[#allocation11 + $0x100] sm:$0xff]
    %v6209 = vld [vmem:[#allocation11 + $0x108] sm:$0xff]
    %v6210 = vld [vmem:[#allocation11 + $0x110] sm:$0xff]
    %v6211 = vld [vmem:[#allocation11 + $0x118] sm:$0xff]
    %v6212 = vld [vmem:[#allocation11 + $0x120] sm:$0xff]
    %v6213 = vld [vmem:[#allocation11 + $0x128] sm:$0xff]
    %v6214 = vld [vmem:[#allocation11 + $0x130] sm:$0xff]
    %v6215 = vld [vmem:[#allocation11 + $0x138] sm:$0xff]
    %v6216 = vld [vmem:[#allocation11 + $0x140] sm:$0xff]
    %v6217 = vld [vmem:[#allocation11 + $0x148] sm:$0xff]
    %v6218 = vld [vmem:[#allocation11 + $0x150] sm:$0xff]
    %v6219 = vld [vmem:[#allocation11 + $0x158] sm:$0xff]
    %v6220 = vld [vmem:[#allocation11 + $0x160] sm:$0xff]
    %v6221 = vld [vmem:[#allocation11 + $0x168] sm:$0xff]
    %v6222 = vld [vmem:[#allocation11 + $0x170] sm:$0xff]
    %v6223 = vld [vmem:[#allocation11 + $0x178] sm:$0xff]
    %v6224 = vld [vmem:[#allocation11 + $0x180] sm:$0xff]
    %v6225 = vld [vmem:[#allocation11 + $0x188] sm:$0xff]
    %v6226 = vld [vmem:[#allocation11 + $0x190] sm:$0xff]
    %v6227 = vld [vmem:[#allocation11 + $0x198] sm:$0xff]
    %v6228 = vld [vmem:[#allocation11 + $0x1a0] sm:$0xff]
    %v6229 = vld [vmem:[#allocation11 + $0x1a8] sm:$0xff]
    %v6230 = vld [vmem:[#allocation11 + $0x1b0] sm:$0xff]
    %v6231 = vld [vmem:[#allocation11 + $0x1b8] sm:$0xff]
    %v6232 = vld [vmem:[#allocation11 + $0x1c0] sm:$0xff]
    %v6233 = vld [vmem:[#allocation11 + $0x1c8] sm:$0xff]
    %v6234 = vld [vmem:[#allocation11 + $0x1d0] sm:$0xff]
    %v6235 = vld [vmem:[#allocation11 + $0x1d8] sm:$0xff]
    %v6236 = vld [vmem:[#allocation11 + $0x1e0] sm:$0xff]
    %v6237 = vld [vmem:[#allocation11 + $0x1e8] sm:$0xff]
    %v6238 = vld [vmem:[#allocation11 + $0x1f0] sm:$0xff]
    %v6239 = vld [vmem:[#allocation11 + $0x1f8] sm:$0xff]
    %v6240 = vld [vmem:[#allocation11 + $0x200] sm:$0xff]
    %v6241 = vld [vmem:[#allocation11 + $0x208] sm:$0xff]
    %v6242 = vld [vmem:[#allocation11 + $0x210] sm:$0xff]
    %v6243 = vld [vmem:[#allocation11 + $0x218] sm:$0xff]
    %v6244 = vld [vmem:[#allocation11 + $0x220] sm:$0xff]
    %v6245 = vld [vmem:[#allocation11 + $0x228] sm:$0xff]
    %v6246 = vld [vmem:[#allocation11 + $0x230] sm:$0xff]
    %v6247 = vld [vmem:[#allocation11 + $0x238] sm:$0xff]
    %v6248 = vld [vmem:[#allocation11 + $0x240] sm:$0xff]
    %v6249 = vld [vmem:[#allocation11 + $0x248] sm:$0xff]
    %v6250 = vld [vmem:[#allocation11 + $0x250] sm:$0xff]
    %v6251 = vld [vmem:[#allocation11 + $0x258] sm:$0xff]
    %v6252 = vld [vmem:[#allocation11 + $0x260] sm:$0xff]
    %v6253 = vld [vmem:[#allocation11 + $0x268] sm:$0xff]
    %v6254 = vld [vmem:[#allocation11 + $0x270] sm:$0xff]
    %v6255 = vld [vmem:[#allocation11 + $0x278] sm:$0xff]
    %v6256 = vld [vmem:[#allocation11 + $0x280] sm:$0xff]
    %v6257 = vld [vmem:[#allocation11 + $0x288] sm:$0xff]
    %v6258 = vld [vmem:[#allocation11 + $0x290] sm:$0xff]
    %v6259 = vld [vmem:[#allocation11 + $0x298] sm:$0xff]
    %v6260 = vld [vmem:[#allocation11 + $0x2a0] sm:$0xff]
    %v6261 = vld [vmem:[#allocation11 + $0x2a8] sm:$0xff]
    %v6262 = vld [vmem:[#allocation11 + $0x2b0] sm:$0xff]
    %v6263 = vld [vmem:[#allocation11 + $0x2b8] sm:$0xff]
    %v6264 = vld [vmem:[#allocation11 + $0x2c0] sm:$0xff]
    %v6265 = vld [vmem:[#allocation11 + $0x2c8] sm:$0xff]
    %v6266 = vld [vmem:[#allocation11 + $0x2d0] sm:$0xff]
    %v6267 = vld [vmem:[#allocation11 + $0x2d8] sm:$0xff]
    %v6268 = vld [vmem:[#allocation11 + $0x2e0] sm:$0xff]
    %v6269 = vld [vmem:[#allocation11 + $0x2e8] sm:$0xff]
    %v6270 = vld [vmem:[#allocation11 + $0x2f0] sm:$0xff]
    %v6271 = vld [vmem:[#allocation11 + $0x2f8] sm:$0xff]
    %v6272 = vld [vmem:[#allocation11 + $0x300] sm:$0xff]
    %v6273 = vld [vmem:[#allocation11 + $0x308] sm:$0xff]
    %v6274 = vld [vmem:[#allocation11 + $0x310] sm:$0xff]
    %v6275 = vld [vmem:[#allocation11 + $0x318] sm:$0xff]
    %v6276 = vld [vmem:[#allocation11 + $0x320] sm:$0xff]
    %v6277 = vld [vmem:[#allocation11 + $0x328] sm:$0xff]
    %v6278 = vld [vmem:[#allocation11 + $0x330] sm:$0xff]
    %v6279 = vld [vmem:[#allocation11 + $0x338] sm:$0xff]
    %v6280 = vld [vmem:[#allocation11 + $0x340] sm:$0xff]
    %v6281 = vld [vmem:[#allocation11 + $0x348] sm:$0xff]
    %v6282 = vld [vmem:[#allocation11 + $0x350] sm:$0xff]
    %v6283 = vld [vmem:[#allocation11 + $0x358] sm:$0xff]
    %v6284 = vld [vmem:[#allocation11 + $0x360] sm:$0xff]
    %v6285 = vld [vmem:[#allocation11 + $0x368] sm:$0xff]
    %v6286 = vld [vmem:[#allocation11 + $0x370] sm:$0xff]
    %v6287 = vld [vmem:[#allocation11 + $0x378] sm:$0xff]
    %v6288 = vld [vmem:[#allocation11 + $0x380] sm:$0xff]
    %v6289 = vld [vmem:[#allocation11 + $0x388] sm:$0xff]
    %v6290 = vld [vmem:[#allocation11 + $0x390] sm:$0xff]
    %v6291 = vld [vmem:[#allocation11 + $0x398] sm:$0xff]
    %v6292 = vld [vmem:[#allocation11 + $0x3a0] sm:$0xff]
    %v6293 = vld [vmem:[#allocation11 + $0x3a8] sm:$0xff]
    %v6294 = vld [vmem:[#allocation11 + $0x3b0] sm:$0xff]
    %v6295 = vld [vmem:[#allocation11 + $0x3b8] sm:$0xff]
    %v6296 = vld [vmem:[#allocation11 + $0x3c0] sm:$0xff]
    %v6297 = vld [vmem:[#allocation11 + $0x3c8] sm:$0xff]
    %v6298 = vld [vmem:[#allocation11 + $0x3d0] sm:$0xff]
    %v6299 = vld [vmem:[#allocation11 + $0x3d8] sm:$0xff]
    %v6300 = vld [vmem:[#allocation11 + $0x3e0] sm:$0xff]
    %v6301 = vld [vmem:[#allocation11 + $0x3e8] sm:$0xff]
    %v6302 = vld [vmem:[#allocation11 + $0x3f0] sm:$0xff]
    %v6303 = vld [vmem:[#allocation11 + $0x3f8] sm:$0xff]
    %v6304 = vld [vmem:[#allocation11 + $0x400] sm:$0xff]
    %v6305 = vld [vmem:[#allocation11 + $0x408] sm:$0xff]
    %v6306 = vld [vmem:[#allocation11 + $0x410] sm:$0xff]
    %v6307 = vld [vmem:[#allocation11 + $0x418] sm:$0xff]
    %v6308 = vld [vmem:[#allocation11 + $0x420] sm:$0xff]
    %v6309 = vld [vmem:[#allocation11 + $0x428] sm:$0xff]
    %v6310 = vld [vmem:[#allocation11 + $0x430] sm:$0xff]
    %v6311 = vld [vmem:[#allocation11 + $0x438] sm:$0xff]
    %v6312 = vld [vmem:[#allocation11 + $0x440] sm:$0xff]
    %v6313 = vld [vmem:[#allocation11 + $0x448] sm:$0xff]
    %v6314 = vld [vmem:[#allocation11 + $0x450] sm:$0xff]
    %v6315 = vld [vmem:[#allocation11 + $0x458] sm:$0xff]
    %v6316 = vld [vmem:[#allocation11 + $0x460] sm:$0xff]
    %v6317 = vld [vmem:[#allocation11 + $0x468] sm:$0xff]
    %v6318 = vld [vmem:[#allocation11 + $0x470] sm:$0xff]
    %v6319 = vld [vmem:[#allocation11 + $0x478] sm:$0xff]
    %v6320 = vld [vmem:[#allocation11 + $0x480] sm:$0xff]
    %v6321 = vld [vmem:[#allocation11 + $0x488] sm:$0xff]
    %v6322 = vld [vmem:[#allocation11 + $0x490] sm:$0xff]
    %v6323 = vld [vmem:[#allocation11 + $0x498] sm:$0xff]
    %v6324 = vld [vmem:[#allocation11 + $0x4a0] sm:$0xff]
    %v6325 = vld [vmem:[#allocation11 + $0x4a8] sm:$0xff]
    %v6326 = vld [vmem:[#allocation11 + $0x4b0] sm:$0xff]
    %v6327 = vld [vmem:[#allocation11 + $0x4b8] sm:$0xff]
    %v6328 = vld [vmem:[#allocation11 + $0x4c0] sm:$0xff]
    %v6329 = vld [vmem:[#allocation11 + $0x4c8] sm:$0xff]
    %v6330 = vld [vmem:[#allocation11 + $0x4d0] sm:$0xff]
    %v6331 = vld [vmem:[#allocation11 + $0x4d8] sm:$0xff]
    %v6332 = vld [vmem:[#allocation11 + $0x4e0] sm:$0xff]
    %v6333 = vld [vmem:[#allocation11 + $0x4e8] sm:$0xff]
    %v6334 = vld [vmem:[#allocation11 + $0x4f0] sm:$0xff]
    %v6335 = vld [vmem:[#allocation11 + $0x4f8] sm:$0xff]
    %v6336 = vld [vmem:[#allocation11 + $0x500] sm:$0xff]
    %v6337 = vld [vmem:[#allocation11 + $0x508] sm:$0xff]
    %v6338 = vld [vmem:[#allocation11 + $0x510] sm:$0xff]
    %v6339 = vld [vmem:[#allocation11 + $0x518] sm:$0xff]
    %v6340 = vld [vmem:[#allocation11 + $0x520] sm:$0xff]
    %v6341 = vld [vmem:[#allocation11 + $0x528] sm:$0xff]
    %v6342 = vld [vmem:[#allocation11 + $0x530] sm:$0xff]
    %v6343 = vld [vmem:[#allocation11 + $0x538] sm:$0xff]
    %v6344 = vld [vmem:[#allocation11 + $0x540] sm:$0xff]
    %v6345 = vld [vmem:[#allocation11 + $0x548] sm:$0xff]
    %v6346 = vld [vmem:[#allocation11 + $0x550] sm:$0xff]
    %v6347 = vld [vmem:[#allocation11 + $0x558] sm:$0xff]
    %v6348 = vld [vmem:[#allocation11 + $0x560] sm:$0xff]
    %v6349 = vld [vmem:[#allocation11 + $0x568] sm:$0xff]
    %v6350 = vld [vmem:[#allocation11 + $0x570] sm:$0xff]
    %v6351 = vld [vmem:[#allocation11 + $0x578] sm:$0xff]
    %v6352 = vld [vmem:[#allocation11 + $0x580] sm:$0xff]
    %v6353 = vld [vmem:[#allocation11 + $0x588] sm:$0xff]
    %v6354 = vld [vmem:[#allocation11 + $0x590] sm:$0xff]
    %v6355 = vld [vmem:[#allocation11 + $0x598] sm:$0xff]
    %v6356 = vld [vmem:[#allocation11 + $0x5a0] sm:$0xff]
    %v6357 = vld [vmem:[#allocation11 + $0x5a8] sm:$0xff]
    %v6358 = vld [vmem:[#allocation11 + $0x5b0] sm:$0xff]
    %v6359 = vld [vmem:[#allocation11 + $0x5b8] sm:$0xff]
    %v6360 = vld [vmem:[#allocation11 + $0x5c0] sm:$0xff]
    %v6361 = vld [vmem:[#allocation11 + $0x5c8] sm:$0xff]
    %v6362 = vld [vmem:[#allocation11 + $0x5d0] sm:$0xff]
    %v6363 = vld [vmem:[#allocation11 + $0x5d8] sm:$0xff]
    %v6364 = vld [vmem:[#allocation11 + $0x5e0] sm:$0xff]
    %v6365 = vld [vmem:[#allocation11 + $0x5e8] sm:$0xff]
    %v6366 = vld [vmem:[#allocation11 + $0x5f0] sm:$0xff]
    %v6367 = vld [vmem:[#allocation11 + $0x5f8] sm:$0xff]
    %v6368 = vld [vmem:[#allocation11 + $0x600] sm:$0xff]
    %v6369 = vld [vmem:[#allocation11 + $0x608] sm:$0xff]
    %v6370 = vld [vmem:[#allocation11 + $0x610] sm:$0xff]
    %v6371 = vld [vmem:[#allocation11 + $0x618] sm:$0xff]
    %v6372 = vld [vmem:[#allocation11 + $0x620] sm:$0xff]
    %v6373 = vld [vmem:[#allocation11 + $0x628] sm:$0xff]
    %v6374 = vld [vmem:[#allocation11 + $0x630] sm:$0xff]
    %v6375 = vld [vmem:[#allocation11 + $0x638] sm:$0xff]
    %v6376 = vld [vmem:[#allocation11 + $0x640] sm:$0xff]
    %v6377 = vld [vmem:[#allocation11 + $0x648] sm:$0xff]
    %v6378 = vld [vmem:[#allocation11 + $0x650] sm:$0xff]
    %v6379 = vld [vmem:[#allocation11 + $0x658] sm:$0xff]
    %v6380 = vld [vmem:[#allocation11 + $0x660] sm:$0xff]
    %v6381 = vld [vmem:[#allocation11 + $0x668] sm:$0xff]
    %v6382 = vld [vmem:[#allocation11 + $0x670] sm:$0xff]
    %v6383 = vld [vmem:[#allocation11 + $0x678] sm:$0xff]
    %v6384 = vld [vmem:[#allocation11 + $0x680] sm:$0xff]
    %v6385 = vld [vmem:[#allocation11 + $0x688] sm:$0xff]
    %v6386 = vld [vmem:[#allocation11 + $0x690] sm:$0xff]
    %v6387 = vld [vmem:[#allocation11 + $0x698] sm:$0xff]
    %v6388 = vld [vmem:[#allocation11 + $0x6a0] sm:$0xff]
    %v6389 = vld [vmem:[#allocation11 + $0x6a8] sm:$0xff]
    %v6390 = vld [vmem:[#allocation11 + $0x6b0] sm:$0xff]
    %v6391 = vld [vmem:[#allocation11 + $0x6b8] sm:$0xff]
    %v6392 = vld [vmem:[#allocation11 + $0x6c0] sm:$0xff]
    %v6393 = vld [vmem:[#allocation11 + $0x6c8] sm:$0xff]
    %v6394 = vld [vmem:[#allocation11 + $0x6d0] sm:$0xff]
    %v6395 = vld [vmem:[#allocation11 + $0x6d8] sm:$0xff]
    %v6396 = vld [vmem:[#allocation11 + $0x6e0] sm:$0xff]
    %v6397 = vld [vmem:[#allocation11 + $0x6e8] sm:$0xff]
    %v6398 = vld [vmem:[#allocation11 + $0x6f0] sm:$0xff]
    %v6399 = vld [vmem:[#allocation11 + $0x6f8] sm:$0xff]
    %v6400 = vld [vmem:[#allocation11 + $0x700] sm:$0xff]
    %v6401 = vld [vmem:[#allocation11 + $0x708] sm:$0xff]
    %v6402 = vld [vmem:[#allocation11 + $0x710] sm:$0xff]
    %v6403 = vld [vmem:[#allocation11 + $0x718] sm:$0xff]
    %v6404 = vld [vmem:[#allocation11 + $0x720] sm:$0xff]
    %v6405 = vld [vmem:[#allocation11 + $0x728] sm:$0xff]
    %v6406 = vld [vmem:[#allocation11 + $0x730] sm:$0xff]
    %v6407 = vld [vmem:[#allocation11 + $0x738] sm:$0xff]
    %v6408 = vld [vmem:[#allocation11 + $0x740] sm:$0xff]
    %v6409 = vld [vmem:[#allocation11 + $0x748] sm:$0xff]
    %v6410 = vld [vmem:[#allocation11 + $0x750] sm:$0xff]
    %v6411 = vld [vmem:[#allocation11 + $0x758] sm:$0xff]
    %v6412 = vld [vmem:[#allocation11 + $0x760] sm:$0xff]
    %v6413 = vld [vmem:[#allocation11 + $0x768] sm:$0xff]
    %v6414 = vld [vmem:[#allocation11 + $0x770] sm:$0xff]
    %v6415 = vld [vmem:[#allocation11 + $0x778] sm:$0xff]
    %v6416 = vld [vmem:[#allocation11 + $0x780] sm:$0xff]
    %v6417 = vld [vmem:[#allocation11 + $0x788] sm:$0xff]
    %v6418 = vld [vmem:[#allocation11 + $0x790] sm:$0xff]
    %v6419 = vld [vmem:[#allocation11 + $0x798] sm:$0xff]
    %v6420 = vld [vmem:[#allocation11 + $0x7a0] sm:$0xff]
    %v6421 = vld [vmem:[#allocation11 + $0x7a8] sm:$0xff]
    %v6422 = vld [vmem:[#allocation11 + $0x7b0] sm:$0xff]
    %v6423 = vld [vmem:[#allocation11 + $0x7b8] sm:$0xff]
    %v6424 = vld [vmem:[#allocation11 + $0x7c0] sm:$0xff]
    %v6425 = vld [vmem:[#allocation11 + $0x7c8] sm:$0xff]
    %v6426 = vld [vmem:[#allocation11 + $0x7d0] sm:$0xff]
    %v6427 = vld [vmem:[#allocation11 + $0x7d8] sm:$0xff]
    %v6428 = vld [vmem:[#allocation11 + $0x7e0] sm:$0xff]
    %v6429 = vld [vmem:[#allocation11 + $0x7e8] sm:$0xff]
    %v6430 = vld [vmem:[#allocation11 + $0x7f0] sm:$0xff]
    %v6431 = vld [vmem:[#allocation11 + $0x7f8] sm:$0xff]
    %v6432 = vld [vmem:[#allocation11 + $0x800] sm:$0xff]
    %v6433 = vld [vmem:[#allocation11 + $0x808] sm:$0xff]
    %v6434 = vld [vmem:[#allocation11 + $0x810] sm:$0xff]
    %v6435 = vld [vmem:[#allocation11 + $0x818] sm:$0xff]
    %v6436 = vld [vmem:[#allocation11 + $0x820] sm:$0xff]
    %v6437 = vld [vmem:[#allocation11 + $0x828] sm:$0xff]
    %v6438 = vld [vmem:[#allocation11 + $0x830] sm:$0xff]
    %v6439 = vld [vmem:[#allocation11 + $0x838] sm:$0xff]
    %v6440 = vld [vmem:[#allocation11 + $0x840] sm:$0xff]
    %v6441 = vld [vmem:[#allocation11 + $0x848] sm:$0xff]
    %v6442 = vld [vmem:[#allocation11 + $0x850] sm:$0xff]
    %v6443 = vld [vmem:[#allocation11 + $0x858] sm:$0xff]
    %v6444 = vld [vmem:[#allocation11 + $0x860] sm:$0xff]
    %v6445 = vld [vmem:[#allocation11 + $0x868] sm:$0xff]
    %v6446 = vld [vmem:[#allocation11 + $0x870] sm:$0xff]
    %v6447 = vld [vmem:[#allocation11 + $0x878] sm:$0xff]
    %v6448 = vld [vmem:[#allocation11 + $0x880] sm:$0xff]
    %v6449 = vld [vmem:[#allocation11 + $0x888] sm:$0xff]
    %v6450 = vld [vmem:[#allocation11 + $0x890] sm:$0xff]
    %v6451 = vld [vmem:[#allocation11 + $0x898] sm:$0xff]
    %v6452 = vld [vmem:[#allocation11 + $0x8a0] sm:$0xff]
    %v6453 = vld [vmem:[#allocation11 + $0x8a8] sm:$0xff]
    %v6454 = vld [vmem:[#allocation11 + $0x8b0] sm:$0xff]
    %v6455 = vld [vmem:[#allocation11 + $0x8b8] sm:$0xff]
    %v6456 = vld [vmem:[#allocation11 + $0x8c0] sm:$0xff]
    %v6457 = vld [vmem:[#allocation11 + $0x8c8] sm:$0xff]
    %v6458 = vld [vmem:[#allocation11 + $0x8d0] sm:$0xff]
    %v6459 = vld [vmem:[#allocation11 + $0x8d8] sm:$0xff]
    %v6460 = vld [vmem:[#allocation11 + $0x8e0] sm:$0xff]
    %v6461 = vld [vmem:[#allocation11 + $0x8e8] sm:$0xff]
    %v6462 = vld [vmem:[#allocation11 + $0x8f0] sm:$0xff]
    %v6463 = vld [vmem:[#allocation11 + $0x8f8] sm:$0xff]
    %v6464 = vld [vmem:[#allocation13] sm:$0x3f]
    %v6466 = vlaneseq
    %v6467 = vshrl.u32 %v6466, 7
    %v6468 = vsub.s32 0, %v6467
    %v6469 = vrot.slane %v6464, %v6468
    %v6470 = vlaneseq
    %v6471 = vshrl.u32 %v6470, 7
    %v6472 = vsub.s32 1, %v6471
    %v6473 = vrot.slane %v6464, %v6472
    %v6474 = vlaneseq
    %v6475 = vshrl.u32 %v6474, 7
    %v6476 = vsub.s32 2, %v6475
    %v6477 = vrot.slane %v6464, %v6476
    %v6478 = vlaneseq
    %v6479 = vshrl.u32 %v6478, 7
    %v6480 = vsub.s32 3, %v6479
    %v6481 = vrot.slane %v6464, %v6480
    %v6482 = vlaneseq
    %v6483 = vshrl.u32 %v6482, 7
    %v6484 = vsub.s32 4, %v6483
    %v6485 = vrot.slane %v6464, %v6484
    %v6486 = vlaneseq
    %v6487 = vshrl.u32 %v6486, 7
    %v6488 = vsub.s32 5, %v6487
    %v6489 = vrot.slane %v6464, %v6488
    %v6784 = vunpack.c.l.b16 %v6176
    %v6785 = vunpack.c.h.b16 %v6176
    %v6786 = vunpack.c.l.b16 %v6177
    %v6787 = vunpack.c.h.b16 %v6177
    %v6788 = vunpack.c.l.b16 %v6178
    %v6789 = vunpack.c.h.b16 %v6178
    %v6790 = vunpack.c.l.b16 %v6179
    %v6791 = vunpack.c.h.b16 %v6179
    %v6792 = vunpack.c.l.b16 %v6180
    %v6793 = vunpack.c.h.b16 %v6180
    %v6794 = vunpack.c.l.b16 %v6181
    %v6795 = vunpack.c.h.b16 %v6181
    %v6796 = vunpack.c.l.b16 %v6182
    %v6797 = vunpack.c.h.b16 %v6182
    %v6798 = vunpack.c.l.b16 %v6183
    %v6799 = vunpack.c.h.b16 %v6183
    %v6800 = vunpack.c.l.b16 %v6184
    %v6801 = vunpack.c.h.b16 %v6184
    %v6802 = vunpack.c.l.b16 %v6185
    %v6803 = vunpack.c.h.b16 %v6185
    %v6804 = vunpack.c.l.b16 %v6186
    %v6805 = vunpack.c.h.b16 %v6186
    %v6806 = vunpack.c.l.b16 %v6187
    %v6807 = vunpack.c.h.b16 %v6187
    %v6808 = vunpack.c.l.b16 %v6188
    %v6809 = vunpack.c.h.b16 %v6188
    %v6810 = vunpack.c.l.b16 %v6189
    %v6811 = vunpack.c.h.b16 %v6189
    %v6812 = vunpack.c.l.b16 %v6190
    %v6813 = vunpack.c.h.b16 %v6190
    %v6814 = vunpack.c.l.b16 %v6191
    %v6815 = vunpack.c.h.b16 %v6191
    %v6816 = vunpack.c.l.b16 %v6192
    %v6817 = vunpack.c.h.b16 %v6192
    %v6818 = vunpack.c.l.b16 %v6193
    %v6819 = vunpack.c.h.b16 %v6193
    %v6820 = vunpack.c.l.b16 %v6194
    %v6821 = vunpack.c.h.b16 %v6194
    %v6822 = vunpack.c.l.b16 %v6195
    %v6823 = vunpack.c.h.b16 %v6195
    %v6824 = vunpack.c.l.b16 %v6196
    %v6825 = vunpack.c.h.b16 %v6196
    %v6826 = vunpack.c.l.b16 %v6197
    %v6827 = vunpack.c.h.b16 %v6197
    %v6828 = vunpack.c.l.b16 %v6198
    %v6829 = vunpack.c.h.b16 %v6198
    %v6830 = vunpack.c.l.b16 %v6199
    %v6831 = vunpack.c.h.b16 %v6199
    %v6832 = vunpack.c.l.b16 %v6200
    %v6833 = vunpack.c.h.b16 %v6200
    %v6834 = vunpack.c.l.b16 %v6201
    %v6835 = vunpack.c.h.b16 %v6201
    %v6836 = vunpack.c.l.b16 %v6202
    %v6837 = vunpack.c.h.b16 %v6202
    %v6838 = vunpack.c.l.b16 %v6203
    %v6839 = vunpack.c.h.b16 %v6203
    %v6840 = vunpack.c.l.b16 %v6204
    %v6841 = vunpack.c.h.b16 %v6204
    %v6842 = vunpack.c.l.b16 %v6205
    %v6843 = vunpack.c.h.b16 %v6205
    %v6844 = vunpack.c.l.b16 %v6206
    %v6845 = vunpack.c.h.b16 %v6206
    %v6846 = vunpack.c.l.b16 %v6207
    %v6847 = vunpack.c.h.b16 %v6207
    %v6848 = vunpack.c.l.b16 %v6208
    %v6849 = vunpack.c.h.b16 %v6208
    %v6850 = vunpack.c.l.b16 %v6209
    %v6851 = vunpack.c.h.b16 %v6209
    %v6852 = vunpack.c.l.b16 %v6210
    %v6853 = vunpack.c.h.b16 %v6210
    %v6854 = vunpack.c.l.b16 %v6211
    %v6855 = vunpack.c.h.b16 %v6211
    %v6856 = vunpack.c.l.b16 %v6212
    %v6857 = vunpack.c.h.b16 %v6212
    %v6858 = vunpack.c.l.b16 %v6213
    %v6859 = vunpack.c.h.b16 %v6213
    %v6860 = vunpack.c.l.b16 %v6214
    %v6861 = vunpack.c.h.b16 %v6214
    %v6862 = vunpack.c.l.b16 %v6215
    %v6863 = vunpack.c.h.b16 %v6215
    %v6864 = vunpack.c.l.b16 %v6216
    %v6865 = vunpack.c.h.b16 %v6216
    %v6866 = vunpack.c.l.b16 %v6217
    %v6867 = vunpack.c.h.b16 %v6217
    %v6868 = vunpack.c.l.b16 %v6218
    %v6869 = vunpack.c.h.b16 %v6218
    %v6870 = vunpack.c.l.b16 %v6219
    %v6871 = vunpack.c.h.b16 %v6219
    %v6872 = vunpack.c.l.b16 %v6220
    %v6873 = vunpack.c.h.b16 %v6220
    %v6874 = vunpack.c.l.b16 %v6221
    %v6875 = vunpack.c.h.b16 %v6221
    %v6876 = vunpack.c.l.b16 %v6222
    %v6877 = vunpack.c.h.b16 %v6222
    %v6878 = vunpack.c.l.b16 %v6223
    %v6879 = vunpack.c.h.b16 %v6223
    %v6880 = vunpack.c.l.b16 %v6224
    %v6881 = vunpack.c.h.b16 %v6224
    %v6882 = vunpack.c.l.b16 %v6225
    %v6883 = vunpack.c.h.b16 %v6225
    %v6884 = vunpack.c.l.b16 %v6226
    %v6885 = vunpack.c.h.b16 %v6226
    %v6886 = vunpack.c.l.b16 %v6227
    %v6887 = vunpack.c.h.b16 %v6227
    %v6888 = vunpack.c.l.b16 %v6228
    %v6889 = vunpack.c.h.b16 %v6228
    %v6890 = vunpack.c.l.b16 %v6229
    %v6891 = vunpack.c.h.b16 %v6229
    %v6892 = vunpack.c.l.b16 %v6230
    %v6893 = vunpack.c.h.b16 %v6230
    %v6894 = vunpack.c.l.b16 %v6231
    %v6895 = vunpack.c.h.b16 %v6231
    %v6896 = vunpack.c.l.b16 %v6232
    %v6897 = vunpack.c.h.b16 %v6232
    %v6898 = vunpack.c.l.b16 %v6233
    %v6899 = vunpack.c.h.b16 %v6233
    %v6900 = vunpack.c.l.b16 %v6234
    %v6901 = vunpack.c.h.b16 %v6234
    %v6902 = vunpack.c.l.b16 %v6235
    %v6903 = vunpack.c.h.b16 %v6235
    %v6904 = vunpack.c.l.b16 %v6236
    %v6905 = vunpack.c.h.b16 %v6236
    %v6906 = vunpack.c.l.b16 %v6237
    %v6907 = vunpack.c.h.b16 %v6237
    %v6908 = vunpack.c.l.b16 %v6238
    %v6909 = vunpack.c.h.b16 %v6238
    %v6910 = vunpack.c.l.b16 %v6239
    %v6911 = vunpack.c.h.b16 %v6239
    %v6912 = vunpack.c.l.b16 %v6240
    %v6913 = vunpack.c.h.b16 %v6240
    %v6914 = vunpack.c.l.b16 %v6241
    %v6915 = vunpack.c.h.b16 %v6241
    %v6916 = vunpack.c.l.b16 %v6242
    %v6917 = vunpack.c.h.b16 %v6242
    %v6918 = vunpack.c.l.b16 %v6243
    %v6919 = vunpack.c.h.b16 %v6243
    %v6920 = vunpack.c.l.b16 %v6244
    %v6921 = vunpack.c.h.b16 %v6244
    %v6922 = vunpack.c.l.b16 %v6245
    %v6923 = vunpack.c.h.b16 %v6245
    %v6924 = vunpack.c.l.b16 %v6246
    %v6925 = vunpack.c.h.b16 %v6246
    %v6926 = vunpack.c.l.b16 %v6247
    %v6927 = vunpack.c.h.b16 %v6247
    %v6928 = vunpack.c.l.b16 %v6248
    %v6929 = vunpack.c.h.b16 %v6248
    %v6930 = vunpack.c.l.b16 %v6249
    %v6931 = vunpack.c.h.b16 %v6249
    %v6932 = vunpack.c.l.b16 %v6250
    %v6933 = vunpack.c.h.b16 %v6250
    %v6934 = vunpack.c.l.b16 %v6251
    %v6935 = vunpack.c.h.b16 %v6251
    %v6936 = vunpack.c.l.b16 %v6252
    %v6937 = vunpack.c.h.b16 %v6252
    %v6938 = vunpack.c.l.b16 %v6253
    %v6939 = vunpack.c.h.b16 %v6253
    %v6940 = vunpack.c.l.b16 %v6254
    %v6941 = vunpack.c.h.b16 %v6254
    %v6942 = vunpack.c.l.b16 %v6255
    %v6943 = vunpack.c.h.b16 %v6255
    %v6944 = vunpack.c.l.b16 %v6256
    %v6945 = vunpack.c.h.b16 %v6256
    %v6946 = vunpack.c.l.b16 %v6257
    %v6947 = vunpack.c.h.b16 %v6257
    %v6948 = vunpack.c.l.b16 %v6258
    %v6949 = vunpack.c.h.b16 %v6258
    %v6950 = vunpack.c.l.b16 %v6259
    %v6951 = vunpack.c.h.b16 %v6259
    %v6952 = vunpack.c.l.b16 %v6260
    %v6953 = vunpack.c.h.b16 %v6260
    %v6954 = vunpack.c.l.b16 %v6261
    %v6955 = vunpack.c.h.b16 %v6261
    %v6956 = vunpack.c.l.b16 %v6262
    %v6957 = vunpack.c.h.b16 %v6262
    %v6958 = vunpack.c.l.b16 %v6263
    %v6959 = vunpack.c.h.b16 %v6263
    %v6960 = vunpack.c.l.b16 %v6264
    %v6961 = vunpack.c.h.b16 %v6264
    %v6962 = vunpack.c.l.b16 %v6265
    %v6963 = vunpack.c.h.b16 %v6265
    %v6964 = vunpack.c.l.b16 %v6266
    %v6965 = vunpack.c.h.b16 %v6266
    %v6966 = vunpack.c.l.b16 %v6267
    %v6967 = vunpack.c.h.b16 %v6267
    %v6968 = vunpack.c.l.b16 %v6268
    %v6969 = vunpack.c.h.b16 %v6268
    %v6970 = vunpack.c.l.b16 %v6269
    %v6971 = vunpack.c.h.b16 %v6269
    %v6972 = vunpack.c.l.b16 %v6270
    %v6973 = vunpack.c.h.b16 %v6270
    %v6974 = vunpack.c.l.b16 %v6271
    %v6975 = vunpack.c.h.b16 %v6271
    %v6976 = vunpack.c.l.b16 %v6272
    %v6977 = vunpack.c.h.b16 %v6272
    %v6978 = vunpack.c.l.b16 %v6273
    %v6979 = vunpack.c.h.b16 %v6273
    %v6980 = vunpack.c.l.b16 %v6274
    %v6981 = vunpack.c.h.b16 %v6274
    %v6982 = vunpack.c.l.b16 %v6275
    %v6983 = vunpack.c.h.b16 %v6275
    %v6984 = vunpack.c.l.b16 %v6276
    %v6985 = vunpack.c.h.b16 %v6276
    %v6986 = vunpack.c.l.b16 %v6277
    %v6987 = vunpack.c.h.b16 %v6277
    %v6988 = vunpack.c.l.b16 %v6278
    %v6989 = vunpack.c.h.b16 %v6278
    %v6990 = vunpack.c.l.b16 %v6279
    %v6991 = vunpack.c.h.b16 %v6279
    %v6992 = vunpack.c.l.b16 %v6280
    %v6993 = vunpack.c.h.b16 %v6280
    %v6994 = vunpack.c.l.b16 %v6281
    %v6995 = vunpack.c.h.b16 %v6281
    %v6996 = vunpack.c.l.b16 %v6282
    %v6997 = vunpack.c.h.b16 %v6282
    %v6998 = vunpack.c.l.b16 %v6283
    %v6999 = vunpack.c.h.b16 %v6283
    %v7000 = vunpack.c.l.b16 %v6284
    %v7001 = vunpack.c.h.b16 %v6284
    %v7002 = vunpack.c.l.b16 %v6285
    %v7003 = vunpack.c.h.b16 %v6285
    %v7004 = vunpack.c.l.b16 %v6286
    %v7005 = vunpack.c.h.b16 %v6286
    %v7006 = vunpack.c.l.b16 %v6287
    %v7007 = vunpack.c.h.b16 %v6287
    %v7008 = vunpack.c.l.b16 %v6288
    %v7009 = vunpack.c.h.b16 %v6288
    %v7010 = vunpack.c.l.b16 %v6289
    %v7011 = vunpack.c.h.b16 %v6289
    %v7012 = vunpack.c.l.b16 %v6290
    %v7013 = vunpack.c.h.b16 %v6290
    %v7014 = vunpack.c.l.b16 %v6291
    %v7015 = vunpack.c.h.b16 %v6291
    %v7016 = vunpack.c.l.b16 %v6292
    %v7017 = vunpack.c.h.b16 %v6292
    %v7018 = vunpack.c.l.b16 %v6293
    %v7019 = vunpack.c.h.b16 %v6293
    %v7020 = vunpack.c.l.b16 %v6294
    %v7021 = vunpack.c.h.b16 %v6294
    %v7022 = vunpack.c.l.b16 %v6295
    %v7023 = vunpack.c.h.b16 %v6295
    %v7024 = vunpack.c.l.b16 %v6296
    %v7025 = vunpack.c.h.b16 %v6296
    %v7026 = vunpack.c.l.b16 %v6297
    %v7027 = vunpack.c.h.b16 %v6297
    %v7028 = vunpack.c.l.b16 %v6298
    %v7029 = vunpack.c.h.b16 %v6298
    %v7030 = vunpack.c.l.b16 %v6299
    %v7031 = vunpack.c.h.b16 %v6299
    %v7032 = vunpack.c.l.b16 %v6300
    %v7033 = vunpack.c.h.b16 %v6300
    %v7034 = vunpack.c.l.b16 %v6301
    %v7035 = vunpack.c.h.b16 %v6301
    %v7036 = vunpack.c.l.b16 %v6302
    %v7037 = vunpack.c.h.b16 %v6302
    %v7038 = vunpack.c.l.b16 %v6303
    %v7039 = vunpack.c.h.b16 %v6303
    %v7040 = vunpack.c.l.b16 %v6304
    %v7041 = vunpack.c.h.b16 %v6304
    %v7042 = vunpack.c.l.b16 %v6305
    %v7043 = vunpack.c.h.b16 %v6305
    %v7044 = vunpack.c.l.b16 %v6306
    %v7045 = vunpack.c.h.b16 %v6306
    %v7046 = vunpack.c.l.b16 %v6307
    %v7047 = vunpack.c.h.b16 %v6307
    %v7048 = vunpack.c.l.b16 %v6308
    %v7049 = vunpack.c.h.b16 %v6308
    %v7050 = vunpack.c.l.b16 %v6309
    %v7051 = vunpack.c.h.b16 %v6309
    %v7052 = vunpack.c.l.b16 %v6310
    %v7053 = vunpack.c.h.b16 %v6310
    %v7054 = vunpack.c.l.b16 %v6311
    %v7055 = vunpack.c.h.b16 %v6311
    %v7056 = vunpack.c.l.b16 %v6312
    %v7057 = vunpack.c.h.b16 %v6312
    %v7058 = vunpack.c.l.b16 %v6313
    %v7059 = vunpack.c.h.b16 %v6313
    %v7060 = vunpack.c.l.b16 %v6314
    %v7061 = vunpack.c.h.b16 %v6314
    %v7062 = vunpack.c.l.b16 %v6315
    %v7063 = vunpack.c.h.b16 %v6315
    %v7064 = vunpack.c.l.b16 %v6316
    %v7065 = vunpack.c.h.b16 %v6316
    %v7066 = vunpack.c.l.b16 %v6317
    %v7067 = vunpack.c.h.b16 %v6317
    %v7068 = vunpack.c.l.b16 %v6318
    %v7069 = vunpack.c.h.b16 %v6318
    %v7070 = vunpack.c.l.b16 %v6319
    %v7071 = vunpack.c.h.b16 %v6319
    %v7072 = vunpack.c.l.b16 %v6320
    %v7073 = vunpack.c.h.b16 %v6320
    %v7074 = vunpack.c.l.b16 %v6321
    %v7075 = vunpack.c.h.b16 %v6321
    %v7076 = vunpack.c.l.b16 %v6322
    %v7077 = vunpack.c.h.b16 %v6322
    %v7078 = vunpack.c.l.b16 %v6323
    %v7079 = vunpack.c.h.b16 %v6323
    %v7080 = vunpack.c.l.b16 %v6324
    %v7081 = vunpack.c.h.b16 %v6324
    %v7082 = vunpack.c.l.b16 %v6325
    %v7083 = vunpack.c.h.b16 %v6325
    %v7084 = vunpack.c.l.b16 %v6326
    %v7085 = vunpack.c.h.b16 %v6326
    %v7086 = vunpack.c.l.b16 %v6327
    %v7087 = vunpack.c.h.b16 %v6327
    %v7088 = vunpack.c.l.b16 %v6328
    %v7089 = vunpack.c.h.b16 %v6328
    %v7090 = vunpack.c.l.b16 %v6329
    %v7091 = vunpack.c.h.b16 %v6329
    %v7092 = vunpack.c.l.b16 %v6330
    %v7093 = vunpack.c.h.b16 %v6330
    %v7094 = vunpack.c.l.b16 %v6331
    %v7095 = vunpack.c.h.b16 %v6331
    %v7096 = vunpack.c.l.b16 %v6332
    %v7097 = vunpack.c.h.b16 %v6332
    %v7098 = vunpack.c.l.b16 %v6333
    %v7099 = vunpack.c.h.b16 %v6333
    %v7100 = vunpack.c.l.b16 %v6334
    %v7101 = vunpack.c.h.b16 %v6334
    %v7102 = vunpack.c.l.b16 %v6335
    %v7103 = vunpack.c.h.b16 %v6335
    %v7104 = vunpack.c.l.b16 %v6336
    %v7105 = vunpack.c.h.b16 %v6336
    %v7106 = vunpack.c.l.b16 %v6337
    %v7107 = vunpack.c.h.b16 %v6337
    %v7108 = vunpack.c.l.b16 %v6338
    %v7109 = vunpack.c.h.b16 %v6338
    %v7110 = vunpack.c.l.b16 %v6339
    %v7111 = vunpack.c.h.b16 %v6339
    %v7112 = vunpack.c.l.b16 %v6340
    %v7113 = vunpack.c.h.b16 %v6340
    %v7114 = vunpack.c.l.b16 %v6341
    %v7115 = vunpack.c.h.b16 %v6341
    %v7116 = vunpack.c.l.b16 %v6342
    %v7117 = vunpack.c.h.b16 %v6342
    %v7118 = vunpack.c.l.b16 %v6343
    %v7119 = vunpack.c.h.b16 %v6343
    %v7120 = vunpack.c.l.b16 %v6344
    %v7121 = vunpack.c.h.b16 %v6344
    %v7122 = vunpack.c.l.b16 %v6345
    %v7123 = vunpack.c.h.b16 %v6345
    %v7124 = vunpack.c.l.b16 %v6346
    %v7125 = vunpack.c.h.b16 %v6346
    %v7126 = vunpack.c.l.b16 %v6347
    %v7127 = vunpack.c.h.b16 %v6347
    %v7128 = vunpack.c.l.b16 %v6348
    %v7129 = vunpack.c.h.b16 %v6348
    %v7130 = vunpack.c.l.b16 %v6349
    %v7131 = vunpack.c.h.b16 %v6349
    %v7132 = vunpack.c.l.b16 %v6350
    %v7133 = vunpack.c.h.b16 %v6350
    %v7134 = vunpack.c.l.b16 %v6351
    %v7135 = vunpack.c.h.b16 %v6351
    %v7136 = vunpack.c.l.b16 %v6352
    %v7137 = vunpack.c.h.b16 %v6352
    %v7138 = vunpack.c.l.b16 %v6353
    %v7139 = vunpack.c.h.b16 %v6353
    %v7140 = vunpack.c.l.b16 %v6354
    %v7141 = vunpack.c.h.b16 %v6354
    %v7142 = vunpack.c.l.b16 %v6355
    %v7143 = vunpack.c.h.b16 %v6355
    %v7144 = vunpack.c.l.b16 %v6356
    %v7145 = vunpack.c.h.b16 %v6356
    %v7146 = vunpack.c.l.b16 %v6357
    %v7147 = vunpack.c.h.b16 %v6357
    %v7148 = vunpack.c.l.b16 %v6358
    %v7149 = vunpack.c.h.b16 %v6358
    %v7150 = vunpack.c.l.b16 %v6359
    %v7151 = vunpack.c.h.b16 %v6359
    %v7152 = vunpack.c.l.b16 %v6360
    %v7153 = vunpack.c.h.b16 %v6360
    %v7154 = vunpack.c.l.b16 %v6361
    %v7155 = vunpack.c.h.b16 %v6361
    %v7156 = vunpack.c.l.b16 %v6362
    %v7157 = vunpack.c.h.b16 %v6362
    %v7158 = vunpack.c.l.b16 %v6363
    %v7159 = vunpack.c.h.b16 %v6363
    %v7160 = vunpack.c.l.b16 %v6364
    %v7161 = vunpack.c.h.b16 %v6364
    %v7162 = vunpack.c.l.b16 %v6365
    %v7163 = vunpack.c.h.b16 %v6365
    %v7164 = vunpack.c.l.b16 %v6366
    %v7165 = vunpack.c.h.b16 %v6366
    %v7166 = vunpack.c.l.b16 %v6367
    %v7167 = vunpack.c.h.b16 %v6367
    %v7168 = vunpack.c.l.b16 %v6368
    %v7169 = vunpack.c.h.b16 %v6368
    %v7170 = vunpack.c.l.b16 %v6369
    %v7171 = vunpack.c.h.b16 %v6369
    %v7172 = vunpack.c.l.b16 %v6370
    %v7173 = vunpack.c.h.b16 %v6370
    %v7174 = vunpack.c.l.b16 %v6371
    %v7175 = vunpack.c.h.b16 %v6371
    %v7176 = vunpack.c.l.b16 %v6372
    %v7177 = vunpack.c.h.b16 %v6372
    %v7178 = vunpack.c.l.b16 %v6373
    %v7179 = vunpack.c.h.b16 %v6373
    %v7180 = vunpack.c.l.b16 %v6374
    %v7181 = vunpack.c.h.b16 %v6374
    %v7182 = vunpack.c.l.b16 %v6375
    %v7183 = vunpack.c.h.b16 %v6375
    %v7184 = vunpack.c.l.b16 %v6376
    %v7185 = vunpack.c.h.b16 %v6376
    %v7186 = vunpack.c.l.b16 %v6377
    %v7187 = vunpack.c.h.b16 %v6377
    %v7188 = vunpack.c.l.b16 %v6378
    %v7189 = vunpack.c.h.b16 %v6378
    %v7190 = vunpack.c.l.b16 %v6379
    %v7191 = vunpack.c.h.b16 %v6379
    %v7192 = vunpack.c.l.b16 %v6380
    %v7193 = vunpack.c.h.b16 %v6380
    %v7194 = vunpack.c.l.b16 %v6381
    %v7195 = vunpack.c.h.b16 %v6381
    %v7196 = vunpack.c.l.b16 %v6382
    %v7197 = vunpack.c.h.b16 %v6382
    %v7198 = vunpack.c.l.b16 %v6383
    %v7199 = vunpack.c.h.b16 %v6383
    %v7200 = vunpack.c.l.b16 %v6384
    %v7201 = vunpack.c.h.b16 %v6384
    %v7202 = vunpack.c.l.b16 %v6385
    %v7203 = vunpack.c.h.b16 %v6385
    %v7204 = vunpack.c.l.b16 %v6386
    %v7205 = vunpack.c.h.b16 %v6386
    %v7206 = vunpack.c.l.b16 %v6387
    %v7207 = vunpack.c.h.b16 %v6387
    %v7208 = vunpack.c.l.b16 %v6388
    %v7209 = vunpack.c.h.b16 %v6388
    %v7210 = vunpack.c.l.b16 %v6389
    %v7211 = vunpack.c.h.b16 %v6389
    %v7212 = vunpack.c.l.b16 %v6390
    %v7213 = vunpack.c.h.b16 %v6390
    %v7214 = vunpack.c.l.b16 %v6391
    %v7215 = vunpack.c.h.b16 %v6391
    %v7216 = vunpack.c.l.b16 %v6392
    %v7217 = vunpack.c.h.b16 %v6392
    %v7218 = vunpack.c.l.b16 %v6393
    %v7219 = vunpack.c.h.b16 %v6393
    %v7220 = vunpack.c.l.b16 %v6394
    %v7221 = vunpack.c.h.b16 %v6394
    %v7222 = vunpack.c.l.b16 %v6395
    %v7223 = vunpack.c.h.b16 %v6395
    %v7224 = vunpack.c.l.b16 %v6396
    %v7225 = vunpack.c.h.b16 %v6396
    %v7226 = vunpack.c.l.b16 %v6397
    %v7227 = vunpack.c.h.b16 %v6397
    %v7228 = vunpack.c.l.b16 %v6398
    %v7229 = vunpack.c.h.b16 %v6398
    %v7230 = vunpack.c.l.b16 %v6399
    %v7231 = vunpack.c.h.b16 %v6399
    %v7232 = vunpack.c.l.b16 %v6400
    %v7233 = vunpack.c.h.b16 %v6400
    %v7234 = vunpack.c.l.b16 %v6401
    %v7235 = vunpack.c.h.b16 %v6401
    %v7236 = vunpack.c.l.b16 %v6402
    %v7237 = vunpack.c.h.b16 %v6402
    %v7238 = vunpack.c.l.b16 %v6403
    %v7239 = vunpack.c.h.b16 %v6403
    %v7240 = vunpack.c.l.b16 %v6404
    %v7241 = vunpack.c.h.b16 %v6404
    %v7242 = vunpack.c.l.b16 %v6405
    %v7243 = vunpack.c.h.b16 %v6405
    %v7244 = vunpack.c.l.b16 %v6406
    %v7245 = vunpack.c.h.b16 %v6406
    %v7246 = vunpack.c.l.b16 %v6407
    %v7247 = vunpack.c.h.b16 %v6407
    %v7248 = vunpack.c.l.b16 %v6408
    %v7249 = vunpack.c.h.b16 %v6408
    %v7250 = vunpack.c.l.b16 %v6409
    %v7251 = vunpack.c.h.b16 %v6409
    %v7252 = vunpack.c.l.b16 %v6410
    %v7253 = vunpack.c.h.b16 %v6410
    %v7254 = vunpack.c.l.b16 %v6411
    %v7255 = vunpack.c.h.b16 %v6411
    %v7256 = vunpack.c.l.b16 %v6412
    %v7257 = vunpack.c.h.b16 %v6412
    %v7258 = vunpack.c.l.b16 %v6413
    %v7259 = vunpack.c.h.b16 %v6413
    %v7260 = vunpack.c.l.b16 %v6414
    %v7261 = vunpack.c.h.b16 %v6414
    %v7262 = vunpack.c.l.b16 %v6415
    %v7263 = vunpack.c.h.b16 %v6415
    %v7264 = vunpack.c.l.b16 %v6416
    %v7265 = vunpack.c.h.b16 %v6416
    %v7266 = vunpack.c.l.b16 %v6417
    %v7267 = vunpack.c.h.b16 %v6417
    %v7268 = vunpack.c.l.b16 %v6418
    %v7269 = vunpack.c.h.b16 %v6418
    %v7270 = vunpack.c.l.b16 %v6419
    %v7271 = vunpack.c.h.b16 %v6419
    %v7272 = vunpack.c.l.b16 %v6420
    %v7273 = vunpack.c.h.b16 %v6420
    %v7274 = vunpack.c.l.b16 %v6421
    %v7275 = vunpack.c.h.b16 %v6421
    %v7276 = vunpack.c.l.b16 %v6422
    %v7277 = vunpack.c.h.b16 %v6422
    %v7278 = vunpack.c.l.b16 %v6423
    %v7279 = vunpack.c.h.b16 %v6423
    %v7280 = vunpack.c.l.b16 %v6424
    %v7281 = vunpack.c.h.b16 %v6424
    %v7282 = vunpack.c.l.b16 %v6425
    %v7283 = vunpack.c.h.b16 %v6425
    %v7284 = vunpack.c.l.b16 %v6426
    %v7285 = vunpack.c.h.b16 %v6426
    %v7286 = vunpack.c.l.b16 %v6427
    %v7287 = vunpack.c.h.b16 %v6427
    %v7288 = vunpack.c.l.b16 %v6428
    %v7289 = vunpack.c.h.b16 %v6428
    %v7290 = vunpack.c.l.b16 %v6429
    %v7291 = vunpack.c.h.b16 %v6429
    %v7292 = vunpack.c.l.b16 %v6430
    %v7293 = vunpack.c.h.b16 %v6430
    %v7294 = vunpack.c.l.b16 %v6431
    %v7295 = vunpack.c.h.b16 %v6431
    %v7296 = vunpack.c.l.b16 %v6432
    %v7297 = vunpack.c.h.b16 %v6432
    %v7298 = vunpack.c.l.b16 %v6433
    %v7299 = vunpack.c.h.b16 %v6433
    %v7300 = vunpack.c.l.b16 %v6434
    %v7301 = vunpack.c.h.b16 %v6434
    %v7302 = vunpack.c.l.b16 %v6435
    %v7303 = vunpack.c.h.b16 %v6435
    %v7304 = vunpack.c.l.b16 %v6436
    %v7305 = vunpack.c.h.b16 %v6436
    %v7306 = vunpack.c.l.b16 %v6437
    %v7307 = vunpack.c.h.b16 %v6437
    %v7308 = vunpack.c.l.b16 %v6438
    %v7309 = vunpack.c.h.b16 %v6438
    %v7310 = vunpack.c.l.b16 %v6439
    %v7311 = vunpack.c.h.b16 %v6439
    %v7312 = vunpack.c.l.b16 %v6440
    %v7313 = vunpack.c.h.b16 %v6440
    %v7314 = vunpack.c.l.b16 %v6441
    %v7315 = vunpack.c.h.b16 %v6441
    %v7316 = vunpack.c.l.b16 %v6442
    %v7317 = vunpack.c.h.b16 %v6442
    %v7318 = vunpack.c.l.b16 %v6443
    %v7319 = vunpack.c.h.b16 %v6443
    %v7320 = vunpack.c.l.b16 %v6444
    %v7321 = vunpack.c.h.b16 %v6444
    %v7322 = vunpack.c.l.b16 %v6445
    %v7323 = vunpack.c.h.b16 %v6445
    %v7324 = vunpack.c.l.b16 %v6446
    %v7325 = vunpack.c.h.b16 %v6446
    %v7326 = vunpack.c.l.b16 %v6447
    %v7327 = vunpack.c.h.b16 %v6447
    %v7328 = vunpack.c.l.b16 %v6448
    %v7329 = vunpack.c.h.b16 %v6448
    %v7330 = vunpack.c.l.b16 %v6449
    %v7331 = vunpack.c.h.b16 %v6449
    %v7332 = vunpack.c.l.b16 %v6450
    %v7333 = vunpack.c.h.b16 %v6450
    %v7334 = vunpack.c.l.b16 %v6451
    %v7335 = vunpack.c.h.b16 %v6451
    %v7336 = vunpack.c.l.b16 %v6452
    %v7337 = vunpack.c.h.b16 %v6452
    %v7338 = vunpack.c.l.b16 %v6453
    %v7339 = vunpack.c.h.b16 %v6453
    %v7340 = vunpack.c.l.b16 %v6454
    %v7341 = vunpack.c.h.b16 %v6454
    %v7342 = vunpack.c.l.b16 %v6455
    %v7343 = vunpack.c.h.b16 %v6455
    %v7344 = vunpack.c.l.b16 %v6456
    %v7345 = vunpack.c.h.b16 %v6456
    %v7346 = vunpack.c.l.b16 %v6457
    %v7347 = vunpack.c.h.b16 %v6457
    %v7348 = vunpack.c.l.b16 %v6458
    %v7349 = vunpack.c.h.b16 %v6458
    %v7350 = vunpack.c.l.b16 %v6459
    %v7351 = vunpack.c.h.b16 %v6459
    %v7352 = vunpack.c.l.b16 %v6460
    %v7353 = vunpack.c.h.b16 %v6460
    %v7354 = vunpack.c.l.b16 %v6461
    %v7355 = vunpack.c.h.b16 %v6461
    %v7356 = vunpack.c.l.b16 %v6462
    %v7357 = vunpack.c.h.b16 %v6462
    %v7358 = vunpack.c.l.b16 %v6463
    %v7359 = vunpack.c.h.b16 %v6463
    %v7360 = vpack.c.b16 %v6790, %v6784
    %v7361 = vpack.c.b16 %v6791, %v6785
    %v7362 = vpack.c.b16 %v6792, %v6786
    %v7363 = vpack.c.b16 %v6793, %v6787
    %v7364 = vpack.c.b16 %v6794, %v6788
    %v7365 = vpack.c.b16 %v6795, %v6789
    %v7366 = vpack.c.b16 %v6802, %v6796
    %v7367 = vpack.c.b16 %v6803, %v6797
    %v7368 = vpack.c.b16 %v6804, %v6798
    %v7369 = vpack.c.b16 %v6805, %v6799
    %v7370 = vpack.c.b16 %v6806, %v6800
    %v7371 = vpack.c.b16 %v6807, %v6801
    %v7372 = vpack.c.b16 %v6814, %v6808
    %v7373 = vpack.c.b16 %v6815, %v6809
    %v7374 = vpack.c.b16 %v6816, %v6810
    %v7375 = vpack.c.b16 %v6817, %v6811
    %v7376 = vpack.c.b16 %v6818, %v6812
    %v7377 = vpack.c.b16 %v6819, %v6813
    %v7378 = vpack.c.b16 %v6826, %v6820
    %v7379 = vpack.c.b16 %v6827, %v6821
    %v7380 = vpack.c.b16 %v6828, %v6822
    %v7381 = vpack.c.b16 %v6829, %v6823
    %v7382 = vpack.c.b16 %v6830, %v6824
    %v7383 = vpack.c.b16 %v6831, %v6825
    %v7384 = vpack.c.b16 %v6838, %v6832
    %v7385 = vpack.c.b16 %v6839, %v6833
    %v7386 = vpack.c.b16 %v6840, %v6834
    %v7387 = vpack.c.b16 %v6841, %v6835
    %v7388 = vpack.c.b16 %v6842, %v6836
    %v7389 = vpack.c.b16 %v6843, %v6837
    %v7390 = vpack.c.b16 %v6850, %v6844
    %v7391 = vpack.c.b16 %v6851, %v6845
    %v7392 = vpack.c.b16 %v6852, %v6846
    %v7393 = vpack.c.b16 %v6853, %v6847
    %v7394 = vpack.c.b16 %v6854, %v6848
    %v7395 = vpack.c.b16 %v6855, %v6849
    %v7396 = vpack.c.b16 %v6862, %v6856
    %v7397 = vpack.c.b16 %v6863, %v6857
    %v7398 = vpack.c.b16 %v6864, %v6858
    %v7399 = vpack.c.b16 %v6865, %v6859
    %v7400 = vpack.c.b16 %v6866, %v6860
    %v7401 = vpack.c.b16 %v6867, %v6861
    %v7402 = vpack.c.b16 %v6874, %v6868
    %v7403 = vpack.c.b16 %v6875, %v6869
    %v7404 = vpack.c.b16 %v6876, %v6870
    %v7405 = vpack.c.b16 %v6877, %v6871
    %v7406 = vpack.c.b16 %v6878, %v6872
    %v7407 = vpack.c.b16 %v6879, %v6873
    %v7408 = vpack.c.b16 %v6886, %v6880
    %v7409 = vpack.c.b16 %v6887, %v6881
    %v7410 = vpack.c.b16 %v6888, %v6882
    %v7411 = vpack.c.b16 %v6889, %v6883
    %v7412 = vpack.c.b16 %v6890, %v6884
    %v7413 = vpack.c.b16 %v6891, %v6885
    %v7414 = vpack.c.b16 %v6898, %v6892
    %v7415 = vpack.c.b16 %v6899, %v6893
    %v7416 = vpack.c.b16 %v6900, %v6894
    %v7417 = vpack.c.b16 %v6901, %v6895
    %v7418 = vpack.c.b16 %v6902, %v6896
    %v7419 = vpack.c.b16 %v6903, %v6897
    %v7420 = vpack.c.b16 %v6910, %v6904
    %v7421 = vpack.c.b16 %v6911, %v6905
    %v7422 = vpack.c.b16 %v6912, %v6906
    %v7423 = vpack.c.b16 %v6913, %v6907
    %v7424 = vpack.c.b16 %v6914, %v6908
    %v7425 = vpack.c.b16 %v6915, %v6909
    %v7426 = vpack.c.b16 %v6922, %v6916
    %v7427 = vpack.c.b16 %v6923, %v6917
    %v7428 = vpack.c.b16 %v6924, %v6918
    %v7429 = vpack.c.b16 %v6925, %v6919
    %v7430 = vpack.c.b16 %v6926, %v6920
    %v7431 = vpack.c.b16 %v6927, %v6921
    %v7432 = vpack.c.b16 %v6934, %v6928
    %v7433 = vpack.c.b16 %v6935, %v6929
    %v7434 = vpack.c.b16 %v6936, %v6930
    %v7435 = vpack.c.b16 %v6937, %v6931
    %v7436 = vpack.c.b16 %v6938, %v6932
    %v7437 = vpack.c.b16 %v6939, %v6933
    %v7438 = vpack.c.b16 %v6946, %v6940
    %v7439 = vpack.c.b16 %v6947, %v6941
    %v7440 = vpack.c.b16 %v6948, %v6942
    %v7441 = vpack.c.b16 %v6949, %v6943
    %v7442 = vpack.c.b16 %v6950, %v6944
    %v7443 = vpack.c.b16 %v6951, %v6945
    %v7444 = vpack.c.b16 %v6958, %v6952
    %v7445 = vpack.c.b16 %v6959, %v6953
    %v7446 = vpack.c.b16 %v6960, %v6954
    %v7447 = vpack.c.b16 %v6961, %v6955
    %v7448 = vpack.c.b16 %v6962, %v6956
    %v7449 = vpack.c.b16 %v6963, %v6957
    %v7450 = vpack.c.b16 %v6970, %v6964
    %v7451 = vpack.c.b16 %v6971, %v6965
    %v7452 = vpack.c.b16 %v6972, %v6966
    %v7453 = vpack.c.b16 %v6973, %v6967
    %v7454 = vpack.c.b16 %v6974, %v6968
    %v7455 = vpack.c.b16 %v6975, %v6969
    %v7456 = vpack.c.b16 %v6982, %v6976
    %v7457 = vpack.c.b16 %v6983, %v6977
    %v7458 = vpack.c.b16 %v6984, %v6978
    %v7459 = vpack.c.b16 %v6985, %v6979
    %v7460 = vpack.c.b16 %v6986, %v6980
    %v7461 = vpack.c.b16 %v6987, %v6981
    %v7462 = vpack.c.b16 %v6994, %v6988
    %v7463 = vpack.c.b16 %v6995, %v6989
    %v7464 = vpack.c.b16 %v6996, %v6990
    %v7465 = vpack.c.b16 %v6997, %v6991
    %v7466 = vpack.c.b16 %v6998, %v6992
    %v7467 = vpack.c.b16 %v6999, %v6993
    %v7468 = vpack.c.b16 %v7006, %v7000
    %v7469 = vpack.c.b16 %v7007, %v7001
    %v7470 = vpack.c.b16 %v7008, %v7002
    %v7471 = vpack.c.b16 %v7009, %v7003
    %v7472 = vpack.c.b16 %v7010, %v7004
    %v7473 = vpack.c.b16 %v7011, %v7005
    %v7474 = vpack.c.b16 %v7018, %v7012
    %v7475 = vpack.c.b16 %v7019, %v7013
    %v7476 = vpack.c.b16 %v7020, %v7014
    %v7477 = vpack.c.b16 %v7021, %v7015
    %v7478 = vpack.c.b16 %v7022, %v7016
    %v7479 = vpack.c.b16 %v7023, %v7017
    %v7480 = vpack.c.b16 %v7030, %v7024
    %v7481 = vpack.c.b16 %v7031, %v7025
    %v7482 = vpack.c.b16 %v7032, %v7026
    %v7483 = vpack.c.b16 %v7033, %v7027
    %v7484 = vpack.c.b16 %v7034, %v7028
    %v7485 = vpack.c.b16 %v7035, %v7029
    %v7486 = vpack.c.b16 %v7042, %v7036
    %v7487 = vpack.c.b16 %v7043, %v7037
    %v7488 = vpack.c.b16 %v7044, %v7038
    %v7489 = vpack.c.b16 %v7045, %v7039
    %v7490 = vpack.c.b16 %v7046, %v7040
    %v7491 = vpack.c.b16 %v7047, %v7041
    %v7492 = vpack.c.b16 %v7054, %v7048
    %v7493 = vpack.c.b16 %v7055, %v7049
    %v7494 = vpack.c.b16 %v7056, %v7050
    %v7495 = vpack.c.b16 %v7057, %v7051
    %v7496 = vpack.c.b16 %v7058, %v7052
    %v7497 = vpack.c.b16 %v7059, %v7053
    %v7498 = vpack.c.b16 %v7066, %v7060
    %v7499 = vpack.c.b16 %v7067, %v7061
    %v7500 = vpack.c.b16 %v7068, %v7062
    %v7501 = vpack.c.b16 %v7069, %v7063
    %v7502 = vpack.c.b16 %v7070, %v7064
    %v7503 = vpack.c.b16 %v7071, %v7065
    %v7504 = vpack.c.b16 %v7078, %v7072
    %v7505 = vpack.c.b16 %v7079, %v7073
    %v7506 = vpack.c.b16 %v7080, %v7074
    %v7507 = vpack.c.b16 %v7081, %v7075
    %v7508 = vpack.c.b16 %v7082, %v7076
    %v7509 = vpack.c.b16 %v7083, %v7077
    %v7510 = vpack.c.b16 %v7090, %v7084
    %v7511 = vpack.c.b16 %v7091, %v7085
    %v7512 = vpack.c.b16 %v7092, %v7086
    %v7513 = vpack.c.b16 %v7093, %v7087
    %v7514 = vpack.c.b16 %v7094, %v7088
    %v7515 = vpack.c.b16 %v7095, %v7089
    %v7516 = vpack.c.b16 %v7102, %v7096
    %v7517 = vpack.c.b16 %v7103, %v7097
    %v7518 = vpack.c.b16 %v7104, %v7098
    %v7519 = vpack.c.b16 %v7105, %v7099
    %v7520 = vpack.c.b16 %v7106, %v7100
    %v7521 = vpack.c.b16 %v7107, %v7101
    %v7522 = vpack.c.b16 %v7114, %v7108
    %v7523 = vpack.c.b16 %v7115, %v7109
    %v7524 = vpack.c.b16 %v7116, %v7110
    %v7525 = vpack.c.b16 %v7117, %v7111
    %v7526 = vpack.c.b16 %v7118, %v7112
    %v7527 = vpack.c.b16 %v7119, %v7113
    %v7528 = vpack.c.b16 %v7126, %v7120
    %v7529 = vpack.c.b16 %v7127, %v7121
    %v7530 = vpack.c.b16 %v7128, %v7122
    %v7531 = vpack.c.b16 %v7129, %v7123
    %v7532 = vpack.c.b16 %v7130, %v7124
    %v7533 = vpack.c.b16 %v7131, %v7125
    %v7534 = vpack.c.b16 %v7138, %v7132
    %v7535 = vpack.c.b16 %v7139, %v7133
    %v7536 = vpack.c.b16 %v7140, %v7134
    %v7537 = vpack.c.b16 %v7141, %v7135
    %v7538 = vpack.c.b16 %v7142, %v7136
    %v7539 = vpack.c.b16 %v7143, %v7137
    %v7540 = vpack.c.b16 %v7150, %v7144
    %v7541 = vpack.c.b16 %v7151, %v7145
    %v7542 = vpack.c.b16 %v7152, %v7146
    %v7543 = vpack.c.b16 %v7153, %v7147
    %v7544 = vpack.c.b16 %v7154, %v7148
    %v7545 = vpack.c.b16 %v7155, %v7149
    %v7546 = vpack.c.b16 %v7162, %v7156
    %v7547 = vpack.c.b16 %v7163, %v7157
    %v7548 = vpack.c.b16 %v7164, %v7158
    %v7549 = vpack.c.b16 %v7165, %v7159
    %v7550 = vpack.c.b16 %v7166, %v7160
    %v7551 = vpack.c.b16 %v7167, %v7161
    %v7552 = vpack.c.b16 %v7174, %v7168
    %v7553 = vpack.c.b16 %v7175, %v7169
    %v7554 = vpack.c.b16 %v7176, %v7170
    %v7555 = vpack.c.b16 %v7177, %v7171
    %v7556 = vpack.c.b16 %v7178, %v7172
    %v7557 = vpack.c.b16 %v7179, %v7173
    %v7558 = vpack.c.b16 %v7186, %v7180
    %v7559 = vpack.c.b16 %v7187, %v7181
    %v7560 = vpack.c.b16 %v7188, %v7182
    %v7561 = vpack.c.b16 %v7189, %v7183
    %v7562 = vpack.c.b16 %v7190, %v7184
    %v7563 = vpack.c.b16 %v7191, %v7185
    %v7564 = vpack.c.b16 %v7198, %v7192
    %v7565 = vpack.c.b16 %v7199, %v7193
    %v7566 = vpack.c.b16 %v7200, %v7194
    %v7567 = vpack.c.b16 %v7201, %v7195
    %v7568 = vpack.c.b16 %v7202, %v7196
    %v7569 = vpack.c.b16 %v7203, %v7197
    %v7570 = vpack.c.b16 %v7210, %v7204
    %v7571 = vpack.c.b16 %v7211, %v7205
    %v7572 = vpack.c.b16 %v7212, %v7206
    %v7573 = vpack.c.b16 %v7213, %v7207
    %v7574 = vpack.c.b16 %v7214, %v7208
    %v7575 = vpack.c.b16 %v7215, %v7209
    %v7576 = vpack.c.b16 %v7222, %v7216
    %v7577 = vpack.c.b16 %v7223, %v7217
    %v7578 = vpack.c.b16 %v7224, %v7218
    %v7579 = vpack.c.b16 %v7225, %v7219
    %v7580 = vpack.c.b16 %v7226, %v7220
    %v7581 = vpack.c.b16 %v7227, %v7221
    %v7582 = vpack.c.b16 %v7234, %v7228
    %v7583 = vpack.c.b16 %v7235, %v7229
    %v7584 = vpack.c.b16 %v7236, %v7230
    %v7585 = vpack.c.b16 %v7237, %v7231
    %v7586 = vpack.c.b16 %v7238, %v7232
    %v7587 = vpack.c.b16 %v7239, %v7233
    %v7588 = vpack.c.b16 %v7246, %v7240
    %v7589 = vpack.c.b16 %v7247, %v7241
    %v7590 = vpack.c.b16 %v7248, %v7242
    %v7591 = vpack.c.b16 %v7249, %v7243
    %v7592 = vpack.c.b16 %v7250, %v7244
    %v7593 = vpack.c.b16 %v7251, %v7245
    %v7594 = vpack.c.b16 %v7258, %v7252
    %v7595 = vpack.c.b16 %v7259, %v7253
    %v7596 = vpack.c.b16 %v7260, %v7254
    %v7597 = vpack.c.b16 %v7261, %v7255
    %v7598 = vpack.c.b16 %v7262, %v7256
    %v7599 = vpack.c.b16 %v7263, %v7257
    %v7600 = vpack.c.b16 %v7270, %v7264
    %v7601 = vpack.c.b16 %v7271, %v7265
    %v7602 = vpack.c.b16 %v7272, %v7266
    %v7603 = vpack.c.b16 %v7273, %v7267
    %v7604 = vpack.c.b16 %v7274, %v7268
    %v7605 = vpack.c.b16 %v7275, %v7269
    %v7606 = vpack.c.b16 %v7282, %v7276
    %v7607 = vpack.c.b16 %v7283, %v7277
    %v7608 = vpack.c.b16 %v7284, %v7278
    %v7609 = vpack.c.b16 %v7285, %v7279
    %v7610 = vpack.c.b16 %v7286, %v7280
    %v7611 = vpack.c.b16 %v7287, %v7281
    %v7612 = vpack.c.b16 %v7294, %v7288
    %v7613 = vpack.c.b16 %v7295, %v7289
    %v7614 = vpack.c.b16 %v7296, %v7290
    %v7615 = vpack.c.b16 %v7297, %v7291
    %v7616 = vpack.c.b16 %v7298, %v7292
    %v7617 = vpack.c.b16 %v7299, %v7293
    %v7618 = vpack.c.b16 %v7306, %v7300
    %v7619 = vpack.c.b16 %v7307, %v7301
    %v7620 = vpack.c.b16 %v7308, %v7302
    %v7621 = vpack.c.b16 %v7309, %v7303
    %v7622 = vpack.c.b16 %v7310, %v7304
    %v7623 = vpack.c.b16 %v7311, %v7305
    %v7624 = vpack.c.b16 %v7318, %v7312
    %v7625 = vpack.c.b16 %v7319, %v7313
    %v7626 = vpack.c.b16 %v7320, %v7314
    %v7627 = vpack.c.b16 %v7321, %v7315
    %v7628 = vpack.c.b16 %v7322, %v7316
    %v7629 = vpack.c.b16 %v7323, %v7317
    %v7630 = vpack.c.b16 %v7330, %v7324
    %v7631 = vpack.c.b16 %v7331, %v7325
    %v7632 = vpack.c.b16 %v7332, %v7326
    %v7633 = vpack.c.b16 %v7333, %v7327
    %v7634 = vpack.c.b16 %v7334, %v7328
    %v7635 = vpack.c.b16 %v7335, %v7329
    %v7636 = vpack.c.b16 %v7342, %v7336
    %v7637 = vpack.c.b16 %v7343, %v7337
    %v7638 = vpack.c.b16 %v7344, %v7338
    %v7639 = vpack.c.b16 %v7345, %v7339
    %v7640 = vpack.c.b16 %v7346, %v7340
    %v7641 = vpack.c.b16 %v7347, %v7341
    %v7642 = vpack.c.b16 %v7354, %v7348
    %v7643 = vpack.c.b16 %v7355, %v7349
    %v7644 = vpack.c.b16 %v7356, %v7350
    %v7645 = vpack.c.b16 %v7357, %v7351
    %v7646 = vpack.c.b16 %v7358, %v7352
    %v7647 = vpack.c.b16 %v7359, %v7353
    %7936 = vmatprep.subr.bf16.mxu0 %v7361
    %7937 = vmatpush1.bf16.msra.mxu0 %v7360
    %7938 = vmatprep.subr.bf16.mxu0 %v7367
    %7939 = vmatpush1.bf16.msra.mxu0 %v7366
    %7940 = vmatprep.subr.bf16.mxu0 %v7373
    %7941 = vmatpush1.bf16.msra.mxu0 %v7372
    %7942 = vmatprep.subr.bf16.mxu0 %v7379
    %7943 = vmatpush1.bf16.msra.mxu0 %v7378
    %7944 = vmatprep.subr.bf16.mxu0 %v7385
    %7945 = vmatpush1.bf16.msra.mxu0 %v7384
    %7946 = vmatprep.subr.bf16.mxu0 %v7391
    %7947 = vmatpush1.bf16.msra.mxu0 %v7390
    %7948 = vmatprep.subr.bf16.mxu0 %v7397
    %7949 = vmatpush1.bf16.msra.mxu0 %v7396
    %7950 = vmatprep.subr.bf16.mxu0 %v7403
    %7951 = vmatpush1.bf16.msra.mxu0 %v7402
    %7952 = vmatprep.subr.bf16.mxu0 %v7409
    %7953 = vmatpush1.bf16.msra.mxu0 %v7408
    %7954 = vmatprep.subr.bf16.mxu0 %v7415
    %7955 = vmatpush1.bf16.msra.mxu0 %v7414
    %7956 = vmatprep.subr.bf16.mxu0 %v7421
    %7957 = vmatpush1.bf16.msra.mxu0 %v7420
    %7958 = vmatprep.subr.bf16.mxu0 %v7427
    %7959 = vmatpush1.bf16.msra.mxu0 %v7426
    %7960 = vmatprep.subr.bf16.mxu0 %v7433
    %7961 = vmatpush1.bf16.msra.mxu0 %v7432
    %7962 = vmatprep.subr.bf16.mxu0 %v7439
    %7963 = vmatpush1.bf16.msra.mxu0 %v7438
    %7964 = vmatprep.subr.bf16.mxu0 %v7445
    %7965 = vmatpush1.bf16.msra.mxu0 %v7444
    %7966 = vmatprep.subr.bf16.mxu0 %v7451
    %7967 = vmatpush1.bf16.msra.mxu0 %v7450
    %7968 = vmatprep.mubr.bf16.mxu0 %v6171
    %7969 = vmatmul.mubr.bf16.gmra.mrb[0].mxu0 %v6170
    %v7970 = vpop.f32.mrb[0].mxu0
    %v7971 = vadd.f32 %v6469, %v7970
    %v7972 = vpop.f32.mrb[0].mxu0
    %v7973 = vadd.f32 %v6473, %v7972
    %v7974 = vpop.f32.mrb[0].mxu0
    %v7975 = vadd.f32 %v6469, %v7974
    %v7976 = vpop.f32.mrb[0].mxu0
    %v7977 = vadd.f32 %v6473, %v7976
    %7978 = vdwg.mxu0
    %7979 = vmatprep.subr.bf16.mxu0 %v7457
    %7980 = vmatpush1.bf16.msra.mxu0 %v7456
    %7981 = vmatprep.subr.bf16.mxu0 %v7463
    %7982 = vmatpush1.bf16.msra.mxu0 %v7462
    %7983 = vmatprep.subr.bf16.mxu0 %v7469
    %7984 = vmatpush1.bf16.msra.mxu0 %v7468
    %7985 = vmatprep.subr.bf16.mxu0 %v7475
    %7986 = vmatpush1.bf16.msra.mxu0 %v7474
    %7987 = vmatprep.subr.bf16.mxu0 %v7481
    %7988 = vmatpush1.bf16.msra.mxu0 %v7480
    %7989 = vmatprep.subr.bf16.mxu0 %v7487
    %7990 = vmatpush1.bf16.msra.mxu0 %v7486
    %7991 = vmatprep.subr.bf16.mxu0 %v7493
    %7992 = vmatpush1.bf16.msra.mxu0 %v7492
    %7993 = vmatprep.subr.bf16.mxu0 %v7499
    %7994 = vmatpush1.bf16.msra.mxu0 %v7498
    %7995 = vmatprep.subr.bf16.mxu0 %v7505
    %7996 = vmatpush1.bf16.msra.mxu0 %v7504
    %7997 = vmatprep.subr.bf16.mxu0 %v7511
    %7998 = vmatpush1.bf16.msra.mxu0 %v7510
    %7999 = vmatprep.subr.bf16.mxu0 %v7517
    %8000 = vmatpush1.bf16.msra.mxu0 %v7516
    %8001 = vmatprep.subr.bf16.mxu0 %v7523
    %8002 = vmatpush1.bf16.msra.mxu0 %v7522
    %8003 = vmatprep.subr.bf16.mxu0 %v7529
    %8004 = vmatpush1.bf16.msra.mxu0 %v7528
    %8005 = vmatprep.subr.bf16.mxu0 %v7535
    %8006 = vmatpush1.bf16.msra.mxu0 %v7534
    %8007 = vmatprep.subr.bf16.mxu0 %v7541
    %8008 = vmatpush1.bf16.msra.mxu0 %v7540
    %8009 = vmatprep.subr.bf16.mxu0 %v7547
    %8010 = vmatpush1.bf16.msra.mxu0 %v7546
    %8011 = vmatprep.mubr.bf16.mxu0 %v6173
    %8012 = vmatmul.mubr.bf16.gmra.mrb[0].mxu0 %v6172
    %v8013 = vpop.f32.mrb[0].mxu0
    %v8014 = vadd.f32 %v7971, %v8013
    %v8015 = vpop.f32.mrb[0].mxu0
    %v8016 = vadd.f32 %v7973, %v8015
    %v8017 = vpop.f32.mrb[0].mxu0
    %v8018 = vadd.f32 %v7975, %v8017
    %v8019 = vpop.f32.mrb[0].mxu0
    %v8020 = vadd.f32 %v7977, %v8019
    %8021 = vdwg.mxu0
    %8022 = vmatprep.subr.bf16.mxu0 %v7553
    %8023 = vmatpush1.bf16.msra.mxu0 %v7552
    %8024 = vmatprep.subr.bf16.mxu0 %v7559
    %8025 = vmatpush1.bf16.msra.mxu0 %v7558
    %8026 = vmatprep.subr.bf16.mxu0 %v7565
    %8027 = vmatpush1.bf16.msra.mxu0 %v7564
    %8028 = vmatprep.subr.bf16.mxu0 %v7571
    %8029 = vmatpush1.bf16.msra.mxu0 %v7570
    %8030 = vmatprep.subr.bf16.mxu0 %v7577
    %8031 = vmatpush1.bf16.msra.mxu0 %v7576
    %8032 = vmatprep.subr.bf16.mxu0 %v7583
    %8033 = vmatpush1.bf16.msra.mxu0 %v7582
    %8034 = vmatprep.subr.bf16.mxu0 %v7589
    %8035 = vmatpush1.bf16.msra.mxu0 %v7588
    %8036 = vmatprep.subr.bf16.mxu0 %v7595
    %8037 = vmatpush1.bf16.msra.mxu0 %v7594
    %8038 = vmatprep.subr.bf16.mxu0 %v7601
    %8039 = vmatpush1.bf16.msra.mxu0 %v7600
    %8040 = vmatprep.subr.bf16.mxu0 %v7607
    %8041 = vmatpush1.bf16.msra.mxu0 %v7606
    %8042 = vmatprep.subr.bf16.mxu0 %v7613
    %8043 = vmatpush1.bf16.msra.mxu0 %v7612
    %8044 = vmatprep.subr.bf16.mxu0 %v7619
    %8045 = vmatpush1.bf16.msra.mxu0 %v7618
    %8046 = vmatprep.subr.bf16.mxu0 %v7625
    %8047 = vmatpush1.bf16.msra.mxu0 %v7624
    %8048 = vmatprep.subr.bf16.mxu0 %v7631
    %8049 = vmatpush1.bf16.msra.mxu0 %v7630
    %8050 = vmatprep.subr.bf16.mxu0 %v7637
    %8051 = vmatpush1.bf16.msra.mxu0 %v7636
    %8052 = vmatprep.subr.bf16.mxu0 %v7643
    %8053 = vmatpush1.bf16.msra.mxu0 %v7642
    %8054 = vmatprep.mubr.bf16.mxu0 %v6175
    %8055 = vmatmul.mubr.bf16.gmra.mrb[0].mxu0 %v6174
    %v8056 = vpop.f32.mrb[0].mxu0
    %v8057 = vadd.f32 %v8014, %v8056
    %v8058 = vpop.f32.mrb[0].mxu0
    %v8059 = vadd.f32 %v8016, %v8058
    %v8060 = vpop.f32.mrb[0].mxu0
    %v8061 = vadd.f32 %v8018, %v8060
    %v8062 = vpop.f32.mrb[0].mxu0
    %v8063 = vadd.f32 %v8020, %v8062
    %8064 = vdwg.mxu0
    %8065 = vmatprep.subr.bf16.mxu0 %v7363
    %8066 = vmatpush1.bf16.msra.mxu0 %v7362
    %8067 = vmatprep.subr.bf16.mxu0 %v7369
    %8068 = vmatpush1.bf16.msra.mxu0 %v7368
    %8069 = vmatprep.subr.bf16.mxu0 %v7375
    %8070 = vmatpush1.bf16.msra.mxu0 %v7374
    %8071 = vmatprep.subr.bf16.mxu0 %v7381
    %8072 = vmatpush1.bf16.msra.mxu0 %v7380
    %8073 = vmatprep.subr.bf16.mxu0 %v7387
    %8074 = vmatpush1.bf16.msra.mxu0 %v7386
    %8075 = vmatprep.subr.bf16.mxu0 %v7393
    %8076 = vmatpush1.bf16.msra.mxu0 %v7392
    %8077 = vmatprep.subr.bf16.mxu0 %v7399
    %8078 = vmatpush1.bf16.msra.mxu0 %v7398
    %8079 = vmatprep.subr.bf16.mxu0 %v7405
    %8080 = vmatpush1.bf16.msra.mxu0 %v7404
    %8081 = vmatprep.subr.bf16.mxu0 %v7411
    %8082 = vmatpush1.bf16.msra.mxu0 %v7410
    %8083 = vmatprep.subr.bf16.mxu0 %v7417
    %8084 = vmatpush1.bf16.msra.mxu0 %v7416
    %8085 = vmatprep.subr.bf16.mxu0 %v7423
    %8086 = vmatpush1.bf16.msra.mxu0 %v7422
    %8087 = vmatprep.subr.bf16.mxu0 %v7429
    %8088 = vmatpush1.bf16.msra.mxu0 %v7428
    %8089 = vmatprep.subr.bf16.mxu0 %v7435
    %8090 = vmatpush1.bf16.msra.mxu0 %v7434
    %8091 = vmatprep.subr.bf16.mxu0 %v7441
    %8092 = vmatpush1.bf16.msra.mxu0 %v7440
    %8093 = vmatprep.subr.bf16.mxu0 %v7447
    %8094 = vmatpush1.bf16.msra.mxu0 %v7446
    %8095 = vmatprep.subr.bf16.mxu0 %v7453
    %8096 = vmatpush1.bf16.msra.mxu0 %v7452
    %8097 = vmatprep.mubr.bf16.mxu0 %v6171
    %8098 = vmatmul.mubr.bf16.gmra.mrb[0].mxu0 %v6170
    %v8099 = vpop.f32.mrb[0].mxu0
    %v8100 = vadd.f32 %v6477, %v8099
    %v8101 = vpop.f32.mrb[0].mxu0
    %v8102 = vadd.f32 %v6481, %v8101
    %v8103 = vpop.f32.mrb[0].mxu0
    %v8104 = vadd.f32 %v6477, %v8103
    %v8105 = vpop.f32.mrb[0].mxu0
    %v8106 = vadd.f32 %v6481, %v8105
    %8107 = vdwg.mxu0
    %8108 = vmatprep.subr.bf16.mxu0 %v7459
    %8109 = vmatpush1.bf16.msra.mxu0 %v7458
    %8110 = vmatprep.subr.bf16.mxu0 %v7465
    %8111 = vmatpush1.bf16.msra.mxu0 %v7464
    %8112 = vmatprep.subr.bf16.mxu0 %v7471
    %8113 = vmatpush1.bf16.msra.mxu0 %v7470
    %8114 = vmatprep.subr.bf16.mxu0 %v7477
    %8115 = vmatpush1.bf16.msra.mxu0 %v7476
    %8116 = vmatprep.subr.bf16.mxu0 %v7483
    %8117 = vmatpush1.bf16.msra.mxu0 %v7482
    %8118 = vmatprep.subr.bf16.mxu0 %v7489
    %8119 = vmatpush1.bf16.msra.mxu0 %v7488
    %8120 = vmatprep.subr.bf16.mxu0 %v7495
    %8121 = vmatpush1.bf16.msra.mxu0 %v7494
    %8122 = vmatprep.subr.bf16.mxu0 %v7501
    %8123 = vmatpush1.bf16.msra.mxu0 %v7500
    %8124 = vmatprep.subr.bf16.mxu0 %v7507
    %8125 = vmatpush1.bf16.msra.mxu0 %v7506
    %8126 = vmatprep.subr.bf16.mxu0 %v7513
    %8127 = vmatpush1.bf16.msra.mxu0 %v7512
    %8128 = vmatprep.subr.bf16.mxu0 %v7519
    %8129 = vmatpush1.bf16.msra.mxu0 %v7518
    %8130 = vmatprep.subr.bf16.mxu0 %v7525
    %8131 = vmatpush1.bf16.msra.mxu0 %v7524
    %8132 = vmatprep.subr.bf16.mxu0 %v7531
    %8133 = vmatpush1.bf16.msra.mxu0 %v7530
    %8134 = vmatprep.subr.bf16.mxu0 %v7537
    %8135 = vmatpush1.bf16.msra.mxu0 %v7536
    %8136 = vmatprep.subr.bf16.mxu0 %v7543
    %8137 = vmatpush1.bf16.msra.mxu0 %v7542
    %8138 = vmatprep.subr.bf16.mxu0 %v7549
    %8139 = vmatpush1.bf16.msra.mxu0 %v7548
    %8140 = vmatprep.mubr.bf16.mxu0 %v6173
    %8141 = vmatmul.mubr.bf16.gmra.mrb[0].mxu0 %v6172
    %v8142 = vpop.f32.mrb[0].mxu0
    %v8143 = vadd.f32 %v8100, %v8142
    %v8144 = vpop.f32.mrb[0].mxu0
    %v8145 = vadd.f32 %v8102, %v8144
    %v8146 = vpop.f32.mrb[0].mxu0
    %v8147 = vadd.f32 %v8104, %v8146
    %v8148 = vpop.f32.mrb[0].mxu0
    %v8149 = vadd.f32 %v8106, %v8148
    %8150 = vdwg.mxu0
    %8151 = vmatprep.subr.bf16.mxu0 %v7555
    %8152 = vmatpush1.bf16.msra.mxu0 %v7554
    %8153 = vmatprep.subr.bf16.mxu0 %v7561
    %8154 = vmatpush1.bf16.msra.mxu0 %v7560
    %8155 = vmatprep.subr.bf16.mxu0 %v7567
    %8156 = vmatpush1.bf16.msra.mxu0 %v7566
    %8157 = vmatprep.subr.bf16.mxu0 %v7573
    %8158 = vmatpush1.bf16.msra.mxu0 %v7572
    %8159 = vmatprep.subr.bf16.mxu0 %v7579
    %8160 = vmatpush1.bf16.msra.mxu0 %v7578
    %8161 = vmatprep.subr.bf16.mxu0 %v7585
    %8162 = vmatpush1.bf16.msra.mxu0 %v7584
    %8163 = vmatprep.subr.bf16.mxu0 %v7591
    %8164 = vmatpush1.bf16.msra.mxu0 %v7590
    %8165 = vmatprep.subr.bf16.mxu0 %v7597
    %8166 = vmatpush1.bf16.msra.mxu0 %v7596
    %8167 = vmatprep.subr.bf16.mxu0 %v7603
    %8168 = vmatpush1.bf16.msra.mxu0 %v7602
    %8169 = vmatprep.subr.bf16.mxu0 %v7609
    %8170 = vmatpush1.bf16.msra.mxu0 %v7608
    %8171 = vmatprep.subr.bf16.mxu0 %v7615
    %8172 = vmatpush1.bf16.msra.mxu0 %v7614
    %8173 = vmatprep.subr.bf16.mxu0 %v7621
    %8174 = vmatpush1.bf16.msra.mxu0 %v7620
    %8175 = vmatprep.subr.bf16.mxu0 %v7627
    %8176 = vmatpush1.bf16.msra.mxu0 %v7626
    %8177 = vmatprep.subr.bf16.mxu0 %v7633
    %8178 = vmatpush1.bf16.msra.mxu0 %v7632
    %8179 = vmatprep.subr.bf16.mxu0 %v7639
    %8180 = vmatpush1.bf16.msra.mxu0 %v7638
    %8181 = vmatprep.subr.bf16.mxu0 %v7645
    %8182 = vmatpush1.bf16.msra.mxu0 %v7644
    %8183 = vmatprep.mubr.bf16.mxu0 %v6175
    %8184 = vmatmul.mubr.bf16.gmra.mrb[0].mxu0 %v6174
    %v8185 = vpop.f32.mrb[0].mxu0
    %v8186 = vadd.f32 %v8143, %v8185
    %v8187 = vpop.f32.mrb[0].mxu0
    %v8188 = vadd.f32 %v8145, %v8187
    %v8189 = vpop.f32.mrb[0].mxu0
    %v8190 = vadd.f32 %v8147, %v8189
    %v8191 = vpop.f32.mrb[0].mxu0
    %v8192 = vadd.f32 %v8149, %v8191
    %8193 = vdwg.mxu0
    %8194 = vmatprep.subr.bf16.mxu0 %v7365
    %8195 = vmatpush1.bf16.msra.mxu0 %v7364
    %8196 = vmatprep.subr.bf16.mxu0 %v7371
    %8197 = vmatpush1.bf16.msra.mxu0 %v7370
    %8198 = vmatprep.subr.bf16.mxu0 %v7377
    %8199 = vmatpush1.bf16.msra.mxu0 %v7376
    %8200 = vmatprep.subr.bf16.mxu0 %v7383
    %8201 = vmatpush1.bf16.msra.mxu0 %v7382
    %8202 = vmatprep.subr.bf16.mxu0 %v7389
    %8203 = vmatpush1.bf16.msra.mxu0 %v7388
    %8204 = vmatprep.subr.bf16.mxu0 %v7395
    %8205 = vmatpush1.bf16.msra.mxu0 %v7394
    %8206 = vmatprep.subr.bf16.mxu0 %v7401
    %8207 = vmatpush1.bf16.msra.mxu0 %v7400
    %8208 = vmatprep.subr.bf16.mxu0 %v7407
    %8209 = vmatpush1.bf16.msra.mxu0 %v7406
    %8210 = vmatprep.subr.bf16.mxu0 %v7413
    %8211 = vmatpush1.bf16.msra.mxu0 %v7412
    %8212 = vmatprep.subr.bf16.mxu0 %v7419
    %8213 = vmatpush1.bf16.msra.mxu0 %v7418
    %8214 = vmatprep.subr.bf16.mxu0 %v7425
    %8215 = vmatpush1.bf16.msra.mxu0 %v7424
    %8216 = vmatprep.subr.bf16.mxu0 %v7431
    %8217 = vmatpush1.bf16.msra.mxu0 %v7430
    %8218 = vmatprep.subr.bf16.mxu0 %v7437
    %8219 = vmatpush1.bf16.msra.mxu0 %v7436
    %8220 = vmatprep.subr.bf16.mxu0 %v7443
    %8221 = vmatpush1.bf16.msra.mxu0 %v7442
    %8222 = vmatprep.subr.bf16.mxu0 %v7449
    %8223 = vmatpush1.bf16.msra.mxu0 %v7448
    %8224 = vmatprep.subr.bf16.mxu0 %v7455
    %8225 = vmatpush1.bf16.msra.mxu0 %v7454
    %8226 = vmatprep.mubr.bf16.mxu0 %v6171
    %8227 = vmatmul.mubr.bf16.gmra.mrb[0].mxu0 %v6170
    %v8228 = vpop.f32.mrb[0].mxu0
    %v8229 = vadd.f32 %v6485, %v8228
    %v8230 = vpop.f32.mrb[0].mxu0
    %v8231 = vadd.f32 %v6489, %v8230
    %v8232 = vpop.f32.mrb[0].mxu0
    %v8233 = vadd.f32 %v6485, %v8232
    %v8234 = vpop.f32.mrb[0].mxu0
    %v8235 = vadd.f32 %v6489, %v8234
    %8236 = vdwg.mxu0
    %8237 = vmatprep.subr.bf16.mxu0 %v7461
    %8238 = vmatpush1.bf16.msra.mxu0 %v7460
    %8239 = vmatprep.subr.bf16.mxu0 %v7467
    %8240 = vmatpush1.bf16.msra.mxu0 %v7466
    %8241 = vmatprep.subr.bf16.mxu0 %v7473
    %8242 = vmatpush1.bf16.msra.mxu0 %v7472
    %8243 = vmatprep.subr.bf16.mxu0 %v7479
    %8244 = vmatpush1.bf16.msra.mxu0 %v7478
    %8245 = vmatprep.subr.bf16.mxu0 %v7485
    %8246 = vmatpush1.bf16.msra.mxu0 %v7484
    %8247 = vmatprep.subr.bf16.mxu0 %v7491
    %8248 = vmatpush1.bf16.msra.mxu0 %v7490
    %8249 = vmatprep.subr.bf16.mxu0 %v7497
    %8250 = vmatpush1.bf16.msra.mxu0 %v7496
    %8251 = vmatprep.subr.bf16.mxu0 %v7503
    %8252 = vmatpush1.bf16.msra.mxu0 %v7502
    %8253 = vmatprep.subr.bf16.mxu0 %v7509
    %8254 = vmatpush1.bf16.msra.mxu0 %v7508
    %8255 = vmatprep.subr.bf16.mxu0 %v7515
    %8256 = vmatpush1.bf16.msra.mxu0 %v7514
    %8257 = vmatprep.subr.bf16.mxu0 %v7521
    %8258 = vmatpush1.bf16.msra.mxu0 %v7520
    %8259 = vmatprep.subr.bf16.mxu0 %v7527
    %8260 = vmatpush1.bf16.msra.mxu0 %v7526
    %8261 = vmatprep.subr.bf16.mxu0 %v7533
    %8262 = vmatpush1.bf16.msra.mxu0 %v7532
    %8263 = vmatprep.subr.bf16.mxu0 %v7539
    %8264 = vmatpush1.bf16.msra.mxu0 %v7538
    %8265 = vmatprep.subr.bf16.mxu0 %v7545
    %8266 = vmatpush1.bf16.msra.mxu0 %v7544
    %8267 = vmatprep.subr.bf16.mxu0 %v7551
    %8268 = vmatpush1.bf16.msra.mxu0 %v7550
    %8269 = vmatprep.mubr.bf16.mxu0 %v6173
    %8270 = vmatmul.mubr.bf16.gmra.mrb[0].mxu0 %v6172
    %v8271 = vpop.f32.mrb[0].mxu0
    %v8272 = vadd.f32 %v8229, %v8271
    %v8273 = vpop.f32.mrb[0].mxu0
    %v8274 = vadd.f32 %v8231, %v8273
    %v8275 = vpop.f32.mrb[0].mxu0
    %v8276 = vadd.f32 %v8233, %v8275
    %v8277 = vpop.f32.mrb[0].mxu0
    %v8278 = vadd.f32 %v8235, %v8277
    %8279 = vdwg.mxu0
    %8280 = vmatprep.subr.bf16.mxu0 %v7557
    %8281 = vmatpush1.bf16.msra.mxu0 %v7556
    %8282 = vmatprep.subr.bf16.mxu0 %v7563
    %8283 = vmatpush1.bf16.msra.mxu0 %v7562
    %8284 = vmatprep.subr.bf16.mxu0 %v7569
    %8285 = vmatpush1.bf16.msra.mxu0 %v7568
    %8286 = vmatprep.subr.bf16.mxu0 %v7575
    %8287 = vmatpush1.bf16.msra.mxu0 %v7574
    %8288 = vmatprep.subr.bf16.mxu0 %v7581
    %8289 = vmatpush1.bf16.msra.mxu0 %v7580
    %8290 = vmatprep.subr.bf16.mxu0 %v7587
    %8291 = vmatpush1.bf16.msra.mxu0 %v7586
    %8292 = vmatprep.subr.bf16.mxu0 %v7593
    %8293 = vmatpush1.bf16.msra.mxu0 %v7592
    %8294 = vmatprep.subr.bf16.mxu0 %v7599
    %8295 = vmatpush1.bf16.msra.mxu0 %v7598
    %8296 = vmatprep.subr.bf16.mxu0 %v7605
    %8297 = vmatpush1.bf16.msra.mxu0 %v7604
    %8298 = vmatprep.subr.bf16.mxu0 %v7611
    %8299 = vmatpush1.bf16.msra.mxu0 %v7610
    %8300 = vmatprep.subr.bf16.mxu0 %v7617
    %8301 = vmatpush1.bf16.msra.mxu0 %v7616
    %8302 = vmatprep.subr.bf16.mxu0 %v7623
    %8303 = vmatpush1.bf16.msra.mxu0 %v7622
    %8304 = vmatprep.subr.bf16.mxu0 %v7629
    %8305 = vmatpush1.bf16.msra.mxu0 %v7628
    %8306 = vmatprep.subr.bf16.mxu0 %v7635
    %8307 = vmatpush1.bf16.msra.mxu0 %v7634
    %8308 = vmatprep.subr.bf16.mxu0 %v7641
    %8309 = vmatpush1.bf16.msra.mxu0 %v7640
    %8310 = vmatprep.subr.bf16.mxu0 %v7647
    %8311 = vmatpush1.bf16.msra.mxu0 %v7646
    %8312 = vmatprep.mubr.bf16.mxu0 %v6175
    %8313 = vmatmul.mubr.bf16.gmra.mrb[0].mxu0 %v6174
    %v8314 = vpop.f32.mrb[0].mxu0
    %v8315 = vadd.f32 %v8272, %v8314
    %v8316 = vpop.f32.mrb[0].mxu0
    %v8317 = vadd.f32 %v8274, %v8316
    %v8318 = vpop.f32.mrb[0].mxu0
    %v8319 = vadd.f32 %v8276, %v8318
    %v8320 = vpop.f32.mrb[0].mxu0
    %v8321 = vadd.f32 %v8278, %v8320
    %8322 = vdwg.mxu0
    %8323 = vst [vmem:[#allocation14] sm:$0xff] %v8057
    %8324 = vst [vmem:[#allocation14 + $0x8] sm:$0xff] %v8059
    %8325 = vst [vmem:[#allocation14 + $0x10] sm:$0xff] %v8186
    %8326 = vst [vmem:[#allocation14 + $0x18] sm:$0xff] %v8188
    %8327 = vst [vmem:[#allocation14 + $0x20] sm:$0xff] %v8315
    %8328 = vst [vmem:[#allocation14 + $0x28] sm:$0xff] %v8317
    %8329 = vst [vmem:[#allocation14 + $0x30] sm:$0xff] %v8061
    %8330 = vst [vmem:[#allocation14 + $0x38] sm:$0xff] %v8063
    %8331 = vst [vmem:[#allocation14 + $0x40] sm:$0xff] %v8190
    %8332 = vst [vmem:[#allocation14 + $0x48] sm:$0xff] %v8192
    %8333 = vst [vmem:[#allocation14 + $0x50] sm:$0xff] %v8319
    %8334 = vst [vmem:[#allocation14 + $0x58] sm:$0xff] %v8321
    // Predicated region
    $region62: #{tpu_custom_call.1} parent=1 // pred_check
      _
    $region63: #{tpu_custom_call.1} parent=1 // pred_check_branch
      %8336 = sbr.rel (0) target = $region65
    $region64: #{tpu_custom_call.1} parent=1 // pred_region
      %s8338 = ssub.s32 1536, 1536
      %8339 = vsyncadd [#allocation4], %s8338
      %s8340 = sshll.u32 [#allocation14], 4
      %s8341 = int_to_ptr.vmem [resolvable:$true] %s8340
      %8346 = dma.vmem_to_hbm [thread:$0]  %s8341, 1536, %s8, [#allocation4], 768, 768, 48
    $region65: #{tpu_custom_call.1} parent=1 // pred_fallthru
      _
    // Predicated region
    $region66: #{tpu_custom_call.1} parent=1 // pred_check
      _
    $region67: #{tpu_custom_call.1} parent=1 // pred_check_branch
      %8348 = sbr.rel (0) target = $region69
    $region68: #{tpu_custom_call.1} parent=1 // pred_region
      %8349 = dma.done [#allocation4], 1536
    $region69: #{tpu_custom_call.1} parent=1 // pred_fallthru
      _
    %8350 = vsyncpa [#allocation3], 1
    %8351 = vsyncpa [#allocation6], 1
    %8352 = vsyncpa [#allocation9], 1
    %8353 = vsyncpa [#allocation12], 1
    %8354 = vsyncpa [#allocation4], 1

</llo_original>
